<compile_context>
chip_gen: v6e
topology: v6e:2x2x1
jax: 0.10.0
libtpu: 0.0.40
codegen_flags: <defaults>
</compile_context>

<pallas_src>
import jax
import jax.numpy as jnp
from jax.experimental import pallas as pl
from jax.experimental.pallas import tpu as pltpu

C = 128      # every layer is 128 -> 128 channels (== TPU lane width)
SUB = 8      # f32 sublane alignment used for row (M) padding


def _round_up(x, m):
    return (x + m - 1) // m * m


def _conv_out(n, k, s, p):
    # Same arithmetic as PyTorch Conv2d / lax.conv.
    return (n + 2 * p - k) // s + 1


# ---------------------------------------------------------------------------
# Wrapper: NCHW in -> 4 NCHW feature maps out (matches the PyTorch module).
# ---------------------------------------------------------------------------
def auxiliary_convolutions(x_nchw, params):
    N, cin, H, W = x_nchw.shape
    assert cin == C

    # Static spatial sizes through the chain.
    h8, w8 = _conv_out(H, 1, 2, 1), _conv_out(W, 1, 2, 1)        # conv8_2
    h9, w9 = _conv_out(h8, 3, 2, 0), _conv_out(w8, 3, 2, 0)      # conv9_2
    h10, w10 = _conv_out(h9, 3, 2, 0), _conv_out(w9, 3, 2, 0)    # conv10_2
    h11, w11 = _conv_out(h10, 3, 1, 0), _conv_out(w10, 3, 1, 0)  # conv11_2

    m_in, m8, m9, m10, m11 = H * W, h8 * w8, h9 * w9, h10 * w10, h11 * w11
    m_in_p = _round_up(m_in, SUB)
    m8_p, m9_p, m10_p, m11_p = (_round_up(m, SUB) for m in (m8, m9, m10, m11))

    # ---------------- the single fused kernel (one batch image per step) ----
    def kernel(x_ref,
               w81_ref, b81_ref, w82_ref, b82_ref,
               w91_ref, b91_ref, w92_ref, b92_ref,
               w101_ref, b101_ref, w102_ref, b102_ref,
               w111_ref, b111_ref, w112_ref, b112_ref,
               o8_ref, o9_ref, o10_ref, o11_ref,
               a81_s, g8_s, a91_s, col9_s, a101_s, col10_s, a111_s, col11_s):

        def mm(a, b):
            return jnp.dot(a, b, preferred_element_type=jnp.float32)

        def conv1x1_relu(x, w_ref, b_ref):
            # 1x1 stride-1 conv: one MXU matmul + f32 bias/ReLU epilogue.
            return jnp.maximum(mm(x, w_ref[...]) + b_ref[...], 0.0)

        def im2col_3x3(src_ref, col_ref, h_out, w_out, w_in, stride):
            # One strided row-read per (output row, tap) into a lane-aligned
            # 128-wide column block of the im2col buffer.  All indices static.
            col_ref[...] = jnp.zeros_like(col_ref)   # keep alignment-pad rows clean
            for ho in range(h_out):
                for dy in range(3):
                    for dx in range(3):
                        t = dy * 3 + dx
                        src = (stride * ho + dy) * w_in + dx
                        sl = pl.ds(src, w_out) if stride == 1 else \
                             pl.ds(src, w_out, stride=stride)
                        col_ref[ho * w_out:(ho + 1) * w_out,
                                t * C:(t + 1) * C] = src_ref[sl, :]

        def conv3x3_relu(src_ref, col_ref, w_ref, b_ref, h_out, w_out, w_in, stride):
            im2col_3x3(src_ref, col_ref, h_out, w_out, w_in, stride)
            return jnp.maximum(mm(col_ref[...], w_ref[...]) + b_ref[...], 0.0)

        # ---- conv8_1: 1x1, stride 1 ------------------------------------
        a81_s[...] = conv1x1_relu(x_ref[...], w81_ref, b81_ref)

        # ---- conv8_2: 1x1, stride 2, pad 1  (H,W) -> (h8,w8) ------------
        # Gather the strided interior pixels of conv8_1's output.  Rows that
        # correspond to the zero padding (or to alignment padding) stay zero,
        # so bias+ReLU reproduces zero-padding exactly: relu(b).
        g8_s[...] = jnp.zeros_like(g8_s)
        ho_lo, ho_hi = 1, min(h8 - 1, H // 2)    # output rows hitting real input
        wo_lo, wo_hi = 1, min(w8 - 1, W // 2)
        n_w = wo_hi - wo_lo + 1
        for ho in range(ho_lo, ho_hi + 1):
            hi = 2 * ho - 1
            src = hi * W + (2 * wo_lo - 1)
            g8_s[ho * w8 + wo_lo: ho * w8 + wo_lo + n_w, :] = (
                a81_s[pl.ds(src, n_w, stride=2), :])
        f8 = conv1x1_relu(g8_s[...], w82_ref, b82_ref)
        o8_ref[...] = f8                                    # aligned full-tile store

        # ---- conv9_1 (1x1) + conv9_2 (3x3, s2, valid) -------------------
        a91_s[...] = conv1x1_relu(f8, w91_ref, b91_ref)
        f9 = conv3x3_relu(a91_s, col9_s, w92_ref, b92_ref, h9, w9, w8, 2)
        o9_ref[...] = f9

        # ---- conv10_1 (1x1) + conv10_2 (3x3, s2, valid) -----------------
        a101_s[...] = conv1x1_relu(f9, w101_ref, b101_ref)
        f10 = conv3x3_relu(a101_s, col10_s, w102_ref, b102_ref, h10, w10, w9, 2)
        o10_ref[...] = f10

        # ---- conv11_1 (1x1) + conv11_2 (3x3, s1, valid) -----------------
        a111_s[...] = conv1x1_relu(f10, w111_ref, b111_ref)
        f11 = conv3x3_relu(a111_s, col11_s, w112_ref, b112_ref, h11, w11, w10, 1)
        o11_ref[...] = f11

    # ---------------- host-side parameter / input preparation ---------------
    def p1x1(name):
        w, b = params[name]                      # (1,1,C,C), (C,)
        return w.reshape(C, C), b.reshape(1, C)

    def p3x3(name):
        w, b = params[name]                      # (3,3,C,C), (C,)
        kh, kw, _, _ = w.shape
        return w.reshape(kh * kw * C, C), b.reshape(1, C)   # taps folded into K

    w81, b81 = p1x1("conv8_1")
    w82, b82 = p1x1("conv8_2")
    w91, b91 = p1x1("conv9_1")
    w92, b92 = p3x3("conv9_2")
    w101, b101 = p1x1("conv10_1")
    w102, b102 = p3x3("conv10_2")
    w111, b111 = p1x1("conv11_1")
    w112, b112 = p3x3("conv11_2")

    # NCHW -> lane-dense (N, rows, 128), rows zero-padded to a sublane multiple.
    x_rows = jnp.transpose(x_nchw, (0, 2, 3, 1)).reshape(N, m_in, C)
    x_rows = jnp.pad(x_rows, ((0, 0), (0, m_in_p - m_in), (0, 0)))

    per_batch = lambda rows: pl.BlockSpec((None, rows, C), lambda b: (b, 0, 0))
    const2 = lambda shape: pl.BlockSpec(shape, lambda b: (0, 0))

    in_specs = [
        per_batch(m_in_p),                                # x
        const2((C, C)), const2((1, C)),                   # conv8_1
        const2((C, C)), const2((1, C)),                   # conv8_2
        const2((C, C)), const2((1, C)),                   # conv9_1
        const2((9 * C, C)), const2((1, C)),               # conv9_2
        const2((C, C)), const2((1, C)),                   # conv10_1
        const2((9 * C, C)), const2((1, C)),               # conv10_2
        const2((C, C)), const2((1, C)),                   # conv11_1
        const2((9 * C, C)), const2((1, C)),               # conv11_2
    ]
    out_specs = (per_batch(m8_p), per_batch(m9_p), per_batch(m10_p), per_batch(m11_p))
    out_shape = (
        jax.ShapeDtypeStruct((N, m8_p, C), jnp.float32),
        jax.ShapeDtypeStruct((N, m9_p, C), jnp.float32),
        jax.ShapeDtypeStruct((N, m10_p, C), jnp.float32),
        jax.ShapeDtypeStruct((N, m11_p, C), jnp.float32),
    )
    scratch_shapes = [
        pltpu.VMEM((m_in_p, C), jnp.float32),      # a81_s : conv8_1 output
        pltpu.VMEM((m8_p, C), jnp.float32),        # g8_s  : gathered conv8_2 input
        pltpu.VMEM((m8_p, C), jnp.float32),        # a91_s : conv9_1 output
        pltpu.VMEM((m9_p, 9 * C), jnp.float32),    # col9_s : conv9_2 im2col
        pltpu.VMEM((m9_p, C), jnp.float32),        # a101_s: conv10_1 output
        pltpu.VMEM((m10_p, 9 * C), jnp.float32),   # col10_s
        pltpu.VMEM((m10_p, C), jnp.float32),       # a111_s: conv11_1 output
        pltpu.VMEM((m11_p, 9 * C), jnp.float32),   # col11_s
    ]

    f8p, f9p, f10p, f11p = pl.pallas_call(
        kernel,
        out_shape=out_shape,
        grid_spec=pltpu.PrefetchScalarGridSpec(
            num_scalar_prefetch=0,
            grid=(N,),
            in_specs=in_specs,
            out_specs=out_specs,
            scratch_shapes=scratch_shapes,
        ),
        compiler_params=pltpu.CompilerParams(
            dimension_semantics=("parallel",),     # batch -> 2 TensorCores on v7x
            vmem_limit_bytes=32 * 1024 * 1024,     # ~6 MiB actually used
        ),
    )(x_rows,
      w81, b81, w82, b82, w91, b91, w92, b92,
      w101, b101, w102, b102, w111, b111, w112, b112)

    # Drop alignment-pad rows (cheap XLA-side slice) and restore NCHW.
    def to_nchw(rows, m, h, w):
        return jnp.transpose(rows[:, :m, :].reshape(N, h, w, C), (0, 3, 1, 2))

    return (to_nchw(f8p, m8, h8, w8), to_nchw(f9p, m9, h9, w9),
            to_nchw(f10p, m10, h10, w10), to_nchw(f11p, m11, h11, w11))


# ---------------------------------------------------------------------------
# Deterministic synthetic parameters (weights stored as (kh, kw, Cin, Cout)).
# ---------------------------------------------------------------------------
def init_params(key):
    specs = {
        "conv8_1": (1, 1), "conv8_2": (1, 1),
        "conv9_1": (1, 1), "conv9_2": (3, 3),
        "conv10_1": (1, 1), "conv10_2": (3, 3),
        "conv11_1": (1, 1), "conv11_2": (3, 3),
    }
    params = {}
    for name, (kh, kw) in specs.items():
        key, k_w, k_b = jax.random.split(key, 3)
        fan_in = kh * kw * C
        w = jax.random.normal(k_w, (kh, kw, C, C), jnp.float32) * jnp.sqrt(2.0 / fan_in)
        b = jax.random.normal(k_b, (C,), jnp.float32) * 0.01
        params[name] = (w, b)
    return params


# ---------------------------------------------------------------------------
# Pure-JAX reference (lax.conv, HIGHEST precision) for the correctness check.
# ---------------------------------------------------------------------------
def _conv_ref(x, w, b, stride, padding):
    y = jax.lax.conv_general_dilated(
        x, w, window_strides=(stride, stride),
        padding=((padding, padding), (padding, padding)),
        dimension_numbers=("NHWC", "HWIO", "NHWC"),
        precision=jax.lax.Precision.HIGHEST)
    return jnp.maximum(y + b, 0.0)


def reference_forward(x_nchw, params):
    x = jnp.transpose(x_nchw, (0, 2, 3, 1))
    out = _conv_ref(x, *params["conv8_1"], 1, 0)
    out = _conv_ref(out, *params["conv8_2"], 2, 1)
    f8 = out
    out = _conv_ref(out, *params["conv9_1"], 1, 0)
    out = _conv_ref(out, *params["conv9_2"], 2, 0)
    f9 = out
    out = _conv_ref(out, *params["conv10_1"], 1, 0)
    out = _conv_ref(out, *params["conv10_2"], 2, 0)
    f10 = out
    out = _conv_ref(out, *params["conv11_1"], 1, 0)
    f11 = _conv_ref(out, *params["conv11_2"], 1, 0)
    to_nchw = lambda t: jnp.transpose(t, (0, 3, 1, 2))
    return tuple(map(to_nchw, (f8, f9, f10, f11)))


if __name__ == "__main__":
    key = jax.random.PRNGKey(0)
    pkey, xkey = jax.random.split(key)
    params = init_params(pkey)

    # Channels fixed at 128 by the module; spatial 27 is the smallest size that
    # keeps every feature map non-empty (27 -> 15 -> 7 -> 3 -> 1 spatially).
    N, H, W = 2, 27, 27
    x = jax.random.normal(xkey, (N, C, H, W), jnp.float32)

    fwd = jax.jit(lambda inp: auxiliary_convolutions(inp, params))
    outs = jax.block_until_ready(fwd(x))

    refs = jax.block_until_ready(reference_forward(x, params))
    expected_shapes = [(N, C, 15, 15), (N, C, 7, 7), (N, C, 3, 3), (N, C, 1, 1)]
    for o, r, es in zip(outs, refs, expected_shapes):
        assert o.shape == es, (o.shape, es)
        max_err = float(jnp.max(jnp.abs(o - r)))
        assert jnp.allclose(o, r, rtol=1e-3, atol=1e-3), ("mismatch vs reference", max_err)

    print("KERNEL_OK")
</pallas_src>

<mosaic_0001>
module attributes {stable_mosaic.version = 11 : i64} {
  func.func @kernel(%arg0: i32, %arg1: memref<1x736x128xf32, #tpu.memory_space<vmem>>, %arg2: memref<128x128xf32, #tpu.memory_space<vmem>>, %arg3: memref<1x128xf32, #tpu.memory_space<vmem>>, %arg4: memref<128x128xf32, #tpu.memory_space<vmem>>, %arg5: memref<1x128xf32, #tpu.memory_space<vmem>>, %arg6: memref<128x128xf32, #tpu.memory_space<vmem>>, %arg7: memref<1x128xf32, #tpu.memory_space<vmem>>, %arg8: memref<1152x128xf32, #tpu.memory_space<vmem>>, %arg9: memref<1x128xf32, #tpu.memory_space<vmem>>, %arg10: memref<128x128xf32, #tpu.memory_space<vmem>>, %arg11: memref<1x128xf32, #tpu.memory_space<vmem>>, %arg12: memref<1152x128xf32, #tpu.memory_space<vmem>>, %arg13: memref<1x128xf32, #tpu.memory_space<vmem>>, %arg14: memref<128x128xf32, #tpu.memory_space<vmem>>, %arg15: memref<1x128xf32, #tpu.memory_space<vmem>>, %arg16: memref<1152x128xf32, #tpu.memory_space<vmem>>, %arg17: memref<1x128xf32, #tpu.memory_space<vmem>>, %arg18: memref<1x232x128xf32, #tpu.memory_space<vmem>>, %arg19: memref<1x56x128xf32, #tpu.memory_space<vmem>>, %arg20: memref<1x16x128xf32, #tpu.memory_space<vmem>>, %arg21: memref<1x8x128xf32, #tpu.memory_space<vmem>>, %arg22: memref<736x128xf32, #tpu.memory_space<vmem>>, %arg23: memref<232x128xf32, #tpu.memory_space<vmem>>, %arg24: memref<232x128xf32, #tpu.memory_space<vmem>>, %arg25: memref<56x1152xf32, #tpu.memory_space<vmem>>, %arg26: memref<56x128xf32, #tpu.memory_space<vmem>>, %arg27: memref<16x1152xf32, #tpu.memory_space<vmem>>, %arg28: memref<16x128xf32, #tpu.memory_space<vmem>>, %arg29: memref<8x1152xf32, #tpu.memory_space<vmem>>) attributes {dimension_semantics = [#tpu.dimension_semantics<parallel>], iteration_bounds = array<i64: 2>, scalar_prefetch = 0 : i64, scratch_operands = 8 : i64, tpu.core_type = #tpu.core_type<tc>, window_params = [{transform_indices = @transform_0, window_bounds = array<i64: 1, 736, 128>}, {pipeline_mode = #tpu.pipeline_mode<synchronous>, transform_indices = @transform_1, window_bounds = array<i64: 128, 128>}, {pipeline_mode = #tpu.pipeline_mode<synchronous>, transform_indices = @transform_2, window_bounds = array<i64: 1, 128>}, {pipeline_mode = #tpu.pipeline_mode<synchronous>, transform_indices = @transform_3, window_bounds = array<i64: 128, 128>}, {pipeline_mode = #tpu.pipeline_mode<synchronous>, transform_indices = @transform_4, window_bounds = array<i64: 1, 128>}, {pipeline_mode = #tpu.pipeline_mode<synchronous>, transform_indices = @transform_5, window_bounds = array<i64: 128, 128>}, {pipeline_mode = #tpu.pipeline_mode<synchronous>, transform_indices = @transform_6, window_bounds = array<i64: 1, 128>}, {pipeline_mode = #tpu.pipeline_mode<synchronous>, transform_indices = @transform_7, window_bounds = array<i64: 1152, 128>}, {pipeline_mode = #tpu.pipeline_mode<synchronous>, transform_indices = @transform_8, window_bounds = array<i64: 1, 128>}, {pipeline_mode = #tpu.pipeline_mode<synchronous>, transform_indices = @transform_9, window_bounds = array<i64: 128, 128>}, {pipeline_mode = #tpu.pipeline_mode<synchronous>, transform_indices = @transform_10, window_bounds = array<i64: 1, 128>}, {pipeline_mode = #tpu.pipeline_mode<synchronous>, transform_indices = @transform_11, window_bounds = array<i64: 1152, 128>}, {pipeline_mode = #tpu.pipeline_mode<synchronous>, transform_indices = @transform_12, window_bounds = array<i64: 1, 128>}, {pipeline_mode = #tpu.pipeline_mode<synchronous>, transform_indices = @transform_13, window_bounds = array<i64: 128, 128>}, {pipeline_mode = #tpu.pipeline_mode<synchronous>, transform_indices = @transform_14, window_bounds = array<i64: 1, 128>}, {pipeline_mode = #tpu.pipeline_mode<synchronous>, transform_indices = @transform_15, window_bounds = array<i64: 1152, 128>}, {pipeline_mode = #tpu.pipeline_mode<synchronous>, transform_indices = @transform_16, window_bounds = array<i64: 1, 128>}, {transform_indices = @transform_17, window_bounds = array<i64: 1, 232, 128>}, {transform_indices = @transform_18, window_bounds = array<i64: 1, 56, 128>}, {transform_indices = @transform_19, window_bounds = array<i64: 1, 16, 128>}, {transform_indices = @transform_20, window_bounds = array<i64: 1, 8, 128>}]} {
    %c0 = arith.constant 0 : index
    %c0_0 = arith.constant 0 : index
    %c0_1 = arith.constant 0 : index
    %0 = vector.load %arg1[%c0, %c0_0, %c0_1] : memref<1x736x128xf32, #tpu.memory_space<vmem>>, vector<1x736x128xf32>
    %1 = vector.shape_cast %0 : vector<1x736x128xf32> to vector<736x128xf32>
    %c0_2 = arith.constant 0 : index
    %c0_3 = arith.constant 0 : index
    %2 = vector.load %arg2[%c0_2, %c0_3] : memref<128x128xf32, #tpu.memory_space<vmem>>, vector<128x128xf32>
    %cst = arith.constant dense<0.000000e+00> : vector<736x128xf32>
    %3 = tpu.matmul %1, %2, %cst {dimension_numbers = #tpu.dot_dimension_numbers<[1], [0], [0], [1], [0, 0, 1, 1], [], []>} : vector<736x128xf32>, vector<128x128xf32>, vector<736x128xf32> -> vector<736x128xf32>
    %c0_4 = arith.constant 0 : index
    %c0_5 = arith.constant 0 : index
    %4 = vector.load %arg3[%c0_4, %c0_5] : memref<1x128xf32, #tpu.memory_space<vmem>>, vector<1x128xf32>
    %5 = vector.broadcast %4 : vector<1x128xf32> to vector<736x128xf32>
    %6 = arith.addf %3, %5 : vector<736x128xf32>
    %cst_6 = arith.constant 0.000000e+00 : f32
    %7 = vector.broadcast %cst_6 : f32 to vector<736x128xf32>
    %8 = arith.maximumf %6, %7 : vector<736x128xf32>
    %c0_7 = arith.constant 0 : index
    %c0_8 = arith.constant 0 : index
    %9 = vector.load %arg22[%c0_7, %c0_8] : memref<736x128xf32, #tpu.memory_space<vmem>>, vector<736x128xf32>
    tpu.vector_store %arg22[%c0_7, %c0_8], %8 {strides = array<i32>} : memref<736x128xf32, #tpu.memory_space<vmem>>, vector<736x128xf32>,
    %cst_9 = arith.constant 0.000000e+00 : f32
    %10 = vector.broadcast %cst_9 : f32 to vector<232x128xf32>
    %c0_10 = arith.constant 0 : index
    %c0_11 = arith.constant 0 : index
    %11 = vector.load %arg23[%c0_10, %c0_11] : memref<232x128xf32, #tpu.memory_space<vmem>>, vector<232x128xf32>
    tpu.vector_store %arg23[%c0_10, %c0_11], %10 {strides = array<i32>} : memref<232x128xf32, #tpu.memory_space<vmem>>, vector<232x128xf32>,
    %c28 = arith.constant 28 : index
    %c0_12 = arith.constant 0 : index
    %12 = tpu.strided_load %arg22[%c28, %c0_12] {strides = array<i32: 2, 1>} : memref<736x128xf32, #tpu.memory_space<vmem>>, vector<13x128xf32>
    %c16 = arith.constant 16 : index
    %c0_13 = arith.constant 0 : index
    %13 = vector.load %arg23[%c16, %c0_13] : memref<232x128xf32, #tpu.memory_space<vmem>>, vector<13x128xf32>
    tpu.vector_store %arg23[%c16, %c0_13], %12 {strides = array<i32>} : memref<232x128xf32, #tpu.memory_space<vmem>>, vector<13x128xf32>,
    %c82 = arith.constant 82 : index
    %c0_14 = arith.constant 0 : index
    %14 = tpu.strided_load %arg22[%c82, %c0_14] {strides = array<i32: 2, 1>} : memref<736x128xf32, #tpu.memory_space<vmem>>, vector<13x128xf32>
    %c31 = arith.constant 31 : index
    %c0_15 = arith.constant 0 : index
    %15 = vector.load %arg23[%c31, %c0_15] : memref<232x128xf32, #tpu.memory_space<vmem>>, vector<13x128xf32>
    tpu.vector_store %arg23[%c31, %c0_15], %14 {strides = array<i32>} : memref<232x128xf32, #tpu.memory_space<vmem>>, vector<13x128xf32>,
    %c136 = arith.constant 136 : index
    %c0_16 = arith.constant 0 : index
    %16 = tpu.strided_load %arg22[%c136, %c0_16] {strides = array<i32: 2, 1>} : memref<736x128xf32, #tpu.memory_space<vmem>>, vector<13x128xf32>
    %c46 = arith.constant 46 : index
    %c0_17 = arith.constant 0 : index
    %17 = vector.load %arg23[%c46, %c0_17] : memref<232x128xf32, #tpu.memory_space<vmem>>, vector<13x128xf32>
    tpu.vector_store %arg23[%c46, %c0_17], %16 {strides = array<i32>} : memref<232x128xf32, #tpu.memory_space<vmem>>, vector<13x128xf32>,
    %c190 = arith.constant 190 : index
    %c0_18 = arith.constant 0 : index
    %18 = tpu.strided_load %arg22[%c190, %c0_18] {strides = array<i32: 2, 1>} : memref<736x128xf32, #tpu.memory_space<vmem>>, vector<13x128xf32>
    %c61 = arith.constant 61 : index
    %c0_19 = arith.constant 0 : index
    %19 = vector.load %arg23[%c61, %c0_19] : memref<232x128xf32, #tpu.memory_space<vmem>>, vector<13x128xf32>
    tpu.vector_store %arg23[%c61, %c0_19], %18 {strides = array<i32>} : memref<232x128xf32, #tpu.memory_space<vmem>>, vector<13x128xf32>,
    %c244 = arith.constant 244 : index
    %c0_20 = arith.constant 0 : index
    %20 = tpu.strided_load %arg22[%c244, %c0_20] {strides = array<i32: 2, 1>} : memref<736x128xf32, #tpu.memory_space<vmem>>, vector<13x128xf32>
    %c76 = arith.constant 76 : index
    %c0_21 = arith.constant 0 : index
    %21 = vector.load %arg23[%c76, %c0_21] : memref<232x128xf32, #tpu.memory_space<vmem>>, vector<13x128xf32>
    tpu.vector_store %arg23[%c76, %c0_21], %20 {strides = array<i32>} : memref<232x128xf32, #tpu.memory_space<vmem>>, vector<13x128xf32>,
    %c298 = arith.constant 298 : index
    %c0_22 = arith.constant 0 : index
    %22 = tpu.strided_load %arg22[%c298, %c0_22] {strides = array<i32: 2, 1>} : memref<736x128xf32, #tpu.memory_space<vmem>>, vector<13x128xf32>
    %c91 = arith.constant 91 : index
    %c0_23 = arith.constant 0 : index
    %23 = vector.load %arg23[%c91, %c0_23] : memref<232x128xf32, #tpu.memory_space<vmem>>, vector<13x128xf32>
    tpu.vector_store %arg23[%c91, %c0_23], %22 {strides = array<i32>} : memref<232x128xf32, #tpu.memory_space<vmem>>, vector<13x128xf32>,
    %c352 = arith.constant 352 : index
    %c0_24 = arith.constant 0 : index
    %24 = tpu.strided_load %arg22[%c352, %c0_24] {strides = array<i32: 2, 1>} : memref<736x128xf32, #tpu.memory_space<vmem>>, vector<13x128xf32>
    %c106 = arith.constant 106 : index
    %c0_25 = arith.constant 0 : index
    %25 = vector.load %arg23[%c106, %c0_25] : memref<232x128xf32, #tpu.memory_space<vmem>>, vector<13x128xf32>
    tpu.vector_store %arg23[%c106, %c0_25], %24 {strides = array<i32>} : memref<232x128xf32, #tpu.memory_space<vmem>>, vector<13x128xf32>,
    %c406 = arith.constant 406 : index
    %c0_26 = arith.constant 0 : index
    %26 = tpu.strided_load %arg22[%c406, %c0_26] {strides = array<i32: 2, 1>} : memref<736x128xf32, #tpu.memory_space<vmem>>, vector<13x128xf32>
    %c121 = arith.constant 121 : index
    %c0_27 = arith.constant 0 : index
    %27 = vector.load %arg23[%c121, %c0_27] : memref<232x128xf32, #tpu.memory_space<vmem>>, vector<13x128xf32>
    tpu.vector_store %arg23[%c121, %c0_27], %26 {strides = array<i32>} : memref<232x128xf32, #tpu.memory_space<vmem>>, vector<13x128xf32>,
    %c460 = arith.constant 460 : index
    %c0_28 = arith.constant 0 : index
    %28 = tpu.strided_load %arg22[%c460, %c0_28] {strides = array<i32: 2, 1>} : memref<736x128xf32, #tpu.memory_space<vmem>>, vector<13x128xf32>
    %c136_29 = arith.constant 136 : index
    %c0_30 = arith.constant 0 : index
    %29 = vector.load %arg23[%c136_29, %c0_30] : memref<232x128xf32, #tpu.memory_space<vmem>>, vector<13x128xf32>
    tpu.vector_store %arg23[%c136_29, %c0_30], %28 {strides = array<i32>} : memref<232x128xf32, #tpu.memory_space<vmem>>, vector<13x128xf32>,
    %c514 = arith.constant 514 : index
    %c0_31 = arith.constant 0 : index
    %30 = tpu.strided_load %arg22[%c514, %c0_31] {strides = array<i32: 2, 1>} : memref<736x128xf32, #tpu.memory_space<vmem>>, vector<13x128xf32>
    %c151 = arith.constant 151 : index
    %c0_32 = arith.constant 0 : index
    %31 = vector.load %arg23[%c151, %c0_32] : memref<232x128xf32, #tpu.memory_space<vmem>>, vector<13x128xf32>
    tpu.vector_store %arg23[%c151, %c0_32], %30 {strides = array<i32>} : memref<232x128xf32, #tpu.memory_space<vmem>>, vector<13x128xf32>,
    %c568 = arith.constant 568 : index
    %c0_33 = arith.constant 0 : index
    %32 = tpu.strided_load %arg22[%c568, %c0_33] {strides = array<i32: 2, 1>} : memref<736x128xf32, #tpu.memory_space<vmem>>, vector<13x128xf32>
    %c166 = arith.constant 166 : index
    %c0_34 = arith.constant 0 : index
    %33 = vector.load %arg23[%c166, %c0_34] : memref<232x128xf32, #tpu.memory_space<vmem>>, vector<13x128xf32>
    tpu.vector_store %arg23[%c166, %c0_34], %32 {strides = array<i32>} : memref<232x128xf32, #tpu.memory_space<vmem>>, vector<13x128xf32>,
    %c622 = arith.constant 622 : index
    %c0_35 = arith.constant 0 : index
    %34 = tpu.strided_load %arg22[%c622, %c0_35] {strides = array<i32: 2, 1>} : memref<736x128xf32, #tpu.memory_space<vmem>>, vector<13x128xf32>
    %c181 = arith.constant 181 : index
    %c0_36 = arith.constant 0 : index
    %35 = vector.load %arg23[%c181, %c0_36] : memref<232x128xf32, #tpu.memory_space<vmem>>, vector<13x128xf32>
    tpu.vector_store %arg23[%c181, %c0_36], %34 {strides = array<i32>} : memref<232x128xf32, #tpu.memory_space<vmem>>, vector<13x128xf32>,
    %c676 = arith.constant 676 : index
    %c0_37 = arith.constant 0 : index
    %36 = tpu.strided_load %arg22[%c676, %c0_37] {strides = array<i32: 2, 1>} : memref<736x128xf32, #tpu.memory_space<vmem>>, vector<13x128xf32>
    %c196 = arith.constant 196 : index
    %c0_38 = arith.constant 0 : index
    %37 = vector.load %arg23[%c196, %c0_38] : memref<232x128xf32, #tpu.memory_space<vmem>>, vector<13x128xf32>
    tpu.vector_store %arg23[%c196, %c0_38], %36 {strides = array<i32>} : memref<232x128xf32, #tpu.memory_space<vmem>>, vector<13x128xf32>,
    %c0_39 = arith.constant 0 : index
    %c0_40 = arith.constant 0 : index
    %38 = vector.load %arg23[%c0_39, %c0_40] : memref<232x128xf32, #tpu.memory_space<vmem>>, vector<232x128xf32>
    %c0_41 = arith.constant 0 : index
    %c0_42 = arith.constant 0 : index
    %39 = vector.load %arg4[%c0_41, %c0_42] : memref<128x128xf32, #tpu.memory_space<vmem>>, vector<128x128xf32>
    %cst_43 = arith.constant dense<0.000000e+00> : vector<232x128xf32>
    %40 = tpu.matmul %38, %39, %cst_43 {dimension_numbers = #tpu.dot_dimension_numbers<[1], [0], [0], [1], [0, 0, 1, 1], [], []>} : vector<232x128xf32>, vector<128x128xf32>, vector<232x128xf32> -> vector<232x128xf32>
    %c0_44 = arith.constant 0 : index
    %c0_45 = arith.constant 0 : index
    %41 = vector.load %arg5[%c0_44, %c0_45] : memref<1x128xf32, #tpu.memory_space<vmem>>, vector<1x128xf32>
    %42 = vector.broadcast %41 : vector<1x128xf32> to vector<232x128xf32>
    %43 = arith.addf %40, %42 : vector<232x128xf32>
    %cst_46 = arith.constant 0.000000e+00 : f32
    %44 = vector.broadcast %cst_46 : f32 to vector<232x128xf32>
    %45 = arith.maximumf %43, %44 : vector<232x128xf32>
    %c0_47 = arith.constant 0 : index
    %c0_48 = arith.constant 0 : index
    %c0_49 = arith.constant 0 : index
    %46 = vector.load %arg18[%c0_47, %c0_48, %c0_49] : memref<1x232x128xf32, #tpu.memory_space<vmem>>, vector<1x232x128xf32>
    %47 = vector.shape_cast %46 : vector<1x232x128xf32> to vector<232x128xf32>
    %48 = vector.shape_cast %45 : vector<232x128xf32> to vector<1x232x128xf32>
    tpu.vector_store %arg18[%c0_47, %c0_48, %c0_49], %48 {strides = array<i32>} : memref<1x232x128xf32, #tpu.memory_space<vmem>>, vector<1x232x128xf32>,
    %c0_50 = arith.constant 0 : index
    %c0_51 = arith.constant 0 : index
    %49 = vector.load %arg6[%c0_50, %c0_51] : memref<128x128xf32, #tpu.memory_space<vmem>>, vector<128x128xf32>
    %cst_52 = arith.constant dense<0.000000e+00> : vector<232x128xf32>
    %50 = tpu.matmul %45, %49, %cst_52 {dimension_numbers = #tpu.dot_dimension_numbers<[1], [0], [0], [1], [0, 0, 1, 1], [], []>} : vector<232x128xf32>, vector<128x128xf32>, vector<232x128xf32> -> vector<232x128xf32>
    %c0_53 = arith.constant 0 : index
    %c0_54 = arith.constant 0 : index
    %51 = vector.load %arg7[%c0_53, %c0_54] : memref<1x128xf32, #tpu.memory_space<vmem>>, vector<1x128xf32>
    %52 = vector.broadcast %51 : vector<1x128xf32> to vector<232x128xf32>
    %53 = arith.addf %50, %52 : vector<232x128xf32>
    %cst_55 = arith.constant 0.000000e+00 : f32
    %54 = vector.broadcast %cst_55 : f32 to vector<232x128xf32>
    %55 = arith.maximumf %53, %54 : vector<232x128xf32>
    %c0_56 = arith.constant 0 : index
    %c0_57 = arith.constant 0 : index
    %56 = vector.load %arg24[%c0_56, %c0_57] : memref<232x128xf32, #tpu.memory_space<vmem>>, vector<232x128xf32>
    tpu.vector_store %arg24[%c0_56, %c0_57], %55 {strides = array<i32>} : memref<232x128xf32, #tpu.memory_space<vmem>>, vector<232x128xf32>,
    %cst_58 = arith.constant 0.000000e+00 : f32
    %57 = vector.broadcast %cst_58 : f32 to vector<56x1152xf32>
    %c0_59 = arith.constant 0 : index
    %c0_60 = arith.constant 0 : index
    %58 = vector.load %arg25[%c0_59, %c0_60] : memref<56x1152xf32, #tpu.memory_space<vmem>>, vector<56x1152xf32>
    tpu.vector_store %arg25[%c0_59, %c0_60], %57 {strides = array<i32>} : memref<56x1152xf32, #tpu.memory_space<vmem>>, vector<56x1152xf32>,
    %c0_61 = arith.constant 0 : index
    %c0_62 = arith.constant 0 : index
    %59 = tpu.strided_load %arg24[%c0_61, %c0_62] {strides = array<i32: 2, 1>} : memref<232x128xf32, #tpu.memory_space<vmem>>, vector<7x128xf32>
    %c0_63 = arith.constant 0 : index
    %c0_64 = arith.constant 0 : index
    %60 = vector.load %arg25[%c0_63, %c0_64] : memref<56x1152xf32, #tpu.memory_space<vmem>>, vector<7x128xf32>
    tpu.vector_store %arg25[%c0_63, %c0_64], %59 {strides = array<i32>} : memref<56x1152xf32, #tpu.memory_space<vmem>>, vector<7x128xf32>,
    %c1 = arith.constant 1 : index
    %c0_65 = arith.constant 0 : index
    %61 = tpu.strided_load %arg24[%c1, %c0_65] {strides = array<i32: 2, 1>} : memref<232x128xf32, #tpu.memory_space<vmem>>, vector<7x128xf32>
    %c0_66 = arith.constant 0 : index
    %c128 = arith.constant 128 : index
    %62 = vector.load %arg25[%c0_66, %c128] : memref<56x1152xf32, #tpu.memory_space<vmem>>, vector<7x128xf32>
    tpu.vector_store %arg25[%c0_66, %c128], %61 {strides = array<i32>} : memref<56x1152xf32, #tpu.memory_space<vmem>>, vector<7x128xf32>,
    %c2 = arith.constant 2 : index
    %c0_67 = arith.constant 0 : index
    %63 = tpu.strided_load %arg24[%c2, %c0_67] {strides = array<i32: 2, 1>} : memref<232x128xf32, #tpu.memory_space<vmem>>, vector<7x128xf32>
    %c0_68 = arith.constant 0 : index
    %c256 = arith.constant 256 : index
    %64 = vector.load %arg25[%c0_68, %c256] : memref<56x1152xf32, #tpu.memory_space<vmem>>, vector<7x128xf32>
    tpu.vector_store %arg25[%c0_68, %c256], %63 {strides = array<i32>} : memref<56x1152xf32, #tpu.memory_space<vmem>>, vector<7x128xf32>,
    %c15 = arith.constant 15 : index
    %c0_69 = arith.constant 0 : index
    %65 = tpu.strided_load %arg24[%c15, %c0_69] {strides = array<i32: 2, 1>} : memref<232x128xf32, #tpu.memory_space<vmem>>, vector<7x128xf32>
    %c0_70 = arith.constant 0 : index
    %c384 = arith.constant 384 : index
    %66 = vector.load %arg25[%c0_70, %c384] : memref<56x1152xf32, #tpu.memory_space<vmem>>, vector<7x128xf32>
    tpu.vector_store %arg25[%c0_70, %c384], %65 {strides = array<i32>} : memref<56x1152xf32, #tpu.memory_space<vmem>>, vector<7x128xf32>,
    %c16_71 = arith.constant 16 : index
    %c0_72 = arith.constant 0 : index
    %67 = tpu.strided_load %arg24[%c16_71, %c0_72] {strides = array<i32: 2, 1>} : memref<232x128xf32, #tpu.memory_space<vmem>>, vector<7x128xf32>
    %c0_73 = arith.constant 0 : index
    %c512 = arith.constant 512 : index
    %68 = vector.load %arg25[%c0_73, %c512] : memref<56x1152xf32, #tpu.memory_space<vmem>>, vector<7x128xf32>
    tpu.vector_store %arg25[%c0_73, %c512], %67 {strides = array<i32>} : memref<56x1152xf32, #tpu.memory_space<vmem>>, vector<7x128xf32>,
    %c17 = arith.constant 17 : index
    %c0_74 = arith.constant 0 : index
    %69 = tpu.strided_load %arg24[%c17, %c0_74] {strides = array<i32: 2, 1>} : memref<232x128xf32, #tpu.memory_space<vmem>>, vector<7x128xf32>
    %c0_75 = arith.constant 0 : index
    %c640 = arith.constant 640 : index
    %70 = vector.load %arg25[%c0_75, %c640] : memref<56x1152xf32, #tpu.memory_space<vmem>>, vector<7x128xf32>
    tpu.vector_store %arg25[%c0_75, %c640], %69 {strides = array<i32>} : memref<56x1152xf32, #tpu.memory_space<vmem>>, vector<7x128xf32>,
    %c30 = arith.constant 30 : index
    %c0_76 = arith.constant 0 : index
    %71 = tpu.strided_load %arg24[%c30, %c0_76] {strides = array<i32: 2, 1>} : memref<232x128xf32, #tpu.memory_space<vmem>>, vector<7x128xf32>
    %c0_77 = arith.constant 0 : index
    %c768 = arith.constant 768 : index
    %72 = vector.load %arg25[%c0_77, %c768] : memref<56x1152xf32, #tpu.memory_space<vmem>>, vector<7x128xf32>
    tpu.vector_store %arg25[%c0_77, %c768], %71 {strides = array<i32>} : memref<56x1152xf32, #tpu.memory_space<vmem>>, vector<7x128xf32>,
    %c31_78 = arith.constant 31 : index
    %c0_79 = arith.constant 0 : index
    %73 = tpu.strided_load %arg24[%c31_78, %c0_79] {strides = array<i32: 2, 1>} : memref<232x128xf32, #tpu.memory_space<vmem>>, vector<7x128xf32>
    %c0_80 = arith.constant 0 : index
    %c896 = arith.constant 896 : index
    %74 = vector.load %arg25[%c0_80, %c896] : memref<56x1152xf32, #tpu.memory_space<vmem>>, vector<7x128xf32>
    tpu.vector_store %arg25[%c0_80, %c896], %73 {strides = array<i32>} : memref<56x1152xf32, #tpu.memory_space<vmem>>, vector<7x128xf32>,
    %c32 = arith.constant 32 : index
    %c0_81 = arith.constant 0 : index
    %75 = tpu.strided_load %arg24[%c32, %c0_81] {strides = array<i32: 2, 1>} : memref<232x128xf32, #tpu.memory_space<vmem>>, vector<7x128xf32>
    %c0_82 = arith.constant 0 : index
    %c1024 = arith.constant 1024 : index
    %76 = vector.load %arg25[%c0_82, %c1024] : memref<56x1152xf32, #tpu.memory_space<vmem>>, vector<7x128xf32>
    tpu.vector_store %arg25[%c0_82, %c1024], %75 {strides = array<i32>} : memref<56x1152xf32, #tpu.memory_space<vmem>>, vector<7x128xf32>,
    %c30_83 = arith.constant 30 : index
    %c0_84 = arith.constant 0 : index
    %77 = tpu.strided_load %arg24[%c30_83, %c0_84] {strides = array<i32: 2, 1>} : memref<232x128xf32, #tpu.memory_space<vmem>>, vector<7x128xf32>
    %c7 = arith.constant 7 : index
    %c0_85 = arith.constant 0 : index
    %78 = vector.load %arg25[%c7, %c0_85] : memref<56x1152xf32, #tpu.memory_space<vmem>>, vector<7x128xf32>
    tpu.vector_store %arg25[%c7, %c0_85], %77 {strides = array<i32>} : memref<56x1152xf32, #tpu.memory_space<vmem>>, vector<7x128xf32>,
    %c31_86 = arith.constant 31 : index
    %c0_87 = arith.constant 0 : index
    %79 = tpu.strided_load %arg24[%c31_86, %c0_87] {strides = array<i32: 2, 1>} : memref<232x128xf32, #tpu.memory_space<vmem>>, vector<7x128xf32>
    %c7_88 = arith.constant 7 : index
    %c128_89 = arith.constant 128 : index
    %80 = vector.load %arg25[%c7_88, %c128_89] : memref<56x1152xf32, #tpu.memory_space<vmem>>, vector<7x128xf32>
    tpu.vector_store %arg25[%c7_88, %c128_89], %79 {strides = array<i32>} : memref<56x1152xf32, #tpu.memory_space<vmem>>, vector<7x128xf32>,
    %c32_90 = arith.constant 32 : index
    %c0_91 = arith.constant 0 : index
    %81 = tpu.strided_load %arg24[%c32_90, %c0_91] {strides = array<i32: 2, 1>} : memref<232x128xf32, #tpu.memory_space<vmem>>, vector<7x128xf32>
    %c7_92 = arith.constant 7 : index
    %c256_93 = arith.constant 256 : index
    %82 = vector.load %arg25[%c7_92, %c256_93] : memref<56x1152xf32, #tpu.memory_space<vmem>>, vector<7x128xf32>
    tpu.vector_store %arg25[%c7_92, %c256_93], %81 {strides = array<i32>} : memref<56x1152xf32, #tpu.memory_space<vmem>>, vector<7x128xf32>,
    %c45 = arith.constant 45 : index
    %c0_94 = arith.constant 0 : index
    %83 = tpu.strided_load %arg24[%c45, %c0_94] {strides = array<i32: 2, 1>} : memref<232x128xf32, #tpu.memory_space<vmem>>, vector<7x128xf32>
    %c7_95 = arith.constant 7 : index
    %c384_96 = arith.constant 384 : index
    %84 = vector.load %arg25[%c7_95, %c384_96] : memref<56x1152xf32, #tpu.memory_space<vmem>>, vector<7x128xf32>
    tpu.vector_store %arg25[%c7_95, %c384_96], %83 {strides = array<i32>} : memref<56x1152xf32, #tpu.memory_space<vmem>>, vector<7x128xf32>,
    %c46_97 = arith.constant 46 : index
    %c0_98 = arith.constant 0 : index
    %85 = tpu.strided_load %arg24[%c46_97, %c0_98] {strides = array<i32: 2, 1>} : memref<232x128xf32, #tpu.memory_space<vmem>>, vector<7x128xf32>
    %c7_99 = arith.constant 7 : index
    %c512_100 = arith.constant 512 : index
    %86 = vector.load %arg25[%c7_99, %c512_100] : memref<56x1152xf32, #tpu.memory_space<vmem>>, vector<7x128xf32>
    tpu.vector_store %arg25[%c7_99, %c512_100], %85 {strides = array<i32>} : memref<56x1152xf32, #tpu.memory_space<vmem>>, vector<7x128xf32>,
    %c47 = arith.constant 47 : index
    %c0_101 = arith.constant 0 : index
    %87 = tpu.strided_load %arg24[%c47, %c0_101] {strides = array<i32: 2, 1>} : memref<232x128xf32, #tpu.memory_space<vmem>>, vector<7x128xf32>
    %c7_102 = arith.constant 7 : index
    %c640_103 = arith.constant 640 : index
    %88 = vector.load %arg25[%c7_102, %c640_103] : memref<56x1152xf32, #tpu.memory_space<vmem>>, vector<7x128xf32>
    tpu.vector_store %arg25[%c7_102, %c640_103], %87 {strides = array<i32>} : memref<56x1152xf32, #tpu.memory_space<vmem>>, vector<7x128xf32>,
    %c60 = arith.constant 60 : index
    %c0_104 = arith.constant 0 : index
    %89 = tpu.strided_load %arg24[%c60, %c0_104] {strides = array<i32: 2, 1>} : memref<232x128xf32, #tpu.memory_space<vmem>>, vector<7x128xf32>
    %c7_105 = arith.constant 7 : index
    %c768_106 = arith.constant 768 : index
    %90 = vector.load %arg25[%c7_105, %c768_106] : memref<56x1152xf32, #tpu.memory_space<vmem>>, vector<7x128xf32>
    tpu.vector_store %arg25[%c7_105, %c768_106], %89 {strides = array<i32>} : memref<56x1152xf32, #tpu.memory_space<vmem>>, vector<7x128xf32>,
    %c61_107 = arith.constant 61 : index
    %c0_108 = arith.constant 0 : index
    %91 = tpu.strided_load %arg24[%c61_107, %c0_108] {strides = array<i32: 2, 1>} : memref<232x128xf32, #tpu.memory_space<vmem>>, vector<7x128xf32>
    %c7_109 = arith.constant 7 : index
    %c896_110 = arith.constant 896 : index
    %92 = vector.load %arg25[%c7_109, %c896_110] : memref<56x1152xf32, #tpu.memory_space<vmem>>, vector<7x128xf32>
    tpu.vector_store %arg25[%c7_109, %c896_110], %91 {strides = array<i32>} : memref<56x1152xf32, #tpu.memory_space<vmem>>, vector<7x128xf32>,
    %c62 = arith.constant 62 : index
    %c0_111 = arith.constant 0 : index
    %93 = tpu.strided_load %arg24[%c62, %c0_111] {strides = array<i32: 2, 1>} : memref<232x128xf32, #tpu.memory_space<vmem>>, vector<7x128xf32>
    %c7_112 = arith.constant 7 : index
    %c1024_113 = arith.constant 1024 : index
    %94 = vector.load %arg25[%c7_112, %c1024_113] : memref<56x1152xf32, #tpu.memory_space<vmem>>, vector<7x128xf32>
    tpu.vector_store %arg25[%c7_112, %c1024_113], %93 {strides = array<i32>} : memref<56x1152xf32, #tpu.memory_space<vmem>>, vector<7x128xf32>,
    %c60_114 = arith.constant 60 : index
    %c0_115 = arith.constant 0 : index
    %95 = tpu.strided_load %arg24[%c60_114, %c0_115] {strides = array<i32: 2, 1>} : memref<232x128xf32, #tpu.memory_space<vmem>>, vector<7x128xf32>
    %c14 = arith.constant 14 : index
    %c0_116 = arith.constant 0 : index
    %96 = vector.load %arg25[%c14, %c0_116] : memref<56x1152xf32, #tpu.memory_space<vmem>>, vector<7x128xf32>
    tpu.vector_store %arg25[%c14, %c0_116], %95 {strides = array<i32>} : memref<56x1152xf32, #tpu.memory_space<vmem>>, vector<7x128xf32>,
    %c61_117 = arith.constant 61 : index
    %c0_118 = arith.constant 0 : index
    %97 = tpu.strided_load %arg24[%c61_117, %c0_118] {strides = array<i32: 2, 1>} : memref<232x128xf32, #tpu.memory_space<vmem>>, vector<7x128xf32>
    %c14_119 = arith.constant 14 : index
    %c128_120 = arith.constant 128 : index
    %98 = vector.load %arg25[%c14_119, %c128_120] : memref<56x1152xf32, #tpu.memory_space<vmem>>, vector<7x128xf32>
    tpu.vector_store %arg25[%c14_119, %c128_120], %97 {strides = array<i32>} : memref<56x1152xf32, #tpu.memory_space<vmem>>, vector<7x128xf32>,
    %c62_121 = arith.constant 62 : index
    %c0_122 = arith.constant 0 : index
    %99 = tpu.strided_load %arg24[%c62_121, %c0_122] {strides = array<i32: 2, 1>} : memref<232x128xf32, #tpu.memory_space<vmem>>, vector<7x128xf32>
    %c14_123 = arith.constant 14 : index
    %c256_124 = arith.constant 256 : index
    %100 = vector.load %arg25[%c14_123, %c256_124] : memref<56x1152xf32, #tpu.memory_space<vmem>>, vector<7x128xf32>
    tpu.vector_store %arg25[%c14_123, %c256_124], %99 {strides = array<i32>} : memref<56x1152xf32, #tpu.memory_space<vmem>>, vector<7x128xf32>,
    %c75 = arith.constant 75 : index
    %c0_125 = arith.constant 0 : index
    %101 = tpu.strided_load %arg24[%c75, %c0_125] {strides = array<i32: 2, 1>} : memref<232x128xf32, #tpu.memory_space<vmem>>, vector<7x128xf32>
    %c14_126 = arith.constant 14 : index
    %c384_127 = arith.constant 384 : index
    %102 = vector.load %arg25[%c14_126, %c384_127] : memref<56x1152xf32, #tpu.memory_space<vmem>>, vector<7x128xf32>
    tpu.vector_store %arg25[%c14_126, %c384_127], %101 {strides = array<i32>} : memref<56x1152xf32, #tpu.memory_space<vmem>>, vector<7x128xf32>,
    %c76_128 = arith.constant 76 : index
    %c0_129 = arith.constant 0 : index
    %103 = tpu.strided_load %arg24[%c76_128, %c0_129] {strides = array<i32: 2, 1>} : memref<232x128xf32, #tpu.memory_space<vmem>>, vector<7x128xf32>
    %c14_130 = arith.constant 14 : index
    %c512_131 = arith.constant 512 : index
    %104 = vector.load %arg25[%c14_130, %c512_131] : memref<56x1152xf32, #tpu.memory_space<vmem>>, vector<7x128xf32>
    tpu.vector_store %arg25[%c14_130, %c512_131], %103 {strides = array<i32>} : memref<56x1152xf32, #tpu.memory_space<vmem>>, vector<7x128xf32>,
    %c77 = arith.constant 77 : index
    %c0_132 = arith.constant 0 : index
    %105 = tpu.strided_load %arg24[%c77, %c0_132] {strides = array<i32: 2, 1>} : memref<232x128xf32, #tpu.memory_space<vmem>>, vector<7x128xf32>
    %c14_133 = arith.constant 14 : index
    %c640_134 = arith.constant 640 : index
    %106 = vector.load %arg25[%c14_133, %c640_134] : memref<56x1152xf32, #tpu.memory_space<vmem>>, vector<7x128xf32>
    tpu.vector_store %arg25[%c14_133, %c640_134], %105 {strides = array<i32>} : memref<56x1152xf32, #tpu.memory_space<vmem>>, vector<7x128xf32>,
    %c90 = arith.constant 90 : index
    %c0_135 = arith.constant 0 : index
    %107 = tpu.strided_load %arg24[%c90, %c0_135] {strides = array<i32: 2, 1>} : memref<232x128xf32, #tpu.memory_space<vmem>>, vector<7x128xf32>
    %c14_136 = arith.constant 14 : index
    %c768_137 = arith.constant 768 : index
    %108 = vector.load %arg25[%c14_136, %c768_137] : memref<56x1152xf32, #tpu.memory_space<vmem>>, vector<7x128xf32>
    tpu.vector_store %arg25[%c14_136, %c768_137], %107 {strides = array<i32>} : memref<56x1152xf32, #tpu.memory_space<vmem>>, vector<7x128xf32>,
    %c91_138 = arith.constant 91 : index
    %c0_139 = arith.constant 0 : index
    %109 = tpu.strided_load %arg24[%c91_138, %c0_139] {strides = array<i32: 2, 1>} : memref<232x128xf32, #tpu.memory_space<vmem>>, vector<7x128xf32>
    %c14_140 = arith.constant 14 : index
    %c896_141 = arith.constant 896 : index
    %110 = vector.load %arg25[%c14_140, %c896_141] : memref<56x1152xf32, #tpu.memory_space<vmem>>, vector<7x128xf32>
    tpu.vector_store %arg25[%c14_140, %c896_141], %109 {strides = array<i32>} : memref<56x1152xf32, #tpu.memory_space<vmem>>, vector<7x128xf32>,
    %c92 = arith.constant 92 : index
    %c0_142 = arith.constant 0 : index
    %111 = tpu.strided_load %arg24[%c92, %c0_142] {strides = array<i32: 2, 1>} : memref<232x128xf32, #tpu.memory_space<vmem>>, vector<7x128xf32>
    %c14_143 = arith.constant 14 : index
    %c1024_144 = arith.constant 1024 : index
    %112 = vector.load %arg25[%c14_143, %c1024_144] : memref<56x1152xf32, #tpu.memory_space<vmem>>, vector<7x128xf32>
    tpu.vector_store %arg25[%c14_143, %c1024_144], %111 {strides = array<i32>} : memref<56x1152xf32, #tpu.memory_space<vmem>>, vector<7x128xf32>,
    %c90_145 = arith.constant 90 : index
    %c0_146 = arith.constant 0 : index
    %113 = tpu.strided_load %arg24[%c90_145, %c0_146] {strides = array<i32: 2, 1>} : memref<232x128xf32, #tpu.memory_space<vmem>>, vector<7x128xf32>
    %c21 = arith.constant 21 : index
    %c0_147 = arith.constant 0 : index
    %114 = vector.load %arg25[%c21, %c0_147] : memref<56x1152xf32, #tpu.memory_space<vmem>>, vector<7x128xf32>
    tpu.vector_store %arg25[%c21, %c0_147], %113 {strides = array<i32>} : memref<56x1152xf32, #tpu.memory_space<vmem>>, vector<7x128xf32>,
    %c91_148 = arith.constant 91 : index
    %c0_149 = arith.constant 0 : index
    %115 = tpu.strided_load %arg24[%c91_148, %c0_149] {strides = array<i32: 2, 1>} : memref<232x128xf32, #tpu.memory_space<vmem>>, vector<7x128xf32>
    %c21_150 = arith.constant 21 : index
    %c128_151 = arith.constant 128 : index
    %116 = vector.load %arg25[%c21_150, %c128_151] : memref<56x1152xf32, #tpu.memory_space<vmem>>, vector<7x128xf32>
    tpu.vector_store %arg25[%c21_150, %c128_151], %115 {strides = array<i32>} : memref<56x1152xf32, #tpu.memory_space<vmem>>, vector<7x128xf32>,
    %c92_152 = arith.constant 92 : index
    %c0_153 = arith.constant 0 : index
    %117 = tpu.strided_load %arg24[%c92_152, %c0_153] {strides = array<i32: 2, 1>} : memref<232x128xf32, #tpu.memory_space<vmem>>, vector<7x128xf32>
    %c21_154 = arith.constant 21 : index
    %c256_155 = arith.constant 256 : index
    %118 = vector.load %arg25[%c21_154, %c256_155] : memref<56x1152xf32, #tpu.memory_space<vmem>>, vector<7x128xf32>
    tpu.vector_store %arg25[%c21_154, %c256_155], %117 {strides = array<i32>} : memref<56x1152xf32, #tpu.memory_space<vmem>>, vector<7x128xf32>,
    %c105 = arith.constant 105 : index
    %c0_156 = arith.constant 0 : index
    %119 = tpu.strided_load %arg24[%c105, %c0_156] {strides = array<i32: 2, 1>} : memref<232x128xf32, #tpu.memory_space<vmem>>, vector<7x128xf32>
    %c21_157 = arith.constant 21 : index
    %c384_158 = arith.constant 384 : index
    %120 = vector.load %arg25[%c21_157, %c384_158] : memref<56x1152xf32, #tpu.memory_space<vmem>>, vector<7x128xf32>
    tpu.vector_store %arg25[%c21_157, %c384_158], %119 {strides = array<i32>} : memref<56x1152xf32, #tpu.memory_space<vmem>>, vector<7x128xf32>,
    %c106_159 = arith.constant 106 : index
    %c0_160 = arith.constant 0 : index
    %121 = tpu.strided_load %arg24[%c106_159, %c0_160] {strides = array<i32: 2, 1>} : memref<232x128xf32, #tpu.memory_space<vmem>>, vector<7x128xf32>
    %c21_161 = arith.constant 21 : index
    %c512_162 = arith.constant 512 : index
    %122 = vector.load %arg25[%c21_161, %c512_162] : memref<56x1152xf32, #tpu.memory_space<vmem>>, vector<7x128xf32>
    tpu.vector_store %arg25[%c21_161, %c512_162], %121 {strides = array<i32>} : memref<56x1152xf32, #tpu.memory_space<vmem>>, vector<7x128xf32>,
    %c107 = arith.constant 107 : index
    %c0_163 = arith.constant 0 : index
    %123 = tpu.strided_load %arg24[%c107, %c0_163] {strides = array<i32: 2, 1>} : memref<232x128xf32, #tpu.memory_space<vmem>>, vector<7x128xf32>
    %c21_164 = arith.constant 21 : index
    %c640_165 = arith.constant 640 : index
    %124 = vector.load %arg25[%c21_164, %c640_165] : memref<56x1152xf32, #tpu.memory_space<vmem>>, vector<7x128xf32>
    tpu.vector_store %arg25[%c21_164, %c640_165], %123 {strides = array<i32>} : memref<56x1152xf32, #tpu.memory_space<vmem>>, vector<7x128xf32>,
    %c120 = arith.constant 120 : index
    %c0_166 = arith.constant 0 : index
    %125 = tpu.strided_load %arg24[%c120, %c0_166] {strides = array<i32: 2, 1>} : memref<232x128xf32, #tpu.memory_space<vmem>>, vector<7x128xf32>
    %c21_167 = arith.constant 21 : index
    %c768_168 = arith.constant 768 : index
    %126 = vector.load %arg25[%c21_167, %c768_168] : memref<56x1152xf32, #tpu.memory_space<vmem>>, vector<7x128xf32>
    tpu.vector_store %arg25[%c21_167, %c768_168], %125 {strides = array<i32>} : memref<56x1152xf32, #tpu.memory_space<vmem>>, vector<7x128xf32>,
    %c121_169 = arith.constant 121 : index
    %c0_170 = arith.constant 0 : index
    %127 = tpu.strided_load %arg24[%c121_169, %c0_170] {strides = array<i32: 2, 1>} : memref<232x128xf32, #tpu.memory_space<vmem>>, vector<7x128xf32>
    %c21_171 = arith.constant 21 : index
    %c896_172 = arith.constant 896 : index
    %128 = vector.load %arg25[%c21_171, %c896_172] : memref<56x1152xf32, #tpu.memory_space<vmem>>, vector<7x128xf32>
    tpu.vector_store %arg25[%c21_171, %c896_172], %127 {strides = array<i32>} : memref<56x1152xf32, #tpu.memory_space<vmem>>, vector<7x128xf32>,
    %c122 = arith.constant 122 : index
    %c0_173 = arith.constant 0 : index
    %129 = tpu.strided_load %arg24[%c122, %c0_173] {strides = array<i32: 2, 1>} : memref<232x128xf32, #tpu.memory_space<vmem>>, vector<7x128xf32>
    %c21_174 = arith.constant 21 : index
    %c1024_175 = arith.constant 1024 : index
    %130 = vector.load %arg25[%c21_174, %c1024_175] : memref<56x1152xf32, #tpu.memory_space<vmem>>, vector<7x128xf32>
    tpu.vector_store %arg25[%c21_174, %c1024_175], %129 {strides = array<i32>} : memref<56x1152xf32, #tpu.memory_space<vmem>>, vector<7x128xf32>,
    %c120_176 = arith.constant 120 : index
    %c0_177 = arith.constant 0 : index
    %131 = tpu.strided_load %arg24[%c120_176, %c0_177] {strides = array<i32: 2, 1>} : memref<232x128xf32, #tpu.memory_space<vmem>>, vector<7x128xf32>
    %c28_178 = arith.constant 28 : index
    %c0_179 = arith.constant 0 : index
    %132 = vector.load %arg25[%c28_178, %c0_179] : memref<56x1152xf32, #tpu.memory_space<vmem>>, vector<7x128xf32>
    tpu.vector_store %arg25[%c28_178, %c0_179], %131 {strides = array<i32>} : memref<56x1152xf32, #tpu.memory_space<vmem>>, vector<7x128xf32>,
    %c121_180 = arith.constant 121 : index
    %c0_181 = arith.constant 0 : index
    %133 = tpu.strided_load %arg24[%c121_180, %c0_181] {strides = array<i32: 2, 1>} : memref<232x128xf32, #tpu.memory_space<vmem>>, vector<7x128xf32>
    %c28_182 = arith.constant 28 : index
    %c128_183 = arith.constant 128 : index
    %134 = vector.load %arg25[%c28_182, %c128_183] : memref<56x1152xf32, #tpu.memory_space<vmem>>, vector<7x128xf32>
    tpu.vector_store %arg25[%c28_182, %c128_183], %133 {strides = array<i32>} : memref<56x1152xf32, #tpu.memory_space<vmem>>, vector<7x128xf32>,
    %c122_184 = arith.constant 122 : index
    %c0_185 = arith.constant 0 : index
    %135 = tpu.strided_load %arg24[%c122_184, %c0_185] {strides = array<i32: 2, 1>} : memref<232x128xf32, #tpu.memory_space<vmem>>, vector<7x128xf32>
    %c28_186 = arith.constant 28 : index
    %c256_187 = arith.constant 256 : index
    %136 = vector.load %arg25[%c28_186, %c256_187] : memref<56x1152xf32, #tpu.memory_space<vmem>>, vector<7x128xf32>
    tpu.vector_store %arg25[%c28_186, %c256_187], %135 {strides = array<i32>} : memref<56x1152xf32, #tpu.memory_space<vmem>>, vector<7x128xf32>,
    %c135 = arith.constant 135 : index
    %c0_188 = arith.constant 0 : index
    %137 = tpu.strided_load %arg24[%c135, %c0_188] {strides = array<i32: 2, 1>} : memref<232x128xf32, #tpu.memory_space<vmem>>, vector<7x128xf32>
    %c28_189 = arith.constant 28 : index
    %c384_190 = arith.constant 384 : index
    %138 = vector.load %arg25[%c28_189, %c384_190] : memref<56x1152xf32, #tpu.memory_space<vmem>>, vector<7x128xf32>
    tpu.vector_store %arg25[%c28_189, %c384_190], %137 {strides = array<i32>} : memref<56x1152xf32, #tpu.memory_space<vmem>>, vector<7x128xf32>,
    %c136_191 = arith.constant 136 : index
    %c0_192 = arith.constant 0 : index
    %139 = tpu.strided_load %arg24[%c136_191, %c0_192] {strides = array<i32: 2, 1>} : memref<232x128xf32, #tpu.memory_space<vmem>>, vector<7x128xf32>
    %c28_193 = arith.constant 28 : index
    %c512_194 = arith.constant 512 : index
    %140 = vector.load %arg25[%c28_193, %c512_194] : memref<56x1152xf32, #tpu.memory_space<vmem>>, vector<7x128xf32>
    tpu.vector_store %arg25[%c28_193, %c512_194], %139 {strides = array<i32>} : memref<56x1152xf32, #tpu.memory_space<vmem>>, vector<7x128xf32>,
    %c137 = arith.constant 137 : index
    %c0_195 = arith.constant 0 : index
    %141 = tpu.strided_load %arg24[%c137, %c0_195] {strides = array<i32: 2, 1>} : memref<232x128xf32, #tpu.memory_space<vmem>>, vector<7x128xf32>
    %c28_196 = arith.constant 28 : index
    %c640_197 = arith.constant 640 : index
    %142 = vector.load %arg25[%c28_196, %c640_197] : memref<56x1152xf32, #tpu.memory_space<vmem>>, vector<7x128xf32>
    tpu.vector_store %arg25[%c28_196, %c640_197], %141 {strides = array<i32>} : memref<56x1152xf32, #tpu.memory_space<vmem>>, vector<7x128xf32>,
    %c150 = arith.constant 150 : index
    %c0_198 = arith.constant 0 : index
    %143 = tpu.strided_load %arg24[%c150, %c0_198] {strides = array<i32: 2, 1>} : memref<232x128xf32, #tpu.memory_space<vmem>>, vector<7x128xf32>
    %c28_199 = arith.constant 28 : index
    %c768_200 = arith.constant 768 : index
    %144 = vector.load %arg25[%c28_199, %c768_200] : memref<56x1152xf32, #tpu.memory_space<vmem>>, vector<7x128xf32>
    tpu.vector_store %arg25[%c28_199, %c768_200], %143 {strides = array<i32>} : memref<56x1152xf32, #tpu.memory_space<vmem>>, vector<7x128xf32>,
    %c151_201 = arith.constant 151 : index
    %c0_202 = arith.constant 0 : index
    %145 = tpu.strided_load %arg24[%c151_201, %c0_202] {strides = array<i32: 2, 1>} : memref<232x128xf32, #tpu.memory_space<vmem>>, vector<7x128xf32>
    %c28_203 = arith.constant 28 : index
    %c896_204 = arith.constant 896 : index
    %146 = vector.load %arg25[%c28_203, %c896_204] : memref<56x1152xf32, #tpu.memory_space<vmem>>, vector<7x128xf32>
    tpu.vector_store %arg25[%c28_203, %c896_204], %145 {strides = array<i32>} : memref<56x1152xf32, #tpu.memory_space<vmem>>, vector<7x128xf32>,
    %c152 = arith.constant 152 : index
    %c0_205 = arith.constant 0 : index
    %147 = tpu.strided_load %arg24[%c152, %c0_205] {strides = array<i32: 2, 1>} : memref<232x128xf32, #tpu.memory_space<vmem>>, vector<7x128xf32>
    %c28_206 = arith.constant 28 : index
    %c1024_207 = arith.constant 1024 : index
    %148 = vector.load %arg25[%c28_206, %c1024_207] : memref<56x1152xf32, #tpu.memory_space<vmem>>, vector<7x128xf32>
    tpu.vector_store %arg25[%c28_206, %c1024_207], %147 {strides = array<i32>} : memref<56x1152xf32, #tpu.memory_space<vmem>>, vector<7x128xf32>,
    %c150_208 = arith.constant 150 : index
    %c0_209 = arith.constant 0 : index
    %149 = tpu.strided_load %arg24[%c150_208, %c0_209] {strides = array<i32: 2, 1>} : memref<232x128xf32, #tpu.memory_space<vmem>>, vector<7x128xf32>
    %c35 = arith.constant 35 : index
    %c0_210 = arith.constant 0 : index
    %150 = vector.load %arg25[%c35, %c0_210] : memref<56x1152xf32, #tpu.memory_space<vmem>>, vector<7x128xf32>
    tpu.vector_store %arg25[%c35, %c0_210], %149 {strides = array<i32>} : memref<56x1152xf32, #tpu.memory_space<vmem>>, vector<7x128xf32>,
    %c151_211 = arith.constant 151 : index
    %c0_212 = arith.constant 0 : index
    %151 = tpu.strided_load %arg24[%c151_211, %c0_212] {strides = array<i32: 2, 1>} : memref<232x128xf32, #tpu.memory_space<vmem>>, vector<7x128xf32>
    %c35_213 = arith.constant 35 : index
    %c128_214 = arith.constant 128 : index
    %152 = vector.load %arg25[%c35_213, %c128_214] : memref<56x1152xf32, #tpu.memory_space<vmem>>, vector<7x128xf32>
    tpu.vector_store %arg25[%c35_213, %c128_214], %151 {strides = array<i32>} : memref<56x1152xf32, #tpu.memory_space<vmem>>, vector<7x128xf32>,
    %c152_215 = arith.constant 152 : index
    %c0_216 = arith.constant 0 : index
    %153 = tpu.strided_load %arg24[%c152_215, %c0_216] {strides = array<i32: 2, 1>} : memref<232x128xf32, #tpu.memory_space<vmem>>, vector<7x128xf32>
    %c35_217 = arith.constant 35 : index
    %c256_218 = arith.constant 256 : index
    %154 = vector.load %arg25[%c35_217, %c256_218] : memref<56x1152xf32, #tpu.memory_space<vmem>>, vector<7x128xf32>
    tpu.vector_store %arg25[%c35_217, %c256_218], %153 {strides = array<i32>} : memref<56x1152xf32, #tpu.memory_space<vmem>>, vector<7x128xf32>,
    %c165 = arith.constant 165 : index
    %c0_219 = arith.constant 0 : index
    %155 = tpu.strided_load %arg24[%c165, %c0_219] {strides = array<i32: 2, 1>} : memref<232x128xf32, #tpu.memory_space<vmem>>, vector<7x128xf32>
    %c35_220 = arith.constant 35 : index
    %c384_221 = arith.constant 384 : index
    %156 = vector.load %arg25[%c35_220, %c384_221] : memref<56x1152xf32, #tpu.memory_space<vmem>>, vector<7x128xf32>
    tpu.vector_store %arg25[%c35_220, %c384_221], %155 {strides = array<i32>} : memref<56x1152xf32, #tpu.memory_space<vmem>>, vector<7x128xf32>,
    %c166_222 = arith.constant 166 : index
    %c0_223 = arith.constant 0 : index
    %157 = tpu.strided_load %arg24[%c166_222, %c0_223] {strides = array<i32: 2, 1>} : memref<232x128xf32, #tpu.memory_space<vmem>>, vector<7x128xf32>
    %c35_224 = arith.constant 35 : index
    %c512_225 = arith.constant 512 : index
    %158 = vector.load %arg25[%c35_224, %c512_225] : memref<56x1152xf32, #tpu.memory_space<vmem>>, vector<7x128xf32>
    tpu.vector_store %arg25[%c35_224, %c512_225], %157 {strides = array<i32>} : memref<56x1152xf32, #tpu.memory_space<vmem>>, vector<7x128xf32>,
    %c167 = arith.constant 167 : index
    %c0_226 = arith.constant 0 : index
    %159 = tpu.strided_load %arg24[%c167, %c0_226] {strides = array<i32: 2, 1>} : memref<232x128xf32, #tpu.memory_space<vmem>>, vector<7x128xf32>
    %c35_227 = arith.constant 35 : index
    %c640_228 = arith.constant 640 : index
    %160 = vector.load %arg25[%c35_227, %c640_228] : memref<56x1152xf32, #tpu.memory_space<vmem>>, vector<7x128xf32>
    tpu.vector_store %arg25[%c35_227, %c640_228], %159 {strides = array<i32>} : memref<56x1152xf32, #tpu.memory_space<vmem>>, vector<7x128xf32>,
    %c180 = arith.constant 180 : index
    %c0_229 = arith.constant 0 : index
    %161 = tpu.strided_load %arg24[%c180, %c0_229] {strides = array<i32: 2, 1>} : memref<232x128xf32, #tpu.memory_space<vmem>>, vector<7x128xf32>
    %c35_230 = arith.constant 35 : index
    %c768_231 = arith.constant 768 : index
    %162 = vector.load %arg25[%c35_230, %c768_231] : memref<56x1152xf32, #tpu.memory_space<vmem>>, vector<7x128xf32>
    tpu.vector_store %arg25[%c35_230, %c768_231], %161 {strides = array<i32>} : memref<56x1152xf32, #tpu.memory_space<vmem>>, vector<7x128xf32>,
    %c181_232 = arith.constant 181 : index
    %c0_233 = arith.constant 0 : index
    %163 = tpu.strided_load %arg24[%c181_232, %c0_233] {strides = array<i32: 2, 1>} : memref<232x128xf32, #tpu.memory_space<vmem>>, vector<7x128xf32>
    %c35_234 = arith.constant 35 : index
    %c896_235 = arith.constant 896 : index
    %164 = vector.load %arg25[%c35_234, %c896_235] : memref<56x1152xf32, #tpu.memory_space<vmem>>, vector<7x128xf32>
    tpu.vector_store %arg25[%c35_234, %c896_235], %163 {strides = array<i32>} : memref<56x1152xf32, #tpu.memory_space<vmem>>, vector<7x128xf32>,
    %c182 = arith.constant 182 : index
    %c0_236 = arith.constant 0 : index
    %165 = tpu.strided_load %arg24[%c182, %c0_236] {strides = array<i32: 2, 1>} : memref<232x128xf32, #tpu.memory_space<vmem>>, vector<7x128xf32>
    %c35_237 = arith.constant 35 : index
    %c1024_238 = arith.constant 1024 : index
    %166 = vector.load %arg25[%c35_237, %c1024_238] : memref<56x1152xf32, #tpu.memory_space<vmem>>, vector<7x128xf32>
    tpu.vector_store %arg25[%c35_237, %c1024_238], %165 {strides = array<i32>} : memref<56x1152xf32, #tpu.memory_space<vmem>>, vector<7x128xf32>,
    %c180_239 = arith.constant 180 : index
    %c0_240 = arith.constant 0 : index
    %167 = tpu.strided_load %arg24[%c180_239, %c0_240] {strides = array<i32: 2, 1>} : memref<232x128xf32, #tpu.memory_space<vmem>>, vector<7x128xf32>
    %c42 = arith.constant 42 : index
    %c0_241 = arith.constant 0 : index
    %168 = vector.load %arg25[%c42, %c0_241] : memref<56x1152xf32, #tpu.memory_space<vmem>>, vector<7x128xf32>
    tpu.vector_store %arg25[%c42, %c0_241], %167 {strides = array<i32>} : memref<56x1152xf32, #tpu.memory_space<vmem>>, vector<7x128xf32>,
    %c181_242 = arith.constant 181 : index
    %c0_243 = arith.constant 0 : index
    %169 = tpu.strided_load %arg24[%c181_242, %c0_243] {strides = array<i32: 2, 1>} : memref<232x128xf32, #tpu.memory_space<vmem>>, vector<7x128xf32>
    %c42_244 = arith.constant 42 : index
    %c128_245 = arith.constant 128 : index
    %170 = vector.load %arg25[%c42_244, %c128_245] : memref<56x1152xf32, #tpu.memory_space<vmem>>, vector<7x128xf32>
    tpu.vector_store %arg25[%c42_244, %c128_245], %169 {strides = array<i32>} : memref<56x1152xf32, #tpu.memory_space<vmem>>, vector<7x128xf32>,
    %c182_246 = arith.constant 182 : index
    %c0_247 = arith.constant 0 : index
    %171 = tpu.strided_load %arg24[%c182_246, %c0_247] {strides = array<i32: 2, 1>} : memref<232x128xf32, #tpu.memory_space<vmem>>, vector<7x128xf32>
    %c42_248 = arith.constant 42 : index
    %c256_249 = arith.constant 256 : index
    %172 = vector.load %arg25[%c42_248, %c256_249] : memref<56x1152xf32, #tpu.memory_space<vmem>>, vector<7x128xf32>
    tpu.vector_store %arg25[%c42_248, %c256_249], %171 {strides = array<i32>} : memref<56x1152xf32, #tpu.memory_space<vmem>>, vector<7x128xf32>,
    %c195 = arith.constant 195 : index
    %c0_250 = arith.constant 0 : index
    %173 = tpu.strided_load %arg24[%c195, %c0_250] {strides = array<i32: 2, 1>} : memref<232x128xf32, #tpu.memory_space<vmem>>, vector<7x128xf32>
    %c42_251 = arith.constant 42 : index
    %c384_252 = arith.constant 384 : index
    %174 = vector.load %arg25[%c42_251, %c384_252] : memref<56x1152xf32, #tpu.memory_space<vmem>>, vector<7x128xf32>
    tpu.vector_store %arg25[%c42_251, %c384_252], %173 {strides = array<i32>} : memref<56x1152xf32, #tpu.memory_space<vmem>>, vector<7x128xf32>,
    %c196_253 = arith.constant 196 : index
    %c0_254 = arith.constant 0 : index
    %175 = tpu.strided_load %arg24[%c196_253, %c0_254] {strides = array<i32: 2, 1>} : memref<232x128xf32, #tpu.memory_space<vmem>>, vector<7x128xf32>
    %c42_255 = arith.constant 42 : index
    %c512_256 = arith.constant 512 : index
    %176 = vector.load %arg25[%c42_255, %c512_256] : memref<56x1152xf32, #tpu.memory_space<vmem>>, vector<7x128xf32>
    tpu.vector_store %arg25[%c42_255, %c512_256], %175 {strides = array<i32>} : memref<56x1152xf32, #tpu.memory_space<vmem>>, vector<7x128xf32>,
    %c197 = arith.constant 197 : index
    %c0_257 = arith.constant 0 : index
    %177 = tpu.strided_load %arg24[%c197, %c0_257] {strides = array<i32: 2, 1>} : memref<232x128xf32, #tpu.memory_space<vmem>>, vector<7x128xf32>
    %c42_258 = arith.constant 42 : index
    %c640_259 = arith.constant 640 : index
    %178 = vector.load %arg25[%c42_258, %c640_259] : memref<56x1152xf32, #tpu.memory_space<vmem>>, vector<7x128xf32>
    tpu.vector_store %arg25[%c42_258, %c640_259], %177 {strides = array<i32>} : memref<56x1152xf32, #tpu.memory_space<vmem>>, vector<7x128xf32>,
    %c210 = arith.constant 210 : index
    %c0_260 = arith.constant 0 : index
    %179 = tpu.strided_load %arg24[%c210, %c0_260] {strides = array<i32: 2, 1>} : memref<232x128xf32, #tpu.memory_space<vmem>>, vector<7x128xf32>
    %c42_261 = arith.constant 42 : index
    %c768_262 = arith.constant 768 : index
    %180 = vector.load %arg25[%c42_261, %c768_262] : memref<56x1152xf32, #tpu.memory_space<vmem>>, vector<7x128xf32>
    tpu.vector_store %arg25[%c42_261, %c768_262], %179 {strides = array<i32>} : memref<56x1152xf32, #tpu.memory_space<vmem>>, vector<7x128xf32>,
    %c211 = arith.constant 211 : index
    %c0_263 = arith.constant 0 : index
    %181 = tpu.strided_load %arg24[%c211, %c0_263] {strides = array<i32: 2, 1>} : memref<232x128xf32, #tpu.memory_space<vmem>>, vector<7x128xf32>
    %c42_264 = arith.constant 42 : index
    %c896_265 = arith.constant 896 : index
    %182 = vector.load %arg25[%c42_264, %c896_265] : memref<56x1152xf32, #tpu.memory_space<vmem>>, vector<7x128xf32>
    tpu.vector_store %arg25[%c42_264, %c896_265], %181 {strides = array<i32>} : memref<56x1152xf32, #tpu.memory_space<vmem>>, vector<7x128xf32>,
    %c212 = arith.constant 212 : index
    %c0_266 = arith.constant 0 : index
    %183 = tpu.strided_load %arg24[%c212, %c0_266] {strides = array<i32: 2, 1>} : memref<232x128xf32, #tpu.memory_space<vmem>>, vector<7x128xf32>
    %c42_267 = arith.constant 42 : index
    %c1024_268 = arith.constant 1024 : index
    %184 = vector.load %arg25[%c42_267, %c1024_268] : memref<56x1152xf32, #tpu.memory_space<vmem>>, vector<7x128xf32>
    tpu.vector_store %arg25[%c42_267, %c1024_268], %183 {strides = array<i32>} : memref<56x1152xf32, #tpu.memory_space<vmem>>, vector<7x128xf32>,
    %c0_269 = arith.constant 0 : index
    %c0_270 = arith.constant 0 : index
    %185 = vector.load %arg25[%c0_269, %c0_270] : memref<56x1152xf32, #tpu.memory_space<vmem>>, vector<56x1152xf32>
    %c0_271 = arith.constant 0 : index
    %c0_272 = arith.constant 0 : index
    %186 = vector.load %arg8[%c0_271, %c0_272] : memref<1152x128xf32, #tpu.memory_space<vmem>>, vector<1152x128xf32>
    %cst_273 = arith.constant dense<0.000000e+00> : vector<56x128xf32>
    %187 = tpu.matmul %185, %186, %cst_273 {dimension_numbers = #tpu.dot_dimension_numbers<[1], [0], [0], [1], [0, 0, 1, 1], [], []>} : vector<56x1152xf32>, vector<1152x128xf32>, vector<56x128xf32> -> vector<56x128xf32>
    %c0_274 = arith.constant 0 : index
    %c0_275 = arith.constant 0 : index
    %188 = vector.load %arg9[%c0_274, %c0_275] : memref<1x128xf32, #tpu.memory_space<vmem>>, vector<1x128xf32>
    %189 = vector.broadcast %188 : vector<1x128xf32> to vector<56x128xf32>
    %190 = arith.addf %187, %189 : vector<56x128xf32>
    %cst_276 = arith.constant 0.000000e+00 : f32
    %191 = vector.broadcast %cst_276 : f32 to vector<56x128xf32>
    %192 = arith.maximumf %190, %191 : vector<56x128xf32>
    %c0_277 = arith.constant 0 : index
    %c0_278 = arith.constant 0 : index
    %c0_279 = arith.constant 0 : index
    %193 = vector.load %arg19[%c0_277, %c0_278, %c0_279] : memref<1x56x128xf32, #tpu.memory_space<vmem>>, vector<1x56x128xf32>
    %194 = vector.shape_cast %193 : vector<1x56x128xf32> to vector<56x128xf32>
    %195 = vector.shape_cast %192 : vector<56x128xf32> to vector<1x56x128xf32>
    tpu.vector_store %arg19[%c0_277, %c0_278, %c0_279], %195 {strides = array<i32>} : memref<1x56x128xf32, #tpu.memory_space<vmem>>, vector<1x56x128xf32>,
    %c0_280 = arith.constant 0 : index
    %c0_281 = arith.constant 0 : index
    %196 = vector.load %arg10[%c0_280, %c0_281] : memref<128x128xf32, #tpu.memory_space<vmem>>, vector<128x128xf32>
    %cst_282 = arith.constant dense<0.000000e+00> : vector<56x128xf32>
    %197 = tpu.matmul %192, %196, %cst_282 {dimension_numbers = #tpu.dot_dimension_numbers<[1], [0], [0], [1], [0, 0, 1, 1], [], []>} : vector<56x128xf32>, vector<128x128xf32>, vector<56x128xf32> -> vector<56x128xf32>
    %c0_283 = arith.constant 0 : index
    %c0_284 = arith.constant 0 : index
    %198 = vector.load %arg11[%c0_283, %c0_284] : memref<1x128xf32, #tpu.memory_space<vmem>>, vector<1x128xf32>
    %199 = vector.broadcast %198 : vector<1x128xf32> to vector<56x128xf32>
    %200 = arith.addf %197, %199 : vector<56x128xf32>
    %cst_285 = arith.constant 0.000000e+00 : f32
    %201 = vector.broadcast %cst_285 : f32 to vector<56x128xf32>
    %202 = arith.maximumf %200, %201 : vector<56x128xf32>
    %c0_286 = arith.constant 0 : index
    %c0_287 = arith.constant 0 : index
    %203 = vector.load %arg26[%c0_286, %c0_287] : memref<56x128xf32, #tpu.memory_space<vmem>>, vector<56x128xf32>
    tpu.vector_store %arg26[%c0_286, %c0_287], %202 {strides = array<i32>} : memref<56x128xf32, #tpu.memory_space<vmem>>, vector<56x128xf32>,
    %cst_288 = arith.constant 0.000000e+00 : f32
    %204 = vector.broadcast %cst_288 : f32 to vector<16x1152xf32>
    %c0_289 = arith.constant 0 : index
    %c0_290 = arith.constant 0 : index
    %205 = vector.load %arg27[%c0_289, %c0_290] : memref<16x1152xf32, #tpu.memory_space<vmem>>, vector<16x1152xf32>
    tpu.vector_store %arg27[%c0_289, %c0_290], %204 {strides = array<i32>} : memref<16x1152xf32, #tpu.memory_space<vmem>>, vector<16x1152xf32>,
    %c0_291 = arith.constant 0 : index
    %c0_292 = arith.constant 0 : index
    %206 = tpu.strided_load %arg26[%c0_291, %c0_292] {strides = array<i32: 2, 1>} : memref<56x128xf32, #tpu.memory_space<vmem>>, vector<3x128xf32>
    %c0_293 = arith.constant 0 : index
    %c0_294 = arith.constant 0 : index
    %207 = vector.load %arg27[%c0_293, %c0_294] : memref<16x1152xf32, #tpu.memory_space<vmem>>, vector<3x128xf32>
    tpu.vector_store %arg27[%c0_293, %c0_294], %206 {strides = array<i32>} : memref<16x1152xf32, #tpu.memory_space<vmem>>, vector<3x128xf32>,
    %c1_295 = arith.constant 1 : index
    %c0_296 = arith.constant 0 : index
    %208 = tpu.strided_load %arg26[%c1_295, %c0_296] {strides = array<i32: 2, 1>} : memref<56x128xf32, #tpu.memory_space<vmem>>, vector<3x128xf32>
    %c0_297 = arith.constant 0 : index
    %c128_298 = arith.constant 128 : index
    %209 = vector.load %arg27[%c0_297, %c128_298] : memref<16x1152xf32, #tpu.memory_space<vmem>>, vector<3x128xf32>
    tpu.vector_store %arg27[%c0_297, %c128_298], %208 {strides = array<i32>} : memref<16x1152xf32, #tpu.memory_space<vmem>>, vector<3x128xf32>,
    %c2_299 = arith.constant 2 : index
    %c0_300 = arith.constant 0 : index
    %210 = tpu.strided_load %arg26[%c2_299, %c0_300] {strides = array<i32: 2, 1>} : memref<56x128xf32, #tpu.memory_space<vmem>>, vector<3x128xf32>
    %c0_301 = arith.constant 0 : index
    %c256_302 = arith.constant 256 : index
    %211 = vector.load %arg27[%c0_301, %c256_302] : memref<16x1152xf32, #tpu.memory_space<vmem>>, vector<3x128xf32>
    tpu.vector_store %arg27[%c0_301, %c256_302], %210 {strides = array<i32>} : memref<16x1152xf32, #tpu.memory_space<vmem>>, vector<3x128xf32>,
    %c7_303 = arith.constant 7 : index
    %c0_304 = arith.constant 0 : index
    %212 = tpu.strided_load %arg26[%c7_303, %c0_304] {strides = array<i32: 2, 1>} : memref<56x128xf32, #tpu.memory_space<vmem>>, vector<3x128xf32>
    %c0_305 = arith.constant 0 : index
    %c384_306 = arith.constant 384 : index
    %213 = vector.load %arg27[%c0_305, %c384_306] : memref<16x1152xf32, #tpu.memory_space<vmem>>, vector<3x128xf32>
    tpu.vector_store %arg27[%c0_305, %c384_306], %212 {strides = array<i32>} : memref<16x1152xf32, #tpu.memory_space<vmem>>, vector<3x128xf32>,
    %c8 = arith.constant 8 : index
    %c0_307 = arith.constant 0 : index
    %214 = tpu.strided_load %arg26[%c8, %c0_307] {strides = array<i32: 2, 1>} : memref<56x128xf32, #tpu.memory_space<vmem>>, vector<3x128xf32>
    %c0_308 = arith.constant 0 : index
    %c512_309 = arith.constant 512 : index
    %215 = vector.load %arg27[%c0_308, %c512_309] : memref<16x1152xf32, #tpu.memory_space<vmem>>, vector<3x128xf32>
    tpu.vector_store %arg27[%c0_308, %c512_309], %214 {strides = array<i32>} : memref<16x1152xf32, #tpu.memory_space<vmem>>, vector<3x128xf32>,
    %c9 = arith.constant 9 : index
    %c0_310 = arith.constant 0 : index
    %216 = tpu.strided_load %arg26[%c9, %c0_310] {strides = array<i32: 2, 1>} : memref<56x128xf32, #tpu.memory_space<vmem>>, vector<3x128xf32>
    %c0_311 = arith.constant 0 : index
    %c640_312 = arith.constant 640 : index
    %217 = vector.load %arg27[%c0_311, %c640_312] : memref<16x1152xf32, #tpu.memory_space<vmem>>, vector<3x128xf32>
    tpu.vector_store %arg27[%c0_311, %c640_312], %216 {strides = array<i32>} : memref<16x1152xf32, #tpu.memory_space<vmem>>, vector<3x128xf32>,
    %c14_313 = arith.constant 14 : index
    %c0_314 = arith.constant 0 : index
    %218 = tpu.strided_load %arg26[%c14_313, %c0_314] {strides = array<i32: 2, 1>} : memref<56x128xf32, #tpu.memory_space<vmem>>, vector<3x128xf32>
    %c0_315 = arith.constant 0 : index
    %c768_316 = arith.constant 768 : index
    %219 = vector.load %arg27[%c0_315, %c768_316] : memref<16x1152xf32, #tpu.memory_space<vmem>>, vector<3x128xf32>
    tpu.vector_store %arg27[%c0_315, %c768_316], %218 {strides = array<i32>} : memref<16x1152xf32, #tpu.memory_space<vmem>>, vector<3x128xf32>,
    %c15_317 = arith.constant 15 : index
    %c0_318 = arith.constant 0 : index
    %220 = tpu.strided_load %arg26[%c15_317, %c0_318] {strides = array<i32: 2, 1>} : memref<56x128xf32, #tpu.memory_space<vmem>>, vector<3x128xf32>
    %c0_319 = arith.constant 0 : index
    %c896_320 = arith.constant 896 : index
    %221 = vector.load %arg27[%c0_319, %c896_320] : memref<16x1152xf32, #tpu.memory_space<vmem>>, vector<3x128xf32>
    tpu.vector_store %arg27[%c0_319, %c896_320], %220 {strides = array<i32>} : memref<16x1152xf32, #tpu.memory_space<vmem>>, vector<3x128xf32>,
    %c16_321 = arith.constant 16 : index
    %c0_322 = arith.constant 0 : index
    %222 = tpu.strided_load %arg26[%c16_321, %c0_322] {strides = array<i32: 2, 1>} : memref<56x128xf32, #tpu.memory_space<vmem>>, vector<3x128xf32>
    %c0_323 = arith.constant 0 : index
    %c1024_324 = arith.constant 1024 : index
    %223 = vector.load %arg27[%c0_323, %c1024_324] : memref<16x1152xf32, #tpu.memory_space<vmem>>, vector<3x128xf32>
    tpu.vector_store %arg27[%c0_323, %c1024_324], %222 {strides = array<i32>} : memref<16x1152xf32, #tpu.memory_space<vmem>>, vector<3x128xf32>,
    %c14_325 = arith.constant 14 : index
    %c0_326 = arith.constant 0 : index
    %224 = tpu.strided_load %arg26[%c14_325, %c0_326] {strides = array<i32: 2, 1>} : memref<56x128xf32, #tpu.memory_space<vmem>>, vector<3x128xf32>
    %c3 = arith.constant 3 : index
    %c0_327 = arith.constant 0 : index
    %225 = vector.load %arg27[%c3, %c0_327] : memref<16x1152xf32, #tpu.memory_space<vmem>>, vector<3x128xf32>
    tpu.vector_store %arg27[%c3, %c0_327], %224 {strides = array<i32>} : memref<16x1152xf32, #tpu.memory_space<vmem>>, vector<3x128xf32>,
    %c15_328 = arith.constant 15 : index
    %c0_329 = arith.constant 0 : index
    %226 = tpu.strided_load %arg26[%c15_328, %c0_329] {strides = array<i32: 2, 1>} : memref<56x128xf32, #tpu.memory_space<vmem>>, vector<3x128xf32>
    %c3_330 = arith.constant 3 : index
    %c128_331 = arith.constant 128 : index
    %227 = vector.load %arg27[%c3_330, %c128_331] : memref<16x1152xf32, #tpu.memory_space<vmem>>, vector<3x128xf32>
    tpu.vector_store %arg27[%c3_330, %c128_331], %226 {strides = array<i32>} : memref<16x1152xf32, #tpu.memory_space<vmem>>, vector<3x128xf32>,
    %c16_332 = arith.constant 16 : index
    %c0_333 = arith.constant 0 : index
    %228 = tpu.strided_load %arg26[%c16_332, %c0_333] {strides = array<i32: 2, 1>} : memref<56x128xf32, #tpu.memory_space<vmem>>, vector<3x128xf32>
    %c3_334 = arith.constant 3 : index
    %c256_335 = arith.constant 256 : index
    %229 = vector.load %arg27[%c3_334, %c256_335] : memref<16x1152xf32, #tpu.memory_space<vmem>>, vector<3x128xf32>
    tpu.vector_store %arg27[%c3_334, %c256_335], %228 {strides = array<i32>} : memref<16x1152xf32, #tpu.memory_space<vmem>>, vector<3x128xf32>,
    %c21_336 = arith.constant 21 : index
    %c0_337 = arith.constant 0 : index
    %230 = tpu.strided_load %arg26[%c21_336, %c0_337] {strides = array<i32: 2, 1>} : memref<56x128xf32, #tpu.memory_space<vmem>>, vector<3x128xf32>
    %c3_338 = arith.constant 3 : index
    %c384_339 = arith.constant 384 : index
    %231 = vector.load %arg27[%c3_338, %c384_339] : memref<16x1152xf32, #tpu.memory_space<vmem>>, vector<3x128xf32>
    tpu.vector_store %arg27[%c3_338, %c384_339], %230 {strides = array<i32>} : memref<16x1152xf32, #tpu.memory_space<vmem>>, vector<3x128xf32>,
    %c22 = arith.constant 22 : index
    %c0_340 = arith.constant 0 : index
    %232 = tpu.strided_load %arg26[%c22, %c0_340] {strides = array<i32: 2, 1>} : memref<56x128xf32, #tpu.memory_space<vmem>>, vector<3x128xf32>
    %c3_341 = arith.constant 3 : index
    %c512_342 = arith.constant 512 : index
    %233 = vector.load %arg27[%c3_341, %c512_342] : memref<16x1152xf32, #tpu.memory_space<vmem>>, vector<3x128xf32>
    tpu.vector_store %arg27[%c3_341, %c512_342], %232 {strides = array<i32>} : memref<16x1152xf32, #tpu.memory_space<vmem>>, vector<3x128xf32>,
    %c23 = arith.constant 23 : index
    %c0_343 = arith.constant 0 : index
    %234 = tpu.strided_load %arg26[%c23, %c0_343] {strides = array<i32: 2, 1>} : memref<56x128xf32, #tpu.memory_space<vmem>>, vector<3x128xf32>
    %c3_344 = arith.constant 3 : index
    %c640_345 = arith.constant 640 : index
    %235 = vector.load %arg27[%c3_344, %c640_345] : memref<16x1152xf32, #tpu.memory_space<vmem>>, vector<3x128xf32>
    tpu.vector_store %arg27[%c3_344, %c640_345], %234 {strides = array<i32>} : memref<16x1152xf32, #tpu.memory_space<vmem>>, vector<3x128xf32>,
    %c28_346 = arith.constant 28 : index
    %c0_347 = arith.constant 0 : index
    %236 = tpu.strided_load %arg26[%c28_346, %c0_347] {strides = array<i32: 2, 1>} : memref<56x128xf32, #tpu.memory_space<vmem>>, vector<3x128xf32>
    %c3_348 = arith.constant 3 : index
    %c768_349 = arith.constant 768 : index
    %237 = vector.load %arg27[%c3_348, %c768_349] : memref<16x1152xf32, #tpu.memory_space<vmem>>, vector<3x128xf32>
    tpu.vector_store %arg27[%c3_348, %c768_349], %236 {strides = array<i32>} : memref<16x1152xf32, #tpu.memory_space<vmem>>, vector<3x128xf32>,
    %c29 = arith.constant 29 : index
    %c0_350 = arith.constant 0 : index
    %238 = tpu.strided_load %arg26[%c29, %c0_350] {strides = array<i32: 2, 1>} : memref<56x128xf32, #tpu.memory_space<vmem>>, vector<3x128xf32>
    %c3_351 = arith.constant 3 : index
    %c896_352 = arith.constant 896 : index
    %239 = vector.load %arg27[%c3_351, %c896_352] : memref<16x1152xf32, #tpu.memory_space<vmem>>, vector<3x128xf32>
    tpu.vector_store %arg27[%c3_351, %c896_352], %238 {strides = array<i32>} : memref<16x1152xf32, #tpu.memory_space<vmem>>, vector<3x128xf32>,
    %c30_353 = arith.constant 30 : index
    %c0_354 = arith.constant 0 : index
    %240 = tpu.strided_load %arg26[%c30_353, %c0_354] {strides = array<i32: 2, 1>} : memref<56x128xf32, #tpu.memory_space<vmem>>, vector<3x128xf32>
    %c3_355 = arith.constant 3 : index
    %c1024_356 = arith.constant 1024 : index
    %241 = vector.load %arg27[%c3_355, %c1024_356] : memref<16x1152xf32, #tpu.memory_space<vmem>>, vector<3x128xf32>
    tpu.vector_store %arg27[%c3_355, %c1024_356], %240 {strides = array<i32>} : memref<16x1152xf32, #tpu.memory_space<vmem>>, vector<3x128xf32>,
    %c28_357 = arith.constant 28 : index
    %c0_358 = arith.constant 0 : index
    %242 = tpu.strided_load %arg26[%c28_357, %c0_358] {strides = array<i32: 2, 1>} : memref<56x128xf32, #tpu.memory_space<vmem>>, vector<3x128xf32>
    %c6 = arith.constant 6 : index
    %c0_359 = arith.constant 0 : index
    %243 = vector.load %arg27[%c6, %c0_359] : memref<16x1152xf32, #tpu.memory_space<vmem>>, vector<3x128xf32>
    tpu.vector_store %arg27[%c6, %c0_359], %242 {strides = array<i32>} : memref<16x1152xf32, #tpu.memory_space<vmem>>, vector<3x128xf32>,
    %c29_360 = arith.constant 29 : index
    %c0_361 = arith.constant 0 : index
    %244 = tpu.strided_load %arg26[%c29_360, %c0_361] {strides = array<i32: 2, 1>} : memref<56x128xf32, #tpu.memory_space<vmem>>, vector<3x128xf32>
    %c6_362 = arith.constant 6 : index
    %c128_363 = arith.constant 128 : index
    %245 = vector.load %arg27[%c6_362, %c128_363] : memref<16x1152xf32, #tpu.memory_space<vmem>>, vector<3x128xf32>
    tpu.vector_store %arg27[%c6_362, %c128_363], %244 {strides = array<i32>} : memref<16x1152xf32, #tpu.memory_space<vmem>>, vector<3x128xf32>,
    %c30_364 = arith.constant 30 : index
    %c0_365 = arith.constant 0 : index
    %246 = tpu.strided_load %arg26[%c30_364, %c0_365] {strides = array<i32: 2, 1>} : memref<56x128xf32, #tpu.memory_space<vmem>>, vector<3x128xf32>
    %c6_366 = arith.constant 6 : index
    %c256_367 = arith.constant 256 : index
    %247 = vector.load %arg27[%c6_366, %c256_367] : memref<16x1152xf32, #tpu.memory_space<vmem>>, vector<3x128xf32>
    tpu.vector_store %arg27[%c6_366, %c256_367], %246 {strides = array<i32>} : memref<16x1152xf32, #tpu.memory_space<vmem>>, vector<3x128xf32>,
    %c35_368 = arith.constant 35 : index
    %c0_369 = arith.constant 0 : index
    %248 = tpu.strided_load %arg26[%c35_368, %c0_369] {strides = array<i32: 2, 1>} : memref<56x128xf32, #tpu.memory_space<vmem>>, vector<3x128xf32>
    %c6_370 = arith.constant 6 : index
    %c384_371 = arith.constant 384 : index
    %249 = vector.load %arg27[%c6_370, %c384_371] : memref<16x1152xf32, #tpu.memory_space<vmem>>, vector<3x128xf32>
    tpu.vector_store %arg27[%c6_370, %c384_371], %248 {strides = array<i32>} : memref<16x1152xf32, #tpu.memory_space<vmem>>, vector<3x128xf32>,
    %c36 = arith.constant 36 : index
    %c0_372 = arith.constant 0 : index
    %250 = tpu.strided_load %arg26[%c36, %c0_372] {strides = array<i32: 2, 1>} : memref<56x128xf32, #tpu.memory_space<vmem>>, vector<3x128xf32>
    %c6_373 = arith.constant 6 : index
    %c512_374 = arith.constant 512 : index
    %251 = vector.load %arg27[%c6_373, %c512_374] : memref<16x1152xf32, #tpu.memory_space<vmem>>, vector<3x128xf32>
    tpu.vector_store %arg27[%c6_373, %c512_374], %250 {strides = array<i32>} : memref<16x1152xf32, #tpu.memory_space<vmem>>, vector<3x128xf32>,
    %c37 = arith.constant 37 : index
    %c0_375 = arith.constant 0 : index
    %252 = tpu.strided_load %arg26[%c37, %c0_375] {strides = array<i32: 2, 1>} : memref<56x128xf32, #tpu.memory_space<vmem>>, vector<3x128xf32>
    %c6_376 = arith.constant 6 : index
    %c640_377 = arith.constant 640 : index
    %253 = vector.load %arg27[%c6_376, %c640_377] : memref<16x1152xf32, #tpu.memory_space<vmem>>, vector<3x128xf32>
    tpu.vector_store %arg27[%c6_376, %c640_377], %252 {strides = array<i32>} : memref<16x1152xf32, #tpu.memory_space<vmem>>, vector<3x128xf32>,
    %c42_378 = arith.constant 42 : index
    %c0_379 = arith.constant 0 : index
    %254 = tpu.strided_load %arg26[%c42_378, %c0_379] {strides = array<i32: 2, 1>} : memref<56x128xf32, #tpu.memory_space<vmem>>, vector<3x128xf32>
    %c6_380 = arith.constant 6 : index
    %c768_381 = arith.constant 768 : index
    %255 = vector.load %arg27[%c6_380, %c768_381] : memref<16x1152xf32, #tpu.memory_space<vmem>>, vector<3x128xf32>
    tpu.vector_store %arg27[%c6_380, %c768_381], %254 {strides = array<i32>} : memref<16x1152xf32, #tpu.memory_space<vmem>>, vector<3x128xf32>,
    %c43 = arith.constant 43 : index
    %c0_382 = arith.constant 0 : index
    %256 = tpu.strided_load %arg26[%c43, %c0_382] {strides = array<i32: 2, 1>} : memref<56x128xf32, #tpu.memory_space<vmem>>, vector<3x128xf32>
    %c6_383 = arith.constant 6 : index
    %c896_384 = arith.constant 896 : index
    %257 = vector.load %arg27[%c6_383, %c896_384] : memref<16x1152xf32, #tpu.memory_space<vmem>>, vector<3x128xf32>
    tpu.vector_store %arg27[%c6_383, %c896_384], %256 {strides = array<i32>} : memref<16x1152xf32, #tpu.memory_space<vmem>>, vector<3x128xf32>,
    %c44 = arith.constant 44 : index
    %c0_385 = arith.constant 0 : index
    %258 = tpu.strided_load %arg26[%c44, %c0_385] {strides = array<i32: 2, 1>} : memref<56x128xf32, #tpu.memory_space<vmem>>, vector<3x128xf32>
    %c6_386 = arith.constant 6 : index
    %c1024_387 = arith.constant 1024 : index
    %259 = vector.load %arg27[%c6_386, %c1024_387] : memref<16x1152xf32, #tpu.memory_space<vmem>>, vector<3x128xf32>
    tpu.vector_store %arg27[%c6_386, %c1024_387], %258 {strides = array<i32>} : memref<16x1152xf32, #tpu.memory_space<vmem>>, vector<3x128xf32>,
    %c0_388 = arith.constant 0 : index
    %c0_389 = arith.constant 0 : index
    %260 = vector.load %arg27[%c0_388, %c0_389] : memref<16x1152xf32, #tpu.memory_space<vmem>>, vector<16x1152xf32>
    %c0_390 = arith.constant 0 : index
    %c0_391 = arith.constant 0 : index
    %261 = vector.load %arg12[%c0_390, %c0_391] : memref<1152x128xf32, #tpu.memory_space<vmem>>, vector<1152x128xf32>
    %cst_392 = arith.constant dense<0.000000e+00> : vector<16x128xf32>
    %262 = tpu.matmul %260, %261, %cst_392 {dimension_numbers = #tpu.dot_dimension_numbers<[1], [0], [0], [1], [0, 0, 1, 1], [], []>} : vector<16x1152xf32>, vector<1152x128xf32>, vector<16x128xf32> -> vector<16x128xf32>
    %c0_393 = arith.constant 0 : index
    %c0_394 = arith.constant 0 : index
    %263 = vector.load %arg13[%c0_393, %c0_394] : memref<1x128xf32, #tpu.memory_space<vmem>>, vector<1x128xf32>
    %264 = vector.broadcast %263 : vector<1x128xf32> to vector<16x128xf32>
    %265 = arith.addf %262, %264 : vector<16x128xf32>
    %cst_395 = arith.constant 0.000000e+00 : f32
    %266 = vector.broadcast %cst_395 : f32 to vector<16x128xf32>
    %267 = arith.maximumf %265, %266 : vector<16x128xf32>
    %c0_396 = arith.constant 0 : index
    %c0_397 = arith.constant 0 : index
    %c0_398 = arith.constant 0 : index
    %268 = vector.load %arg20[%c0_396, %c0_397, %c0_398] : memref<1x16x128xf32, #tpu.memory_space<vmem>>, vector<1x16x128xf32>
    %269 = vector.shape_cast %268 : vector<1x16x128xf32> to vector<16x128xf32>
    %270 = vector.shape_cast %267 : vector<16x128xf32> to vector<1x16x128xf32>
    tpu.vector_store %arg20[%c0_396, %c0_397, %c0_398], %270 {strides = array<i32>} : memref<1x16x128xf32, #tpu.memory_space<vmem>>, vector<1x16x128xf32>,
    %c0_399 = arith.constant 0 : index
    %c0_400 = arith.constant 0 : index
    %271 = vector.load %arg14[%c0_399, %c0_400] : memref<128x128xf32, #tpu.memory_space<vmem>>, vector<128x128xf32>
    %cst_401 = arith.constant dense<0.000000e+00> : vector<16x128xf32>
    %272 = tpu.matmul %267, %271, %cst_401 {dimension_numbers = #tpu.dot_dimension_numbers<[1], [0], [0], [1], [0, 0, 1, 1], [], []>} : vector<16x128xf32>, vector<128x128xf32>, vector<16x128xf32> -> vector<16x128xf32>
    %c0_402 = arith.constant 0 : index
    %c0_403 = arith.constant 0 : index
    %273 = vector.load %arg15[%c0_402, %c0_403] : memref<1x128xf32, #tpu.memory_space<vmem>>, vector<1x128xf32>
    %274 = vector.broadcast %273 : vector<1x128xf32> to vector<16x128xf32>
    %275 = arith.addf %272, %274 : vector<16x128xf32>
    %cst_404 = arith.constant 0.000000e+00 : f32
    %276 = vector.broadcast %cst_404 : f32 to vector<16x128xf32>
    %277 = arith.maximumf %275, %276 : vector<16x128xf32>
    %c0_405 = arith.constant 0 : index
    %c0_406 = arith.constant 0 : index
    %278 = vector.load %arg28[%c0_405, %c0_406] : memref<16x128xf32, #tpu.memory_space<vmem>>, vector<16x128xf32>
    tpu.vector_store %arg28[%c0_405, %c0_406], %277 {strides = array<i32>} : memref<16x128xf32, #tpu.memory_space<vmem>>, vector<16x128xf32>,
    %cst_407 = arith.constant 0.000000e+00 : f32
    %279 = vector.broadcast %cst_407 : f32 to vector<8x1152xf32>
    %c0_408 = arith.constant 0 : index
    %c0_409 = arith.constant 0 : index
    %280 = vector.load %arg29[%c0_408, %c0_409] : memref<8x1152xf32, #tpu.memory_space<vmem>>, vector<8x1152xf32>
    tpu.vector_store %arg29[%c0_408, %c0_409], %279 {strides = array<i32>} : memref<8x1152xf32, #tpu.memory_space<vmem>>, vector<8x1152xf32>,
    %c0_410 = arith.constant 0 : index
    %c0_411 = arith.constant 0 : index
    %281 = vector.load %arg28[%c0_410, %c0_411] : memref<16x128xf32, #tpu.memory_space<vmem>>, vector<1x128xf32>
    %c0_412 = arith.constant 0 : index
    %c0_413 = arith.constant 0 : index
    %282 = vector.load %arg29[%c0_412, %c0_413] : memref<8x1152xf32, #tpu.memory_space<vmem>>, vector<1x128xf32>
    tpu.vector_store %arg29[%c0_412, %c0_413], %281 {strides = array<i32>} : memref<8x1152xf32, #tpu.memory_space<vmem>>, vector<1x128xf32>,
    %c1_414 = arith.constant 1 : index
    %c0_415 = arith.constant 0 : index
    %283 = vector.load %arg28[%c1_414, %c0_415] : memref<16x128xf32, #tpu.memory_space<vmem>>, vector<1x128xf32>
    %c0_416 = arith.constant 0 : index
    %c128_417 = arith.constant 128 : index
    %284 = vector.load %arg29[%c0_416, %c128_417] : memref<8x1152xf32, #tpu.memory_space<vmem>>, vector<1x128xf32>
    tpu.vector_store %arg29[%c0_416, %c128_417], %283 {strides = array<i32>} : memref<8x1152xf32, #tpu.memory_space<vmem>>, vector<1x128xf32>,
    %c2_418 = arith.constant 2 : index
    %c0_419 = arith.constant 0 : index
    %285 = vector.load %arg28[%c2_418, %c0_419] : memref<16x128xf32, #tpu.memory_space<vmem>>, vector<1x128xf32>
    %c0_420 = arith.constant 0 : index
    %c256_421 = arith.constant 256 : index
    %286 = vector.load %arg29[%c0_420, %c256_421] : memref<8x1152xf32, #tpu.memory_space<vmem>>, vector<1x128xf32>
    tpu.vector_store %arg29[%c0_420, %c256_421], %285 {strides = array<i32>} : memref<8x1152xf32, #tpu.memory_space<vmem>>, vector<1x128xf32>,
    %c3_422 = arith.constant 3 : index
    %c0_423 = arith.constant 0 : index
    %287 = vector.load %arg28[%c3_422, %c0_423] : memref<16x128xf32, #tpu.memory_space<vmem>>, vector<1x128xf32>
    %c0_424 = arith.constant 0 : index
    %c384_425 = arith.constant 384 : index
    %288 = vector.load %arg29[%c0_424, %c384_425] : memref<8x1152xf32, #tpu.memory_space<vmem>>, vector<1x128xf32>
    tpu.vector_store %arg29[%c0_424, %c384_425], %287 {strides = array<i32>} : memref<8x1152xf32, #tpu.memory_space<vmem>>, vector<1x128xf32>,
    %c4 = arith.constant 4 : index
    %c0_426 = arith.constant 0 : index
    %289 = vector.load %arg28[%c4, %c0_426] : memref<16x128xf32, #tpu.memory_space<vmem>>, vector<1x128xf32>
    %c0_427 = arith.constant 0 : index
    %c512_428 = arith.constant 512 : index
    %290 = vector.load %arg29[%c0_427, %c512_428] : memref<8x1152xf32, #tpu.memory_space<vmem>>, vector<1x128xf32>
    tpu.vector_store %arg29[%c0_427, %c512_428], %289 {strides = array<i32>} : memref<8x1152xf32, #tpu.memory_space<vmem>>, vector<1x128xf32>,
    %c5 = arith.constant 5 : index
    %c0_429 = arith.constant 0 : index
    %291 = vector.load %arg28[%c5, %c0_429] : memref<16x128xf32, #tpu.memory_space<vmem>>, vector<1x128xf32>
    %c0_430 = arith.constant 0 : index
    %c640_431 = arith.constant 640 : index
    %292 = vector.load %arg29[%c0_430, %c640_431] : memref<8x1152xf32, #tpu.memory_space<vmem>>, vector<1x128xf32>
    tpu.vector_store %arg29[%c0_430, %c640_431], %291 {strides = array<i32>} : memref<8x1152xf32, #tpu.memory_space<vmem>>, vector<1x128xf32>,
    %c6_432 = arith.constant 6 : index
    %c0_433 = arith.constant 0 : index
    %293 = vector.load %arg28[%c6_432, %c0_433] : memref<16x128xf32, #tpu.memory_space<vmem>>, vector<1x128xf32>
    %c0_434 = arith.constant 0 : index
    %c768_435 = arith.constant 768 : index
    %294 = vector.load %arg29[%c0_434, %c768_435] : memref<8x1152xf32, #tpu.memory_space<vmem>>, vector<1x128xf32>
    tpu.vector_store %arg29[%c0_434, %c768_435], %293 {strides = array<i32>} : memref<8x1152xf32, #tpu.memory_space<vmem>>, vector<1x128xf32>,
    %c7_436 = arith.constant 7 : index
    %c0_437 = arith.constant 0 : index
    %295 = vector.load %arg28[%c7_436, %c0_437] : memref<16x128xf32, #tpu.memory_space<vmem>>, vector<1x128xf32>
    %c0_438 = arith.constant 0 : index
    %c896_439 = arith.constant 896 : index
    %296 = vector.load %arg29[%c0_438, %c896_439] : memref<8x1152xf32, #tpu.memory_space<vmem>>, vector<1x128xf32>
    tpu.vector_store %arg29[%c0_438, %c896_439], %295 {strides = array<i32>} : memref<8x1152xf32, #tpu.memory_space<vmem>>, vector<1x128xf32>,
    %c8_440 = arith.constant 8 : index
    %c0_441 = arith.constant 0 : index
    %297 = vector.load %arg28[%c8_440, %c0_441] : memref<16x128xf32, #tpu.memory_space<vmem>>, vector<1x128xf32>
    %c0_442 = arith.constant 0 : index
    %c1024_443 = arith.constant 1024 : index
    %298 = vector.load %arg29[%c0_442, %c1024_443] : memref<8x1152xf32, #tpu.memory_space<vmem>>, vector<1x128xf32>
    tpu.vector_store %arg29[%c0_442, %c1024_443], %297 {strides = array<i32>} : memref<8x1152xf32, #tpu.memory_space<vmem>>, vector<1x128xf32>,
    %c0_444 = arith.constant 0 : index
    %c0_445 = arith.constant 0 : index
    %299 = vector.load %arg29[%c0_444, %c0_445] : memref<8x1152xf32, #tpu.memory_space<vmem>>, vector<8x1152xf32>
    %c0_446 = arith.constant 0 : index
    %c0_447 = arith.constant 0 : index
    %300 = vector.load %arg16[%c0_446, %c0_447] : memref<1152x128xf32, #tpu.memory_space<vmem>>, vector<1152x128xf32>
    %cst_448 = arith.constant dense<0.000000e+00> : vector<8x128xf32>
    %301 = tpu.matmul %299, %300, %cst_448 {dimension_numbers = #tpu.dot_dimension_numbers<[1], [0], [0], [1], [0, 0, 1, 1], [], []>} : vector<8x1152xf32>, vector<1152x128xf32>, vector<8x128xf32> -> vector<8x128xf32>
    %c0_449 = arith.constant 0 : index
    %c0_450 = arith.constant 0 : index
    %302 = vector.load %arg17[%c0_449, %c0_450] : memref<1x128xf32, #tpu.memory_space<vmem>>, vector<1x128xf32>
    %303 = vector.broadcast %302 : vector<1x128xf32> to vector<8x128xf32>
    %304 = arith.addf %301, %303 : vector<8x128xf32>
    %cst_451 = arith.constant 0.000000e+00 : f32
    %305 = vector.broadcast %cst_451 : f32 to vector<8x128xf32>
    %306 = arith.maximumf %304, %305 : vector<8x128xf32>
    %c0_452 = arith.constant 0 : index
    %c0_453 = arith.constant 0 : index
    %c0_454 = arith.constant 0 : index
    %307 = vector.load %arg21[%c0_452, %c0_453, %c0_454] : memref<1x8x128xf32, #tpu.memory_space<vmem>>, vector<1x8x128xf32>
    %308 = vector.shape_cast %307 : vector<1x8x128xf32> to vector<8x128xf32>
    %309 = vector.shape_cast %306 : vector<8x128xf32> to vector<1x8x128xf32>
    tpu.vector_store %arg21[%c0_452, %c0_453, %c0_454], %309 {strides = array<i32>} : memref<1x8x128xf32, #tpu.memory_space<vmem>>, vector<1x8x128xf32>,
    return
  }
  func.func @transform_0(%arg0: i32) -> (i32, i32, i32) {
    %c0_i32 = arith.constant 0 : i32
    %c0_i32_0 = arith.constant 0 : i32
    %c0_i32_1 = arith.constant 0 : i32
    return %arg0, %c0_i32, %c0_i32_0 : i32, i32, i32
  }
  func.func @transform_1(%arg0: i32) -> (i32, i32) {
    %c0_i32 = arith.constant 0 : i32
    %c0_i32_0 = arith.constant 0 : i32
    %c0_i32_1 = arith.constant 0 : i32
    return %c0_i32, %c0_i32_0 : i32, i32
  }
  func.func @transform_2(%arg0: i32) -> (i32, i32) {
    %c0_i32 = arith.constant 0 : i32
    %c0_i32_0 = arith.constant 0 : i32
    %c0_i32_1 = arith.constant 0 : i32
    return %c0_i32, %c0_i32_0 : i32, i32
  }
  func.func @transform_3(%arg0: i32) -> (i32, i32) {
    %c0_i32 = arith.constant 0 : i32
    %c0_i32_0 = arith.constant 0 : i32
    %c0_i32_1 = arith.constant 0 : i32
    return %c0_i32, %c0_i32_0 : i32, i32
  }
  func.func @transform_4(%arg0: i32) -> (i32, i32) {
    %c0_i32 = arith.constant 0 : i32
    %c0_i32_0 = arith.constant 0 : i32
    %c0_i32_1 = arith.constant 0 : i32
    return %c0_i32, %c0_i32_0 : i32, i32
  }
  func.func @transform_5(%arg0: i32) -> (i32, i32) {
    %c0_i32 = arith.constant 0 : i32
    %c0_i32_0 = arith.constant 0 : i32
    %c0_i32_1 = arith.constant 0 : i32
    return %c0_i32, %c0_i32_0 : i32, i32
  }
  func.func @transform_6(%arg0: i32) -> (i32, i32) {
    %c0_i32 = arith.constant 0 : i32
    %c0_i32_0 = arith.constant 0 : i32
    %c0_i32_1 = arith.constant 0 : i32
    return %c0_i32, %c0_i32_0 : i32, i32
  }
  func.func @transform_7(%arg0: i32) -> (i32, i32) {
    %c0_i32 = arith.constant 0 : i32
    %c0_i32_0 = arith.constant 0 : i32
    %c0_i32_1 = arith.constant 0 : i32
    return %c0_i32, %c0_i32_0 : i32, i32
  }
  func.func @transform_8(%arg0: i32) -> (i32, i32) {
    %c0_i32 = arith.constant 0 : i32
    %c0_i32_0 = arith.constant 0 : i32
    %c0_i32_1 = arith.constant 0 : i32
    return %c0_i32, %c0_i32_0 : i32, i32
  }
  func.func @transform_9(%arg0: i32) -> (i32, i32) {
    %c0_i32 = arith.constant 0 : i32
    %c0_i32_0 = arith.constant 0 : i32
    %c0_i32_1 = arith.constant 0 : i32
    return %c0_i32, %c0_i32_0 : i32, i32
  }
  func.func @transform_10(%arg0: i32) -> (i32, i32) {
    %c0_i32 = arith.constant 0 : i32
    %c0_i32_0 = arith.constant 0 : i32
    %c0_i32_1 = arith.constant 0 : i32
    return %c0_i32, %c0_i32_0 : i32, i32
  }
  func.func @transform_11(%arg0: i32) -> (i32, i32) {
    %c0_i32 = arith.constant 0 : i32
    %c0_i32_0 = arith.constant 0 : i32
    %c0_i32_1 = arith.constant 0 : i32
    return %c0_i32, %c0_i32_0 : i32, i32
  }
  func.func @transform_12(%arg0: i32) -> (i32, i32) {
    %c0_i32 = arith.constant 0 : i32
    %c0_i32_0 = arith.constant 0 : i32
    %c0_i32_1 = arith.constant 0 : i32
    return %c0_i32, %c0_i32_0 : i32, i32
  }
  func.func @transform_13(%arg0: i32) -> (i32, i32) {
    %c0_i32 = arith.constant 0 : i32
    %c0_i32_0 = arith.constant 0 : i32
    %c0_i32_1 = arith.constant 0 : i32
    return %c0_i32, %c0_i32_0 : i32, i32
  }
  func.func @transform_14(%arg0: i32) -> (i32, i32) {
    %c0_i32 = arith.constant 0 : i32
    %c0_i32_0 = arith.constant 0 : i32
    %c0_i32_1 = arith.constant 0 : i32
    return %c0_i32, %c0_i32_0 : i32, i32
  }
  func.func @transform_15(%arg0: i32) -> (i32, i32) {
    %c0_i32 = arith.constant 0 : i32
    %c0_i32_0 = arith.constant 0 : i32
    %c0_i32_1 = arith.constant 0 : i32
    return %c0_i32, %c0_i32_0 : i32, i32
  }
  func.func @transform_16(%arg0: i32) -> (i32, i32) {
    %c0_i32 = arith.constant 0 : i32
    %c0_i32_0 = arith.constant 0 : i32
    %c0_i32_1 = arith.constant 0 : i32
    return %c0_i32, %c0_i32_0 : i32, i32
  }
  func.func @transform_17(%arg0: i32) -> (i32, i32, i32) {
    %c0_i32 = arith.constant 0 : i32
    %c0_i32_0 = arith.constant 0 : i32
    %c0_i32_1 = arith.constant 0 : i32
    return %arg0, %c0_i32, %c0_i32_0 : i32, i32, i32
  }
  func.func @transform_18(%arg0: i32) -> (i32, i32, i32) {
    %c0_i32 = arith.constant 0 : i32
    %c0_i32_0 = arith.constant 0 : i32
    %c0_i32_1 = arith.constant 0 : i32
    return %arg0, %c0_i32, %c0_i32_0 : i32, i32, i32
  }
  func.func @transform_19(%arg0: i32) -> (i32, i32, i32) {
    %c0_i32 = arith.constant 0 : i32
    %c0_i32_0 = arith.constant 0 : i32
    %c0_i32_1 = arith.constant 0 : i32
    return %arg0, %c0_i32, %c0_i32_0 : i32, i32, i32
  }
  func.func @transform_20(%arg0: i32) -> (i32, i32, i32) {
    %c0_i32 = arith.constant 0 : i32
    %c0_i32_0 = arith.constant 0 : i32
    %c0_i32_1 = arith.constant 0 : i32
    return %arg0, %c0_i32, %c0_i32_0 : i32, i32, i32
  }
}

</mosaic_0001>

<llo_original>
// kernel: _lambda_.1
$region0: #{_lambda_.1}
  #allocation0 [shape = 'u32[]', space=smem, size = 0x4, offset = 0x4, fixed_abs, tag = 'smem constant byte address 0x4 - core index']
  #allocation1 [shape = 'u32[144,128]{1,0:T(1,128)}', space=vmem, size = 0x12000, scoped, tag = 'internal scratch']
  #allocation2 [shape = 'f32[736,128]{1,0:T(8,128)}', space=vmem, size = 0x5c000, scoped, tag = 'scratch operand']
  #allocation3 [shape = 'f32[232,128]{1,0:T(8,128)}', space=vmem, size = 0x1d000, scoped, tag = 'scratch operand']
  #allocation4 [shape = 'f32[232,128]{1,0:T(8,128)}', space=vmem, size = 0x1d000, scoped, tag = 'scratch operand']
  #allocation5 [shape = 'f32[56,1152]{1,0:T(8,128)}', space=vmem, size = 0x3f000, scoped, tag = 'scratch operand']
  #allocation6 [shape = 'f32[56,128]{1,0:T(8,128)}', space=vmem, size = 0x7000, scoped, tag = 'scratch operand']
  #allocation7 [shape = 'f32[16,1152]{1,0:T(8,128)}', space=vmem, size = 0x12000, scoped, tag = 'scratch operand']
  #allocation8 [shape = 'f32[16,128]{1,0:T(8,128)}', space=vmem, size = 0x2000, scoped, tag = 'scratch operand']
  #allocation9 [shape = 'f32[8,1152]{1,0:T(8,128)}', space=vmem, size = 0x9000, scoped, tag = 'scratch operand']
  %s0 = inlined_call_operand.vmem [shape: f32[2,736,128], index: 0, kind: input, shape index: {}]
  %s1 = inlined_call_operand.vmem [shape: f32[128,128], index: 1, kind: input, shape index: {}]
  %s2 = inlined_call_operand.vmem [shape: f32[1,128], index: 2, kind: input, shape index: {}]
  %s3 = inlined_call_operand.vmem [shape: f32[128,128], index: 3, kind: input, shape index: {}]
  %s4 = inlined_call_operand.vmem [shape: f32[1,128], index: 4, kind: input, shape index: {}]
  %s5 = inlined_call_operand.vmem [shape: f32[128,128], index: 5, kind: input, shape index: {}]
  %s6 = inlined_call_operand.vmem [shape: f32[1,128], index: 6, kind: input, shape index: {}]
  %s7 = inlined_call_operand.vmem [shape: f32[1152,128], index: 7, kind: input, shape index: {}]
  %s8 = inlined_call_operand.vmem [shape: f32[1,128], index: 8, kind: input, shape index: {}]
  %s9 = inlined_call_operand.vmem [shape: f32[128,128], index: 9, kind: input, shape index: {}]
  %s10 = inlined_call_operand.vmem [shape: f32[1,128], index: 10, kind: input, shape index: {}]
  %s11 = inlined_call_operand.vmem [shape: f32[1152,128], index: 11, kind: input, shape index: {}]
  %s12 = inlined_call_operand.vmem [shape: f32[1,128], index: 12, kind: input, shape index: {}]
  %s13 = inlined_call_operand.vmem [shape: f32[128,128], index: 13, kind: input, shape index: {}]
  %s14 = inlined_call_operand.vmem [shape: f32[1,128], index: 14, kind: input, shape index: {}]
  %s15 = inlined_call_operand.vmem [shape: f32[1152,128], index: 15, kind: input, shape index: {}]
  %s16 = inlined_call_operand.vmem [shape: f32[1,128], index: 16, kind: input, shape index: {}]
  %s17 = inlined_call_operand.vmem [shape: f32[2,232,128], index: 17, kind: output, shape index: {0}]
  %s18 = inlined_call_operand.vmem [shape: f32[2,56,128], index: 18, kind: output, shape index: {1}]
  %s19 = inlined_call_operand.vmem [shape: f32[2,16,128], index: 19, kind: output, shape index: {2}]
  %s20 = inlined_call_operand.vmem [shape: f32[2,8,128], index: 20, kind: output, shape index: {3}]
  %21 = xla_tuple %s17, %s18, %s19, %s20
  %s22 = sld [smem:[#allocation0]]
  $region125: #{_lambda_.1} parent=0
    _
  %s24 = ssub.s32 1, %s22
  %s25 = scalar_select 0, %s24, %s22
  loop: start=0, step=1, limit=4
  $region2: #{_lambda_.1} parent=0 // loop_pre_header
    _
  $region3: #{_lambda_.1} parent=0 // loop_header
    %s27 = sphi 0, %s31
    %p28 = scmp.ge.s32.totalorder %s27, 4
    %s37 = sphi 0, %s39
    %s40 = sphi 0, %s37
    %s41 = sphi 0, %s40
    %s57 = sphi 0, %s41
    %s61 = sphi 0, %s61
    %s63 = sphi 0, %s61
    %s64 = sphi 0, %s63
    %s78 = sphi 0, %s64
    %s82 = sphi 0, %s82
    %s84 = sphi 0, %s82
    %s85 = sphi 0, %s84
    %s99 = sphi 0, %s85
    %s103 = sphi 0, %s103
    %s105 = sphi 0, %s103
    %s106 = sphi 0, %s105
    %s120 = sphi 0, %s106
    %s124 = sphi 0, %s124
    %s126 = sphi 0, %s124
    %s127 = sphi 0, %s126
    %s141 = sphi 0, %s127
    %s145 = sphi 0, %s145
    %s147 = sphi 0, %s145
    %s148 = sphi 0, %s147
    %s162 = sphi 0, %s148
    %s166 = sphi 0, %s166
    %s168 = sphi 0, %s166
    %s169 = sphi 0, %s168
    %s183 = sphi 0, %s169
    %s187 = sphi 0, %s187
    %s189 = sphi 0, %s187
    %s190 = sphi 0, %s189
    %s204 = sphi 0, %s190
    %s208 = sphi 0, %s208
    %s210 = sphi 0, %s208
    %s211 = sphi 0, %s210
    %s225 = sphi 0, %s211
    %s229 = sphi 0, %s229
    %s231 = sphi 0, %s229
    %s232 = sphi 0, %s231
    %s246 = sphi 0, %s232
    %s250 = sphi 0, %s250
    %s252 = sphi 0, %s250
    %s253 = sphi 0, %s252
    %s267 = sphi 0, %s253
    %s271 = sphi 0, %s271
    %s273 = sphi 0, %s271
    %s274 = sphi 0, %s273
    %s288 = sphi 0, %s274
    %s292 = sphi 0, %s292
    %s294 = sphi 0, %s292
    %s295 = sphi 0, %s294
    %s309 = sphi 0, %s295
    %s313 = sphi 0, %s313
    %s315 = sphi 0, %s313
    %s316 = sphi 0, %s315
    %s330 = sphi 0, %s316
    %s334 = sphi 0, %s334
    %s336 = sphi 0, %s334
    %s337 = sphi 0, %s336
    %s351 = sphi 0, %s337
    %s355 = sphi 0, %s355
    %s357 = sphi 0, %s355
    %s358 = sphi 0, %s357
    %s372 = sphi 0, %s358
    %s376 = sphi 0, %s376
    %s378 = sphi 0, %s376
    %s379 = sphi 0, %s378
    %s393 = sphi 0, %s379
    %s399 = sphi 0, %s401
    %s402 = sphi 0, %s399
    %s403 = sphi 0, %s402
    %s419 = sphi 0, %s403
    %s425 = sphi 0, %s427
    %s428 = sphi 0, %s425
    %s429 = sphi 0, %s428
    %s445 = sphi 0, %s429
    %s451 = sphi 0, %s453
    %s454 = sphi 0, %s451
    %s455 = sphi 0, %s454
    %s471 = sphi 0, %s455
    %s477 = sphi 0, %s479
    %s480 = sphi 0, %s477
    %s481 = sphi 0, %s480
    %s497 = sphi 0, %s481
  $region4: #{_lambda_.1} parent=0 // loop_header_branch
    %30 = sbr.rel (%p28) target = $region8
  $region5: #{_lambda_.1} parent=0 // loop_body
    %s32 = ssub.s32 %s27, 1
    %s33 = ssub.s32 %s27, 2
    %s34 = sadd.s32 %s27, 1
    %s35 = ssub.s32 %s27, %s34
    %p36 = scmp.eq.s32.totalorder %s35, 0
    %s38 = sadd.s32 %s37, 1
    %s39 = scalar_select %p36, %s37, %s38
    %p42 = pneg %p36
    %p43 = scmp.eq.s32.totalorder %s27, 1
    %p44 = por %p42, %p43
    %p45 = scmp.ne.s32.totalorder %s37, %s40
    %p46 = scmp.eq.s32.totalorder %s27, 0
    %p47 = por %p45, %p46
    %p48 = scmp.ne.s32.totalorder %s37, %s40
    %p49 = scmp.eq.s32.totalorder %s32, 1
    %p50 = por %p48, %p49
    %p51 = scmp.ne.s32.totalorder %s40, %s41
    %p52 = scmp.eq.s32.totalorder %s32, 0
    %p53 = por %p51, %p52
    %p54 = scmp.ne.s32.totalorder %s40, %s41
    %p55 = scmp.eq.s32.totalorder %s33, 1
    %p56 = por %p54, %p55
    %p58 = scmp.ne.s32.totalorder %s41, %s57
    %p59 = scmp.eq.s32.totalorder %s33, 0
    %p60 = por %p58, %p59
    %s62 = sadd.s32 %s61, 1
    %p65 = scmp.eq.s32.totalorder %s27, 1
    %p66 = scmp.ne.s32.totalorder %s61, %s63
    %p67 = scmp.eq.s32.totalorder %s27, 0
    %p68 = por %p66, %p67
    %p69 = scmp.ne.s32.totalorder %s61, %s63
    %p70 = scmp.eq.s32.totalorder %s32, 1
    %p71 = por %p69, %p70
    %p72 = scmp.ne.s32.totalorder %s63, %s64
    %p73 = scmp.eq.s32.totalorder %s32, 0
    %p74 = por %p72, %p73
    %p75 = scmp.ne.s32.totalorder %s63, %s64
    %p76 = scmp.eq.s32.totalorder %s33, 1
    %p77 = por %p75, %p76
    %p79 = scmp.ne.s32.totalorder %s64, %s78
    %p80 = scmp.eq.s32.totalorder %s33, 0
    %p81 = por %p79, %p80
    %s83 = sadd.s32 %s82, 1
    %p86 = scmp.eq.s32.totalorder %s27, 1
    %p87 = scmp.ne.s32.totalorder %s82, %s84
    %p88 = scmp.eq.s32.totalorder %s27, 0
    %p89 = por %p87, %p88
    %p90 = scmp.ne.s32.totalorder %s82, %s84
    %p91 = scmp.eq.s32.totalorder %s32, 1
    %p92 = por %p90, %p91
    %p93 = scmp.ne.s32.totalorder %s84, %s85
    %p94 = scmp.eq.s32.totalorder %s32, 0
    %p95 = por %p93, %p94
    %p96 = scmp.ne.s32.totalorder %s84, %s85
    %p97 = scmp.eq.s32.totalorder %s33, 1
    %p98 = por %p96, %p97
    %p100 = scmp.ne.s32.totalorder %s85, %s99
    %p101 = scmp.eq.s32.totalorder %s33, 0
    %p102 = por %p100, %p101
    %s104 = sadd.s32 %s103, 1
    %p107 = scmp.eq.s32.totalorder %s27, 1
    %p108 = scmp.ne.s32.totalorder %s103, %s105
    %p109 = scmp.eq.s32.totalorder %s27, 0
    %p110 = por %p108, %p109
    %p111 = scmp.ne.s32.totalorder %s103, %s105
    %p112 = scmp.eq.s32.totalorder %s32, 1
    %p113 = por %p111, %p112
    %p114 = scmp.ne.s32.totalorder %s105, %s106
    %p115 = scmp.eq.s32.totalorder %s32, 0
    %p116 = por %p114, %p115
    %p117 = scmp.ne.s32.totalorder %s105, %s106
    %p118 = scmp.eq.s32.totalorder %s33, 1
    %p119 = por %p117, %p118
    %p121 = scmp.ne.s32.totalorder %s106, %s120
    %p122 = scmp.eq.s32.totalorder %s33, 0
    %p123 = por %p121, %p122
    %s125 = sadd.s32 %s124, 1
    %p128 = scmp.eq.s32.totalorder %s27, 1
    %p129 = scmp.ne.s32.totalorder %s124, %s126
    %p130 = scmp.eq.s32.totalorder %s27, 0
    %p131 = por %p129, %p130
    %p132 = scmp.ne.s32.totalorder %s124, %s126
    %p133 = scmp.eq.s32.totalorder %s32, 1
    %p134 = por %p132, %p133
    %p135 = scmp.ne.s32.totalorder %s126, %s127
    %p136 = scmp.eq.s32.totalorder %s32, 0
    %p137 = por %p135, %p136
    %p138 = scmp.ne.s32.totalorder %s126, %s127
    %p139 = scmp.eq.s32.totalorder %s33, 1
    %p140 = por %p138, %p139
    %p142 = scmp.ne.s32.totalorder %s127, %s141
    %p143 = scmp.eq.s32.totalorder %s33, 0
    %p144 = por %p142, %p143
    %s146 = sadd.s32 %s145, 1
    %p149 = scmp.eq.s32.totalorder %s27, 1
    %p150 = scmp.ne.s32.totalorder %s145, %s147
    %p151 = scmp.eq.s32.totalorder %s27, 0
    %p152 = por %p150, %p151
    %p153 = scmp.ne.s32.totalorder %s145, %s147
    %p154 = scmp.eq.s32.totalorder %s32, 1
    %p155 = por %p153, %p154
    %p156 = scmp.ne.s32.totalorder %s147, %s148
    %p157 = scmp.eq.s32.totalorder %s32, 0
    %p158 = por %p156, %p157
    %p159 = scmp.ne.s32.totalorder %s147, %s148
    %p160 = scmp.eq.s32.totalorder %s33, 1
    %p161 = por %p159, %p160
    %p163 = scmp.ne.s32.totalorder %s148, %s162
    %p164 = scmp.eq.s32.totalorder %s33, 0
    %p165 = por %p163, %p164
    %s167 = sadd.s32 %s166, 1
    %p170 = scmp.eq.s32.totalorder %s27, 1
    %p171 = scmp.ne.s32.totalorder %s166, %s168
    %p172 = scmp.eq.s32.totalorder %s27, 0
    %p173 = por %p171, %p172
    %p174 = scmp.ne.s32.totalorder %s166, %s168
    %p175 = scmp.eq.s32.totalorder %s32, 1
    %p176 = por %p174, %p175
    %p177 = scmp.ne.s32.totalorder %s168, %s169
    %p178 = scmp.eq.s32.totalorder %s32, 0
    %p179 = por %p177, %p178
    %p180 = scmp.ne.s32.totalorder %s168, %s169
    %p181 = scmp.eq.s32.totalorder %s33, 1
    %p182 = por %p180, %p181
    %p184 = scmp.ne.s32.totalorder %s169, %s183
    %p185 = scmp.eq.s32.totalorder %s33, 0
    %p186 = por %p184, %p185
    %s188 = sadd.s32 %s187, 1
    %p191 = scmp.eq.s32.totalorder %s27, 1
    %p192 = scmp.ne.s32.totalorder %s187, %s189
    %p193 = scmp.eq.s32.totalorder %s27, 0
    %p194 = por %p192, %p193
    %p195 = scmp.ne.s32.totalorder %s187, %s189
    %p196 = scmp.eq.s32.totalorder %s32, 1
    %p197 = por %p195, %p196
    %p198 = scmp.ne.s32.totalorder %s189, %s190
    %p199 = scmp.eq.s32.totalorder %s32, 0
    %p200 = por %p198, %p199
    %p201 = scmp.ne.s32.totalorder %s189, %s190
    %p202 = scmp.eq.s32.totalorder %s33, 1
    %p203 = por %p201, %p202
    %p205 = scmp.ne.s32.totalorder %s190, %s204
    %p206 = scmp.eq.s32.totalorder %s33, 0
    %p207 = por %p205, %p206
    %s209 = sadd.s32 %s208, 1
    %p212 = scmp.eq.s32.totalorder %s27, 1
    %p213 = scmp.ne.s32.totalorder %s208, %s210
    %p214 = scmp.eq.s32.totalorder %s27, 0
    %p215 = por %p213, %p214
    %p216 = scmp.ne.s32.totalorder %s208, %s210
    %p217 = scmp.eq.s32.totalorder %s32, 1
    %p218 = por %p216, %p217
    %p219 = scmp.ne.s32.totalorder %s210, %s211
    %p220 = scmp.eq.s32.totalorder %s32, 0
    %p221 = por %p219, %p220
    %p222 = scmp.ne.s32.totalorder %s210, %s211
    %p223 = scmp.eq.s32.totalorder %s33, 1
    %p224 = por %p222, %p223
    %p226 = scmp.ne.s32.totalorder %s211, %s225
    %p227 = scmp.eq.s32.totalorder %s33, 0
    %p228 = por %p226, %p227
    %s230 = sadd.s32 %s229, 1
    %p233 = scmp.eq.s32.totalorder %s27, 1
    %p234 = scmp.ne.s32.totalorder %s229, %s231
    %p235 = scmp.eq.s32.totalorder %s27, 0
    %p236 = por %p234, %p235
    %p237 = scmp.ne.s32.totalorder %s229, %s231
    %p238 = scmp.eq.s32.totalorder %s32, 1
    %p239 = por %p237, %p238
    %p240 = scmp.ne.s32.totalorder %s231, %s232
    %p241 = scmp.eq.s32.totalorder %s32, 0
    %p242 = por %p240, %p241
    %p243 = scmp.ne.s32.totalorder %s231, %s232
    %p244 = scmp.eq.s32.totalorder %s33, 1
    %p245 = por %p243, %p244
    %p247 = scmp.ne.s32.totalorder %s232, %s246
    %p248 = scmp.eq.s32.totalorder %s33, 0
    %p249 = por %p247, %p248
    %s251 = sadd.s32 %s250, 1
    %p254 = scmp.eq.s32.totalorder %s27, 1
    %p255 = scmp.ne.s32.totalorder %s250, %s252
    %p256 = scmp.eq.s32.totalorder %s27, 0
    %p257 = por %p255, %p256
    %p258 = scmp.ne.s32.totalorder %s250, %s252
    %p259 = scmp.eq.s32.totalorder %s32, 1
    %p260 = por %p258, %p259
    %p261 = scmp.ne.s32.totalorder %s252, %s253
    %p262 = scmp.eq.s32.totalorder %s32, 0
    %p263 = por %p261, %p262
    %p264 = scmp.ne.s32.totalorder %s252, %s253
    %p265 = scmp.eq.s32.totalorder %s33, 1
    %p266 = por %p264, %p265
    %p268 = scmp.ne.s32.totalorder %s253, %s267
    %p269 = scmp.eq.s32.totalorder %s33, 0
    %p270 = por %p268, %p269
    %s272 = sadd.s32 %s271, 1
    %p275 = scmp.eq.s32.totalorder %s27, 1
    %p276 = scmp.ne.s32.totalorder %s271, %s273
    %p277 = scmp.eq.s32.totalorder %s27, 0
    %p278 = por %p276, %p277
    %p279 = scmp.ne.s32.totalorder %s271, %s273
    %p280 = scmp.eq.s32.totalorder %s32, 1
    %p281 = por %p279, %p280
    %p282 = scmp.ne.s32.totalorder %s273, %s274
    %p283 = scmp.eq.s32.totalorder %s32, 0
    %p284 = por %p282, %p283
    %p285 = scmp.ne.s32.totalorder %s273, %s274
    %p286 = scmp.eq.s32.totalorder %s33, 1
    %p287 = por %p285, %p286
    %p289 = scmp.ne.s32.totalorder %s274, %s288
    %p290 = scmp.eq.s32.totalorder %s33, 0
    %p291 = por %p289, %p290
    %s293 = sadd.s32 %s292, 1
    %p296 = scmp.eq.s32.totalorder %s27, 1
    %p297 = scmp.ne.s32.totalorder %s292, %s294
    %p298 = scmp.eq.s32.totalorder %s27, 0
    %p299 = por %p297, %p298
    %p300 = scmp.ne.s32.totalorder %s292, %s294
    %p301 = scmp.eq.s32.totalorder %s32, 1
    %p302 = por %p300, %p301
    %p303 = scmp.ne.s32.totalorder %s294, %s295
    %p304 = scmp.eq.s32.totalorder %s32, 0
    %p305 = por %p303, %p304
    %p306 = scmp.ne.s32.totalorder %s294, %s295
    %p307 = scmp.eq.s32.totalorder %s33, 1
    %p308 = por %p306, %p307
    %p310 = scmp.ne.s32.totalorder %s295, %s309
    %p311 = scmp.eq.s32.totalorder %s33, 0
    %p312 = por %p310, %p311
    %s314 = sadd.s32 %s313, 1
    %p317 = scmp.eq.s32.totalorder %s27, 1
    %p318 = scmp.ne.s32.totalorder %s313, %s315
    %p319 = scmp.eq.s32.totalorder %s27, 0
    %p320 = por %p318, %p319
    %p321 = scmp.ne.s32.totalorder %s313, %s315
    %p322 = scmp.eq.s32.totalorder %s32, 1
    %p323 = por %p321, %p322
    %p324 = scmp.ne.s32.totalorder %s315, %s316
    %p325 = scmp.eq.s32.totalorder %s32, 0
    %p326 = por %p324, %p325
    %p327 = scmp.ne.s32.totalorder %s315, %s316
    %p328 = scmp.eq.s32.totalorder %s33, 1
    %p329 = por %p327, %p328
    %p331 = scmp.ne.s32.totalorder %s316, %s330
    %p332 = scmp.eq.s32.totalorder %s33, 0
    %p333 = por %p331, %p332
    %s335 = sadd.s32 %s334, 1
    %p338 = scmp.eq.s32.totalorder %s27, 1
    %p339 = scmp.ne.s32.totalorder %s334, %s336
    %p340 = scmp.eq.s32.totalorder %s27, 0
    %p341 = por %p339, %p340
    %p342 = scmp.ne.s32.totalorder %s334, %s336
    %p343 = scmp.eq.s32.totalorder %s32, 1
    %p344 = por %p342, %p343
    %p345 = scmp.ne.s32.totalorder %s336, %s337
    %p346 = scmp.eq.s32.totalorder %s32, 0
    %p347 = por %p345, %p346
    %p348 = scmp.ne.s32.totalorder %s336, %s337
    %p349 = scmp.eq.s32.totalorder %s33, 1
    %p350 = por %p348, %p349
    %p352 = scmp.ne.s32.totalorder %s337, %s351
    %p353 = scmp.eq.s32.totalorder %s33, 0
    %p354 = por %p352, %p353
    %s356 = sadd.s32 %s355, 1
    %p359 = scmp.eq.s32.totalorder %s27, 1
    %p360 = scmp.ne.s32.totalorder %s355, %s357
    %p361 = scmp.eq.s32.totalorder %s27, 0
    %p362 = por %p360, %p361
    %p363 = scmp.ne.s32.totalorder %s355, %s357
    %p364 = scmp.eq.s32.totalorder %s32, 1
    %p365 = por %p363, %p364
    %p366 = scmp.ne.s32.totalorder %s357, %s358
    %p367 = scmp.eq.s32.totalorder %s32, 0
    %p368 = por %p366, %p367
    %p369 = scmp.ne.s32.totalorder %s357, %s358
    %p370 = scmp.eq.s32.totalorder %s33, 1
    %p371 = por %p369, %p370
    %p373 = scmp.ne.s32.totalorder %s358, %s372
    %p374 = scmp.eq.s32.totalorder %s33, 0
    %p375 = por %p373, %p374
    %s377 = sadd.s32 %s376, 1
    %p380 = scmp.eq.s32.totalorder %s27, 1
    %p381 = scmp.ne.s32.totalorder %s376, %s378
    %p382 = scmp.eq.s32.totalorder %s27, 0
    %p383 = por %p381, %p382
    %p384 = scmp.ne.s32.totalorder %s376, %s378
    %p385 = scmp.eq.s32.totalorder %s32, 1
    %p386 = por %p384, %p385
    %p387 = scmp.ne.s32.totalorder %s378, %s379
    %p388 = scmp.eq.s32.totalorder %s32, 0
    %p389 = por %p387, %p388
    %p390 = scmp.ne.s32.totalorder %s378, %s379
    %p391 = scmp.eq.s32.totalorder %s33, 1
    %p392 = por %p390, %p391
    %p394 = scmp.ne.s32.totalorder %s379, %s393
    %p395 = scmp.eq.s32.totalorder %s33, 0
    %p396 = por %p394, %p395
    %s397 = ssub.s32 %s27, %s34
    %p398 = scmp.eq.s32.totalorder %s397, 0
    %s400 = sadd.s32 %s399, 1
    %s401 = scalar_select %p398, %s399, %s400
    %p404 = pneg %p398
    %p405 = scmp.eq.s32.totalorder %s27, 1
    %p406 = por %p404, %p405
    %p407 = scmp.ne.s32.totalorder %s399, %s402
    %p408 = scmp.eq.s32.totalorder %s27, 0
    %p409 = por %p407, %p408
    %p410 = scmp.ne.s32.totalorder %s399, %s402
    %p411 = scmp.eq.s32.totalorder %s32, 1
    %p412 = por %p410, %p411
    %p413 = scmp.ne.s32.totalorder %s402, %s403
    %p414 = scmp.eq.s32.totalorder %s32, 0
    %p415 = por %p413, %p414
    %p416 = scmp.ne.s32.totalorder %s402, %s403
    %p417 = scmp.eq.s32.totalorder %s33, 1
    %p418 = por %p416, %p417
    %p420 = scmp.ne.s32.totalorder %s403, %s419
    %p421 = scmp.eq.s32.totalorder %s33, 0
    %p422 = por %p420, %p421
    %s423 = ssub.s32 %s27, %s34
    %p424 = scmp.eq.s32.totalorder %s423, 0
    %s426 = sadd.s32 %s425, 1
    %s427 = scalar_select %p424, %s425, %s426
    %p430 = pneg %p424
    %p431 = scmp.eq.s32.totalorder %s27, 1
    %p432 = por %p430, %p431
    %p433 = scmp.ne.s32.totalorder %s425, %s428
    %p434 = scmp.eq.s32.totalorder %s27, 0
    %p435 = por %p433, %p434
    %p436 = scmp.ne.s32.totalorder %s425, %s428
    %p437 = scmp.eq.s32.totalorder %s32, 1
    %p438 = por %p436, %p437
    %p439 = scmp.ne.s32.totalorder %s428, %s429
    %p440 = scmp.eq.s32.totalorder %s32, 0
    %p441 = por %p439, %p440
    %p442 = scmp.ne.s32.totalorder %s428, %s429
    %p443 = scmp.eq.s32.totalorder %s33, 1
    %p444 = por %p442, %p443
    %p446 = scmp.ne.s32.totalorder %s429, %s445
    %p447 = scmp.eq.s32.totalorder %s33, 0
    %p448 = por %p446, %p447
    %s449 = ssub.s32 %s27, %s34
    %p450 = scmp.eq.s32.totalorder %s449, 0
    %s452 = sadd.s32 %s451, 1
    %s453 = scalar_select %p450, %s451, %s452
    %p456 = pneg %p450
    %p457 = scmp.eq.s32.totalorder %s27, 1
    %p458 = por %p456, %p457
    %p459 = scmp.ne.s32.totalorder %s451, %s454
    %p460 = scmp.eq.s32.totalorder %s27, 0
    %p461 = por %p459, %p460
    %p462 = scmp.ne.s32.totalorder %s451, %s454
    %p463 = scmp.eq.s32.totalorder %s32, 1
    %p464 = por %p462, %p463
    %p465 = scmp.ne.s32.totalorder %s454, %s455
    %p466 = scmp.eq.s32.totalorder %s32, 0
    %p467 = por %p465, %p466
    %p468 = scmp.ne.s32.totalorder %s454, %s455
    %p469 = scmp.eq.s32.totalorder %s33, 1
    %p470 = por %p468, %p469
    %p472 = scmp.ne.s32.totalorder %s455, %s471
    %p473 = scmp.eq.s32.totalorder %s33, 0
    %p474 = por %p472, %p473
    %s475 = ssub.s32 %s27, %s34
    %p476 = scmp.eq.s32.totalorder %s475, 0
    %s478 = sadd.s32 %s477, 1
    %s479 = scalar_select %p476, %s477, %s478
    %p482 = pneg %p476
    %p483 = scmp.eq.s32.totalorder %s27, 1
    %p484 = por %p482, %p483
    %p485 = scmp.ne.s32.totalorder %s477, %s480
    %p486 = scmp.eq.s32.totalorder %s27, 0
    %p487 = por %p485, %p486
    %p488 = scmp.ne.s32.totalorder %s477, %s480
    %p489 = scmp.eq.s32.totalorder %s32, 1
    %p490 = por %p488, %p489
    %p491 = scmp.ne.s32.totalorder %s480, %s481
    %p492 = scmp.eq.s32.totalorder %s32, 0
    %p493 = por %p491, %p492
    %p494 = scmp.ne.s32.totalorder %s480, %s481
    %p495 = scmp.eq.s32.totalorder %s33, 1
    %p496 = por %p494, %p495
    %p498 = scmp.ne.s32.totalorder %s481, %s497
    %p499 = scmp.eq.s32.totalorder %s33, 0
    %p500 = por %p498, %p499
    %p501 = scmp.le.s32.totalorder 1, %s27
    %p502 = scmp.lt.s32.totalorder %s27, 3
    %p503 = pnand %p501, %p502
    %p504 = pneg %p503
    // Predicated region
    $region9: #{_lambda_.1} parent=5 // pred_check
      _
    $region10: #{_lambda_.1} parent=5 // pred_check_branch
      %506 = sbr.rel (%p503) target = $region12
    $region11: #{_lambda_.1} parent=5 // pred_region
      %s507 = ssub.s32 %s27, 1
      // Predicated region
      $region13: #{_lambda_.1} parent=11 // pred_check
        %p508 = pneg %p74
      $region14: #{_lambda_.1} parent=11 // pred_check_branch
        %510 = sbr.rel (%p508) target = $region16
      $region15: #{_lambda_.1} parent=11 // pred_region
        _
      $region16: #{_lambda_.1} parent=11 // pred_fallthru
        _
      // Predicated region
      $region17: #{_lambda_.1} parent=11 // pred_check
        %p511 = pneg %p95
      $region18: #{_lambda_.1} parent=11 // pred_check_branch
        %513 = sbr.rel (%p511) target = $region20
      $region19: #{_lambda_.1} parent=11 // pred_region
        _
      $region20: #{_lambda_.1} parent=11 // pred_fallthru
        _
      // Predicated region
      $region21: #{_lambda_.1} parent=11 // pred_check
        %p514 = pneg %p116
      $region22: #{_lambda_.1} parent=11 // pred_check_branch
        %516 = sbr.rel (%p514) target = $region24
      $region23: #{_lambda_.1} parent=11 // pred_region
        _
      $region24: #{_lambda_.1} parent=11 // pred_fallthru
        _
      // Predicated region
      $region25: #{_lambda_.1} parent=11 // pred_check
        %p517 = pneg %p137
      $region26: #{_lambda_.1} parent=11 // pred_check_branch
        %519 = sbr.rel (%p517) target = $region28
      $region27: #{_lambda_.1} parent=11 // pred_region
        _
      $region28: #{_lambda_.1} parent=11 // pred_fallthru
        _
      // Predicated region
      $region29: #{_lambda_.1} parent=11 // pred_check
        %p520 = pneg %p158
      $region30: #{_lambda_.1} parent=11 // pred_check_branch
        %522 = sbr.rel (%p520) target = $region32
      $region31: #{_lambda_.1} parent=11 // pred_region
        _
      $region32: #{_lambda_.1} parent=11 // pred_fallthru
        _
      // Predicated region
      $region33: #{_lambda_.1} parent=11 // pred_check
        %p523 = pneg %p179
      $region34: #{_lambda_.1} parent=11 // pred_check_branch
        %525 = sbr.rel (%p523) target = $region36
      $region35: #{_lambda_.1} parent=11 // pred_region
        _
      $region36: #{_lambda_.1} parent=11 // pred_fallthru
        _
      // Predicated region
      $region37: #{_lambda_.1} parent=11 // pred_check
        %p526 = pneg %p200
      $region38: #{_lambda_.1} parent=11 // pred_check_branch
        %528 = sbr.rel (%p526) target = $region40
      $region39: #{_lambda_.1} parent=11 // pred_region
        _
      $region40: #{_lambda_.1} parent=11 // pred_fallthru
        _
      // Predicated region
      $region41: #{_lambda_.1} parent=11 // pred_check
        %p529 = pneg %p221
      $region42: #{_lambda_.1} parent=11 // pred_check_branch
        %531 = sbr.rel (%p529) target = $region44
      $region43: #{_lambda_.1} parent=11 // pred_region
        _
      $region44: #{_lambda_.1} parent=11 // pred_fallthru
        _
      // Predicated region
      $region45: #{_lambda_.1} parent=11 // pred_check
        %p532 = pneg %p242
      $region46: #{_lambda_.1} parent=11 // pred_check_branch
        %534 = sbr.rel (%p532) target = $region48
      $region47: #{_lambda_.1} parent=11 // pred_region
        _
      $region48: #{_lambda_.1} parent=11 // pred_fallthru
        _
      // Predicated region
      $region49: #{_lambda_.1} parent=11 // pred_check
        %p535 = pneg %p263
      $region50: #{_lambda_.1} parent=11 // pred_check_branch
        %537 = sbr.rel (%p535) target = $region52
      $region51: #{_lambda_.1} parent=11 // pred_region
        _
      $region52: #{_lambda_.1} parent=11 // pred_fallthru
        _
      // Predicated region
      $region53: #{_lambda_.1} parent=11 // pred_check
        %p538 = pneg %p284
      $region54: #{_lambda_.1} parent=11 // pred_check_branch
        %540 = sbr.rel (%p538) target = $region56
      $region55: #{_lambda_.1} parent=11 // pred_region
        _
      $region56: #{_lambda_.1} parent=11 // pred_fallthru
        _
      // Predicated region
      $region57: #{_lambda_.1} parent=11 // pred_check
        %p541 = pneg %p305
      $region58: #{_lambda_.1} parent=11 // pred_check_branch
        %543 = sbr.rel (%p541) target = $region60
      $region59: #{_lambda_.1} parent=11 // pred_region
        _
      $region60: #{_lambda_.1} parent=11 // pred_fallthru
        _
      // Predicated region
      $region61: #{_lambda_.1} parent=11 // pred_check
        %p544 = pneg %p326
      $region62: #{_lambda_.1} parent=11 // pred_check_branch
        %546 = sbr.rel (%p544) target = $region64
      $region63: #{_lambda_.1} parent=11 // pred_region
        _
      $region64: #{_lambda_.1} parent=11 // pred_fallthru
        _
      // Predicated region
      $region65: #{_lambda_.1} parent=11 // pred_check
        %p547 = pneg %p347
      $region66: #{_lambda_.1} parent=11 // pred_check_branch
        %549 = sbr.rel (%p547) target = $region68
      $region67: #{_lambda_.1} parent=11 // pred_region
        _
      $region68: #{_lambda_.1} parent=11 // pred_fallthru
        _
      // Predicated region
      $region69: #{_lambda_.1} parent=11 // pred_check
        %p550 = pneg %p368
      $region70: #{_lambda_.1} parent=11 // pred_check_branch
        %552 = sbr.rel (%p550) target = $region72
      $region71: #{_lambda_.1} parent=11 // pred_region
        _
      $region72: #{_lambda_.1} parent=11 // pred_fallthru
        _
      // Predicated region
      $region73: #{_lambda_.1} parent=11 // pred_check
        %p553 = pneg %p389
      $region74: #{_lambda_.1} parent=11 // pred_check_branch
        %555 = sbr.rel (%p553) target = $region76
      $region75: #{_lambda_.1} parent=11 // pred_region
        _
      $region76: #{_lambda_.1} parent=11 // pred_fallthru
        _
    $region12: #{_lambda_.1} parent=5 // pred_fallthru
      _
    %p556 = scmp.lt.s32.totalorder %s27, 2
    // Predicated region
    $region77: #{_lambda_.1} parent=5 // pred_check
      %p557 = pneg %p556
    $region78: #{_lambda_.1} parent=5 // pred_check_branch
      %559 = sbr.rel (%p557) target = $region80
    $region79: #{_lambda_.1} parent=5 // pred_region
      // Predicated region
      $region81: #{_lambda_.1} parent=79 // pred_check
        %p560 = pneg %p47
      $region82: #{_lambda_.1} parent=79 // pred_check_branch
        %562 = sbr.rel (%p560) target = $region84
      $region83: #{_lambda_.1} parent=79 // pred_region
        %p563 = scmp.lt.s32.totalorder %s27, 1
        %s564 = scalar_select %p563, %s27, 1
        %s565 = smul.addr %s564, 92
        %s566 = smul.addr %s565, 8
        %s567 = scalar_lea.vmem %s0, %s566
      $region84: #{_lambda_.1} parent=79 // pred_fallthru
        _
    $region80: #{_lambda_.1} parent=5 // pred_fallthru
      _
    %p568 = scmp.le.s32.totalorder 1, %s27
    %p569 = scmp.lt.s32.totalorder %s27, 3
    %p570 = pnand %p568, %p569
    %p571 = pneg %p570
    // Predicated region
    $region85: #{_lambda_.1} parent=5 // pred_check
      _
    $region86: #{_lambda_.1} parent=5 // pred_check_branch
      %573 = sbr.rel (%p570) target = $region88
    $region87: #{_lambda_.1} parent=5 // pred_region
      %s574 = ssub.s32 %s27, 1
      %p575 = scmp.lt.s32.totalorder %s32, 1
      %s576 = scalar_select %p575, %s32, 1
      %s577 = smul.addr %s576, 92
      %s578 = smul.addr %s577, 8
      %s579 = scalar_lea.vmem %s0, %s578
      %p580 = pneg %p53
      %p581 = pneg %p50
      %p582 = pneg %p74
      %p583 = pneg %p71
      %p584 = pneg %p95
      %p585 = pneg %p92
      %p586 = pneg %p116
      %p587 = pneg %p113
      %p588 = pneg %p137
      %p589 = pneg %p134
      %p590 = pneg %p158
      %p591 = pneg %p155
      %p592 = pneg %p179
      %p593 = pneg %p176
      %p594 = pneg %p200
      %p595 = pneg %p197
      %p596 = pneg %p221
      %p597 = pneg %p218
      %p598 = pneg %p242
      %p599 = pneg %p239
      %p600 = pneg %p263
      %p601 = pneg %p260
      %p602 = pneg %p284
      %p603 = pneg %p281
      %p604 = pneg %p305
      %p605 = pneg %p302
      %p606 = pneg %p326
      %p607 = pneg %p323
      %p608 = pneg %p347
      %p609 = pneg %p344
      %p610 = pneg %p368
      %p611 = pneg %p365
      %p612 = pneg %p389
      %p613 = pneg %p386
      %p614 = pneg %p415
      %p615 = pneg %p412
      %p616 = scmp.lt.s32.totalorder %s32, 1
      %s617 = scalar_select %p616, %s32, 1
      %s618 = smul.addr %s617, 29
      %s619 = smul.addr %s618, 8
      %s620 = scalar_lea.vmem %s17, %s619
      %p621 = pneg %p441
      %p622 = pneg %p438
      %p623 = scmp.lt.s32.totalorder %s32, 1
      %s624 = scalar_select %p623, %s32, 1
      %s625 = smul.addr %s624, 7
      %s626 = smul.addr %s625, 8
      %s627 = scalar_lea.vmem %s18, %s626
      %p628 = pneg %p467
      %p629 = pneg %p464
      %p630 = scmp.lt.s32.totalorder %s32, 1
      %s631 = scalar_select %p630, %s32, 1
      %s632 = smul.addr %s631, 2
      %s633 = smul.addr %s632, 8
      %s634 = scalar_lea.vmem %s19, %s633
      %p635 = pneg %p493
      %p636 = pneg %p490
      %p637 = scmp.lt.s32.totalorder %s32, 1
      %s638 = scalar_select %p637, %s32, 1
      %s639 = smul.addr %s638, 8
      %s640 = scalar_lea.vmem %s20, %s639
      %p641 = scmp.lt.s32.totalorder %s32, 1
      %s642 = scalar_select %p641, %s32, 1
      %s643 = smul.addr %s642, 92
      %s644 = smul.addr %s643, 8
      %s645 = scalar_lea.vmem %s0, %s644
      %p646 = scmp.lt.s32.totalorder %s32, 1
      %s647 = scalar_select %p646, %s32, 1
      %s648 = smul.addr %s647, 29
      %s649 = smul.addr %s648, 8
      %s650 = scalar_lea.vmem %s17, %s649
      %p651 = scmp.lt.s32.totalorder %s32, 1
      %s652 = scalar_select %p651, %s32, 1
      %s653 = smul.addr %s652, 7
      %s654 = smul.addr %s653, 8
      %s655 = scalar_lea.vmem %s18, %s654
      %p656 = scmp.lt.s32.totalorder %s32, 1
      %s657 = scalar_select %p656, %s32, 1
      %s658 = smul.addr %s657, 2
      %s659 = smul.addr %s658, 8
      %s660 = scalar_lea.vmem %s19, %s659
      %p661 = scmp.lt.s32.totalorder %s32, 1
      %s662 = scalar_select %p661, %s32, 1
      %s663 = smul.addr %s662, 8
      %s664 = scalar_lea.vmem %s20, %s663
      %v665 = vld [vmem:[%s645] sm:$0xff]
      %v666 = vld [vmem:[%s645 + $0x8] sm:$0xff]
      %v667 = vld [vmem:[%s645 + $0x10] sm:$0xff]
      %v668 = vld [vmem:[%s645 + $0x18] sm:$0xff]
      %v669 = vld [vmem:[%s645 + $0x20] sm:$0xff]
      %v670 = vld [vmem:[%s645 + $0x28] sm:$0xff]
      %v671 = vld [vmem:[%s645 + $0x30] sm:$0xff]
      %v672 = vld [vmem:[%s645 + $0x38] sm:$0xff]
      %v673 = vld [vmem:[%s645 + $0x40] sm:$0xff]
      %v674 = vld [vmem:[%s645 + $0x48] sm:$0xff]
      %v675 = vld [vmem:[%s645 + $0x50] sm:$0xff]
      %v676 = vld [vmem:[%s645 + $0x58] sm:$0xff]
      %v677 = vld [vmem:[%s645 + $0x60] sm:$0xff]
      %v678 = vld [vmem:[%s645 + $0x68] sm:$0xff]
      %v679 = vld [vmem:[%s645 + $0x70] sm:$0xff]
      %v680 = vld [vmem:[%s645 + $0x78] sm:$0xff]
      %v681 = vld [vmem:[%s645 + $0x80] sm:$0xff]
      %v682 = vld [vmem:[%s645 + $0x88] sm:$0xff]
      %v683 = vld [vmem:[%s645 + $0x90] sm:$0xff]
      %v684 = vld [vmem:[%s645 + $0x98] sm:$0xff]
      %v685 = vld [vmem:[%s645 + $0xa0] sm:$0xff]
      %v686 = vld [vmem:[%s645 + $0xa8] sm:$0xff]
      %v687 = vld [vmem:[%s645 + $0xb0] sm:$0xff]
      %v688 = vld [vmem:[%s645 + $0xb8] sm:$0xff]
      %v689 = vld [vmem:[%s645 + $0xc0] sm:$0xff]
      %v690 = vld [vmem:[%s645 + $0xc8] sm:$0xff]
      %v691 = vld [vmem:[%s645 + $0xd0] sm:$0xff]
      %v692 = vld [vmem:[%s645 + $0xd8] sm:$0xff]
      %v693 = vld [vmem:[%s645 + $0xe0] sm:$0xff]
      %v694 = vld [vmem:[%s645 + $0xe8] sm:$0xff]
      %v695 = vld [vmem:[%s645 + $0xf0] sm:$0xff]
      %v696 = vld [vmem:[%s645 + $0xf8] sm:$0xff]
      %v697 = vld [vmem:[%s645 + $0x100] sm:$0xff]
      %v698 = vld [vmem:[%s645 + $0x108] sm:$0xff]
      %v699 = vld [vmem:[%s645 + $0x110] sm:$0xff]
      %v700 = vld [vmem:[%s645 + $0x118] sm:$0xff]
      %v701 = vld [vmem:[%s645 + $0x120] sm:$0xff]
      %v702 = vld [vmem:[%s645 + $0x128] sm:$0xff]
      %v703 = vld [vmem:[%s645 + $0x130] sm:$0xff]
      %v704 = vld [vmem:[%s645 + $0x138] sm:$0xff]
      %v705 = vld [vmem:[%s645 + $0x140] sm:$0xff]
      %v706 = vld [vmem:[%s645 + $0x148] sm:$0xff]
      %v707 = vld [vmem:[%s645 + $0x150] sm:$0xff]
      %v708 = vld [vmem:[%s645 + $0x158] sm:$0xff]
      %v709 = vld [vmem:[%s645 + $0x160] sm:$0xff]
      %v710 = vld [vmem:[%s645 + $0x168] sm:$0xff]
      %v711 = vld [vmem:[%s645 + $0x170] sm:$0xff]
      %v712 = vld [vmem:[%s645 + $0x178] sm:$0xff]
      %v713 = vld [vmem:[%s645 + $0x180] sm:$0xff]
      %v714 = vld [vmem:[%s645 + $0x188] sm:$0xff]
      %v715 = vld [vmem:[%s645 + $0x190] sm:$0xff]
      %v716 = vld [vmem:[%s645 + $0x198] sm:$0xff]
      %v717 = vld [vmem:[%s645 + $0x1a0] sm:$0xff]
      %v718 = vld [vmem:[%s645 + $0x1a8] sm:$0xff]
      %v719 = vld [vmem:[%s645 + $0x1b0] sm:$0xff]
      %v720 = vld [vmem:[%s645 + $0x1b8] sm:$0xff]
      %v721 = vld [vmem:[%s645 + $0x1c0] sm:$0xff]
      %v722 = vld [vmem:[%s645 + $0x1c8] sm:$0xff]
      %v723 = vld [vmem:[%s645 + $0x1d0] sm:$0xff]
      %v724 = vld [vmem:[%s645 + $0x1d8] sm:$0xff]
      %v725 = vld [vmem:[%s645 + $0x1e0] sm:$0xff]
      %v726 = vld [vmem:[%s645 + $0x1e8] sm:$0xff]
      %v727 = vld [vmem:[%s645 + $0x1f0] sm:$0xff]
      %v728 = vld [vmem:[%s645 + $0x1f8] sm:$0xff]
      %v729 = vld [vmem:[%s645 + $0x200] sm:$0xff]
      %v730 = vld [vmem:[%s645 + $0x208] sm:$0xff]
      %v731 = vld [vmem:[%s645 + $0x210] sm:$0xff]
      %v732 = vld [vmem:[%s645 + $0x218] sm:$0xff]
      %v733 = vld [vmem:[%s645 + $0x220] sm:$0xff]
      %v734 = vld [vmem:[%s645 + $0x228] sm:$0xff]
      %v735 = vld [vmem:[%s645 + $0x230] sm:$0xff]
      %v736 = vld [vmem:[%s645 + $0x238] sm:$0xff]
      %v737 = vld [vmem:[%s645 + $0x240] sm:$0xff]
      %v738 = vld [vmem:[%s645 + $0x248] sm:$0xff]
      %v739 = vld [vmem:[%s645 + $0x250] sm:$0xff]
      %v740 = vld [vmem:[%s645 + $0x258] sm:$0xff]
      %v741 = vld [vmem:[%s645 + $0x260] sm:$0xff]
      %v742 = vld [vmem:[%s645 + $0x268] sm:$0xff]
      %v743 = vld [vmem:[%s645 + $0x270] sm:$0xff]
      %v744 = vld [vmem:[%s645 + $0x278] sm:$0xff]
      %v745 = vld [vmem:[%s645 + $0x280] sm:$0xff]
      %v746 = vld [vmem:[%s645 + $0x288] sm:$0xff]
      %v747 = vld [vmem:[%s645 + $0x290] sm:$0xff]
      %v748 = vld [vmem:[%s645 + $0x298] sm:$0xff]
      %v749 = vld [vmem:[%s645 + $0x2a0] sm:$0xff]
      %v750 = vld [vmem:[%s645 + $0x2a8] sm:$0xff]
      %v751 = vld [vmem:[%s645 + $0x2b0] sm:$0xff]
      %v752 = vld [vmem:[%s645 + $0x2b8] sm:$0xff]
      %v753 = vld [vmem:[%s645 + $0x2c0] sm:$0xff]
      %v754 = vld [vmem:[%s645 + $0x2c8] sm:$0xff]
      %v755 = vld [vmem:[%s645 + $0x2d0] sm:$0xff]
      %v756 = vld [vmem:[%s645 + $0x2d8] sm:$0xff]
      %v757 = vld [vmem:[%s1] sm:$0xff]
      %v758 = vld [vmem:[%s1 + $0x8] sm:$0xff]
      %v759 = vld [vmem:[%s1 + $0x10] sm:$0xff]
      %v760 = vld [vmem:[%s1 + $0x18] sm:$0xff]
      %v761 = vld [vmem:[%s1 + $0x20] sm:$0xff]
      %v762 = vld [vmem:[%s1 + $0x28] sm:$0xff]
      %v763 = vld [vmem:[%s1 + $0x30] sm:$0xff]
      %v764 = vld [vmem:[%s1 + $0x38] sm:$0xff]
      %v765 = vld [vmem:[%s1 + $0x40] sm:$0xff]
      %v766 = vld [vmem:[%s1 + $0x48] sm:$0xff]
      %v767 = vld [vmem:[%s1 + $0x50] sm:$0xff]
      %v768 = vld [vmem:[%s1 + $0x58] sm:$0xff]
      %v769 = vld [vmem:[%s1 + $0x60] sm:$0xff]
      %v770 = vld [vmem:[%s1 + $0x68] sm:$0xff]
      %v771 = vld [vmem:[%s1 + $0x70] sm:$0xff]
      %v772 = vld [vmem:[%s1 + $0x78] sm:$0xff]
      %v773 = vld [vmem:[%s2] sm:$0x1]
      %v775 = vlaneseq
      %v776 = vshrl.u32 %v775, 7
      %v777 = vsub.s32 0, %v776
      %v778 = vrot.slane %v773, %v777
      %780 = vmatprep.subr.mxu0 0.0
      %781 = vmatpush1.msra.mxu0 %v772
      %782 = vmatprep.subr.mxu0 0.0
      %783 = vmatpush1.msra.mxu0 %v771
      %784 = vmatprep.subr.mxu0 0.0
      %785 = vmatpush1.msra.mxu0 %v770
      %786 = vmatprep.subr.mxu0 0.0
      %787 = vmatpush1.msra.mxu0 %v769
      %788 = vmatprep.subr.mxu0 0.0
      %789 = vmatpush1.msra.mxu0 %v768
      %790 = vmatprep.subr.mxu0 0.0
      %791 = vmatpush1.msra.mxu0 %v767
      %792 = vmatprep.subr.mxu0 0.0
      %793 = vmatpush1.msra.mxu0 %v766
      %794 = vmatprep.subr.mxu0 0.0
      %795 = vmatpush1.msra.mxu0 %v765
      %796 = vmatprep.subr.mxu0 0.0
      %797 = vmatpush1.msra.mxu0 %v764
      %798 = vmatprep.subr.mxu0 0.0
      %799 = vmatpush1.msra.mxu0 %v763
      %800 = vmatprep.subr.mxu0 0.0
      %801 = vmatpush1.msra.mxu0 %v762
      %802 = vmatprep.subr.mxu0 0.0
      %803 = vmatpush1.msra.mxu0 %v761
      %804 = vmatprep.subr.mxu0 0.0
      %805 = vmatpush1.msra.mxu0 %v760
      %806 = vmatprep.subr.mxu0 0.0
      %807 = vmatpush1.msra.mxu0 %v759
      %808 = vmatprep.subr.mxu0 0.0
      %809 = vmatpush1.msra.mxu0 %v758
      %810 = vmatprep.subr.mxu0 0.0
      %811 = vmatpush1.msra.mxu0 %v757
      %812 = vmatprep.subr.mxu0 0.0
      %813 = vmatpush2.msra.mxu0 0.0
      %814 = vmatprep.subr.mxu0 0.0
      %815 = vmatpush2.msra.mxu0 0.0
      %816 = vmatprep.subr.mxu0 0.0
      %817 = vmatpush2.msra.mxu0 0.0
      %818 = vmatprep.subr.mxu0 0.0
      %819 = vmatpush2.msra.mxu0 0.0
      %820 = vmatprep.subr.mxu0 0.0
      %821 = vmatpush2.msra.mxu0 0.0
      %822 = vmatprep.subr.mxu0 0.0
      %823 = vmatpush2.msra.mxu0 0.0
      %824 = vmatprep.subr.mxu0 0.0
      %825 = vmatpush2.msra.mxu0 0.0
      %826 = vmatprep.subr.mxu0 0.0
      %827 = vmatpush2.msra.mxu0 0.0
      %828 = vmatprep.subr.mxu0 0.0
      %829 = vmatpush2.msra.mxu0 0.0
      %830 = vmatprep.subr.mxu0 0.0
      %831 = vmatpush2.msra.mxu0 0.0
      %832 = vmatprep.subr.mxu0 0.0
      %833 = vmatpush2.msra.mxu0 0.0
      %834 = vmatprep.subr.mxu0 0.0
      %835 = vmatpush2.msra.mxu0 0.0
      %836 = vmatprep.subr.mxu0 0.0
      %837 = vmatpush2.msra.mxu0 0.0
      %838 = vmatprep.subr.mxu0 0.0
      %839 = vmatpush2.msra.mxu0 0.0
      %840 = vmatprep.subr.mxu0 0.0
      %841 = vmatpush2.msra.mxu0 0.0
      %842 = vmatprep.subr.mxu0 0.0
      %843 = vmatpush2.msra.mxu0 0.0
      %844 = vmatprep.mubr.f32.mxu0 0.0
      %845 = vmatmul.mubr.f32.gmra.mxu0 %v665
      %v846 = vpop.f32.mrf.mxu0
      %v847 = vadd.f32 %v778, %v846
      %v848 = vpop.f32.mrf.mxu0
      %849 = vmatprep.mubr.f32.mxu0 0.0
      %850 = vmatmul.mubr.f32.gmra.mxu0 %v666
      %v851 = vpop.f32.mrf.mxu0
      %v852 = vadd.f32 %v778, %v851
      %v853 = vpop.f32.mrf.mxu0
      %854 = vmatprep.mubr.f32.mxu0 0.0
      %855 = vmatmul.mubr.f32.gmra.mxu0 %v667
      %v856 = vpop.f32.mrf.mxu0
      %v857 = vadd.f32 %v778, %v856
      %v858 = vpop.f32.mrf.mxu0
      %859 = vmatprep.mubr.f32.mxu0 0.0
      %860 = vmatmul.mubr.f32.gmra.mxu0 %v668
      %v861 = vpop.f32.mrf.mxu0
      %v862 = vadd.f32 %v778, %v861
      %v863 = vpop.f32.mrf.mxu0
      %864 = vmatprep.mubr.f32.mxu0 0.0
      %865 = vmatmul.mubr.f32.gmra.mxu0 %v669
      %v866 = vpop.f32.mrf.mxu0
      %v867 = vadd.f32 %v778, %v866
      %v868 = vpop.f32.mrf.mxu0
      %869 = vmatprep.mubr.f32.mxu0 0.0
      %870 = vmatmul.mubr.f32.gmra.mxu0 %v670
      %v871 = vpop.f32.mrf.mxu0
      %v872 = vadd.f32 %v778, %v871
      %v873 = vpop.f32.mrf.mxu0
      %874 = vmatprep.mubr.f32.mxu0 0.0
      %875 = vmatmul.mubr.f32.gmra.mxu0 %v671
      %v876 = vpop.f32.mrf.mxu0
      %v877 = vadd.f32 %v778, %v876
      %v878 = vpop.f32.mrf.mxu0
      %879 = vmatprep.mubr.f32.mxu0 0.0
      %880 = vmatmul.mubr.f32.gmra.mxu0 %v672
      %v881 = vpop.f32.mrf.mxu0
      %v882 = vadd.f32 %v778, %v881
      %v883 = vpop.f32.mrf.mxu0
      %884 = vmatprep.mubr.f32.mxu0 0.0
      %885 = vmatmul.mubr.f32.gmra.mxu0 %v673
      %v886 = vpop.f32.mrf.mxu0
      %v887 = vadd.f32 %v778, %v886
      %v888 = vpop.f32.mrf.mxu0
      %889 = vmatprep.mubr.f32.mxu0 0.0
      %890 = vmatmul.mubr.f32.gmra.mxu0 %v674
      %v891 = vpop.f32.mrf.mxu0
      %v892 = vadd.f32 %v778, %v891
      %v893 = vpop.f32.mrf.mxu0
      %894 = vmatprep.mubr.f32.mxu0 0.0
      %895 = vmatmul.mubr.f32.gmra.mxu0 %v675
      %v896 = vpop.f32.mrf.mxu0
      %v897 = vadd.f32 %v778, %v896
      %v898 = vpop.f32.mrf.mxu0
      %899 = vmatprep.mubr.f32.mxu0 0.0
      %900 = vmatmul.mubr.f32.gmra.mxu0 %v676
      %v901 = vpop.f32.mrf.mxu0
      %v902 = vadd.f32 %v778, %v901
      %v903 = vpop.f32.mrf.mxu0
      %904 = vmatprep.mubr.f32.mxu0 0.0
      %905 = vmatmul.mubr.f32.gmra.mxu0 %v677
      %v906 = vpop.f32.mrf.mxu0
      %v907 = vadd.f32 %v778, %v906
      %v908 = vpop.f32.mrf.mxu0
      %909 = vmatprep.mubr.f32.mxu0 0.0
      %910 = vmatmul.mubr.f32.gmra.mxu0 %v678
      %v911 = vpop.f32.mrf.mxu0
      %v912 = vadd.f32 %v778, %v911
      %v913 = vpop.f32.mrf.mxu0
      %914 = vmatprep.mubr.f32.mxu0 0.0
      %915 = vmatmul.mubr.f32.gmra.mxu0 %v679
      %v916 = vpop.f32.mrf.mxu0
      %v917 = vadd.f32 %v778, %v916
      %v918 = vpop.f32.mrf.mxu0
      %919 = vmatprep.mubr.f32.mxu0 0.0
      %920 = vmatmul.mubr.f32.gmra.mxu0 %v680
      %v921 = vpop.f32.mrf.mxu0
      %v922 = vadd.f32 %v778, %v921
      %v923 = vpop.f32.mrf.mxu0
      %924 = vmatprep.mubr.f32.mxu0 0.0
      %925 = vmatmul.mubr.f32.gmra.mxu0 %v681
      %v926 = vpop.f32.mrf.mxu0
      %v927 = vadd.f32 %v778, %v926
      %v928 = vpop.f32.mrf.mxu0
      %929 = vmatprep.mubr.f32.mxu0 0.0
      %930 = vmatmul.mubr.f32.gmra.mxu0 %v682
      %v931 = vpop.f32.mrf.mxu0
      %v932 = vadd.f32 %v778, %v931
      %v933 = vpop.f32.mrf.mxu0
      %934 = vmatprep.mubr.f32.mxu0 0.0
      %935 = vmatmul.mubr.f32.gmra.mxu0 %v683
      %v936 = vpop.f32.mrf.mxu0
      %v937 = vadd.f32 %v778, %v936
      %v938 = vpop.f32.mrf.mxu0
      %939 = vmatprep.mubr.f32.mxu0 0.0
      %940 = vmatmul.mubr.f32.gmra.mxu0 %v684
      %v941 = vpop.f32.mrf.mxu0
      %v942 = vadd.f32 %v778, %v941
      %v943 = vpop.f32.mrf.mxu0
      %944 = vmatprep.mubr.f32.mxu0 0.0
      %945 = vmatmul.mubr.f32.gmra.mxu0 %v685
      %v946 = vpop.f32.mrf.mxu0
      %v947 = vadd.f32 %v778, %v946
      %v948 = vpop.f32.mrf.mxu0
      %949 = vmatprep.mubr.f32.mxu0 0.0
      %950 = vmatmul.mubr.f32.gmra.mxu0 %v686
      %v951 = vpop.f32.mrf.mxu0
      %v952 = vadd.f32 %v778, %v951
      %v953 = vpop.f32.mrf.mxu0
      %954 = vmatprep.mubr.f32.mxu0 0.0
      %955 = vmatmul.mubr.f32.gmra.mxu0 %v687
      %v956 = vpop.f32.mrf.mxu0
      %v957 = vadd.f32 %v778, %v956
      %v958 = vpop.f32.mrf.mxu0
      %959 = vmatprep.mubr.f32.mxu0 0.0
      %960 = vmatmul.mubr.f32.gmra.mxu0 %v688
      %v961 = vpop.f32.mrf.mxu0
      %v962 = vadd.f32 %v778, %v961
      %v963 = vpop.f32.mrf.mxu0
      %964 = vmatprep.mubr.f32.mxu0 0.0
      %965 = vmatmul.mubr.f32.gmra.mxu0 %v689
      %v966 = vpop.f32.mrf.mxu0
      %v967 = vadd.f32 %v778, %v966
      %v968 = vpop.f32.mrf.mxu0
      %969 = vmatprep.mubr.f32.mxu0 0.0
      %970 = vmatmul.mubr.f32.gmra.mxu0 %v690
      %v971 = vpop.f32.mrf.mxu0
      %v972 = vadd.f32 %v778, %v971
      %v973 = vpop.f32.mrf.mxu0
      %974 = vmatprep.mubr.f32.mxu0 0.0
      %975 = vmatmul.mubr.f32.gmra.mxu0 %v691
      %v976 = vpop.f32.mrf.mxu0
      %v977 = vadd.f32 %v778, %v976
      %v978 = vpop.f32.mrf.mxu0
      %979 = vmatprep.mubr.f32.mxu0 0.0
      %980 = vmatmul.mubr.f32.gmra.mxu0 %v692
      %v981 = vpop.f32.mrf.mxu0
      %v982 = vadd.f32 %v778, %v981
      %v983 = vpop.f32.mrf.mxu0
      %984 = vmatprep.mubr.f32.mxu0 0.0
      %985 = vmatmul.mubr.f32.gmra.mxu0 %v693
      %v986 = vpop.f32.mrf.mxu0
      %v987 = vadd.f32 %v778, %v986
      %v988 = vpop.f32.mrf.mxu0
      %989 = vmatprep.mubr.f32.mxu0 0.0
      %990 = vmatmul.mubr.f32.gmra.mxu0 %v694
      %v991 = vpop.f32.mrf.mxu0
      %v992 = vadd.f32 %v778, %v991
      %v993 = vpop.f32.mrf.mxu0
      %994 = vmatprep.mubr.f32.mxu0 0.0
      %995 = vmatmul.mubr.f32.gmra.mxu0 %v695
      %v996 = vpop.f32.mrf.mxu0
      %v997 = vadd.f32 %v778, %v996
      %v998 = vpop.f32.mrf.mxu0
      %999 = vmatprep.mubr.f32.mxu0 0.0
      %1000 = vmatmul.mubr.f32.gmra.mxu0 %v696
      %v1001 = vpop.f32.mrf.mxu0
      %v1002 = vadd.f32 %v778, %v1001
      %v1003 = vpop.f32.mrf.mxu0
      %1004 = vmatprep.mubr.f32.mxu0 0.0
      %1005 = vmatmul.mubr.f32.gmra.mxu0 %v697
      %v1006 = vpop.f32.mrf.mxu0
      %v1007 = vadd.f32 %v778, %v1006
      %v1008 = vpop.f32.mrf.mxu0
      %1009 = vmatprep.mubr.f32.mxu0 0.0
      %1010 = vmatmul.mubr.f32.gmra.mxu0 %v698
      %v1011 = vpop.f32.mrf.mxu0
      %v1012 = vadd.f32 %v778, %v1011
      %v1013 = vpop.f32.mrf.mxu0
      %1014 = vmatprep.mubr.f32.mxu0 0.0
      %1015 = vmatmul.mubr.f32.gmra.mxu0 %v699
      %v1016 = vpop.f32.mrf.mxu0
      %v1017 = vadd.f32 %v778, %v1016
      %v1018 = vpop.f32.mrf.mxu0
      %1019 = vmatprep.mubr.f32.mxu0 0.0
      %1020 = vmatmul.mubr.f32.gmra.mxu0 %v700
      %v1021 = vpop.f32.mrf.mxu0
      %v1022 = vadd.f32 %v778, %v1021
      %v1023 = vpop.f32.mrf.mxu0
      %1024 = vmatprep.mubr.f32.mxu0 0.0
      %1025 = vmatmul.mubr.f32.gmra.mxu0 %v701
      %v1026 = vpop.f32.mrf.mxu0
      %v1027 = vadd.f32 %v778, %v1026
      %v1028 = vpop.f32.mrf.mxu0
      %1029 = vmatprep.mubr.f32.mxu0 0.0
      %1030 = vmatmul.mubr.f32.gmra.mxu0 %v702
      %v1031 = vpop.f32.mrf.mxu0
      %v1032 = vadd.f32 %v778, %v1031
      %v1033 = vpop.f32.mrf.mxu0
      %1034 = vmatprep.mubr.f32.mxu0 0.0
      %1035 = vmatmul.mubr.f32.gmra.mxu0 %v703
      %v1036 = vpop.f32.mrf.mxu0
      %v1037 = vadd.f32 %v778, %v1036
      %v1038 = vpop.f32.mrf.mxu0
      %1039 = vmatprep.mubr.f32.mxu0 0.0
      %1040 = vmatmul.mubr.f32.gmra.mxu0 %v704
      %v1041 = vpop.f32.mrf.mxu0
      %v1042 = vadd.f32 %v778, %v1041
      %v1043 = vpop.f32.mrf.mxu0
      %1044 = vmatprep.mubr.f32.mxu0 0.0
      %1045 = vmatmul.mubr.f32.gmra.mxu0 %v705
      %v1046 = vpop.f32.mrf.mxu0
      %v1047 = vadd.f32 %v778, %v1046
      %v1048 = vpop.f32.mrf.mxu0
      %1049 = vmatprep.mubr.f32.mxu0 0.0
      %1050 = vmatmul.mubr.f32.gmra.mxu0 %v706
      %v1051 = vpop.f32.mrf.mxu0
      %v1052 = vadd.f32 %v778, %v1051
      %v1053 = vpop.f32.mrf.mxu0
      %1054 = vmatprep.mubr.f32.mxu0 0.0
      %1055 = vmatmul.mubr.f32.gmra.mxu0 %v707
      %v1056 = vpop.f32.mrf.mxu0
      %v1057 = vadd.f32 %v778, %v1056
      %v1058 = vpop.f32.mrf.mxu0
      %1059 = vmatprep.mubr.f32.mxu0 0.0
      %1060 = vmatmul.mubr.f32.gmra.mxu0 %v708
      %v1061 = vpop.f32.mrf.mxu0
      %v1062 = vadd.f32 %v778, %v1061
      %v1063 = vpop.f32.mrf.mxu0
      %1064 = vmatprep.mubr.f32.mxu0 0.0
      %1065 = vmatmul.mubr.f32.gmra.mxu0 %v709
      %v1066 = vpop.f32.mrf.mxu0
      %v1067 = vadd.f32 %v778, %v1066
      %v1068 = vpop.f32.mrf.mxu0
      %1069 = vmatprep.mubr.f32.mxu0 0.0
      %1070 = vmatmul.mubr.f32.gmra.mxu0 %v710
      %v1071 = vpop.f32.mrf.mxu0
      %v1072 = vadd.f32 %v778, %v1071
      %v1073 = vpop.f32.mrf.mxu0
      %1074 = vmatprep.mubr.f32.mxu0 0.0
      %1075 = vmatmul.mubr.f32.gmra.mxu0 %v711
      %v1076 = vpop.f32.mrf.mxu0
      %v1077 = vadd.f32 %v778, %v1076
      %v1078 = vpop.f32.mrf.mxu0
      %1079 = vmatprep.mubr.f32.mxu0 0.0
      %1080 = vmatmul.mubr.f32.gmra.mxu0 %v712
      %v1081 = vpop.f32.mrf.mxu0
      %v1082 = vadd.f32 %v778, %v1081
      %v1083 = vpop.f32.mrf.mxu0
      %1084 = vmatprep.mubr.f32.mxu0 0.0
      %1085 = vmatmul.mubr.f32.gmra.mxu0 %v713
      %v1086 = vpop.f32.mrf.mxu0
      %v1087 = vadd.f32 %v778, %v1086
      %v1088 = vpop.f32.mrf.mxu0
      %1089 = vmatprep.mubr.f32.mxu0 0.0
      %1090 = vmatmul.mubr.f32.gmra.mxu0 %v714
      %v1091 = vpop.f32.mrf.mxu0
      %v1092 = vadd.f32 %v778, %v1091
      %v1093 = vpop.f32.mrf.mxu0
      %1094 = vmatprep.mubr.f32.mxu0 0.0
      %1095 = vmatmul.mubr.f32.gmra.mxu0 %v715
      %v1096 = vpop.f32.mrf.mxu0
      %v1097 = vadd.f32 %v778, %v1096
      %v1098 = vpop.f32.mrf.mxu0
      %1099 = vmatprep.mubr.f32.mxu0 0.0
      %1100 = vmatmul.mubr.f32.gmra.mxu0 %v716
      %v1101 = vpop.f32.mrf.mxu0
      %v1102 = vadd.f32 %v778, %v1101
      %v1103 = vpop.f32.mrf.mxu0
      %1104 = vmatprep.mubr.f32.mxu0 0.0
      %1105 = vmatmul.mubr.f32.gmra.mxu0 %v717
      %v1106 = vpop.f32.mrf.mxu0
      %v1107 = vadd.f32 %v778, %v1106
      %v1108 = vpop.f32.mrf.mxu0
      %1109 = vmatprep.mubr.f32.mxu0 0.0
      %1110 = vmatmul.mubr.f32.gmra.mxu0 %v718
      %v1111 = vpop.f32.mrf.mxu0
      %v1112 = vadd.f32 %v778, %v1111
      %v1113 = vpop.f32.mrf.mxu0
      %1114 = vmatprep.mubr.f32.mxu0 0.0
      %1115 = vmatmul.mubr.f32.gmra.mxu0 %v719
      %v1116 = vpop.f32.mrf.mxu0
      %v1117 = vadd.f32 %v778, %v1116
      %v1118 = vpop.f32.mrf.mxu0
      %1119 = vmatprep.mubr.f32.mxu0 0.0
      %1120 = vmatmul.mubr.f32.gmra.mxu0 %v720
      %v1121 = vpop.f32.mrf.mxu0
      %v1122 = vadd.f32 %v778, %v1121
      %v1123 = vpop.f32.mrf.mxu0
      %1124 = vmatprep.mubr.f32.mxu0 0.0
      %1125 = vmatmul.mubr.f32.gmra.mxu0 %v721
      %v1126 = vpop.f32.mrf.mxu0
      %v1127 = vadd.f32 %v778, %v1126
      %v1128 = vpop.f32.mrf.mxu0
      %1129 = vmatprep.mubr.f32.mxu0 0.0
      %1130 = vmatmul.mubr.f32.gmra.mxu0 %v722
      %v1131 = vpop.f32.mrf.mxu0
      %v1132 = vadd.f32 %v778, %v1131
      %v1133 = vpop.f32.mrf.mxu0
      %1134 = vmatprep.mubr.f32.mxu0 0.0
      %1135 = vmatmul.mubr.f32.gmra.mxu0 %v723
      %v1136 = vpop.f32.mrf.mxu0
      %v1137 = vadd.f32 %v778, %v1136
      %v1138 = vpop.f32.mrf.mxu0
      %1139 = vmatprep.mubr.f32.mxu0 0.0
      %1140 = vmatmul.mubr.f32.gmra.mxu0 %v724
      %v1141 = vpop.f32.mrf.mxu0
      %v1142 = vadd.f32 %v778, %v1141
      %v1143 = vpop.f32.mrf.mxu0
      %1144 = vmatprep.mubr.f32.mxu0 0.0
      %1145 = vmatmul.mubr.f32.gmra.mxu0 %v725
      %v1146 = vpop.f32.mrf.mxu0
      %v1147 = vadd.f32 %v778, %v1146
      %v1148 = vpop.f32.mrf.mxu0
      %1149 = vmatprep.mubr.f32.mxu0 0.0
      %1150 = vmatmul.mubr.f32.gmra.mxu0 %v726
      %v1151 = vpop.f32.mrf.mxu0
      %v1152 = vadd.f32 %v778, %v1151
      %v1153 = vpop.f32.mrf.mxu0
      %1154 = vmatprep.mubr.f32.mxu0 0.0
      %1155 = vmatmul.mubr.f32.gmra.mxu0 %v727
      %v1156 = vpop.f32.mrf.mxu0
      %v1157 = vadd.f32 %v778, %v1156
      %v1158 = vpop.f32.mrf.mxu0
      %1159 = vmatprep.mubr.f32.mxu0 0.0
      %1160 = vmatmul.mubr.f32.gmra.mxu0 %v728
      %v1161 = vpop.f32.mrf.mxu0
      %v1162 = vadd.f32 %v778, %v1161
      %v1163 = vpop.f32.mrf.mxu0
      %1164 = vmatprep.mubr.f32.mxu0 0.0
      %1165 = vmatmul.mubr.f32.gmra.mxu0 %v729
      %v1166 = vpop.f32.mrf.mxu0
      %v1167 = vadd.f32 %v778, %v1166
      %v1168 = vpop.f32.mrf.mxu0
      %1169 = vmatprep.mubr.f32.mxu0 0.0
      %1170 = vmatmul.mubr.f32.gmra.mxu0 %v730
      %v1171 = vpop.f32.mrf.mxu0
      %v1172 = vadd.f32 %v778, %v1171
      %v1173 = vpop.f32.mrf.mxu0
      %1174 = vmatprep.mubr.f32.mxu0 0.0
      %1175 = vmatmul.mubr.f32.gmra.mxu0 %v731
      %v1176 = vpop.f32.mrf.mxu0
      %v1177 = vadd.f32 %v778, %v1176
      %v1178 = vpop.f32.mrf.mxu0
      %1179 = vmatprep.mubr.f32.mxu0 0.0
      %1180 = vmatmul.mubr.f32.gmra.mxu0 %v732
      %v1181 = vpop.f32.mrf.mxu0
      %v1182 = vadd.f32 %v778, %v1181
      %v1183 = vpop.f32.mrf.mxu0
      %1184 = vmatprep.mubr.f32.mxu0 0.0
      %1185 = vmatmul.mubr.f32.gmra.mxu0 %v733
      %v1186 = vpop.f32.mrf.mxu0
      %v1187 = vadd.f32 %v778, %v1186
      %v1188 = vpop.f32.mrf.mxu0
      %1189 = vmatprep.mubr.f32.mxu0 0.0
      %1190 = vmatmul.mubr.f32.gmra.mxu0 %v734
      %v1191 = vpop.f32.mrf.mxu0
      %v1192 = vadd.f32 %v778, %v1191
      %v1193 = vpop.f32.mrf.mxu0
      %1194 = vmatprep.mubr.f32.mxu0 0.0
      %1195 = vmatmul.mubr.f32.gmra.mxu0 %v735
      %v1196 = vpop.f32.mrf.mxu0
      %v1197 = vadd.f32 %v778, %v1196
      %v1198 = vpop.f32.mrf.mxu0
      %1199 = vmatprep.mubr.f32.mxu0 0.0
      %1200 = vmatmul.mubr.f32.gmra.mxu0 %v736
      %v1201 = vpop.f32.mrf.mxu0
      %v1202 = vadd.f32 %v778, %v1201
      %v1203 = vpop.f32.mrf.mxu0
      %1204 = vmatprep.mubr.f32.mxu0 0.0
      %1205 = vmatmul.mubr.f32.gmra.mxu0 %v737
      %v1206 = vpop.f32.mrf.mxu0
      %v1207 = vadd.f32 %v778, %v1206
      %v1208 = vpop.f32.mrf.mxu0
      %1209 = vmatprep.mubr.f32.mxu0 0.0
      %1210 = vmatmul.mubr.f32.gmra.mxu0 %v738
      %v1211 = vpop.f32.mrf.mxu0
      %v1212 = vadd.f32 %v778, %v1211
      %v1213 = vpop.f32.mrf.mxu0
      %1214 = vmatprep.mubr.f32.mxu0 0.0
      %1215 = vmatmul.mubr.f32.gmra.mxu0 %v739
      %v1216 = vpop.f32.mrf.mxu0
      %v1217 = vadd.f32 %v778, %v1216
      %v1218 = vpop.f32.mrf.mxu0
      %1219 = vmatprep.mubr.f32.mxu0 0.0
      %1220 = vmatmul.mubr.f32.gmra.mxu0 %v740
      %v1221 = vpop.f32.mrf.mxu0
      %v1222 = vadd.f32 %v778, %v1221
      %v1223 = vpop.f32.mrf.mxu0
      %1224 = vmatprep.mubr.f32.mxu0 0.0
      %1225 = vmatmul.mubr.f32.gmra.mxu0 %v741
      %v1226 = vpop.f32.mrf.mxu0
      %v1227 = vadd.f32 %v778, %v1226
      %v1228 = vpop.f32.mrf.mxu0
      %1229 = vmatprep.mubr.f32.mxu0 0.0
      %1230 = vmatmul.mubr.f32.gmra.mxu0 %v742
      %v1231 = vpop.f32.mrf.mxu0
      %v1232 = vadd.f32 %v778, %v1231
      %v1233 = vpop.f32.mrf.mxu0
      %1234 = vmatprep.mubr.f32.mxu0 0.0
      %1235 = vmatmul.mubr.f32.gmra.mxu0 %v743
      %v1236 = vpop.f32.mrf.mxu0
      %v1237 = vadd.f32 %v778, %v1236
      %v1238 = vpop.f32.mrf.mxu0
      %1239 = vmatprep.mubr.f32.mxu0 0.0
      %1240 = vmatmul.mubr.f32.gmra.mxu0 %v744
      %v1241 = vpop.f32.mrf.mxu0
      %v1242 = vadd.f32 %v778, %v1241
      %v1243 = vpop.f32.mrf.mxu0
      %1244 = vmatprep.mubr.f32.mxu0 0.0
      %1245 = vmatmul.mubr.f32.gmra.mxu0 %v745
      %v1246 = vpop.f32.mrf.mxu0
      %v1247 = vadd.f32 %v778, %v1246
      %v1248 = vpop.f32.mrf.mxu0
      %1249 = vmatprep.mubr.f32.mxu0 0.0
      %1250 = vmatmul.mubr.f32.gmra.mxu0 %v746
      %v1251 = vpop.f32.mrf.mxu0
      %v1252 = vadd.f32 %v778, %v1251
      %v1253 = vpop.f32.mrf.mxu0
      %1254 = vmatprep.mubr.f32.mxu0 0.0
      %1255 = vmatmul.mubr.f32.gmra.mxu0 %v747
      %v1256 = vpop.f32.mrf.mxu0
      %v1257 = vadd.f32 %v778, %v1256
      %v1258 = vpop.f32.mrf.mxu0
      %1259 = vmatprep.mubr.f32.mxu0 0.0
      %1260 = vmatmul.mubr.f32.gmra.mxu0 %v748
      %v1261 = vpop.f32.mrf.mxu0
      %v1262 = vadd.f32 %v778, %v1261
      %v1263 = vpop.f32.mrf.mxu0
      %1264 = vmatprep.mubr.f32.mxu0 0.0
      %1265 = vmatmul.mubr.f32.gmra.mxu0 %v749
      %v1266 = vpop.f32.mrf.mxu0
      %v1267 = vadd.f32 %v778, %v1266
      %v1268 = vpop.f32.mrf.mxu0
      %1269 = vmatprep.mubr.f32.mxu0 0.0
      %1270 = vmatmul.mubr.f32.gmra.mxu0 %v750
      %v1271 = vpop.f32.mrf.mxu0
      %v1272 = vadd.f32 %v778, %v1271
      %v1273 = vpop.f32.mrf.mxu0
      %1274 = vmatprep.mubr.f32.mxu0 0.0
      %1275 = vmatmul.mubr.f32.gmra.mxu0 %v751
      %v1276 = vpop.f32.mrf.mxu0
      %v1277 = vadd.f32 %v778, %v1276
      %v1278 = vpop.f32.mrf.mxu0
      %1279 = vmatprep.mubr.f32.mxu0 0.0
      %1280 = vmatmul.mubr.f32.gmra.mxu0 %v752
      %v1281 = vpop.f32.mrf.mxu0
      %v1282 = vadd.f32 %v778, %v1281
      %v1283 = vpop.f32.mrf.mxu0
      %1284 = vmatprep.mubr.f32.mxu0 0.0
      %1285 = vmatmul.mubr.f32.gmra.mxu0 %v753
      %v1286 = vpop.f32.mrf.mxu0
      %v1287 = vadd.f32 %v778, %v1286
      %v1288 = vpop.f32.mrf.mxu0
      %1289 = vmatprep.mubr.f32.mxu0 0.0
      %1290 = vmatmul.mubr.f32.gmra.mxu0 %v754
      %v1291 = vpop.f32.mrf.mxu0
      %v1292 = vadd.f32 %v778, %v1291
      %v1293 = vpop.f32.mrf.mxu0
      %1294 = vmatprep.mubr.f32.mxu0 0.0
      %1295 = vmatmul.mubr.f32.gmra.mxu0 %v755
      %v1296 = vpop.f32.mrf.mxu0
      %v1297 = vadd.f32 %v778, %v1296
      %v1298 = vpop.f32.mrf.mxu0
      %1299 = vmatprep.mubr.f32.mxu0 0.0
      %1300 = vmatmul.mubr.f32.gmra.mxu0 %v756
      %v1301 = vpop.f32.mrf.mxu0
      %v1302 = vadd.f32 %v778, %v1301
      %v1303 = vpop.f32.mrf.mxu0
      %1304 = vdwg.mxu0
      %v1305 = vmax.f32 %v847, 0.0
      %v1306 = vmax.f32 %v852, 0.0
      %v1307 = vmax.f32 %v857, 0.0
      %v1308 = vmax.f32 %v862, 0.0
      %v1309 = vmax.f32 %v867, 0.0
      %v1310 = vmax.f32 %v872, 0.0
      %v1311 = vmax.f32 %v877, 0.0
      %v1312 = vmax.f32 %v882, 0.0
      %v1313 = vmax.f32 %v887, 0.0
      %v1314 = vmax.f32 %v892, 0.0
      %v1315 = vmax.f32 %v897, 0.0
      %v1316 = vmax.f32 %v902, 0.0
      %v1317 = vmax.f32 %v907, 0.0
      %v1318 = vmax.f32 %v912, 0.0
      %v1319 = vmax.f32 %v917, 0.0
      %v1320 = vmax.f32 %v922, 0.0
      %v1321 = vmax.f32 %v927, 0.0
      %v1322 = vmax.f32 %v932, 0.0
      %v1323 = vmax.f32 %v937, 0.0
      %v1324 = vmax.f32 %v942, 0.0
      %v1325 = vmax.f32 %v947, 0.0
      %v1326 = vmax.f32 %v952, 0.0
      %v1327 = vmax.f32 %v957, 0.0
      %v1328 = vmax.f32 %v962, 0.0
      %v1329 = vmax.f32 %v967, 0.0
      %v1330 = vmax.f32 %v972, 0.0
      %v1331 = vmax.f32 %v977, 0.0
      %v1332 = vmax.f32 %v982, 0.0
      %v1333 = vmax.f32 %v987, 0.0
      %v1334 = vmax.f32 %v992, 0.0
      %v1335 = vmax.f32 %v997, 0.0
      %v1336 = vmax.f32 %v1002, 0.0
      %v1337 = vmax.f32 %v1007, 0.0
      %v1338 = vmax.f32 %v1012, 0.0
      %v1339 = vmax.f32 %v1017, 0.0
      %v1340 = vmax.f32 %v1022, 0.0
      %v1341 = vmax.f32 %v1027, 0.0
      %v1342 = vmax.f32 %v1032, 0.0
      %v1343 = vmax.f32 %v1037, 0.0
      %v1344 = vmax.f32 %v1042, 0.0
      %v1345 = vmax.f32 %v1047, 0.0
      %v1346 = vmax.f32 %v1052, 0.0
      %v1347 = vmax.f32 %v1057, 0.0
      %v1348 = vmax.f32 %v1062, 0.0
      %v1349 = vmax.f32 %v1067, 0.0
      %v1350 = vmax.f32 %v1072, 0.0
      %v1351 = vmax.f32 %v1077, 0.0
      %v1352 = vmax.f32 %v1082, 0.0
      %v1353 = vmax.f32 %v1087, 0.0
      %v1354 = vmax.f32 %v1092, 0.0
      %v1355 = vmax.f32 %v1097, 0.0
      %v1356 = vmax.f32 %v1102, 0.0
      %v1357 = vmax.f32 %v1107, 0.0
      %v1358 = vmax.f32 %v1112, 0.0
      %v1359 = vmax.f32 %v1117, 0.0
      %v1360 = vmax.f32 %v1122, 0.0
      %v1361 = vmax.f32 %v1127, 0.0
      %v1362 = vmax.f32 %v1132, 0.0
      %v1363 = vmax.f32 %v1137, 0.0
      %v1364 = vmax.f32 %v1142, 0.0
      %v1365 = vmax.f32 %v1147, 0.0
      %v1366 = vmax.f32 %v1152, 0.0
      %v1367 = vmax.f32 %v1157, 0.0
      %v1368 = vmax.f32 %v1162, 0.0
      %v1369 = vmax.f32 %v1167, 0.0
      %v1370 = vmax.f32 %v1172, 0.0
      %v1371 = vmax.f32 %v1177, 0.0
      %v1372 = vmax.f32 %v1182, 0.0
      %v1373 = vmax.f32 %v1187, 0.0
      %v1374 = vmax.f32 %v1192, 0.0
      %v1375 = vmax.f32 %v1197, 0.0
      %v1376 = vmax.f32 %v1202, 0.0
      %v1377 = vmax.f32 %v1207, 0.0
      %v1378 = vmax.f32 %v1212, 0.0
      %v1379 = vmax.f32 %v1217, 0.0
      %v1380 = vmax.f32 %v1222, 0.0
      %v1381 = vmax.f32 %v1227, 0.0
      %v1382 = vmax.f32 %v1232, 0.0
      %v1383 = vmax.f32 %v1237, 0.0
      %v1384 = vmax.f32 %v1242, 0.0
      %v1385 = vmax.f32 %v1247, 0.0
      %v1386 = vmax.f32 %v1252, 0.0
      %v1387 = vmax.f32 %v1257, 0.0
      %v1388 = vmax.f32 %v1262, 0.0
      %v1389 = vmax.f32 %v1267, 0.0
      %v1390 = vmax.f32 %v1272, 0.0
      %v1391 = vmax.f32 %v1277, 0.0
      %v1392 = vmax.f32 %v1282, 0.0
      %v1393 = vmax.f32 %v1287, 0.0
      %v1394 = vmax.f32 %v1292, 0.0
      %v1395 = vmax.f32 %v1297, 0.0
      %v1396 = vmax.f32 %v1302, 0.0
      %1397 = vst [vmem:[#allocation2] sm:$0xff] %v1305
      %1398 = vst [vmem:[#allocation2 + $0x8] sm:$0xff] %v1306
      %1399 = vst [vmem:[#allocation2 + $0x10] sm:$0xff] %v1307
      %1400 = vst [vmem:[#allocation2 + $0x18] sm:$0xff] %v1308
      %1401 = vst [vmem:[#allocation2 + $0x20] sm:$0xff] %v1309
      %1402 = vst [vmem:[#allocation2 + $0x28] sm:$0xff] %v1310
      %1403 = vst [vmem:[#allocation2 + $0x30] sm:$0xff] %v1311
      %1404 = vst [vmem:[#allocation2 + $0x38] sm:$0xff] %v1312
      %1405 = vst [vmem:[#allocation2 + $0x40] sm:$0xff] %v1313
      %1406 = vst [vmem:[#allocation2 + $0x48] sm:$0xff] %v1314
      %1407 = vst [vmem:[#allocation2 + $0x50] sm:$0xff] %v1315
      %1408 = vst [vmem:[#allocation2 + $0x58] sm:$0xff] %v1316
      %1409 = vst [vmem:[#allocation2 + $0x60] sm:$0xff] %v1317
      %1410 = vst [vmem:[#allocation2 + $0x68] sm:$0xff] %v1318
      %1411 = vst [vmem:[#allocation2 + $0x70] sm:$0xff] %v1319
      %1412 = vst [vmem:[#allocation2 + $0x78] sm:$0xff] %v1320
      %1413 = vst [vmem:[#allocation2 + $0x80] sm:$0xff] %v1321
      %1414 = vst [vmem:[#allocation2 + $0x88] sm:$0xff] %v1322
      %1415 = vst [vmem:[#allocation2 + $0x90] sm:$0xff] %v1323
      %1416 = vst [vmem:[#allocation2 + $0x98] sm:$0xff] %v1324
      %1417 = vst [vmem:[#allocation2 + $0xa0] sm:$0xff] %v1325
      %1418 = vst [vmem:[#allocation2 + $0xa8] sm:$0xff] %v1326
      %1419 = vst [vmem:[#allocation2 + $0xb0] sm:$0xff] %v1327
      %1420 = vst [vmem:[#allocation2 + $0xb8] sm:$0xff] %v1328
      %1421 = vst [vmem:[#allocation2 + $0xc0] sm:$0xff] %v1329
      %1422 = vst [vmem:[#allocation2 + $0xc8] sm:$0xff] %v1330
      %1423 = vst [vmem:[#allocation2 + $0xd0] sm:$0xff] %v1331
      %1424 = vst [vmem:[#allocation2 + $0xd8] sm:$0xff] %v1332
      %1425 = vst [vmem:[#allocation2 + $0xe0] sm:$0xff] %v1333
      %1426 = vst [vmem:[#allocation2 + $0xe8] sm:$0xff] %v1334
      %1427 = vst [vmem:[#allocation2 + $0xf0] sm:$0xff] %v1335
      %1428 = vst [vmem:[#allocation2 + $0xf8] sm:$0xff] %v1336
      %1429 = vst [vmem:[#allocation2 + $0x100] sm:$0xff] %v1337
      %1430 = vst [vmem:[#allocation2 + $0x108] sm:$0xff] %v1338
      %1431 = vst [vmem:[#allocation2 + $0x110] sm:$0xff] %v1339
      %1432 = vst [vmem:[#allocation2 + $0x118] sm:$0xff] %v1340
      %1433 = vst [vmem:[#allocation2 + $0x120] sm:$0xff] %v1341
      %1434 = vst [vmem:[#allocation2 + $0x128] sm:$0xff] %v1342
      %1435 = vst [vmem:[#allocation2 + $0x130] sm:$0xff] %v1343
      %1436 = vst [vmem:[#allocation2 + $0x138] sm:$0xff] %v1344
      %1437 = vst [vmem:[#allocation2 + $0x140] sm:$0xff] %v1345
      %1438 = vst [vmem:[#allocation2 + $0x148] sm:$0xff] %v1346
      %1439 = vst [vmem:[#allocation2 + $0x150] sm:$0xff] %v1347
      %1440 = vst [vmem:[#allocation2 + $0x158] sm:$0xff] %v1348
      %1441 = vst [vmem:[#allocation2 + $0x160] sm:$0xff] %v1349
      %1442 = vst [vmem:[#allocation2 + $0x168] sm:$0xff] %v1350
      %1443 = vst [vmem:[#allocation2 + $0x170] sm:$0xff] %v1351
      %1444 = vst [vmem:[#allocation2 + $0x178] sm:$0xff] %v1352
      %1445 = vst [vmem:[#allocation2 + $0x180] sm:$0xff] %v1353
      %1446 = vst [vmem:[#allocation2 + $0x188] sm:$0xff] %v1354
      %1447 = vst [vmem:[#allocation2 + $0x190] sm:$0xff] %v1355
      %1448 = vst [vmem:[#allocation2 + $0x198] sm:$0xff] %v1356
      %1449 = vst [vmem:[#allocation2 + $0x1a0] sm:$0xff] %v1357
      %1450 = vst [vmem:[#allocation2 + $0x1a8] sm:$0xff] %v1358
      %1451 = vst [vmem:[#allocation2 + $0x1b0] sm:$0xff] %v1359
      %1452 = vst [vmem:[#allocation2 + $0x1b8] sm:$0xff] %v1360
      %1453 = vst [vmem:[#allocation2 + $0x1c0] sm:$0xff] %v1361
      %1454 = vst [vmem:[#allocation2 + $0x1c8] sm:$0xff] %v1362
      %1455 = vst [vmem:[#allocation2 + $0x1d0] sm:$0xff] %v1363
      %1456 = vst [vmem:[#allocation2 + $0x1d8] sm:$0xff] %v1364
      %1457 = vst [vmem:[#allocation2 + $0x1e0] sm:$0xff] %v1365
      %1458 = vst [vmem:[#allocation2 + $0x1e8] sm:$0xff] %v1366
      %1459 = vst [vmem:[#allocation2 + $0x1f0] sm:$0xff] %v1367
      %1460 = vst [vmem:[#allocation2 + $0x1f8] sm:$0xff] %v1368
      %1461 = vst [vmem:[#allocation2 + $0x200] sm:$0xff] %v1369
      %1462 = vst [vmem:[#allocation2 + $0x208] sm:$0xff] %v1370
      %1463 = vst [vmem:[#allocation2 + $0x210] sm:$0xff] %v1371
      %1464 = vst [vmem:[#allocation2 + $0x218] sm:$0xff] %v1372
      %1465 = vst [vmem:[#allocation2 + $0x220] sm:$0xff] %v1373
      %1466 = vst [vmem:[#allocation2 + $0x228] sm:$0xff] %v1374
      %1467 = vst [vmem:[#allocation2 + $0x230] sm:$0xff] %v1375
      %1468 = vst [vmem:[#allocation2 + $0x238] sm:$0xff] %v1376
      %1469 = vst [vmem:[#allocation2 + $0x240] sm:$0xff] %v1377
      %1470 = vst [vmem:[#allocation2 + $0x248] sm:$0xff] %v1378
      %1471 = vst [vmem:[#allocation2 + $0x250] sm:$0xff] %v1379
      %1472 = vst [vmem:[#allocation2 + $0x258] sm:$0xff] %v1380
      %1473 = vst [vmem:[#allocation2 + $0x260] sm:$0xff] %v1381
      %1474 = vst [vmem:[#allocation2 + $0x268] sm:$0xff] %v1382
      %1475 = vst [vmem:[#allocation2 + $0x270] sm:$0xff] %v1383
      %1476 = vst [vmem:[#allocation2 + $0x278] sm:$0xff] %v1384
      %1477 = vst [vmem:[#allocation2 + $0x280] sm:$0xff] %v1385
      %1478 = vst [vmem:[#allocation2 + $0x288] sm:$0xff] %v1386
      %1479 = vst [vmem:[#allocation2 + $0x290] sm:$0xff] %v1387
      %1480 = vst [vmem:[#allocation2 + $0x298] sm:$0xff] %v1388
      %1481 = vst [vmem:[#allocation2 + $0x2a0] sm:$0xff] %v1389
      %1482 = vst [vmem:[#allocation2 + $0x2a8] sm:$0xff] %v1390
      %1483 = vst [vmem:[#allocation2 + $0x2b0] sm:$0xff] %v1391
      %1484 = vst [vmem:[#allocation2 + $0x2b8] sm:$0xff] %v1392
      %1485 = vst [vmem:[#allocation2 + $0x2c0] sm:$0xff] %v1393
      %1486 = vst [vmem:[#allocation2 + $0x2c8] sm:$0xff] %v1394
      %1487 = vst [vmem:[#allocation2 + $0x2d0] sm:$0xff] %v1395
      %1488 = vst [vmem:[#allocation2 + $0x2d8] sm:$0xff] %v1396
      %1489 = vst [vmem:[#allocation3] sm:$0xff] 0.0
      %1490 = vst [vmem:[#allocation3 + $0x8] sm:$0xff] 0.0
      %1491 = vst [vmem:[#allocation3 + $0x10] sm:$0xff] 0.0
      %1492 = vst [vmem:[#allocation3 + $0x18] sm:$0xff] 0.0
      %1493 = vst [vmem:[#allocation3 + $0x20] sm:$0xff] 0.0
      %1494 = vst [vmem:[#allocation3 + $0x28] sm:$0xff] 0.0
      %1495 = vst [vmem:[#allocation3 + $0x30] sm:$0xff] 0.0
      %1496 = vst [vmem:[#allocation3 + $0x38] sm:$0xff] 0.0
      %1497 = vst [vmem:[#allocation3 + $0x40] sm:$0xff] 0.0
      %1498 = vst [vmem:[#allocation3 + $0x48] sm:$0xff] 0.0
      %1499 = vst [vmem:[#allocation3 + $0x50] sm:$0xff] 0.0
      %1500 = vst [vmem:[#allocation3 + $0x58] sm:$0xff] 0.0
      %1501 = vst [vmem:[#allocation3 + $0x60] sm:$0xff] 0.0
      %1502 = vst [vmem:[#allocation3 + $0x68] sm:$0xff] 0.0
      %1503 = vst [vmem:[#allocation3 + $0x70] sm:$0xff] 0.0
      %1504 = vst [vmem:[#allocation3 + $0x78] sm:$0xff] 0.0
      %1505 = vst [vmem:[#allocation3 + $0x80] sm:$0xff] 0.0
      %1506 = vst [vmem:[#allocation3 + $0x88] sm:$0xff] 0.0
      %1507 = vst [vmem:[#allocation3 + $0x90] sm:$0xff] 0.0
      %1508 = vst [vmem:[#allocation3 + $0x98] sm:$0xff] 0.0
      %1509 = vst [vmem:[#allocation3 + $0xa0] sm:$0xff] 0.0
      %1510 = vst [vmem:[#allocation3 + $0xa8] sm:$0xff] 0.0
      %1511 = vst [vmem:[#allocation3 + $0xb0] sm:$0xff] 0.0
      %1512 = vst [vmem:[#allocation3 + $0xb8] sm:$0xff] 0.0
      %1513 = vst [vmem:[#allocation3 + $0xc0] sm:$0xff] 0.0
      %1514 = vst [vmem:[#allocation3 + $0xc8] sm:$0xff] 0.0
      %1515 = vst [vmem:[#allocation3 + $0xd0] sm:$0xff] 0.0
      %1516 = vst [vmem:[#allocation3 + $0xd8] sm:$0xff] 0.0
      %1517 = vst [vmem:[#allocation3 + $0xe0] sm:$0xff] 0.0
      %s1518 = scalar_lea.vmem [#allocation2], 28
      %v1519 = vld [vmem:[%s1518] ss:$2 sm:$0xff]
      %s1520 = scalar_lea.vmem [#allocation2], 44
      %v1521 = vld [vmem:[%s1520] ss:$2 sm:$0x1f]
      %1522 = vst [vmem:[#allocation3 + $0x10] sm:$0xff] %v1519
      %1523 = vst [vmem:[#allocation3 + $0x18] sm:$0x1f] %v1521
      %s1524 = scalar_lea.vmem [#allocation2], 82
      %v1525 = vld [vmem:[%s1524] ss:$2 sm:$0xff]
      %s1526 = scalar_lea.vmem [#allocation2], 98
      %v1527 = vld [vmem:[%s1526] ss:$2 sm:$0x1f]
      %1528 = vst [vmem:[#allocation3 + $0x1f] sm:$0xff] %v1525
      %1529 = vst [vmem:[#allocation3 + $0x27] sm:$0x1f] %v1527
      %s1530 = scalar_lea.vmem [#allocation2], 136
      %v1531 = vld [vmem:[%s1530] ss:$2 sm:$0xff]
      %s1532 = scalar_lea.vmem [#allocation2], 152
      %v1533 = vld [vmem:[%s1532] ss:$2 sm:$0x1f]
      %1534 = vst [vmem:[#allocation3 + $0x2e] sm:$0xff] %v1531
      %1535 = vst [vmem:[#allocation3 + $0x36] sm:$0x1f] %v1533
      %s1536 = scalar_lea.vmem [#allocation2], 190
      %v1537 = vld [vmem:[%s1536] ss:$2 sm:$0xff]
      %s1538 = scalar_lea.vmem [#allocation2], 206
      %v1539 = vld [vmem:[%s1538] ss:$2 sm:$0x1f]
      %1540 = vst [vmem:[#allocation3 + $0x3d] sm:$0xff] %v1537
      %1541 = vst [vmem:[#allocation3 + $0x45] sm:$0x1f] %v1539
      %s1542 = scalar_lea.vmem [#allocation2], 244
      %v1543 = vld [vmem:[%s1542] ss:$2 sm:$0xff]
      %s1544 = scalar_lea.vmem [#allocation2], 260
      %v1545 = vld [vmem:[%s1544] ss:$2 sm:$0x1f]
      %1546 = vst [vmem:[#allocation3 + $0x4c] sm:$0xff] %v1543
      %1547 = vst [vmem:[#allocation3 + $0x54] sm:$0x1f] %v1545
      %s1548 = scalar_lea.vmem [#allocation2], 298
      %v1549 = vld [vmem:[%s1548] ss:$2 sm:$0xff]
      %s1550 = scalar_lea.vmem [#allocation2], 314
      %v1551 = vld [vmem:[%s1550] ss:$2 sm:$0x1f]
      %1552 = vst [vmem:[#allocation3 + $0x5b] sm:$0xff] %v1549
      %1553 = vst [vmem:[#allocation3 + $0x63] sm:$0x1f] %v1551
      %s1554 = scalar_lea.vmem [#allocation2], 352
      %v1555 = vld [vmem:[%s1554] ss:$2 sm:$0xff]
      %s1556 = scalar_lea.vmem [#allocation2], 368
      %v1557 = vld [vmem:[%s1556] ss:$2 sm:$0x1f]
      %1558 = vst [vmem:[#allocation3 + $0x6a] sm:$0xff] %v1555
      %1559 = vst [vmem:[#allocation3 + $0x72] sm:$0x1f] %v1557
      %s1560 = scalar_lea.vmem [#allocation2], 406
      %v1561 = vld [vmem:[%s1560] ss:$2 sm:$0xff]
      %s1562 = scalar_lea.vmem [#allocation2], 422
      %v1563 = vld [vmem:[%s1562] ss:$2 sm:$0x1f]
      %1564 = vst [vmem:[#allocation3 + $0x79] sm:$0xff] %v1561
      %1565 = vst [vmem:[#allocation3 + $0x81] sm:$0x1f] %v1563
      %s1566 = scalar_lea.vmem [#allocation2], 460
      %v1567 = vld [vmem:[%s1566] ss:$2 sm:$0xff]
      %s1568 = scalar_lea.vmem [#allocation2], 476
      %v1569 = vld [vmem:[%s1568] ss:$2 sm:$0x1f]
      %1570 = vst [vmem:[#allocation3 + $0x88] sm:$0xff] %v1567
      %1571 = vst [vmem:[#allocation3 + $0x90] sm:$0x1f] %v1569
      %s1572 = scalar_lea.vmem [#allocation2], 514
      %v1573 = vld [vmem:[%s1572] ss:$2 sm:$0xff]
      %s1574 = scalar_lea.vmem [#allocation2], 530
      %v1575 = vld [vmem:[%s1574] ss:$2 sm:$0x1f]
      %1576 = vst [vmem:[#allocation3 + $0x97] sm:$0xff] %v1573
      %1577 = vst [vmem:[#allocation3 + $0x9f] sm:$0x1f] %v1575
      %s1578 = scalar_lea.vmem [#allocation2], 568
      %v1579 = vld [vmem:[%s1578] ss:$2 sm:$0xff]
      %s1580 = scalar_lea.vmem [#allocation2], 584
      %v1581 = vld [vmem:[%s1580] ss:$2 sm:$0x1f]
      %1582 = vst [vmem:[#allocation3 + $0xa6] sm:$0xff] %v1579
      %1583 = vst [vmem:[#allocation3 + $0xae] sm:$0x1f] %v1581
      %s1584 = scalar_lea.vmem [#allocation2], 622
      %v1585 = vld [vmem:[%s1584] ss:$2 sm:$0xff]
      %s1586 = scalar_lea.vmem [#allocation2], 638
      %v1587 = vld [vmem:[%s1586] ss:$2 sm:$0x1f]
      %1588 = vst [vmem:[#allocation3 + $0xb5] sm:$0xff] %v1585
      %1589 = vst [vmem:[#allocation3 + $0xbd] sm:$0x1f] %v1587
      %s1590 = scalar_lea.vmem [#allocation2], 676
      %v1591 = vld [vmem:[%s1590] ss:$2 sm:$0xff]
      %s1592 = scalar_lea.vmem [#allocation2], 692
      %v1593 = vld [vmem:[%s1592] ss:$2 sm:$0x1f]
      %1594 = vst [vmem:[#allocation3 + $0xc4] sm:$0xff] %v1591
      %1595 = vst [vmem:[#allocation3 + $0xcc] sm:$0x1f] %v1593
      %v1596 = vld [vmem:[#allocation3] sm:$0xff]
      %v1597 = vld [vmem:[#allocation3 + $0x8] sm:$0xff]
      %v1598 = vld [vmem:[#allocation3 + $0x10] sm:$0xff]
      %v1599 = vld [vmem:[#allocation3 + $0x18] sm:$0xff]
      %v1600 = vld [vmem:[#allocation3 + $0x20] sm:$0xff]
      %v1601 = vld [vmem:[#allocation3 + $0x28] sm:$0xff]
      %v1602 = vld [vmem:[#allocation3 + $0x30] sm:$0xff]
      %v1603 = vld [vmem:[#allocation3 + $0x38] sm:$0xff]
      %v1604 = vld [vmem:[#allocation3 + $0x40] sm:$0xff]
      %v1605 = vld [vmem:[#allocation3 + $0x48] sm:$0xff]
      %v1606 = vld [vmem:[#allocation3 + $0x50] sm:$0xff]
      %v1607 = vld [vmem:[#allocation3 + $0x58] sm:$0xff]
      %v1608 = vld [vmem:[#allocation3 + $0x60] sm:$0xff]
      %v1609 = vld [vmem:[#allocation3 + $0x68] sm:$0xff]
      %v1610 = vld [vmem:[#allocation3 + $0x70] sm:$0xff]
      %v1611 = vld [vmem:[#allocation3 + $0x78] sm:$0xff]
      %v1612 = vld [vmem:[#allocation3 + $0x80] sm:$0xff]
      %v1613 = vld [vmem:[#allocation3 + $0x88] sm:$0xff]
      %v1614 = vld [vmem:[#allocation3 + $0x90] sm:$0xff]
      %v1615 = vld [vmem:[#allocation3 + $0x98] sm:$0xff]
      %v1616 = vld [vmem:[#allocation3 + $0xa0] sm:$0xff]
      %v1617 = vld [vmem:[#allocation3 + $0xa8] sm:$0xff]
      %v1618 = vld [vmem:[#allocation3 + $0xb0] sm:$0xff]
      %v1619 = vld [vmem:[#allocation3 + $0xb8] sm:$0xff]
      %v1620 = vld [vmem:[#allocation3 + $0xc0] sm:$0xff]
      %v1621 = vld [vmem:[#allocation3 + $0xc8] sm:$0xff]
      %v1622 = vld [vmem:[#allocation3 + $0xd0] sm:$0xff]
      %v1623 = vld [vmem:[#allocation3 + $0xd8] sm:$0xff]
      %v1624 = vld [vmem:[#allocation3 + $0xe0] sm:$0xff]
      %v1625 = vld [vmem:[%s3] sm:$0xff]
      %v1626 = vld [vmem:[%s3 + $0x8] sm:$0xff]
      %v1627 = vld [vmem:[%s3 + $0x10] sm:$0xff]
      %v1628 = vld [vmem:[%s3 + $0x18] sm:$0xff]
      %v1629 = vld [vmem:[%s3 + $0x20] sm:$0xff]
      %v1630 = vld [vmem:[%s3 + $0x28] sm:$0xff]
      %v1631 = vld [vmem:[%s3 + $0x30] sm:$0xff]
      %v1632 = vld [vmem:[%s3 + $0x38] sm:$0xff]
      %v1633 = vld [vmem:[%s3 + $0x40] sm:$0xff]
      %v1634 = vld [vmem:[%s3 + $0x48] sm:$0xff]
      %v1635 = vld [vmem:[%s3 + $0x50] sm:$0xff]
      %v1636 = vld [vmem:[%s3 + $0x58] sm:$0xff]
      %v1637 = vld [vmem:[%s3 + $0x60] sm:$0xff]
      %v1638 = vld [vmem:[%s3 + $0x68] sm:$0xff]
      %v1639 = vld [vmem:[%s3 + $0x70] sm:$0xff]
      %v1640 = vld [vmem:[%s3 + $0x78] sm:$0xff]
      %v1641 = vld [vmem:[%s4] sm:$0x1]
      %v1643 = vlaneseq
      %v1644 = vshrl.u32 %v1643, 7
      %v1645 = vsub.s32 0, %v1644
      %v1646 = vrot.slane %v1641, %v1645
      %1648 = vmatprep.subr.mxu0 0.0
      %1649 = vmatpush1.msra.mxu0 %v1640
      %1650 = vmatprep.subr.mxu0 0.0
      %1651 = vmatpush1.msra.mxu0 %v1639
      %1652 = vmatprep.subr.mxu0 0.0
      %1653 = vmatpush1.msra.mxu0 %v1638
      %1654 = vmatprep.subr.mxu0 0.0
      %1655 = vmatpush1.msra.mxu0 %v1637
      %1656 = vmatprep.subr.mxu0 0.0
      %1657 = vmatpush1.msra.mxu0 %v1636
      %1658 = vmatprep.subr.mxu0 0.0
      %1659 = vmatpush1.msra.mxu0 %v1635
      %1660 = vmatprep.subr.mxu0 0.0
      %1661 = vmatpush1.msra.mxu0 %v1634
      %1662 = vmatprep.subr.mxu0 0.0
      %1663 = vmatpush1.msra.mxu0 %v1633
      %1664 = vmatprep.subr.mxu0 0.0
      %1665 = vmatpush1.msra.mxu0 %v1632
      %1666 = vmatprep.subr.mxu0 0.0
      %1667 = vmatpush1.msra.mxu0 %v1631
      %1668 = vmatprep.subr.mxu0 0.0
      %1669 = vmatpush1.msra.mxu0 %v1630
      %1670 = vmatprep.subr.mxu0 0.0
      %1671 = vmatpush1.msra.mxu0 %v1629
      %1672 = vmatprep.subr.mxu0 0.0
      %1673 = vmatpush1.msra.mxu0 %v1628
      %1674 = vmatprep.subr.mxu0 0.0
      %1675 = vmatpush1.msra.mxu0 %v1627
      %1676 = vmatprep.subr.mxu0 0.0
      %1677 = vmatpush1.msra.mxu0 %v1626
      %1678 = vmatprep.subr.mxu0 0.0
      %1679 = vmatpush1.msra.mxu0 %v1625
      %1680 = vmatprep.subr.mxu0 0.0
      %1681 = vmatpush2.msra.mxu0 0.0
      %1682 = vmatprep.subr.mxu0 0.0
      %1683 = vmatpush2.msra.mxu0 0.0
      %1684 = vmatprep.subr.mxu0 0.0
      %1685 = vmatpush2.msra.mxu0 0.0
      %1686 = vmatprep.subr.mxu0 0.0
      %1687 = vmatpush2.msra.mxu0 0.0
      %1688 = vmatprep.subr.mxu0 0.0
      %1689 = vmatpush2.msra.mxu0 0.0
      %1690 = vmatprep.subr.mxu0 0.0
      %1691 = vmatpush2.msra.mxu0 0.0
      %1692 = vmatprep.subr.mxu0 0.0
      %1693 = vmatpush2.msra.mxu0 0.0
      %1694 = vmatprep.subr.mxu0 0.0
      %1695 = vmatpush2.msra.mxu0 0.0
      %1696 = vmatprep.subr.mxu0 0.0
      %1697 = vmatpush2.msra.mxu0 0.0
      %1698 = vmatprep.subr.mxu0 0.0
      %1699 = vmatpush2.msra.mxu0 0.0
      %1700 = vmatprep.subr.mxu0 0.0
      %1701 = vmatpush2.msra.mxu0 0.0
      %1702 = vmatprep.subr.mxu0 0.0
      %1703 = vmatpush2.msra.mxu0 0.0
      %1704 = vmatprep.subr.mxu0 0.0
      %1705 = vmatpush2.msra.mxu0 0.0
      %1706 = vmatprep.subr.mxu0 0.0
      %1707 = vmatpush2.msra.mxu0 0.0
      %1708 = vmatprep.subr.mxu0 0.0
      %1709 = vmatpush2.msra.mxu0 0.0
      %1710 = vmatprep.subr.mxu0 0.0
      %1711 = vmatpush2.msra.mxu0 0.0
      %1712 = vmatprep.mubr.f32.mxu0 0.0
      %1713 = vmatmul.mubr.f32.gmra.mxu0 %v1596
      %v1714 = vpop.f32.mrf.mxu0
      %v1715 = vadd.f32 %v1646, %v1714
      %v1716 = vpop.f32.mrf.mxu0
      %1717 = vmatprep.mubr.f32.mxu0 0.0
      %1718 = vmatmul.mubr.f32.gmra.mxu0 %v1597
      %v1719 = vpop.f32.mrf.mxu0
      %v1720 = vadd.f32 %v1646, %v1719
      %v1721 = vpop.f32.mrf.mxu0
      %1722 = vmatprep.mubr.f32.mxu0 0.0
      %1723 = vmatmul.mubr.f32.gmra.mxu0 %v1598
      %v1724 = vpop.f32.mrf.mxu0
      %v1725 = vadd.f32 %v1646, %v1724
      %v1726 = vpop.f32.mrf.mxu0
      %1727 = vmatprep.mubr.f32.mxu0 0.0
      %1728 = vmatmul.mubr.f32.gmra.mxu0 %v1599
      %v1729 = vpop.f32.mrf.mxu0
      %v1730 = vadd.f32 %v1646, %v1729
      %v1731 = vpop.f32.mrf.mxu0
      %1732 = vmatprep.mubr.f32.mxu0 0.0
      %1733 = vmatmul.mubr.f32.gmra.mxu0 %v1600
      %v1734 = vpop.f32.mrf.mxu0
      %v1735 = vadd.f32 %v1646, %v1734
      %v1736 = vpop.f32.mrf.mxu0
      %1737 = vmatprep.mubr.f32.mxu0 0.0
      %1738 = vmatmul.mubr.f32.gmra.mxu0 %v1601
      %v1739 = vpop.f32.mrf.mxu0
      %v1740 = vadd.f32 %v1646, %v1739
      %v1741 = vpop.f32.mrf.mxu0
      %1742 = vmatprep.mubr.f32.mxu0 0.0
      %1743 = vmatmul.mubr.f32.gmra.mxu0 %v1602
      %v1744 = vpop.f32.mrf.mxu0
      %v1745 = vadd.f32 %v1646, %v1744
      %v1746 = vpop.f32.mrf.mxu0
      %1747 = vmatprep.mubr.f32.mxu0 0.0
      %1748 = vmatmul.mubr.f32.gmra.mxu0 %v1603
      %v1749 = vpop.f32.mrf.mxu0
      %v1750 = vadd.f32 %v1646, %v1749
      %v1751 = vpop.f32.mrf.mxu0
      %1752 = vmatprep.mubr.f32.mxu0 0.0
      %1753 = vmatmul.mubr.f32.gmra.mxu0 %v1604
      %v1754 = vpop.f32.mrf.mxu0
      %v1755 = vadd.f32 %v1646, %v1754
      %v1756 = vpop.f32.mrf.mxu0
      %1757 = vmatprep.mubr.f32.mxu0 0.0
      %1758 = vmatmul.mubr.f32.gmra.mxu0 %v1605
      %v1759 = vpop.f32.mrf.mxu0
      %v1760 = vadd.f32 %v1646, %v1759
      %v1761 = vpop.f32.mrf.mxu0
      %1762 = vmatprep.mubr.f32.mxu0 0.0
      %1763 = vmatmul.mubr.f32.gmra.mxu0 %v1606
      %v1764 = vpop.f32.mrf.mxu0
      %v1765 = vadd.f32 %v1646, %v1764
      %v1766 = vpop.f32.mrf.mxu0
      %1767 = vmatprep.mubr.f32.mxu0 0.0
      %1768 = vmatmul.mubr.f32.gmra.mxu0 %v1607
      %v1769 = vpop.f32.mrf.mxu0
      %v1770 = vadd.f32 %v1646, %v1769
      %v1771 = vpop.f32.mrf.mxu0
      %1772 = vmatprep.mubr.f32.mxu0 0.0
      %1773 = vmatmul.mubr.f32.gmra.mxu0 %v1608
      %v1774 = vpop.f32.mrf.mxu0
      %v1775 = vadd.f32 %v1646, %v1774
      %v1776 = vpop.f32.mrf.mxu0
      %1777 = vmatprep.mubr.f32.mxu0 0.0
      %1778 = vmatmul.mubr.f32.gmra.mxu0 %v1609
      %v1779 = vpop.f32.mrf.mxu0
      %v1780 = vadd.f32 %v1646, %v1779
      %v1781 = vpop.f32.mrf.mxu0
      %1782 = vmatprep.mubr.f32.mxu0 0.0
      %1783 = vmatmul.mubr.f32.gmra.mxu0 %v1610
      %v1784 = vpop.f32.mrf.mxu0
      %v1785 = vadd.f32 %v1646, %v1784
      %v1786 = vpop.f32.mrf.mxu0
      %1787 = vmatprep.mubr.f32.mxu0 0.0
      %1788 = vmatmul.mubr.f32.gmra.mxu0 %v1611
      %v1789 = vpop.f32.mrf.mxu0
      %v1790 = vadd.f32 %v1646, %v1789
      %v1791 = vpop.f32.mrf.mxu0
      %1792 = vmatprep.mubr.f32.mxu0 0.0
      %1793 = vmatmul.mubr.f32.gmra.mxu0 %v1612
      %v1794 = vpop.f32.mrf.mxu0
      %v1795 = vadd.f32 %v1646, %v1794
      %v1796 = vpop.f32.mrf.mxu0
      %1797 = vmatprep.mubr.f32.mxu0 0.0
      %1798 = vmatmul.mubr.f32.gmra.mxu0 %v1613
      %v1799 = vpop.f32.mrf.mxu0
      %v1800 = vadd.f32 %v1646, %v1799
      %v1801 = vpop.f32.mrf.mxu0
      %1802 = vmatprep.mubr.f32.mxu0 0.0
      %1803 = vmatmul.mubr.f32.gmra.mxu0 %v1614
      %v1804 = vpop.f32.mrf.mxu0
      %v1805 = vadd.f32 %v1646, %v1804
      %v1806 = vpop.f32.mrf.mxu0
      %1807 = vmatprep.mubr.f32.mxu0 0.0
      %1808 = vmatmul.mubr.f32.gmra.mxu0 %v1615
      %v1809 = vpop.f32.mrf.mxu0
      %v1810 = vadd.f32 %v1646, %v1809
      %v1811 = vpop.f32.mrf.mxu0
      %1812 = vmatprep.mubr.f32.mxu0 0.0
      %1813 = vmatmul.mubr.f32.gmra.mxu0 %v1616
      %v1814 = vpop.f32.mrf.mxu0
      %v1815 = vadd.f32 %v1646, %v1814
      %v1816 = vpop.f32.mrf.mxu0
      %1817 = vmatprep.mubr.f32.mxu0 0.0
      %1818 = vmatmul.mubr.f32.gmra.mxu0 %v1617
      %v1819 = vpop.f32.mrf.mxu0
      %v1820 = vadd.f32 %v1646, %v1819
      %v1821 = vpop.f32.mrf.mxu0
      %1822 = vmatprep.mubr.f32.mxu0 0.0
      %1823 = vmatmul.mubr.f32.gmra.mxu0 %v1618
      %v1824 = vpop.f32.mrf.mxu0
      %v1825 = vadd.f32 %v1646, %v1824
      %v1826 = vpop.f32.mrf.mxu0
      %1827 = vmatprep.mubr.f32.mxu0 0.0
      %1828 = vmatmul.mubr.f32.gmra.mxu0 %v1619
      %v1829 = vpop.f32.mrf.mxu0
      %v1830 = vadd.f32 %v1646, %v1829
      %v1831 = vpop.f32.mrf.mxu0
      %1832 = vmatprep.mubr.f32.mxu0 0.0
      %1833 = vmatmul.mubr.f32.gmra.mxu0 %v1620
      %v1834 = vpop.f32.mrf.mxu0
      %v1835 = vadd.f32 %v1646, %v1834
      %v1836 = vpop.f32.mrf.mxu0
      %1837 = vmatprep.mubr.f32.mxu0 0.0
      %1838 = vmatmul.mubr.f32.gmra.mxu0 %v1621
      %v1839 = vpop.f32.mrf.mxu0
      %v1840 = vadd.f32 %v1646, %v1839
      %v1841 = vpop.f32.mrf.mxu0
      %1842 = vmatprep.mubr.f32.mxu0 0.0
      %1843 = vmatmul.mubr.f32.gmra.mxu0 %v1622
      %v1844 = vpop.f32.mrf.mxu0
      %v1845 = vadd.f32 %v1646, %v1844
      %v1846 = vpop.f32.mrf.mxu0
      %1847 = vmatprep.mubr.f32.mxu0 0.0
      %1848 = vmatmul.mubr.f32.gmra.mxu0 %v1623
      %v1849 = vpop.f32.mrf.mxu0
      %v1850 = vadd.f32 %v1646, %v1849
      %v1851 = vpop.f32.mrf.mxu0
      %1852 = vmatprep.mubr.f32.mxu0 0.0
      %1853 = vmatmul.mubr.f32.gmra.mxu0 %v1624
      %v1854 = vpop.f32.mrf.mxu0
      %v1855 = vadd.f32 %v1646, %v1854
      %v1856 = vpop.f32.mrf.mxu0
      %1857 = vdwg.mxu0
      %v1858 = vmax.f32 %v1715, 0.0
      %v1859 = vmax.f32 %v1720, 0.0
      %v1860 = vmax.f32 %v1725, 0.0
      %v1861 = vmax.f32 %v1730, 0.0
      %v1862 = vmax.f32 %v1735, 0.0
      %v1863 = vmax.f32 %v1740, 0.0
      %v1864 = vmax.f32 %v1745, 0.0
      %v1865 = vmax.f32 %v1750, 0.0
      %v1866 = vmax.f32 %v1755, 0.0
      %v1867 = vmax.f32 %v1760, 0.0
      %v1868 = vmax.f32 %v1765, 0.0
      %v1869 = vmax.f32 %v1770, 0.0
      %v1870 = vmax.f32 %v1775, 0.0
      %v1871 = vmax.f32 %v1780, 0.0
      %v1872 = vmax.f32 %v1785, 0.0
      %v1873 = vmax.f32 %v1790, 0.0
      %v1874 = vmax.f32 %v1795, 0.0
      %v1875 = vmax.f32 %v1800, 0.0
      %v1876 = vmax.f32 %v1805, 0.0
      %v1877 = vmax.f32 %v1810, 0.0
      %v1878 = vmax.f32 %v1815, 0.0
      %v1879 = vmax.f32 %v1820, 0.0
      %v1880 = vmax.f32 %v1825, 0.0
      %v1881 = vmax.f32 %v1830, 0.0
      %v1882 = vmax.f32 %v1835, 0.0
      %v1883 = vmax.f32 %v1840, 0.0
      %v1884 = vmax.f32 %v1845, 0.0
      %v1885 = vmax.f32 %v1850, 0.0
      %v1886 = vmax.f32 %v1855, 0.0
      %1887 = vst [vmem:[%s650] sm:$0xff] %v1858
      %1888 = vst [vmem:[%s650 + $0x8] sm:$0xff] %v1859
      %1889 = vst [vmem:[%s650 + $0x10] sm:$0xff] %v1860
      %1890 = vst [vmem:[%s650 + $0x18] sm:$0xff] %v1861
      %1891 = vst [vmem:[%s650 + $0x20] sm:$0xff] %v1862
      %1892 = vst [vmem:[%s650 + $0x28] sm:$0xff] %v1863
      %1893 = vst [vmem:[%s650 + $0x30] sm:$0xff] %v1864
      %1894 = vst [vmem:[%s650 + $0x38] sm:$0xff] %v1865
      %1895 = vst [vmem:[%s650 + $0x40] sm:$0xff] %v1866
      %1896 = vst [vmem:[%s650 + $0x48] sm:$0xff] %v1867
      %1897 = vst [vmem:[%s650 + $0x50] sm:$0xff] %v1868
      %1898 = vst [vmem:[%s650 + $0x58] sm:$0xff] %v1869
      %1899 = vst [vmem:[%s650 + $0x60] sm:$0xff] %v1870
      %1900 = vst [vmem:[%s650 + $0x68] sm:$0xff] %v1871
      %1901 = vst [vmem:[%s650 + $0x70] sm:$0xff] %v1872
      %1902 = vst [vmem:[%s650 + $0x78] sm:$0xff] %v1873
      %1903 = vst [vmem:[%s650 + $0x80] sm:$0xff] %v1874
      %1904 = vst [vmem:[%s650 + $0x88] sm:$0xff] %v1875
      %1905 = vst [vmem:[%s650 + $0x90] sm:$0xff] %v1876
      %1906 = vst [vmem:[%s650 + $0x98] sm:$0xff] %v1877
      %1907 = vst [vmem:[%s650 + $0xa0] sm:$0xff] %v1878
      %1908 = vst [vmem:[%s650 + $0xa8] sm:$0xff] %v1879
      %1909 = vst [vmem:[%s650 + $0xb0] sm:$0xff] %v1880
      %1910 = vst [vmem:[%s650 + $0xb8] sm:$0xff] %v1881
      %1911 = vst [vmem:[%s650 + $0xc0] sm:$0xff] %v1882
      %1912 = vst [vmem:[%s650 + $0xc8] sm:$0xff] %v1883
      %1913 = vst [vmem:[%s650 + $0xd0] sm:$0xff] %v1884
      %1914 = vst [vmem:[%s650 + $0xd8] sm:$0xff] %v1885
      %1915 = vst [vmem:[%s650 + $0xe0] sm:$0xff] %v1886
      %v1916 = vld [vmem:[%s5] sm:$0xff]
      %v1917 = vld [vmem:[%s5 + $0x8] sm:$0xff]
      %v1918 = vld [vmem:[%s5 + $0x10] sm:$0xff]
      %v1919 = vld [vmem:[%s5 + $0x18] sm:$0xff]
      %v1920 = vld [vmem:[%s5 + $0x20] sm:$0xff]
      %v1921 = vld [vmem:[%s5 + $0x28] sm:$0xff]
      %v1922 = vld [vmem:[%s5 + $0x30] sm:$0xff]
      %v1923 = vld [vmem:[%s5 + $0x38] sm:$0xff]
      %v1924 = vld [vmem:[%s5 + $0x40] sm:$0xff]
      %v1925 = vld [vmem:[%s5 + $0x48] sm:$0xff]
      %v1926 = vld [vmem:[%s5 + $0x50] sm:$0xff]
      %v1927 = vld [vmem:[%s5 + $0x58] sm:$0xff]
      %v1928 = vld [vmem:[%s5 + $0x60] sm:$0xff]
      %v1929 = vld [vmem:[%s5 + $0x68] sm:$0xff]
      %v1930 = vld [vmem:[%s5 + $0x70] sm:$0xff]
      %v1931 = vld [vmem:[%s5 + $0x78] sm:$0xff]
      %v1932 = vld [vmem:[%s6] sm:$0x1]
      %v1934 = vlaneseq
      %v1935 = vshrl.u32 %v1934, 7
      %v1936 = vsub.s32 0, %v1935
      %v1937 = vrot.slane %v1932, %v1936
      %1939 = vmatprep.subr.mxu0 0.0
      %1940 = vmatpush1.msra.mxu0 %v1931
      %1941 = vmatprep.subr.mxu0 0.0
      %1942 = vmatpush1.msra.mxu0 %v1930
      %1943 = vmatprep.subr.mxu0 0.0
      %1944 = vmatpush1.msra.mxu0 %v1929
      %1945 = vmatprep.subr.mxu0 0.0
      %1946 = vmatpush1.msra.mxu0 %v1928
      %1947 = vmatprep.subr.mxu0 0.0
      %1948 = vmatpush1.msra.mxu0 %v1927
      %1949 = vmatprep.subr.mxu0 0.0
      %1950 = vmatpush1.msra.mxu0 %v1926
      %1951 = vmatprep.subr.mxu0 0.0
      %1952 = vmatpush1.msra.mxu0 %v1925
      %1953 = vmatprep.subr.mxu0 0.0
      %1954 = vmatpush1.msra.mxu0 %v1924
      %1955 = vmatprep.subr.mxu0 0.0
      %1956 = vmatpush1.msra.mxu0 %v1923
      %1957 = vmatprep.subr.mxu0 0.0
      %1958 = vmatpush1.msra.mxu0 %v1922
      %1959 = vmatprep.subr.mxu0 0.0
      %1960 = vmatpush1.msra.mxu0 %v1921
      %1961 = vmatprep.subr.mxu0 0.0
      %1962 = vmatpush1.msra.mxu0 %v1920
      %1963 = vmatprep.subr.mxu0 0.0
      %1964 = vmatpush1.msra.mxu0 %v1919
      %1965 = vmatprep.subr.mxu0 0.0
      %1966 = vmatpush1.msra.mxu0 %v1918
      %1967 = vmatprep.subr.mxu0 0.0
      %1968 = vmatpush1.msra.mxu0 %v1917
      %1969 = vmatprep.subr.mxu0 0.0
      %1970 = vmatpush1.msra.mxu0 %v1916
      %1971 = vmatprep.subr.mxu0 0.0
      %1972 = vmatpush2.msra.mxu0 0.0
      %1973 = vmatprep.subr.mxu0 0.0
      %1974 = vmatpush2.msra.mxu0 0.0
      %1975 = vmatprep.subr.mxu0 0.0
      %1976 = vmatpush2.msra.mxu0 0.0
      %1977 = vmatprep.subr.mxu0 0.0
      %1978 = vmatpush2.msra.mxu0 0.0
      %1979 = vmatprep.subr.mxu0 0.0
      %1980 = vmatpush2.msra.mxu0 0.0
      %1981 = vmatprep.subr.mxu0 0.0
      %1982 = vmatpush2.msra.mxu0 0.0
      %1983 = vmatprep.subr.mxu0 0.0
      %1984 = vmatpush2.msra.mxu0 0.0
      %1985 = vmatprep.subr.mxu0 0.0
      %1986 = vmatpush2.msra.mxu0 0.0
      %1987 = vmatprep.subr.mxu0 0.0
      %1988 = vmatpush2.msra.mxu0 0.0
      %1989 = vmatprep.subr.mxu0 0.0
      %1990 = vmatpush2.msra.mxu0 0.0
      %1991 = vmatprep.subr.mxu0 0.0
      %1992 = vmatpush2.msra.mxu0 0.0
      %1993 = vmatprep.subr.mxu0 0.0
      %1994 = vmatpush2.msra.mxu0 0.0
      %1995 = vmatprep.subr.mxu0 0.0
      %1996 = vmatpush2.msra.mxu0 0.0
      %1997 = vmatprep.subr.mxu0 0.0
      %1998 = vmatpush2.msra.mxu0 0.0
      %1999 = vmatprep.subr.mxu0 0.0
      %2000 = vmatpush2.msra.mxu0 0.0
      %2001 = vmatprep.subr.mxu0 0.0
      %2002 = vmatpush2.msra.mxu0 0.0
      %2003 = vmatprep.mubr.f32.mxu0 0.0
      %2004 = vmatmul.mubr.f32.gmra.mxu0 %v1858
      %v2005 = vpop.f32.mrf.mxu0
      %v2006 = vadd.f32 %v1937, %v2005
      %v2007 = vpop.f32.mrf.mxu0
      %2008 = vmatprep.mubr.f32.mxu0 0.0
      %2009 = vmatmul.mubr.f32.gmra.mxu0 %v1859
      %v2010 = vpop.f32.mrf.mxu0
      %v2011 = vadd.f32 %v1937, %v2010
      %v2012 = vpop.f32.mrf.mxu0
      %2013 = vmatprep.mubr.f32.mxu0 0.0
      %2014 = vmatmul.mubr.f32.gmra.mxu0 %v1860
      %v2015 = vpop.f32.mrf.mxu0
      %v2016 = vadd.f32 %v1937, %v2015
      %v2017 = vpop.f32.mrf.mxu0
      %2018 = vmatprep.mubr.f32.mxu0 0.0
      %2019 = vmatmul.mubr.f32.gmra.mxu0 %v1861
      %v2020 = vpop.f32.mrf.mxu0
      %v2021 = vadd.f32 %v1937, %v2020
      %v2022 = vpop.f32.mrf.mxu0
      %2023 = vmatprep.mubr.f32.mxu0 0.0
      %2024 = vmatmul.mubr.f32.gmra.mxu0 %v1862
      %v2025 = vpop.f32.mrf.mxu0
      %v2026 = vadd.f32 %v1937, %v2025
      %v2027 = vpop.f32.mrf.mxu0
      %2028 = vmatprep.mubr.f32.mxu0 0.0
      %2029 = vmatmul.mubr.f32.gmra.mxu0 %v1863
      %v2030 = vpop.f32.mrf.mxu0
      %v2031 = vadd.f32 %v1937, %v2030
      %v2032 = vpop.f32.mrf.mxu0
      %2033 = vmatprep.mubr.f32.mxu0 0.0
      %2034 = vmatmul.mubr.f32.gmra.mxu0 %v1864
      %v2035 = vpop.f32.mrf.mxu0
      %v2036 = vadd.f32 %v1937, %v2035
      %v2037 = vpop.f32.mrf.mxu0
      %2038 = vmatprep.mubr.f32.mxu0 0.0
      %2039 = vmatmul.mubr.f32.gmra.mxu0 %v1865
      %v2040 = vpop.f32.mrf.mxu0
      %v2041 = vadd.f32 %v1937, %v2040
      %v2042 = vpop.f32.mrf.mxu0
      %2043 = vmatprep.mubr.f32.mxu0 0.0
      %2044 = vmatmul.mubr.f32.gmra.mxu0 %v1866
      %v2045 = vpop.f32.mrf.mxu0
      %v2046 = vadd.f32 %v1937, %v2045
      %v2047 = vpop.f32.mrf.mxu0
      %2048 = vmatprep.mubr.f32.mxu0 0.0
      %2049 = vmatmul.mubr.f32.gmra.mxu0 %v1867
      %v2050 = vpop.f32.mrf.mxu0
      %v2051 = vadd.f32 %v1937, %v2050
      %v2052 = vpop.f32.mrf.mxu0
      %2053 = vmatprep.mubr.f32.mxu0 0.0
      %2054 = vmatmul.mubr.f32.gmra.mxu0 %v1868
      %v2055 = vpop.f32.mrf.mxu0
      %v2056 = vadd.f32 %v1937, %v2055
      %v2057 = vpop.f32.mrf.mxu0
      %2058 = vmatprep.mubr.f32.mxu0 0.0
      %2059 = vmatmul.mubr.f32.gmra.mxu0 %v1869
      %v2060 = vpop.f32.mrf.mxu0
      %v2061 = vadd.f32 %v1937, %v2060
      %v2062 = vpop.f32.mrf.mxu0
      %2063 = vmatprep.mubr.f32.mxu0 0.0
      %2064 = vmatmul.mubr.f32.gmra.mxu0 %v1870
      %v2065 = vpop.f32.mrf.mxu0
      %v2066 = vadd.f32 %v1937, %v2065
      %v2067 = vpop.f32.mrf.mxu0
      %2068 = vmatprep.mubr.f32.mxu0 0.0
      %2069 = vmatmul.mubr.f32.gmra.mxu0 %v1871
      %v2070 = vpop.f32.mrf.mxu0
      %v2071 = vadd.f32 %v1937, %v2070
      %v2072 = vpop.f32.mrf.mxu0
      %2073 = vmatprep.mubr.f32.mxu0 0.0
      %2074 = vmatmul.mubr.f32.gmra.mxu0 %v1872
      %v2075 = vpop.f32.mrf.mxu0
      %v2076 = vadd.f32 %v1937, %v2075
      %v2077 = vpop.f32.mrf.mxu0
      %2078 = vmatprep.mubr.f32.mxu0 0.0
      %2079 = vmatmul.mubr.f32.gmra.mxu0 %v1873
      %v2080 = vpop.f32.mrf.mxu0
      %v2081 = vadd.f32 %v1937, %v2080
      %v2082 = vpop.f32.mrf.mxu0
      %2083 = vmatprep.mubr.f32.mxu0 0.0
      %2084 = vmatmul.mubr.f32.gmra.mxu0 %v1874
      %v2085 = vpop.f32.mrf.mxu0
      %v2086 = vadd.f32 %v1937, %v2085
      %v2087 = vpop.f32.mrf.mxu0
      %2088 = vmatprep.mubr.f32.mxu0 0.0
      %2089 = vmatmul.mubr.f32.gmra.mxu0 %v1875
      %v2090 = vpop.f32.mrf.mxu0
      %v2091 = vadd.f32 %v1937, %v2090
      %v2092 = vpop.f32.mrf.mxu0
      %2093 = vmatprep.mubr.f32.mxu0 0.0
      %2094 = vmatmul.mubr.f32.gmra.mxu0 %v1876
      %v2095 = vpop.f32.mrf.mxu0
      %v2096 = vadd.f32 %v1937, %v2095
      %v2097 = vpop.f32.mrf.mxu0
      %2098 = vmatprep.mubr.f32.mxu0 0.0
      %2099 = vmatmul.mubr.f32.gmra.mxu0 %v1877
      %v2100 = vpop.f32.mrf.mxu0
      %v2101 = vadd.f32 %v1937, %v2100
      %v2102 = vpop.f32.mrf.mxu0
      %2103 = vmatprep.mubr.f32.mxu0 0.0
      %2104 = vmatmul.mubr.f32.gmra.mxu0 %v1878
      %v2105 = vpop.f32.mrf.mxu0
      %v2106 = vadd.f32 %v1937, %v2105
      %v2107 = vpop.f32.mrf.mxu0
      %2108 = vmatprep.mubr.f32.mxu0 0.0
      %2109 = vmatmul.mubr.f32.gmra.mxu0 %v1879
      %v2110 = vpop.f32.mrf.mxu0
      %v2111 = vadd.f32 %v1937, %v2110
      %v2112 = vpop.f32.mrf.mxu0
      %2113 = vmatprep.mubr.f32.mxu0 0.0
      %2114 = vmatmul.mubr.f32.gmra.mxu0 %v1880
      %v2115 = vpop.f32.mrf.mxu0
      %v2116 = vadd.f32 %v1937, %v2115
      %v2117 = vpop.f32.mrf.mxu0
      %2118 = vmatprep.mubr.f32.mxu0 0.0
      %2119 = vmatmul.mubr.f32.gmra.mxu0 %v1881
      %v2120 = vpop.f32.mrf.mxu0
      %v2121 = vadd.f32 %v1937, %v2120
      %v2122 = vpop.f32.mrf.mxu0
      %2123 = vmatprep.mubr.f32.mxu0 0.0
      %2124 = vmatmul.mubr.f32.gmra.mxu0 %v1882
      %v2125 = vpop.f32.mrf.mxu0
      %v2126 = vadd.f32 %v1937, %v2125
      %v2127 = vpop.f32.mrf.mxu0
      %2128 = vmatprep.mubr.f32.mxu0 0.0
      %2129 = vmatmul.mubr.f32.gmra.mxu0 %v1883
      %v2130 = vpop.f32.mrf.mxu0
      %v2131 = vadd.f32 %v1937, %v2130
      %v2132 = vpop.f32.mrf.mxu0
      %2133 = vmatprep.mubr.f32.mxu0 0.0
      %2134 = vmatmul.mubr.f32.gmra.mxu0 %v1884
      %v2135 = vpop.f32.mrf.mxu0
      %v2136 = vadd.f32 %v1937, %v2135
      %v2137 = vpop.f32.mrf.mxu0
      %2138 = vmatprep.mubr.f32.mxu0 0.0
      %2139 = vmatmul.mubr.f32.gmra.mxu0 %v1885
      %v2140 = vpop.f32.mrf.mxu0
      %v2141 = vadd.f32 %v1937, %v2140
      %v2142 = vpop.f32.mrf.mxu0
      %2143 = vmatprep.mubr.f32.mxu0 0.0
      %2144 = vmatmul.mubr.f32.gmra.mxu0 %v1886
      %v2145 = vpop.f32.mrf.mxu0
      %v2146 = vadd.f32 %v1937, %v2145
      %v2147 = vpop.f32.mrf.mxu0
      %2148 = vdwg.mxu0
      %v2149 = vmax.f32 %v2006, 0.0
      %v2150 = vmax.f32 %v2011, 0.0
      %v2151 = vmax.f32 %v2016, 0.0
      %v2152 = vmax.f32 %v2021, 0.0
      %v2153 = vmax.f32 %v2026, 0.0
      %v2154 = vmax.f32 %v2031, 0.0
      %v2155 = vmax.f32 %v2036, 0.0
      %v2156 = vmax.f32 %v2041, 0.0
      %v2157 = vmax.f32 %v2046, 0.0
      %v2158 = vmax.f32 %v2051, 0.0
      %v2159 = vmax.f32 %v2056, 0.0
      %v2160 = vmax.f32 %v2061, 0.0
      %v2161 = vmax.f32 %v2066, 0.0
      %v2162 = vmax.f32 %v2071, 0.0
      %v2163 = vmax.f32 %v2076, 0.0
      %v2164 = vmax.f32 %v2081, 0.0
      %v2165 = vmax.f32 %v2086, 0.0
      %v2166 = vmax.f32 %v2091, 0.0
      %v2167 = vmax.f32 %v2096, 0.0
      %v2168 = vmax.f32 %v2101, 0.0
      %v2169 = vmax.f32 %v2106, 0.0
      %v2170 = vmax.f32 %v2111, 0.0
      %v2171 = vmax.f32 %v2116, 0.0
      %v2172 = vmax.f32 %v2121, 0.0
      %v2173 = vmax.f32 %v2126, 0.0
      %v2174 = vmax.f32 %v2131, 0.0
      %v2175 = vmax.f32 %v2136, 0.0
      %v2176 = vmax.f32 %v2141, 0.0
      %v2177 = vmax.f32 %v2146, 0.0
      %2178 = vst [vmem:[#allocation4] sm:$0xff] %v2149
      %2179 = vst [vmem:[#allocation4 + $0x8] sm:$0xff] %v2150
      %2180 = vst [vmem:[#allocation4 + $0x10] sm:$0xff] %v2151
      %2181 = vst [vmem:[#allocation4 + $0x18] sm:$0xff] %v2152
      %2182 = vst [vmem:[#allocation4 + $0x20] sm:$0xff] %v2153
      %2183 = vst [vmem:[#allocation4 + $0x28] sm:$0xff] %v2154
      %2184 = vst [vmem:[#allocation4 + $0x30] sm:$0xff] %v2155
      %2185 = vst [vmem:[#allocation4 + $0x38] sm:$0xff] %v2156
      %2186 = vst [vmem:[#allocation4 + $0x40] sm:$0xff] %v2157
      %2187 = vst [vmem:[#allocation4 + $0x48] sm:$0xff] %v2158
      %2188 = vst [vmem:[#allocation4 + $0x50] sm:$0xff] %v2159
      %2189 = vst [vmem:[#allocation4 + $0x58] sm:$0xff] %v2160
      %2190 = vst [vmem:[#allocation4 + $0x60] sm:$0xff] %v2161
      %2191 = vst [vmem:[#allocation4 + $0x68] sm:$0xff] %v2162
      %2192 = vst [vmem:[#allocation4 + $0x70] sm:$0xff] %v2163
      %2193 = vst [vmem:[#allocation4 + $0x78] sm:$0xff] %v2164
      %2194 = vst [vmem:[#allocation4 + $0x80] sm:$0xff] %v2165
      %2195 = vst [vmem:[#allocation4 + $0x88] sm:$0xff] %v2166
      %2196 = vst [vmem:[#allocation4 + $0x90] sm:$0xff] %v2167
      %2197 = vst [vmem:[#allocation4 + $0x98] sm:$0xff] %v2168
      %2198 = vst [vmem:[#allocation4 + $0xa0] sm:$0xff] %v2169
      %2199 = vst [vmem:[#allocation4 + $0xa8] sm:$0xff] %v2170
      %2200 = vst [vmem:[#allocation4 + $0xb0] sm:$0xff] %v2171
      %2201 = vst [vmem:[#allocation4 + $0xb8] sm:$0xff] %v2172
      %2202 = vst [vmem:[#allocation4 + $0xc0] sm:$0xff] %v2173
      %2203 = vst [vmem:[#allocation4 + $0xc8] sm:$0xff] %v2174
      %2204 = vst [vmem:[#allocation4 + $0xd0] sm:$0xff] %v2175
      %2205 = vst [vmem:[#allocation4 + $0xd8] sm:$0xff] %v2176
      %2206 = vst [vmem:[#allocation4 + $0xe0] sm:$0xff] %v2177
      %2207 = vst [vmem:[#allocation5] sm:$0xff] 0.0
      %2208 = vst [vmem:[#allocation5 + $0x8] sm:$0xff] 0.0
      %2209 = vst [vmem:[#allocation5 + $0x10] sm:$0xff] 0.0
      %2210 = vst [vmem:[#allocation5 + $0x18] sm:$0xff] 0.0
      %2211 = vst [vmem:[#allocation5 + $0x20] sm:$0xff] 0.0
      %2212 = vst [vmem:[#allocation5 + $0x28] sm:$0xff] 0.0
      %2213 = vst [vmem:[#allocation5 + $0x30] sm:$0xff] 0.0
      %2214 = vst [vmem:[#allocation5 + $0x38] sm:$0xff] 0.0
      %2215 = vst [vmem:[#allocation5 + $0x40] sm:$0xff] 0.0
      %2216 = vst [vmem:[#allocation5 + $0x48] sm:$0xff] 0.0
      %2217 = vst [vmem:[#allocation5 + $0x50] sm:$0xff] 0.0
      %2218 = vst [vmem:[#allocation5 + $0x58] sm:$0xff] 0.0
      %2219 = vst [vmem:[#allocation5 + $0x60] sm:$0xff] 0.0
      %2220 = vst [vmem:[#allocation5 + $0x68] sm:$0xff] 0.0
      %2221 = vst [vmem:[#allocation5 + $0x70] sm:$0xff] 0.0
      %2222 = vst [vmem:[#allocation5 + $0x78] sm:$0xff] 0.0
      %2223 = vst [vmem:[#allocation5 + $0x80] sm:$0xff] 0.0
      %2224 = vst [vmem:[#allocation5 + $0x88] sm:$0xff] 0.0
      %2225 = vst [vmem:[#allocation5 + $0x90] sm:$0xff] 0.0
      %2226 = vst [vmem:[#allocation5 + $0x98] sm:$0xff] 0.0
      %2227 = vst [vmem:[#allocation5 + $0xa0] sm:$0xff] 0.0
      %2228 = vst [vmem:[#allocation5 + $0xa8] sm:$0xff] 0.0
      %2229 = vst [vmem:[#allocation5 + $0xb0] sm:$0xff] 0.0
      %2230 = vst [vmem:[#allocation5 + $0xb8] sm:$0xff] 0.0
      %2231 = vst [vmem:[#allocation5 + $0xc0] sm:$0xff] 0.0
      %2232 = vst [vmem:[#allocation5 + $0xc8] sm:$0xff] 0.0
      %2233 = vst [vmem:[#allocation5 + $0xd0] sm:$0xff] 0.0
      %2234 = vst [vmem:[#allocation5 + $0xd8] sm:$0xff] 0.0
      %2235 = vst [vmem:[#allocation5 + $0xe0] sm:$0xff] 0.0
      %2236 = vst [vmem:[#allocation5 + $0xe8] sm:$0xff] 0.0
      %2237 = vst [vmem:[#allocation5 + $0xf0] sm:$0xff] 0.0
      %2238 = vst [vmem:[#allocation5 + $0xf8] sm:$0xff] 0.0
      %2239 = vst [vmem:[#allocation5 + $0x100] sm:$0xff] 0.0
      %2240 = vst [vmem:[#allocation5 + $0x108] sm:$0xff] 0.0
      %2241 = vst [vmem:[#allocation5 + $0x110] sm:$0xff] 0.0
      %2242 = vst [vmem:[#allocation5 + $0x118] sm:$0xff] 0.0
      %2243 = vst [vmem:[#allocation5 + $0x120] sm:$0xff] 0.0
      %2244 = vst [vmem:[#allocation5 + $0x128] sm:$0xff] 0.0
      %2245 = vst [vmem:[#allocation5 + $0x130] sm:$0xff] 0.0
      %2246 = vst [vmem:[#allocation5 + $0x138] sm:$0xff] 0.0
      %2247 = vst [vmem:[#allocation5 + $0x140] sm:$0xff] 0.0
      %2248 = vst [vmem:[#allocation5 + $0x148] sm:$0xff] 0.0
      %2249 = vst [vmem:[#allocation5 + $0x150] sm:$0xff] 0.0
      %2250 = vst [vmem:[#allocation5 + $0x158] sm:$0xff] 0.0
      %2251 = vst [vmem:[#allocation5 + $0x160] sm:$0xff] 0.0
      %2252 = vst [vmem:[#allocation5 + $0x168] sm:$0xff] 0.0
      %2253 = vst [vmem:[#allocation5 + $0x170] sm:$0xff] 0.0
      %2254 = vst [vmem:[#allocation5 + $0x178] sm:$0xff] 0.0
      %2255 = vst [vmem:[#allocation5 + $0x180] sm:$0xff] 0.0
      %2256 = vst [vmem:[#allocation5 + $0x188] sm:$0xff] 0.0
      %2257 = vst [vmem:[#allocation5 + $0x190] sm:$0xff] 0.0
      %2258 = vst [vmem:[#allocation5 + $0x198] sm:$0xff] 0.0
      %2259 = vst [vmem:[#allocation5 + $0x1a0] sm:$0xff] 0.0
      %2260 = vst [vmem:[#allocation5 + $0x1a8] sm:$0xff] 0.0
      %2261 = vst [vmem:[#allocation5 + $0x1b0] sm:$0xff] 0.0
      %2262 = vst [vmem:[#allocation5 + $0x1b8] sm:$0xff] 0.0
      %2263 = vst [vmem:[#allocation5 + $0x1c0] sm:$0xff] 0.0
      %2264 = vst [vmem:[#allocation5 + $0x1c8] sm:$0xff] 0.0
      %2265 = vst [vmem:[#allocation5 + $0x1d0] sm:$0xff] 0.0
      %2266 = vst [vmem:[#allocation5 + $0x1d8] sm:$0xff] 0.0
      %2267 = vst [vmem:[#allocation5 + $0x1e0] sm:$0xff] 0.0
      %2268 = vst [vmem:[#allocation5 + $0x1e8] sm:$0xff] 0.0
      %2269 = vst [vmem:[#allocation5 + $0x1f0] sm:$0xff] 0.0
      %v2270 = vld [vmem:[#allocation4] ss:$2 sm:$0x7f]
      %2271 = vst [vmem:[#allocation5] sm:$0x7f] %v2270
      %s2272 = scalar_lea.vmem [#allocation4], 1
      %v2273 = vld [vmem:[%s2272] ss:$2 sm:$0x7f]
      %2274 = vst [vmem:[#allocation5 + $0x8] sm:$0x7f] %v2273
      %s2275 = scalar_lea.vmem [#allocation4], 2
      %v2276 = vld [vmem:[%s2275] ss:$2 sm:$0x7f]
      %2277 = vst [vmem:[#allocation5 + $0x10] sm:$0x7f] %v2276
      %s2278 = scalar_lea.vmem [#allocation4], 15
      %v2279 = vld [vmem:[%s2278] ss:$2 sm:$0x7f]
      %2280 = vst [vmem:[#allocation5 + $0x18] sm:$0x7f] %v2279
      %s2281 = scalar_lea.vmem [#allocation4], 16
      %v2282 = vld [vmem:[%s2281] ss:$2 sm:$0x7f]
      %2283 = vst [vmem:[#allocation5 + $0x20] sm:$0x7f] %v2282
      %s2284 = scalar_lea.vmem [#allocation4], 17
      %v2285 = vld [vmem:[%s2284] ss:$2 sm:$0x7f]
      %2286 = vst [vmem:[#allocation5 + $0x28] sm:$0x7f] %v2285
      %s2287 = scalar_lea.vmem [#allocation4], 30
      %v2288 = vld [vmem:[%s2287] ss:$2 sm:$0x7f]
      %2289 = vst [vmem:[#allocation5 + $0x30] sm:$0x7f] %v2288
      %s2290 = scalar_lea.vmem [#allocation4], 31
      %v2291 = vld [vmem:[%s2290] ss:$2 sm:$0x7f]
      %2292 = vst [vmem:[#allocation5 + $0x38] sm:$0x7f] %v2291
      %s2293 = scalar_lea.vmem [#allocation4], 32
      %v2294 = vld [vmem:[%s2293] ss:$2 sm:$0x7f]
      %2295 = vst [vmem:[#allocation5 + $0x40] sm:$0x7f] %v2294
      %v2296 = vld [vmem:[%s2287] ss:$2 sm:$0x7f]
      %v2298 = vrot.slane %v2296, 1
      %2300 = vst [vmem:[#allocation5] sm:$0x80] %v2298
      %2301 = vst [vmem:[#allocation5 + $0x48] sm:$0x3f] %v2298
      %v2302 = vld [vmem:[%s2290] ss:$2 sm:$0x7f]
      %v2304 = vrot.slane %v2302, 1
      %2306 = vst [vmem:[#allocation5 + $0x8] sm:$0x80] %v2304
      %2307 = vst [vmem:[#allocation5 + $0x50] sm:$0x3f] %v2304
      %v2308 = vld [vmem:[%s2293] ss:$2 sm:$0x7f]
      %v2310 = vrot.slane %v2308, 1
      %2312 = vst [vmem:[#allocation5 + $0x10] sm:$0x80] %v2310
      %2313 = vst [vmem:[#allocation5 + $0x58] sm:$0x3f] %v2310
      %s2314 = scalar_lea.vmem [#allocation4], 45
      %v2315 = vld [vmem:[%s2314] ss:$2 sm:$0x7f]
      %v2317 = vrot.slane %v2315, 1
      %2319 = vst [vmem:[#allocation5 + $0x18] sm:$0x80] %v2317
      %2320 = vst [vmem:[#allocation5 + $0x60] sm:$0x3f] %v2317
      %s2321 = scalar_lea.vmem [#allocation4], 46
      %v2322 = vld [vmem:[%s2321] ss:$2 sm:$0x7f]
      %v2324 = vrot.slane %v2322, 1
      %2326 = vst [vmem:[#allocation5 + $0x20] sm:$0x80] %v2324
      %2327 = vst [vmem:[#allocation5 + $0x68] sm:$0x3f] %v2324
      %s2328 = scalar_lea.vmem [#allocation4], 47
      %v2329 = vld [vmem:[%s2328] ss:$2 sm:$0x7f]
      %v2331 = vrot.slane %v2329, 1
      %2333 = vst [vmem:[#allocation5 + $0x28] sm:$0x80] %v2331
      %2334 = vst [vmem:[#allocation5 + $0x70] sm:$0x3f] %v2331
      %s2335 = scalar_lea.vmem [#allocation4], 60
      %v2336 = vld [vmem:[%s2335] ss:$2 sm:$0x7f]
      %v2338 = vrot.slane %v2336, 1
      %2340 = vst [vmem:[#allocation5 + $0x30] sm:$0x80] %v2338
      %2341 = vst [vmem:[#allocation5 + $0x78] sm:$0x3f] %v2338
      %s2342 = scalar_lea.vmem [#allocation4], 61
      %v2343 = vld [vmem:[%s2342] ss:$2 sm:$0x7f]
      %v2345 = vrot.slane %v2343, 1
      %2347 = vst [vmem:[#allocation5 + $0x38] sm:$0x80] %v2345
      %2348 = vst [vmem:[#allocation5 + $0x80] sm:$0x3f] %v2345
      %s2349 = scalar_lea.vmem [#allocation4], 62
      %v2350 = vld [vmem:[%s2349] ss:$2 sm:$0x7f]
      %v2352 = vrot.slane %v2350, 1
      %2354 = vst [vmem:[#allocation5 + $0x40] sm:$0x80] %v2352
      %2355 = vst [vmem:[#allocation5 + $0x88] sm:$0x3f] %v2352
      %v2356 = vld [vmem:[%s2335] ss:$2 sm:$0x7f]
      %v2358 = vrot.slane %v2356, 2
      %2360 = vst [vmem:[#allocation5 + $0x48] sm:$0xc0] %v2358
      %2361 = vst [vmem:[#allocation5 + $0x90] sm:$0x1f] %v2358
      %v2362 = vld [vmem:[%s2342] ss:$2 sm:$0x7f]
      %v2364 = vrot.slane %v2362, 2
      %2366 = vst [vmem:[#allocation5 + $0x50] sm:$0xc0] %v2364
      %2367 = vst [vmem:[#allocation5 + $0x98] sm:$0x1f] %v2364
      %v2368 = vld [vmem:[%s2349] ss:$2 sm:$0x7f]
      %v2370 = vrot.slane %v2368, 2
      %2372 = vst [vmem:[#allocation5 + $0x58] sm:$0xc0] %v2370
      %2373 = vst [vmem:[#allocation5 + $0xa0] sm:$0x1f] %v2370
      %s2374 = scalar_lea.vmem [#allocation4], 75
      %v2375 = vld [vmem:[%s2374] ss:$2 sm:$0x7f]
      %v2377 = vrot.slane %v2375, 2
      %2379 = vst [vmem:[#allocation5 + $0x60] sm:$0xc0] %v2377
      %2380 = vst [vmem:[#allocation5 + $0xa8] sm:$0x1f] %v2377
      %s2381 = scalar_lea.vmem [#allocation4], 76
      %v2382 = vld [vmem:[%s2381] ss:$2 sm:$0x7f]
      %v2384 = vrot.slane %v2382, 2
      %2386 = vst [vmem:[#allocation5 + $0x68] sm:$0xc0] %v2384
      %2387 = vst [vmem:[#allocation5 + $0xb0] sm:$0x1f] %v2384
      %s2388 = scalar_lea.vmem [#allocation4], 77
      %v2389 = vld [vmem:[%s2388] ss:$2 sm:$0x7f]
      %v2391 = vrot.slane %v2389, 2
      %2393 = vst [vmem:[#allocation5 + $0x70] sm:$0xc0] %v2391
      %2394 = vst [vmem:[#allocation5 + $0xb8] sm:$0x1f] %v2391
      %s2395 = scalar_lea.vmem [#allocation4], 90
      %v2396 = vld [vmem:[%s2395] ss:$2 sm:$0x7f]
      %v2398 = vrot.slane %v2396, 2
      %2400 = vst [vmem:[#allocation5 + $0x78] sm:$0xc0] %v2398
      %2401 = vst [vmem:[#allocation5 + $0xc0] sm:$0x1f] %v2398
      %s2402 = scalar_lea.vmem [#allocation4], 91
      %v2403 = vld [vmem:[%s2402] ss:$2 sm:$0x7f]
      %v2405 = vrot.slane %v2403, 2
      %2407 = vst [vmem:[#allocation5 + $0x80] sm:$0xc0] %v2405
      %2408 = vst [vmem:[#allocation5 + $0xc8] sm:$0x1f] %v2405
      %s2409 = scalar_lea.vmem [#allocation4], 92
      %v2410 = vld [vmem:[%s2409] ss:$2 sm:$0x7f]
      %v2412 = vrot.slane %v2410, 2
      %2414 = vst [vmem:[#allocation5 + $0x88] sm:$0xc0] %v2412
      %2415 = vst [vmem:[#allocation5 + $0xd0] sm:$0x1f] %v2412
      %v2416 = vld [vmem:[%s2395] ss:$2 sm:$0x7f]
      %v2418 = vrot.slane %v2416, 3
      %2420 = vst [vmem:[#allocation5 + $0x90] sm:$0xe0] %v2418
      %2421 = vst [vmem:[#allocation5 + $0xd8] sm:$0xf] %v2418
      %v2422 = vld [vmem:[%s2402] ss:$2 sm:$0x7f]
      %v2424 = vrot.slane %v2422, 3
      %2426 = vst [vmem:[#allocation5 + $0x98] sm:$0xe0] %v2424
      %2427 = vst [vmem:[#allocation5 + $0xe0] sm:$0xf] %v2424
      %v2428 = vld [vmem:[%s2409] ss:$2 sm:$0x7f]
      %v2430 = vrot.slane %v2428, 3
      %2432 = vst [vmem:[#allocation5 + $0xa0] sm:$0xe0] %v2430
      %2433 = vst [vmem:[#allocation5 + $0xe8] sm:$0xf] %v2430
      %s2434 = scalar_lea.vmem [#allocation4], 105
      %v2435 = vld [vmem:[%s2434] ss:$2 sm:$0x7f]
      %v2437 = vrot.slane %v2435, 3
      %2439 = vst [vmem:[#allocation5 + $0xa8] sm:$0xe0] %v2437
      %2440 = vst [vmem:[#allocation5 + $0xf0] sm:$0xf] %v2437
      %s2441 = scalar_lea.vmem [#allocation4], 106
      %v2442 = vld [vmem:[%s2441] ss:$2 sm:$0x7f]
      %v2444 = vrot.slane %v2442, 3
      %2446 = vst [vmem:[#allocation5 + $0xb0] sm:$0xe0] %v2444
      %2447 = vst [vmem:[#allocation5 + $0xf8] sm:$0xf] %v2444
      %s2448 = scalar_lea.vmem [#allocation4], 107
      %v2449 = vld [vmem:[%s2448] ss:$2 sm:$0x7f]
      %v2451 = vrot.slane %v2449, 3
      %2453 = vst [vmem:[#allocation5 + $0xb8] sm:$0xe0] %v2451
      %2454 = vst [vmem:[#allocation5 + $0x100] sm:$0xf] %v2451
      %s2455 = scalar_lea.vmem [#allocation4], 120
      %v2456 = vld [vmem:[%s2455] ss:$2 sm:$0x7f]
      %v2458 = vrot.slane %v2456, 3
      %2460 = vst [vmem:[#allocation5 + $0xc0] sm:$0xe0] %v2458
      %2461 = vst [vmem:[#allocation5 + $0x108] sm:$0xf] %v2458
      %s2462 = scalar_lea.vmem [#allocation4], 121
      %v2463 = vld [vmem:[%s2462] ss:$2 sm:$0x7f]
      %v2465 = vrot.slane %v2463, 3
      %2467 = vst [vmem:[#allocation5 + $0xc8] sm:$0xe0] %v2465
      %2468 = vst [vmem:[#allocation5 + $0x110] sm:$0xf] %v2465
      %s2469 = scalar_lea.vmem [#allocation4], 122
      %v2470 = vld [vmem:[%s2469] ss:$2 sm:$0x7f]
      %v2472 = vrot.slane %v2470, 3
      %2474 = vst [vmem:[#allocation5 + $0xd0] sm:$0xe0] %v2472
      %2475 = vst [vmem:[#allocation5 + $0x118] sm:$0xf] %v2472
      %v2476 = vld [vmem:[%s2455] ss:$2 sm:$0x7f]
      %v2478 = vrot.slane %v2476, 4
      %2480 = vst [vmem:[#allocation5 + $0xd8] sm:$0xf0] %v2478
      %2481 = vst [vmem:[#allocation5 + $0x120] sm:$0x7] %v2478
      %v2482 = vld [vmem:[%s2462] ss:$2 sm:$0x7f]
      %v2484 = vrot.slane %v2482, 4
      %2486 = vst [vmem:[#allocation5 + $0xe0] sm:$0xf0] %v2484
      %2487 = vst [vmem:[#allocation5 + $0x128] sm:$0x7] %v2484
      %v2488 = vld [vmem:[%s2469] ss:$2 sm:$0x7f]
      %v2490 = vrot.slane %v2488, 4
      %2492 = vst [vmem:[#allocation5 + $0xe8] sm:$0xf0] %v2490
      %2493 = vst [vmem:[#allocation5 + $0x130] sm:$0x7] %v2490
      %s2494 = scalar_lea.vmem [#allocation4], 135
      %v2495 = vld [vmem:[%s2494] ss:$2 sm:$0x7f]
      %v2497 = vrot.slane %v2495, 4
      %2499 = vst [vmem:[#allocation5 + $0xf0] sm:$0xf0] %v2497
      %2500 = vst [vmem:[#allocation5 + $0x138] sm:$0x7] %v2497
      %s2501 = scalar_lea.vmem [#allocation4], 136
      %v2502 = vld [vmem:[%s2501] ss:$2 sm:$0x7f]
      %v2504 = vrot.slane %v2502, 4
      %2506 = vst [vmem:[#allocation5 + $0xf8] sm:$0xf0] %v2504
      %2507 = vst [vmem:[#allocation5 + $0x140] sm:$0x7] %v2504
      %s2508 = scalar_lea.vmem [#allocation4], 137
      %v2509 = vld [vmem:[%s2508] ss:$2 sm:$0x7f]
      %v2511 = vrot.slane %v2509, 4
      %2513 = vst [vmem:[#allocation5 + $0x100] sm:$0xf0] %v2511
      %2514 = vst [vmem:[#allocation5 + $0x148] sm:$0x7] %v2511
      %s2515 = scalar_lea.vmem [#allocation4], 150
      %v2516 = vld [vmem:[%s2515] ss:$2 sm:$0x7f]
      %v2518 = vrot.slane %v2516, 4
      %2520 = vst [vmem:[#allocation5 + $0x108] sm:$0xf0] %v2518
      %2521 = vst [vmem:[#allocation5 + $0x150] sm:$0x7] %v2518
      %s2522 = scalar_lea.vmem [#allocation4], 151
      %v2523 = vld [vmem:[%s2522] ss:$2 sm:$0x7f]
      %v2525 = vrot.slane %v2523, 4
      %2527 = vst [vmem:[#allocation5 + $0x110] sm:$0xf0] %v2525
      %2528 = vst [vmem:[#allocation5 + $0x158] sm:$0x7] %v2525
      %s2529 = scalar_lea.vmem [#allocation4], 152
      %v2530 = vld [vmem:[%s2529] ss:$2 sm:$0x7f]
      %v2532 = vrot.slane %v2530, 4
      %2534 = vst [vmem:[#allocation5 + $0x118] sm:$0xf0] %v2532
      %2535 = vst [vmem:[#allocation5 + $0x160] sm:$0x7] %v2532
      %v2536 = vld [vmem:[%s2515] ss:$2 sm:$0x7f]
      %v2538 = vrot.slane %v2536, 5
      %2540 = vst [vmem:[#allocation5 + $0x120] sm:$0xf8] %v2538
      %2541 = vst [vmem:[#allocation5 + $0x168] sm:$0x3] %v2538
      %v2542 = vld [vmem:[%s2522] ss:$2 sm:$0x7f]
      %v2544 = vrot.slane %v2542, 5
      %2546 = vst [vmem:[#allocation5 + $0x128] sm:$0xf8] %v2544
      %2547 = vst [vmem:[#allocation5 + $0x170] sm:$0x3] %v2544
      %v2548 = vld [vmem:[%s2529] ss:$2 sm:$0x7f]
      %v2550 = vrot.slane %v2548, 5
      %2552 = vst [vmem:[#allocation5 + $0x130] sm:$0xf8] %v2550
      %2553 = vst [vmem:[#allocation5 + $0x178] sm:$0x3] %v2550
      %s2554 = scalar_lea.vmem [#allocation4], 165
      %v2555 = vld [vmem:[%s2554] ss:$2 sm:$0x7f]
      %v2557 = vrot.slane %v2555, 5
      %2559 = vst [vmem:[#allocation5 + $0x138] sm:$0xf8] %v2557
      %2560 = vst [vmem:[#allocation5 + $0x180] sm:$0x3] %v2557
      %s2561 = scalar_lea.vmem [#allocation4], 166
      %v2562 = vld [vmem:[%s2561] ss:$2 sm:$0x7f]
      %v2564 = vrot.slane %v2562, 5
      %2566 = vst [vmem:[#allocation5 + $0x140] sm:$0xf8] %v2564
      %2567 = vst [vmem:[#allocation5 + $0x188] sm:$0x3] %v2564
      %s2568 = scalar_lea.vmem [#allocation4], 167
      %v2569 = vld [vmem:[%s2568] ss:$2 sm:$0x7f]
      %v2571 = vrot.slane %v2569, 5
      %2573 = vst [vmem:[#allocation5 + $0x148] sm:$0xf8] %v2571
      %2574 = vst [vmem:[#allocation5 + $0x190] sm:$0x3] %v2571
      %s2575 = scalar_lea.vmem [#allocation4], 180
      %v2576 = vld [vmem:[%s2575] ss:$2 sm:$0x7f]
      %v2578 = vrot.slane %v2576, 5
      %2580 = vst [vmem:[#allocation5 + $0x150] sm:$0xf8] %v2578
      %2581 = vst [vmem:[#allocation5 + $0x198] sm:$0x3] %v2578
      %s2582 = scalar_lea.vmem [#allocation4], 181
      %v2583 = vld [vmem:[%s2582] ss:$2 sm:$0x7f]
      %v2585 = vrot.slane %v2583, 5
      %2587 = vst [vmem:[#allocation5 + $0x158] sm:$0xf8] %v2585
      %2588 = vst [vmem:[#allocation5 + $0x1a0] sm:$0x3] %v2585
      %s2589 = scalar_lea.vmem [#allocation4], 182
      %v2590 = vld [vmem:[%s2589] ss:$2 sm:$0x7f]
      %v2592 = vrot.slane %v2590, 5
      %2594 = vst [vmem:[#allocation5 + $0x160] sm:$0xf8] %v2592
      %2595 = vst [vmem:[#allocation5 + $0x1a8] sm:$0x3] %v2592
      %v2596 = vld [vmem:[%s2575] ss:$2 sm:$0x7f]
      %v2598 = vrot.slane %v2596, 6
      %2600 = vst [vmem:[#allocation5 + $0x168] sm:$0xfc] %v2598
      %2601 = vst [vmem:[#allocation5 + $0x1b0] sm:$0x1] %v2598
      %v2602 = vld [vmem:[%s2582] ss:$2 sm:$0x7f]
      %v2604 = vrot.slane %v2602, 6
      %2606 = vst [vmem:[#allocation5 + $0x170] sm:$0xfc] %v2604
      %2607 = vst [vmem:[#allocation5 + $0x1b8] sm:$0x1] %v2604
      %v2608 = vld [vmem:[%s2589] ss:$2 sm:$0x7f]
      %v2610 = vrot.slane %v2608, 6
      %2612 = vst [vmem:[#allocation5 + $0x178] sm:$0xfc] %v2610
      %2613 = vst [vmem:[#allocation5 + $0x1c0] sm:$0x1] %v2610
      %s2614 = scalar_lea.vmem [#allocation4], 195
      %v2615 = vld [vmem:[%s2614] ss:$2 sm:$0x7f]
      %v2617 = vrot.slane %v2615, 6
      %2619 = vst [vmem:[#allocation5 + $0x180] sm:$0xfc] %v2617
      %2620 = vst [vmem:[#allocation5 + $0x1c8] sm:$0x1] %v2617
      %s2621 = scalar_lea.vmem [#allocation4], 196
      %v2622 = vld [vmem:[%s2621] ss:$2 sm:$0x7f]
      %v2624 = vrot.slane %v2622, 6
      %2626 = vst [vmem:[#allocation5 + $0x188] sm:$0xfc] %v2624
      %2627 = vst [vmem:[#allocation5 + $0x1d0] sm:$0x1] %v2624
      %s2628 = scalar_lea.vmem [#allocation4], 197
      %v2629 = vld [vmem:[%s2628] ss:$2 sm:$0x7f]
      %v2631 = vrot.slane %v2629, 6
      %2633 = vst [vmem:[#allocation5 + $0x190] sm:$0xfc] %v2631
      %2634 = vst [vmem:[#allocation5 + $0x1d8] sm:$0x1] %v2631
      %s2635 = scalar_lea.vmem [#allocation4], 210
      %v2636 = vld [vmem:[%s2635] ss:$2 sm:$0x7f]
      %v2638 = vrot.slane %v2636, 6
      %2640 = vst [vmem:[#allocation5 + $0x198] sm:$0xfc] %v2638
      %2641 = vst [vmem:[#allocation5 + $0x1e0] sm:$0x1] %v2638
      %s2642 = scalar_lea.vmem [#allocation4], 211
      %v2643 = vld [vmem:[%s2642] ss:$2 sm:$0x7f]
      %v2645 = vrot.slane %v2643, 6
      %2647 = vst [vmem:[#allocation5 + $0x1a0] sm:$0xfc] %v2645
      %2648 = vst [vmem:[#allocation5 + $0x1e8] sm:$0x1] %v2645
      %s2649 = scalar_lea.vmem [#allocation4], 212
      %v2650 = vld [vmem:[%s2649] ss:$2 sm:$0x7f]
      %v2652 = vrot.slane %v2650, 6
      %2654 = vst [vmem:[#allocation5 + $0x1a8] sm:$0xfc] %v2652
      %2655 = vst [vmem:[#allocation5 + $0x1f0] sm:$0x1] %v2652
      %v2656 = vld [vmem:[#allocation5] sm:$0xff]
      %v2657 = vld [vmem:[#allocation5 + $0x8] sm:$0xff]
      %v2658 = vld [vmem:[#allocation5 + $0x10] sm:$0xff]
      %v2659 = vld [vmem:[#allocation5 + $0x18] sm:$0xff]
      %v2660 = vld [vmem:[#allocation5 + $0x20] sm:$0xff]
      %v2661 = vld [vmem:[#allocation5 + $0x28] sm:$0xff]
      %v2662 = vld [vmem:[#allocation5 + $0x30] sm:$0xff]
      %v2663 = vld [vmem:[#allocation5 + $0x38] sm:$0xff]
      %v2664 = vld [vmem:[#allocation5 + $0x40] sm:$0xff]
      %v2665 = vld [vmem:[#allocation5 + $0x48] sm:$0xff]
      %v2666 = vld [vmem:[#allocation5 + $0x50] sm:$0xff]
      %v2667 = vld [vmem:[#allocation5 + $0x58] sm:$0xff]
      %v2668 = vld [vmem:[#allocation5 + $0x60] sm:$0xff]
      %v2669 = vld [vmem:[#allocation5 + $0x68] sm:$0xff]
      %v2670 = vld [vmem:[#allocation5 + $0x70] sm:$0xff]
      %v2671 = vld [vmem:[#allocation5 + $0x78] sm:$0xff]
      %v2672 = vld [vmem:[#allocation5 + $0x80] sm:$0xff]
      %v2673 = vld [vmem:[#allocation5 + $0x88] sm:$0xff]
      %v2674 = vld [vmem:[#allocation5 + $0x90] sm:$0xff]
      %v2675 = vld [vmem:[#allocation5 + $0x98] sm:$0xff]
      %v2676 = vld [vmem:[#allocation5 + $0xa0] sm:$0xff]
      %v2677 = vld [vmem:[#allocation5 + $0xa8] sm:$0xff]
      %v2678 = vld [vmem:[#allocation5 + $0xb0] sm:$0xff]
      %v2679 = vld [vmem:[#allocation5 + $0xb8] sm:$0xff]
      %v2680 = vld [vmem:[#allocation5 + $0xc0] sm:$0xff]
      %v2681 = vld [vmem:[#allocation5 + $0xc8] sm:$0xff]
      %v2682 = vld [vmem:[#allocation5 + $0xd0] sm:$0xff]
      %v2683 = vld [vmem:[#allocation5 + $0xd8] sm:$0xff]
      %v2684 = vld [vmem:[#allocation5 + $0xe0] sm:$0xff]
      %v2685 = vld [vmem:[#allocation5 + $0xe8] sm:$0xff]
      %v2686 = vld [vmem:[#allocation5 + $0xf0] sm:$0xff]
      %v2687 = vld [vmem:[#allocation5 + $0xf8] sm:$0xff]
      %v2688 = vld [vmem:[#allocation5 + $0x100] sm:$0xff]
      %v2689 = vld [vmem:[#allocation5 + $0x108] sm:$0xff]
      %v2690 = vld [vmem:[#allocation5 + $0x110] sm:$0xff]
      %v2691 = vld [vmem:[#allocation5 + $0x118] sm:$0xff]
      %v2692 = vld [vmem:[#allocation5 + $0x120] sm:$0xff]
      %v2693 = vld [vmem:[#allocation5 + $0x128] sm:$0xff]
      %v2694 = vld [vmem:[#allocation5 + $0x130] sm:$0xff]
      %v2695 = vld [vmem:[#allocation5 + $0x138] sm:$0xff]
      %v2696 = vld [vmem:[#allocation5 + $0x140] sm:$0xff]
      %v2697 = vld [vmem:[#allocation5 + $0x148] sm:$0xff]
      %v2698 = vld [vmem:[#allocation5 + $0x150] sm:$0xff]
      %v2699 = vld [vmem:[#allocation5 + $0x158] sm:$0xff]
      %v2700 = vld [vmem:[#allocation5 + $0x160] sm:$0xff]
      %v2701 = vld [vmem:[#allocation5 + $0x168] sm:$0xff]
      %v2702 = vld [vmem:[#allocation5 + $0x170] sm:$0xff]
      %v2703 = vld [vmem:[#allocation5 + $0x178] sm:$0xff]
      %v2704 = vld [vmem:[#allocation5 + $0x180] sm:$0xff]
      %v2705 = vld [vmem:[#allocation5 + $0x188] sm:$0xff]
      %v2706 = vld [vmem:[#allocation5 + $0x190] sm:$0xff]
      %v2707 = vld [vmem:[#allocation5 + $0x198] sm:$0xff]
      %v2708 = vld [vmem:[#allocation5 + $0x1a0] sm:$0xff]
      %v2709 = vld [vmem:[#allocation5 + $0x1a8] sm:$0xff]
      %v2710 = vld [vmem:[#allocation5 + $0x1b0] sm:$0xff]
      %v2711 = vld [vmem:[#allocation5 + $0x1b8] sm:$0xff]
      %v2712 = vld [vmem:[#allocation5 + $0x1c0] sm:$0xff]
      %v2713 = vld [vmem:[#allocation5 + $0x1c8] sm:$0xff]
      %v2714 = vld [vmem:[#allocation5 + $0x1d0] sm:$0xff]
      %v2715 = vld [vmem:[#allocation5 + $0x1d8] sm:$0xff]
      %v2716 = vld [vmem:[#allocation5 + $0x1e0] sm:$0xff]
      %v2717 = vld [vmem:[#allocation5 + $0x1e8] sm:$0xff]
      %v2718 = vld [vmem:[#allocation5 + $0x1f0] sm:$0xff]
      %v2719 = vld [vmem:[%s7] sm:$0xff]
      %v2720 = vld [vmem:[%s7 + $0x8] sm:$0xff]
      %v2721 = vld [vmem:[%s7 + $0x10] sm:$0xff]
      %v2722 = vld [vmem:[%s7 + $0x18] sm:$0xff]
      %v2723 = vld [vmem:[%s7 + $0x20] sm:$0xff]
      %v2724 = vld [vmem:[%s7 + $0x28] sm:$0xff]
      %v2725 = vld [vmem:[%s7 + $0x30] sm:$0xff]
      %v2726 = vld [vmem:[%s7 + $0x38] sm:$0xff]
      %v2727 = vld [vmem:[%s7 + $0x40] sm:$0xff]
      %v2728 = vld [vmem:[%s7 + $0x48] sm:$0xff]
      %v2729 = vld [vmem:[%s7 + $0x50] sm:$0xff]
      %v2730 = vld [vmem:[%s7 + $0x58] sm:$0xff]
      %v2731 = vld [vmem:[%s7 + $0x60] sm:$0xff]
      %v2732 = vld [vmem:[%s7 + $0x68] sm:$0xff]
      %v2733 = vld [vmem:[%s7 + $0x70] sm:$0xff]
      %v2734 = vld [vmem:[%s7 + $0x78] sm:$0xff]
      %v2735 = vld [vmem:[%s7 + $0x80] sm:$0xff]
      %v2736 = vld [vmem:[%s7 + $0x88] sm:$0xff]
      %v2737 = vld [vmem:[%s7 + $0x90] sm:$0xff]
      %v2738 = vld [vmem:[%s7 + $0x98] sm:$0xff]
      %v2739 = vld [vmem:[%s7 + $0xa0] sm:$0xff]
      %v2740 = vld [vmem:[%s7 + $0xa8] sm:$0xff]
      %v2741 = vld [vmem:[%s7 + $0xb0] sm:$0xff]
      %v2742 = vld [vmem:[%s7 + $0xb8] sm:$0xff]
      %v2743 = vld [vmem:[%s7 + $0xc0] sm:$0xff]
      %v2744 = vld [vmem:[%s7 + $0xc8] sm:$0xff]
      %v2745 = vld [vmem:[%s7 + $0xd0] sm:$0xff]
      %v2746 = vld [vmem:[%s7 + $0xd8] sm:$0xff]
      %v2747 = vld [vmem:[%s7 + $0xe0] sm:$0xff]
      %v2748 = vld [vmem:[%s7 + $0xe8] sm:$0xff]
      %v2749 = vld [vmem:[%s7 + $0xf0] sm:$0xff]
      %v2750 = vld [vmem:[%s7 + $0xf8] sm:$0xff]
      %v2751 = vld [vmem:[%s7 + $0x100] sm:$0xff]
      %v2752 = vld [vmem:[%s7 + $0x108] sm:$0xff]
      %v2753 = vld [vmem:[%s7 + $0x110] sm:$0xff]
      %v2754 = vld [vmem:[%s7 + $0x118] sm:$0xff]
      %v2755 = vld [vmem:[%s7 + $0x120] sm:$0xff]
      %v2756 = vld [vmem:[%s7 + $0x128] sm:$0xff]
      %v2757 = vld [vmem:[%s7 + $0x130] sm:$0xff]
      %v2758 = vld [vmem:[%s7 + $0x138] sm:$0xff]
      %v2759 = vld [vmem:[%s7 + $0x140] sm:$0xff]
      %v2760 = vld [vmem:[%s7 + $0x148] sm:$0xff]
      %v2761 = vld [vmem:[%s7 + $0x150] sm:$0xff]
      %v2762 = vld [vmem:[%s7 + $0x158] sm:$0xff]
      %v2763 = vld [vmem:[%s7 + $0x160] sm:$0xff]
      %v2764 = vld [vmem:[%s7 + $0x168] sm:$0xff]
      %v2765 = vld [vmem:[%s7 + $0x170] sm:$0xff]
      %v2766 = vld [vmem:[%s7 + $0x178] sm:$0xff]
      %v2767 = vld [vmem:[%s7 + $0x180] sm:$0xff]
      %v2768 = vld [vmem:[%s7 + $0x188] sm:$0xff]
      %v2769 = vld [vmem:[%s7 + $0x190] sm:$0xff]
      %v2770 = vld [vmem:[%s7 + $0x198] sm:$0xff]
      %v2771 = vld [vmem:[%s7 + $0x1a0] sm:$0xff]
      %v2772 = vld [vmem:[%s7 + $0x1a8] sm:$0xff]
      %v2773 = vld [vmem:[%s7 + $0x1b0] sm:$0xff]
      %v2774 = vld [vmem:[%s7 + $0x1b8] sm:$0xff]
      %v2775 = vld [vmem:[%s7 + $0x1c0] sm:$0xff]
      %v2776 = vld [vmem:[%s7 + $0x1c8] sm:$0xff]
      %v2777 = vld [vmem:[%s7 + $0x1d0] sm:$0xff]
      %v2778 = vld [vmem:[%s7 + $0x1d8] sm:$0xff]
      %v2779 = vld [vmem:[%s7 + $0x1e0] sm:$0xff]
      %v2780 = vld [vmem:[%s7 + $0x1e8] sm:$0xff]
      %v2781 = vld [vmem:[%s7 + $0x1f0] sm:$0xff]
      %v2782 = vld [vmem:[%s7 + $0x1f8] sm:$0xff]
      %v2783 = vld [vmem:[%s7 + $0x200] sm:$0xff]
      %v2784 = vld [vmem:[%s7 + $0x208] sm:$0xff]
      %v2785 = vld [vmem:[%s7 + $0x210] sm:$0xff]
      %v2786 = vld [vmem:[%s7 + $0x218] sm:$0xff]
      %v2787 = vld [vmem:[%s7 + $0x220] sm:$0xff]
      %v2788 = vld [vmem:[%s7 + $0x228] sm:$0xff]
      %v2789 = vld [vmem:[%s7 + $0x230] sm:$0xff]
      %v2790 = vld [vmem:[%s7 + $0x238] sm:$0xff]
      %v2791 = vld [vmem:[%s7 + $0x240] sm:$0xff]
      %v2792 = vld [vmem:[%s7 + $0x248] sm:$0xff]
      %v2793 = vld [vmem:[%s7 + $0x250] sm:$0xff]
      %v2794 = vld [vmem:[%s7 + $0x258] sm:$0xff]
      %v2795 = vld [vmem:[%s7 + $0x260] sm:$0xff]
      %v2796 = vld [vmem:[%s7 + $0x268] sm:$0xff]
      %v2797 = vld [vmem:[%s7 + $0x270] sm:$0xff]
      %v2798 = vld [vmem:[%s7 + $0x278] sm:$0xff]
      %v2799 = vld [vmem:[%s7 + $0x280] sm:$0xff]
      %v2800 = vld [vmem:[%s7 + $0x288] sm:$0xff]
      %v2801 = vld [vmem:[%s7 + $0x290] sm:$0xff]
      %v2802 = vld [vmem:[%s7 + $0x298] sm:$0xff]
      %v2803 = vld [vmem:[%s7 + $0x2a0] sm:$0xff]
      %v2804 = vld [vmem:[%s7 + $0x2a8] sm:$0xff]
      %v2805 = vld [vmem:[%s7 + $0x2b0] sm:$0xff]
      %v2806 = vld [vmem:[%s7 + $0x2b8] sm:$0xff]
      %v2807 = vld [vmem:[%s7 + $0x2c0] sm:$0xff]
      %v2808 = vld [vmem:[%s7 + $0x2c8] sm:$0xff]
      %v2809 = vld [vmem:[%s7 + $0x2d0] sm:$0xff]
      %v2810 = vld [vmem:[%s7 + $0x2d8] sm:$0xff]
      %v2811 = vld [vmem:[%s7 + $0x2e0] sm:$0xff]
      %v2812 = vld [vmem:[%s7 + $0x2e8] sm:$0xff]
      %v2813 = vld [vmem:[%s7 + $0x2f0] sm:$0xff]
      %v2814 = vld [vmem:[%s7 + $0x2f8] sm:$0xff]
      %v2815 = vld [vmem:[%s7 + $0x300] sm:$0xff]
      %v2816 = vld [vmem:[%s7 + $0x308] sm:$0xff]
      %v2817 = vld [vmem:[%s7 + $0x310] sm:$0xff]
      %v2818 = vld [vmem:[%s7 + $0x318] sm:$0xff]
      %v2819 = vld [vmem:[%s7 + $0x320] sm:$0xff]
      %v2820 = vld [vmem:[%s7 + $0x328] sm:$0xff]
      %v2821 = vld [vmem:[%s7 + $0x330] sm:$0xff]
      %v2822 = vld [vmem:[%s7 + $0x338] sm:$0xff]
      %v2823 = vld [vmem:[%s7 + $0x340] sm:$0xff]
      %v2824 = vld [vmem:[%s7 + $0x348] sm:$0xff]
      %v2825 = vld [vmem:[%s7 + $0x350] sm:$0xff]
      %v2826 = vld [vmem:[%s7 + $0x358] sm:$0xff]
      %v2827 = vld [vmem:[%s7 + $0x360] sm:$0xff]
      %v2828 = vld [vmem:[%s7 + $0x368] sm:$0xff]
      %v2829 = vld [vmem:[%s7 + $0x370] sm:$0xff]
      %v2830 = vld [vmem:[%s7 + $0x378] sm:$0xff]
      %v2831 = vld [vmem:[%s7 + $0x380] sm:$0xff]
      %v2832 = vld [vmem:[%s7 + $0x388] sm:$0xff]
      %v2833 = vld [vmem:[%s7 + $0x390] sm:$0xff]
      %v2834 = vld [vmem:[%s7 + $0x398] sm:$0xff]
      %v2835 = vld [vmem:[%s7 + $0x3a0] sm:$0xff]
      %v2836 = vld [vmem:[%s7 + $0x3a8] sm:$0xff]
      %v2837 = vld [vmem:[%s7 + $0x3b0] sm:$0xff]
      %v2838 = vld [vmem:[%s7 + $0x3b8] sm:$0xff]
      %v2839 = vld [vmem:[%s7 + $0x3c0] sm:$0xff]
      %v2840 = vld [vmem:[%s7 + $0x3c8] sm:$0xff]
      %v2841 = vld [vmem:[%s7 + $0x3d0] sm:$0xff]
      %v2842 = vld [vmem:[%s7 + $0x3d8] sm:$0xff]
      %v2843 = vld [vmem:[%s7 + $0x3e0] sm:$0xff]
      %v2844 = vld [vmem:[%s7 + $0x3e8] sm:$0xff]
      %v2845 = vld [vmem:[%s7 + $0x3f0] sm:$0xff]
      %v2846 = vld [vmem:[%s7 + $0x3f8] sm:$0xff]
      %v2847 = vld [vmem:[%s7 + $0x400] sm:$0xff]
      %v2848 = vld [vmem:[%s7 + $0x408] sm:$0xff]
      %v2849 = vld [vmem:[%s7 + $0x410] sm:$0xff]
      %v2850 = vld [vmem:[%s7 + $0x418] sm:$0xff]
      %v2851 = vld [vmem:[%s7 + $0x420] sm:$0xff]
      %v2852 = vld [vmem:[%s7 + $0x428] sm:$0xff]
      %v2853 = vld [vmem:[%s7 + $0x430] sm:$0xff]
      %v2854 = vld [vmem:[%s7 + $0x438] sm:$0xff]
      %v2855 = vld [vmem:[%s7 + $0x440] sm:$0xff]
      %v2856 = vld [vmem:[%s7 + $0x448] sm:$0xff]
      %v2857 = vld [vmem:[%s7 + $0x450] sm:$0xff]
      %v2858 = vld [vmem:[%s7 + $0x458] sm:$0xff]
      %v2859 = vld [vmem:[%s7 + $0x460] sm:$0xff]
      %v2860 = vld [vmem:[%s7 + $0x468] sm:$0xff]
      %v2861 = vld [vmem:[%s7 + $0x470] sm:$0xff]
      %v2862 = vld [vmem:[%s7 + $0x478] sm:$0xff]
      %v2863 = vld [vmem:[%s8] sm:$0x1]
      %v2865 = vlaneseq
      %v2866 = vshrl.u32 %v2865, 7
      %v2867 = vsub.s32 0, %v2866
      %v2868 = vrot.slane %v2863, %v2867
      %2870 = vmatprep.subr.mxu0 0.0
      %2871 = vmatpush1.msra.mxu0 %v2734
      %2872 = vmatprep.subr.mxu0 0.0
      %2873 = vmatpush1.msra.mxu0 %v2733
      %2874 = vmatprep.subr.mxu0 0.0
      %2875 = vmatpush1.msra.mxu0 %v2732
      %2876 = vmatprep.subr.mxu0 0.0
      %2877 = vmatpush1.msra.mxu0 %v2731
      %2878 = vmatprep.subr.mxu0 0.0
      %2879 = vmatpush1.msra.mxu0 %v2730
      %2880 = vmatprep.subr.mxu0 0.0
      %2881 = vmatpush1.msra.mxu0 %v2729
      %2882 = vmatprep.subr.mxu0 0.0
      %2883 = vmatpush1.msra.mxu0 %v2728
      %2884 = vmatprep.subr.mxu0 0.0
      %2885 = vmatpush1.msra.mxu0 %v2727
      %2886 = vmatprep.subr.mxu0 0.0
      %2887 = vmatpush1.msra.mxu0 %v2726
      %2888 = vmatprep.subr.mxu0 0.0
      %2889 = vmatpush1.msra.mxu0 %v2725
      %2890 = vmatprep.subr.mxu0 0.0
      %2891 = vmatpush1.msra.mxu0 %v2724
      %2892 = vmatprep.subr.mxu0 0.0
      %2893 = vmatpush1.msra.mxu0 %v2723
      %2894 = vmatprep.subr.mxu0 0.0
      %2895 = vmatpush1.msra.mxu0 %v2722
      %2896 = vmatprep.subr.mxu0 0.0
      %2897 = vmatpush1.msra.mxu0 %v2721
      %2898 = vmatprep.subr.mxu0 0.0
      %2899 = vmatpush1.msra.mxu0 %v2720
      %2900 = vmatprep.subr.mxu0 0.0
      %2901 = vmatpush1.msra.mxu0 %v2719
      %2902 = vmatprep.subr.mxu0 0.0
      %2903 = vmatpush2.msra.mxu0 %v2750
      %2904 = vmatprep.subr.mxu0 0.0
      %2905 = vmatpush2.msra.mxu0 %v2749
      %2906 = vmatprep.subr.mxu0 0.0
      %2907 = vmatpush2.msra.mxu0 %v2748
      %2908 = vmatprep.subr.mxu0 0.0
      %2909 = vmatpush2.msra.mxu0 %v2747
      %2910 = vmatprep.subr.mxu0 0.0
      %2911 = vmatpush2.msra.mxu0 %v2746
      %2912 = vmatprep.subr.mxu0 0.0
      %2913 = vmatpush2.msra.mxu0 %v2745
      %2914 = vmatprep.subr.mxu0 0.0
      %2915 = vmatpush2.msra.mxu0 %v2744
      %2916 = vmatprep.subr.mxu0 0.0
      %2917 = vmatpush2.msra.mxu0 %v2743
      %2918 = vmatprep.subr.mxu0 0.0
      %2919 = vmatpush2.msra.mxu0 %v2742
      %2920 = vmatprep.subr.mxu0 0.0
      %2921 = vmatpush2.msra.mxu0 %v2741
      %2922 = vmatprep.subr.mxu0 0.0
      %2923 = vmatpush2.msra.mxu0 %v2740
      %2924 = vmatprep.subr.mxu0 0.0
      %2925 = vmatpush2.msra.mxu0 %v2739
      %2926 = vmatprep.subr.mxu0 0.0
      %2927 = vmatpush2.msra.mxu0 %v2738
      %2928 = vmatprep.subr.mxu0 0.0
      %2929 = vmatpush2.msra.mxu0 %v2737
      %2930 = vmatprep.subr.mxu0 0.0
      %2931 = vmatpush2.msra.mxu0 %v2736
      %2932 = vmatprep.subr.mxu0 0.0
      %2933 = vmatpush2.msra.mxu0 %v2735
      %2934 = vmatprep.mubr.f32.mxu0 %v2657
      %2935 = vmatmul.mubr.f32.gmra.mxu0 %v2656
      %v2936 = vpop.f32.mrf.mxu0
      %v2937 = vadd.f32 %v2868, %v2936
      %v2938 = vpop.f32.mrf.mxu0
      %2939 = vmatprep.mubr.f32.mxu0 %v2666
      %2940 = vmatmul.mubr.f32.gmra.mxu0 %v2665
      %v2941 = vpop.f32.mrf.mxu0
      %v2942 = vadd.f32 %v2868, %v2941
      %v2943 = vpop.f32.mrf.mxu0
      %2944 = vmatprep.mubr.f32.mxu0 %v2675
      %2945 = vmatmul.mubr.f32.gmra.mxu0 %v2674
      %v2946 = vpop.f32.mrf.mxu0
      %v2947 = vadd.f32 %v2868, %v2946
      %v2948 = vpop.f32.mrf.mxu0
      %2949 = vmatprep.mubr.f32.mxu0 %v2684
      %2950 = vmatmul.mubr.f32.gmra.mxu0 %v2683
      %v2951 = vpop.f32.mrf.mxu0
      %v2952 = vadd.f32 %v2868, %v2951
      %v2953 = vpop.f32.mrf.mxu0
      %2954 = vmatprep.mubr.f32.mxu0 %v2693
      %2955 = vmatmul.mubr.f32.gmra.mxu0 %v2692
      %v2956 = vpop.f32.mrf.mxu0
      %v2957 = vadd.f32 %v2868, %v2956
      %v2958 = vpop.f32.mrf.mxu0
      %2959 = vmatprep.mubr.f32.mxu0 %v2702
      %2960 = vmatmul.mubr.f32.gmra.mxu0 %v2701
      %v2961 = vpop.f32.mrf.mxu0
      %v2962 = vadd.f32 %v2868, %v2961
      %v2963 = vpop.f32.mrf.mxu0
      %2964 = vmatprep.mubr.f32.mxu0 %v2711
      %2965 = vmatmul.mubr.f32.gmra.mxu0 %v2710
      %v2966 = vpop.f32.mrf.mxu0
      %v2967 = vadd.f32 %v2868, %v2966
      %v2968 = vpop.f32.mrf.mxu0
      %2969 = vdwg.mxu0
      %2970 = vmatprep.subr.mxu0 0.0
      %2971 = vmatpush1.msra.mxu0 %v2766
      %2972 = vmatprep.subr.mxu0 0.0
      %2973 = vmatpush1.msra.mxu0 %v2765
      %2974 = vmatprep.subr.mxu0 0.0
      %2975 = vmatpush1.msra.mxu0 %v2764
      %2976 = vmatprep.subr.mxu0 0.0
      %2977 = vmatpush1.msra.mxu0 %v2763
      %2978 = vmatprep.subr.mxu0 0.0
      %2979 = vmatpush1.msra.mxu0 %v2762
      %2980 = vmatprep.subr.mxu0 0.0
      %2981 = vmatpush1.msra.mxu0 %v2761
      %2982 = vmatprep.subr.mxu0 0.0
      %2983 = vmatpush1.msra.mxu0 %v2760
      %2984 = vmatprep.subr.mxu0 0.0
      %2985 = vmatpush1.msra.mxu0 %v2759
      %2986 = vmatprep.subr.mxu0 0.0
      %2987 = vmatpush1.msra.mxu0 %v2758
      %2988 = vmatprep.subr.mxu0 0.0
      %2989 = vmatpush1.msra.mxu0 %v2757
      %2990 = vmatprep.subr.mxu0 0.0
      %2991 = vmatpush1.msra.mxu0 %v2756
      %2992 = vmatprep.subr.mxu0 0.0
      %2993 = vmatpush1.msra.mxu0 %v2755
      %2994 = vmatprep.subr.mxu0 0.0
      %2995 = vmatpush1.msra.mxu0 %v2754
      %2996 = vmatprep.subr.mxu0 0.0
      %2997 = vmatpush1.msra.mxu0 %v2753
      %2998 = vmatprep.subr.mxu0 0.0
      %2999 = vmatpush1.msra.mxu0 %v2752
      %3000 = vmatprep.subr.mxu0 0.0
      %3001 = vmatpush1.msra.mxu0 %v2751
      %3002 = vmatprep.subr.mxu0 0.0
      %3003 = vmatpush2.msra.mxu0 %v2782
      %3004 = vmatprep.subr.mxu0 0.0
      %3005 = vmatpush2.msra.mxu0 %v2781
      %3006 = vmatprep.subr.mxu0 0.0
      %3007 = vmatpush2.msra.mxu0 %v2780
      %3008 = vmatprep.subr.mxu0 0.0
      %3009 = vmatpush2.msra.mxu0 %v2779
      %3010 = vmatprep.subr.mxu0 0.0
      %3011 = vmatpush2.msra.mxu0 %v2778
      %3012 = vmatprep.subr.mxu0 0.0
      %3013 = vmatpush2.msra.mxu0 %v2777
      %3014 = vmatprep.subr.mxu0 0.0
      %3015 = vmatpush2.msra.mxu0 %v2776
      %3016 = vmatprep.subr.mxu0 0.0
      %3017 = vmatpush2.msra.mxu0 %v2775
      %3018 = vmatprep.subr.mxu0 0.0
      %3019 = vmatpush2.msra.mxu0 %v2774
      %3020 = vmatprep.subr.mxu0 0.0
      %3021 = vmatpush2.msra.mxu0 %v2773
      %3022 = vmatprep.subr.mxu0 0.0
      %3023 = vmatpush2.msra.mxu0 %v2772
      %3024 = vmatprep.subr.mxu0 0.0
      %3025 = vmatpush2.msra.mxu0 %v2771
      %3026 = vmatprep.subr.mxu0 0.0
      %3027 = vmatpush2.msra.mxu0 %v2770
      %3028 = vmatprep.subr.mxu0 0.0
      %3029 = vmatpush2.msra.mxu0 %v2769
      %3030 = vmatprep.subr.mxu0 0.0
      %3031 = vmatpush2.msra.mxu0 %v2768
      %3032 = vmatprep.subr.mxu0 0.0
      %3033 = vmatpush2.msra.mxu0 %v2767
      %3034 = vmatprep.mubr.f32.mxu0 %v2659
      %3035 = vmatmul.mubr.f32.gmra.mxu0 %v2658
      %v3036 = vpop.f32.mrf.mxu0
      %v3037 = vadd.f32 %v2937, %v3036
      %v3038 = vpop.f32.mrf.mxu0
      %3039 = vmatprep.mubr.f32.mxu0 %v2668
      %3040 = vmatmul.mubr.f32.gmra.mxu0 %v2667
      %v3041 = vpop.f32.mrf.mxu0
      %v3042 = vadd.f32 %v2942, %v3041
      %v3043 = vpop.f32.mrf.mxu0
      %3044 = vmatprep.mubr.f32.mxu0 %v2677
      %3045 = vmatmul.mubr.f32.gmra.mxu0 %v2676
      %v3046 = vpop.f32.mrf.mxu0
      %v3047 = vadd.f32 %v2947, %v3046
      %v3048 = vpop.f32.mrf.mxu0
      %3049 = vmatprep.mubr.f32.mxu0 %v2686
      %3050 = vmatmul.mubr.f32.gmra.mxu0 %v2685
      %v3051 = vpop.f32.mrf.mxu0
      %v3052 = vadd.f32 %v2952, %v3051
      %v3053 = vpop.f32.mrf.mxu0
      %3054 = vmatprep.mubr.f32.mxu0 %v2695
      %3055 = vmatmul.mubr.f32.gmra.mxu0 %v2694
      %v3056 = vpop.f32.mrf.mxu0
      %v3057 = vadd.f32 %v2957, %v3056
      %v3058 = vpop.f32.mrf.mxu0
      %3059 = vmatprep.mubr.f32.mxu0 %v2704
      %3060 = vmatmul.mubr.f32.gmra.mxu0 %v2703
      %v3061 = vpop.f32.mrf.mxu0
      %v3062 = vadd.f32 %v2962, %v3061
      %v3063 = vpop.f32.mrf.mxu0
      %3064 = vmatprep.mubr.f32.mxu0 %v2713
      %3065 = vmatmul.mubr.f32.gmra.mxu0 %v2712
      %v3066 = vpop.f32.mrf.mxu0
      %v3067 = vadd.f32 %v2967, %v3066
      %v3068 = vpop.f32.mrf.mxu0
      %3069 = vdwg.mxu0
      %3070 = vmatprep.subr.mxu0 0.0
      %3071 = vmatpush1.msra.mxu0 %v2798
      %3072 = vmatprep.subr.mxu0 0.0
      %3073 = vmatpush1.msra.mxu0 %v2797
      %3074 = vmatprep.subr.mxu0 0.0
      %3075 = vmatpush1.msra.mxu0 %v2796
      %3076 = vmatprep.subr.mxu0 0.0
      %3077 = vmatpush1.msra.mxu0 %v2795
      %3078 = vmatprep.subr.mxu0 0.0
      %3079 = vmatpush1.msra.mxu0 %v2794
      %3080 = vmatprep.subr.mxu0 0.0
      %3081 = vmatpush1.msra.mxu0 %v2793
      %3082 = vmatprep.subr.mxu0 0.0
      %3083 = vmatpush1.msra.mxu0 %v2792
      %3084 = vmatprep.subr.mxu0 0.0
      %3085 = vmatpush1.msra.mxu0 %v2791
      %3086 = vmatprep.subr.mxu0 0.0
      %3087 = vmatpush1.msra.mxu0 %v2790
      %3088 = vmatprep.subr.mxu0 0.0
      %3089 = vmatpush1.msra.mxu0 %v2789
      %3090 = vmatprep.subr.mxu0 0.0
      %3091 = vmatpush1.msra.mxu0 %v2788
      %3092 = vmatprep.subr.mxu0 0.0
      %3093 = vmatpush1.msra.mxu0 %v2787
      %3094 = vmatprep.subr.mxu0 0.0
      %3095 = vmatpush1.msra.mxu0 %v2786
      %3096 = vmatprep.subr.mxu0 0.0
      %3097 = vmatpush1.msra.mxu0 %v2785
      %3098 = vmatprep.subr.mxu0 0.0
      %3099 = vmatpush1.msra.mxu0 %v2784
      %3100 = vmatprep.subr.mxu0 0.0
      %3101 = vmatpush1.msra.mxu0 %v2783
      %3102 = vmatprep.subr.mxu0 0.0
      %3103 = vmatpush2.msra.mxu0 %v2814
      %3104 = vmatprep.subr.mxu0 0.0
      %3105 = vmatpush2.msra.mxu0 %v2813
      %3106 = vmatprep.subr.mxu0 0.0
      %3107 = vmatpush2.msra.mxu0 %v2812
      %3108 = vmatprep.subr.mxu0 0.0
      %3109 = vmatpush2.msra.mxu0 %v2811
      %3110 = vmatprep.subr.mxu0 0.0
      %3111 = vmatpush2.msra.mxu0 %v2810
      %3112 = vmatprep.subr.mxu0 0.0
      %3113 = vmatpush2.msra.mxu0 %v2809
      %3114 = vmatprep.subr.mxu0 0.0
      %3115 = vmatpush2.msra.mxu0 %v2808
      %3116 = vmatprep.subr.mxu0 0.0
      %3117 = vmatpush2.msra.mxu0 %v2807
      %3118 = vmatprep.subr.mxu0 0.0
      %3119 = vmatpush2.msra.mxu0 %v2806
      %3120 = vmatprep.subr.mxu0 0.0
      %3121 = vmatpush2.msra.mxu0 %v2805
      %3122 = vmatprep.subr.mxu0 0.0
      %3123 = vmatpush2.msra.mxu0 %v2804
      %3124 = vmatprep.subr.mxu0 0.0
      %3125 = vmatpush2.msra.mxu0 %v2803
      %3126 = vmatprep.subr.mxu0 0.0
      %3127 = vmatpush2.msra.mxu0 %v2802
      %3128 = vmatprep.subr.mxu0 0.0
      %3129 = vmatpush2.msra.mxu0 %v2801
      %3130 = vmatprep.subr.mxu0 0.0
      %3131 = vmatpush2.msra.mxu0 %v2800
      %3132 = vmatprep.subr.mxu0 0.0
      %3133 = vmatpush2.msra.mxu0 %v2799
      %3134 = vmatprep.mubr.f32.mxu0 %v2661
      %3135 = vmatmul.mubr.f32.gmra.mxu0 %v2660
      %v3136 = vpop.f32.mrf.mxu0
      %v3137 = vadd.f32 %v3037, %v3136
      %v3138 = vpop.f32.mrf.mxu0
      %3139 = vmatprep.mubr.f32.mxu0 %v2670
      %3140 = vmatmul.mubr.f32.gmra.mxu0 %v2669
      %v3141 = vpop.f32.mrf.mxu0
      %v3142 = vadd.f32 %v3042, %v3141
      %v3143 = vpop.f32.mrf.mxu0
      %3144 = vmatprep.mubr.f32.mxu0 %v2679
      %3145 = vmatmul.mubr.f32.gmra.mxu0 %v2678
      %v3146 = vpop.f32.mrf.mxu0
      %v3147 = vadd.f32 %v3047, %v3146
      %v3148 = vpop.f32.mrf.mxu0
      %3149 = vmatprep.mubr.f32.mxu0 %v2688
      %3150 = vmatmul.mubr.f32.gmra.mxu0 %v2687
      %v3151 = vpop.f32.mrf.mxu0
      %v3152 = vadd.f32 %v3052, %v3151
      %v3153 = vpop.f32.mrf.mxu0
      %3154 = vmatprep.mubr.f32.mxu0 %v2697
      %3155 = vmatmul.mubr.f32.gmra.mxu0 %v2696
      %v3156 = vpop.f32.mrf.mxu0
      %v3157 = vadd.f32 %v3057, %v3156
      %v3158 = vpop.f32.mrf.mxu0
      %3159 = vmatprep.mubr.f32.mxu0 %v2706
      %3160 = vmatmul.mubr.f32.gmra.mxu0 %v2705
      %v3161 = vpop.f32.mrf.mxu0
      %v3162 = vadd.f32 %v3062, %v3161
      %v3163 = vpop.f32.mrf.mxu0
      %3164 = vmatprep.mubr.f32.mxu0 %v2715
      %3165 = vmatmul.mubr.f32.gmra.mxu0 %v2714
      %v3166 = vpop.f32.mrf.mxu0
      %v3167 = vadd.f32 %v3067, %v3166
      %v3168 = vpop.f32.mrf.mxu0
      %3169 = vdwg.mxu0
      %3170 = vmatprep.subr.mxu0 0.0
      %3171 = vmatpush1.msra.mxu0 %v2830
      %3172 = vmatprep.subr.mxu0 0.0
      %3173 = vmatpush1.msra.mxu0 %v2829
      %3174 = vmatprep.subr.mxu0 0.0
      %3175 = vmatpush1.msra.mxu0 %v2828
      %3176 = vmatprep.subr.mxu0 0.0
      %3177 = vmatpush1.msra.mxu0 %v2827
      %3178 = vmatprep.subr.mxu0 0.0
      %3179 = vmatpush1.msra.mxu0 %v2826
      %3180 = vmatprep.subr.mxu0 0.0
      %3181 = vmatpush1.msra.mxu0 %v2825
      %3182 = vmatprep.subr.mxu0 0.0
      %3183 = vmatpush1.msra.mxu0 %v2824
      %3184 = vmatprep.subr.mxu0 0.0
      %3185 = vmatpush1.msra.mxu0 %v2823
      %3186 = vmatprep.subr.mxu0 0.0
      %3187 = vmatpush1.msra.mxu0 %v2822
      %3188 = vmatprep.subr.mxu0 0.0
      %3189 = vmatpush1.msra.mxu0 %v2821
      %3190 = vmatprep.subr.mxu0 0.0
      %3191 = vmatpush1.msra.mxu0 %v2820
      %3192 = vmatprep.subr.mxu0 0.0
      %3193 = vmatpush1.msra.mxu0 %v2819
      %3194 = vmatprep.subr.mxu0 0.0
      %3195 = vmatpush1.msra.mxu0 %v2818
      %3196 = vmatprep.subr.mxu0 0.0
      %3197 = vmatpush1.msra.mxu0 %v2817
      %3198 = vmatprep.subr.mxu0 0.0
      %3199 = vmatpush1.msra.mxu0 %v2816
      %3200 = vmatprep.subr.mxu0 0.0
      %3201 = vmatpush1.msra.mxu0 %v2815
      %3202 = vmatprep.subr.mxu0 0.0
      %3203 = vmatpush2.msra.mxu0 %v2846
      %3204 = vmatprep.subr.mxu0 0.0
      %3205 = vmatpush2.msra.mxu0 %v2845
      %3206 = vmatprep.subr.mxu0 0.0
      %3207 = vmatpush2.msra.mxu0 %v2844
      %3208 = vmatprep.subr.mxu0 0.0
      %3209 = vmatpush2.msra.mxu0 %v2843
      %3210 = vmatprep.subr.mxu0 0.0
      %3211 = vmatpush2.msra.mxu0 %v2842
      %3212 = vmatprep.subr.mxu0 0.0
      %3213 = vmatpush2.msra.mxu0 %v2841
      %3214 = vmatprep.subr.mxu0 0.0
      %3215 = vmatpush2.msra.mxu0 %v2840
      %3216 = vmatprep.subr.mxu0 0.0
      %3217 = vmatpush2.msra.mxu0 %v2839
      %3218 = vmatprep.subr.mxu0 0.0
      %3219 = vmatpush2.msra.mxu0 %v2838
      %3220 = vmatprep.subr.mxu0 0.0
      %3221 = vmatpush2.msra.mxu0 %v2837
      %3222 = vmatprep.subr.mxu0 0.0
      %3223 = vmatpush2.msra.mxu0 %v2836
      %3224 = vmatprep.subr.mxu0 0.0
      %3225 = vmatpush2.msra.mxu0 %v2835
      %3226 = vmatprep.subr.mxu0 0.0
      %3227 = vmatpush2.msra.mxu0 %v2834
      %3228 = vmatprep.subr.mxu0 0.0
      %3229 = vmatpush2.msra.mxu0 %v2833
      %3230 = vmatprep.subr.mxu0 0.0
      %3231 = vmatpush2.msra.mxu0 %v2832
      %3232 = vmatprep.subr.mxu0 0.0
      %3233 = vmatpush2.msra.mxu0 %v2831
      %3234 = vmatprep.mubr.f32.mxu0 %v2663
      %3235 = vmatmul.mubr.f32.gmra.mxu0 %v2662
      %v3236 = vpop.f32.mrf.mxu0
      %v3237 = vadd.f32 %v3137, %v3236
      %v3238 = vpop.f32.mrf.mxu0
      %3239 = vmatprep.mubr.f32.mxu0 %v2672
      %3240 = vmatmul.mubr.f32.gmra.mxu0 %v2671
      %v3241 = vpop.f32.mrf.mxu0
      %v3242 = vadd.f32 %v3142, %v3241
      %v3243 = vpop.f32.mrf.mxu0
      %3244 = vmatprep.mubr.f32.mxu0 %v2681
      %3245 = vmatmul.mubr.f32.gmra.mxu0 %v2680
      %v3246 = vpop.f32.mrf.mxu0
      %v3247 = vadd.f32 %v3147, %v3246
      %v3248 = vpop.f32.mrf.mxu0
      %3249 = vmatprep.mubr.f32.mxu0 %v2690
      %3250 = vmatmul.mubr.f32.gmra.mxu0 %v2689
      %v3251 = vpop.f32.mrf.mxu0
      %v3252 = vadd.f32 %v3152, %v3251
      %v3253 = vpop.f32.mrf.mxu0
      %3254 = vmatprep.mubr.f32.mxu0 %v2699
      %3255 = vmatmul.mubr.f32.gmra.mxu0 %v2698
      %v3256 = vpop.f32.mrf.mxu0
      %v3257 = vadd.f32 %v3157, %v3256
      %v3258 = vpop.f32.mrf.mxu0
      %3259 = vmatprep.mubr.f32.mxu0 %v2708
      %3260 = vmatmul.mubr.f32.gmra.mxu0 %v2707
      %v3261 = vpop.f32.mrf.mxu0
      %v3262 = vadd.f32 %v3162, %v3261
      %v3263 = vpop.f32.mrf.mxu0
      %3264 = vmatprep.mubr.f32.mxu0 %v2717
      %3265 = vmatmul.mubr.f32.gmra.mxu0 %v2716
      %v3266 = vpop.f32.mrf.mxu0
      %v3267 = vadd.f32 %v3167, %v3266
      %v3268 = vpop.f32.mrf.mxu0
      %3269 = vdwg.mxu0
      %3270 = vmatprep.subr.mxu0 0.0
      %3271 = vmatpush1.msra.mxu0 %v2862
      %3272 = vmatprep.subr.mxu0 0.0
      %3273 = vmatpush1.msra.mxu0 %v2861
      %3274 = vmatprep.subr.mxu0 0.0
      %3275 = vmatpush1.msra.mxu0 %v2860
      %3276 = vmatprep.subr.mxu0 0.0
      %3277 = vmatpush1.msra.mxu0 %v2859
      %3278 = vmatprep.subr.mxu0 0.0
      %3279 = vmatpush1.msra.mxu0 %v2858
      %3280 = vmatprep.subr.mxu0 0.0
      %3281 = vmatpush1.msra.mxu0 %v2857
      %3282 = vmatprep.subr.mxu0 0.0
      %3283 = vmatpush1.msra.mxu0 %v2856
      %3284 = vmatprep.subr.mxu0 0.0
      %3285 = vmatpush1.msra.mxu0 %v2855
      %3286 = vmatprep.subr.mxu0 0.0
      %3287 = vmatpush1.msra.mxu0 %v2854
      %3288 = vmatprep.subr.mxu0 0.0
      %3289 = vmatpush1.msra.mxu0 %v2853
      %3290 = vmatprep.subr.mxu0 0.0
      %3291 = vmatpush1.msra.mxu0 %v2852
      %3292 = vmatprep.subr.mxu0 0.0
      %3293 = vmatpush1.msra.mxu0 %v2851
      %3294 = vmatprep.subr.mxu0 0.0
      %3295 = vmatpush1.msra.mxu0 %v2850
      %3296 = vmatprep.subr.mxu0 0.0
      %3297 = vmatpush1.msra.mxu0 %v2849
      %3298 = vmatprep.subr.mxu0 0.0
      %3299 = vmatpush1.msra.mxu0 %v2848
      %3300 = vmatprep.subr.mxu0 0.0
      %3301 = vmatpush1.msra.mxu0 %v2847
      %3302 = vmatprep.subr.mxu0 0.0
      %3303 = vmatpush2.msra.mxu0 0.0
      %3304 = vmatprep.subr.mxu0 0.0
      %3305 = vmatpush2.msra.mxu0 0.0
      %3306 = vmatprep.subr.mxu0 0.0
      %3307 = vmatpush2.msra.mxu0 0.0
      %3308 = vmatprep.subr.mxu0 0.0
      %3309 = vmatpush2.msra.mxu0 0.0
      %3310 = vmatprep.subr.mxu0 0.0
      %3311 = vmatpush2.msra.mxu0 0.0
      %3312 = vmatprep.subr.mxu0 0.0
      %3313 = vmatpush2.msra.mxu0 0.0
      %3314 = vmatprep.subr.mxu0 0.0
      %3315 = vmatpush2.msra.mxu0 0.0
      %3316 = vmatprep.subr.mxu0 0.0
      %3317 = vmatpush2.msra.mxu0 0.0
      %3318 = vmatprep.subr.mxu0 0.0
      %3319 = vmatpush2.msra.mxu0 0.0
      %3320 = vmatprep.subr.mxu0 0.0
      %3321 = vmatpush2.msra.mxu0 0.0
      %3322 = vmatprep.subr.mxu0 0.0
      %3323 = vmatpush2.msra.mxu0 0.0
      %3324 = vmatprep.subr.mxu0 0.0
      %3325 = vmatpush2.msra.mxu0 0.0
      %3326 = vmatprep.subr.mxu0 0.0
      %3327 = vmatpush2.msra.mxu0 0.0
      %3328 = vmatprep.subr.mxu0 0.0
      %3329 = vmatpush2.msra.mxu0 0.0
      %3330 = vmatprep.subr.mxu0 0.0
      %3331 = vmatpush2.msra.mxu0 0.0
      %3332 = vmatprep.subr.mxu0 0.0
      %3333 = vmatpush2.msra.mxu0 0.0
      %3334 = vmatprep.mubr.f32.mxu0 0.0
      %3335 = vmatmul.mubr.f32.gmra.mxu0 %v2664
      %v3336 = vpop.f32.mrf.mxu0
      %v3337 = vadd.f32 %v3237, %v3336
      %v3338 = vpop.f32.mrf.mxu0
      %3339 = vmatprep.mubr.f32.mxu0 0.0
      %3340 = vmatmul.mubr.f32.gmra.mxu0 %v2673
      %v3341 = vpop.f32.mrf.mxu0
      %v3342 = vadd.f32 %v3242, %v3341
      %v3343 = vpop.f32.mrf.mxu0
      %3344 = vmatprep.mubr.f32.mxu0 0.0
      %3345 = vmatmul.mubr.f32.gmra.mxu0 %v2682
      %v3346 = vpop.f32.mrf.mxu0
      %v3347 = vadd.f32 %v3247, %v3346
      %v3348 = vpop.f32.mrf.mxu0
      %3349 = vmatprep.mubr.f32.mxu0 0.0
      %3350 = vmatmul.mubr.f32.gmra.mxu0 %v2691
      %v3351 = vpop.f32.mrf.mxu0
      %v3352 = vadd.f32 %v3252, %v3351
      %v3353 = vpop.f32.mrf.mxu0
      %3354 = vmatprep.mubr.f32.mxu0 0.0
      %3355 = vmatmul.mubr.f32.gmra.mxu0 %v2700
      %v3356 = vpop.f32.mrf.mxu0
      %v3357 = vadd.f32 %v3257, %v3356
      %v3358 = vpop.f32.mrf.mxu0
      %3359 = vmatprep.mubr.f32.mxu0 0.0
      %3360 = vmatmul.mubr.f32.gmra.mxu0 %v2709
      %v3361 = vpop.f32.mrf.mxu0
      %v3362 = vadd.f32 %v3262, %v3361
      %v3363 = vpop.f32.mrf.mxu0
      %3364 = vmatprep.mubr.f32.mxu0 0.0
      %3365 = vmatmul.mubr.f32.gmra.mxu0 %v2718
      %v3366 = vpop.f32.mrf.mxu0
      %v3367 = vadd.f32 %v3267, %v3366
      %v3368 = vpop.f32.mrf.mxu0
      %3369 = vdwg.mxu0
      %v3370 = vmax.f32 %v3337, 0.0
      %v3371 = vmax.f32 %v3342, 0.0
      %v3372 = vmax.f32 %v3347, 0.0
      %v3373 = vmax.f32 %v3352, 0.0
      %v3374 = vmax.f32 %v3357, 0.0
      %v3375 = vmax.f32 %v3362, 0.0
      %v3376 = vmax.f32 %v3367, 0.0
      %3377 = vst [vmem:[%s655] sm:$0xff] %v3370
      %3378 = vst [vmem:[%s655 + $0x8] sm:$0xff] %v3371
      %3379 = vst [vmem:[%s655 + $0x10] sm:$0xff] %v3372
      %3380 = vst [vmem:[%s655 + $0x18] sm:$0xff] %v3373
      %3381 = vst [vmem:[%s655 + $0x20] sm:$0xff] %v3374
      %3382 = vst [vmem:[%s655 + $0x28] sm:$0xff] %v3375
      %3383 = vst [vmem:[%s655 + $0x30] sm:$0xff] %v3376
      %v3384 = vld [vmem:[%s9] sm:$0xff]
      %v3385 = vld [vmem:[%s9 + $0x8] sm:$0xff]
      %v3386 = vld [vmem:[%s9 + $0x10] sm:$0xff]
      %v3387 = vld [vmem:[%s9 + $0x18] sm:$0xff]
      %v3388 = vld [vmem:[%s9 + $0x20] sm:$0xff]
      %v3389 = vld [vmem:[%s9 + $0x28] sm:$0xff]
      %v3390 = vld [vmem:[%s9 + $0x30] sm:$0xff]
      %v3391 = vld [vmem:[%s9 + $0x38] sm:$0xff]
      %v3392 = vld [vmem:[%s9 + $0x40] sm:$0xff]
      %v3393 = vld [vmem:[%s9 + $0x48] sm:$0xff]
      %v3394 = vld [vmem:[%s9 + $0x50] sm:$0xff]
      %v3395 = vld [vmem:[%s9 + $0x58] sm:$0xff]
      %v3396 = vld [vmem:[%s9 + $0x60] sm:$0xff]
      %v3397 = vld [vmem:[%s9 + $0x68] sm:$0xff]
      %v3398 = vld [vmem:[%s9 + $0x70] sm:$0xff]
      %v3399 = vld [vmem:[%s9 + $0x78] sm:$0xff]
      %v3400 = vld [vmem:[%s10] sm:$0x1]
      %v3402 = vlaneseq
      %v3403 = vshrl.u32 %v3402, 7
      %v3404 = vsub.s32 0, %v3403
      %v3405 = vrot.slane %v3400, %v3404
      %3407 = vmatprep.subr.mxu0 0.0
      %3408 = vmatpush1.msra.mxu0 %v3399
      %3409 = vmatprep.subr.mxu0 0.0
      %3410 = vmatpush1.msra.mxu0 %v3398
      %3411 = vmatprep.subr.mxu0 0.0
      %3412 = vmatpush1.msra.mxu0 %v3397
      %3413 = vmatprep.subr.mxu0 0.0
      %3414 = vmatpush1.msra.mxu0 %v3396
      %3415 = vmatprep.subr.mxu0 0.0
      %3416 = vmatpush1.msra.mxu0 %v3395
      %3417 = vmatprep.subr.mxu0 0.0
      %3418 = vmatpush1.msra.mxu0 %v3394
      %3419 = vmatprep.subr.mxu0 0.0
      %3420 = vmatpush1.msra.mxu0 %v3393
      %3421 = vmatprep.subr.mxu0 0.0
      %3422 = vmatpush1.msra.mxu0 %v3392
      %3423 = vmatprep.subr.mxu0 0.0
      %3424 = vmatpush1.msra.mxu0 %v3391
      %3425 = vmatprep.subr.mxu0 0.0
      %3426 = vmatpush1.msra.mxu0 %v3390
      %3427 = vmatprep.subr.mxu0 0.0
      %3428 = vmatpush1.msra.mxu0 %v3389
      %3429 = vmatprep.subr.mxu0 0.0
      %3430 = vmatpush1.msra.mxu0 %v3388
      %3431 = vmatprep.subr.mxu0 0.0
      %3432 = vmatpush1.msra.mxu0 %v3387
      %3433 = vmatprep.subr.mxu0 0.0
      %3434 = vmatpush1.msra.mxu0 %v3386
      %3435 = vmatprep.subr.mxu0 0.0
      %3436 = vmatpush1.msra.mxu0 %v3385
      %3437 = vmatprep.subr.mxu0 0.0
      %3438 = vmatpush1.msra.mxu0 %v3384
      %3439 = vmatprep.subr.mxu0 0.0
      %3440 = vmatpush2.msra.mxu0 0.0
      %3441 = vmatprep.subr.mxu0 0.0
      %3442 = vmatpush2.msra.mxu0 0.0
      %3443 = vmatprep.subr.mxu0 0.0
      %3444 = vmatpush2.msra.mxu0 0.0
      %3445 = vmatprep.subr.mxu0 0.0
      %3446 = vmatpush2.msra.mxu0 0.0
      %3447 = vmatprep.subr.mxu0 0.0
      %3448 = vmatpush2.msra.mxu0 0.0
      %3449 = vmatprep.subr.mxu0 0.0
      %3450 = vmatpush2.msra.mxu0 0.0
      %3451 = vmatprep.subr.mxu0 0.0
      %3452 = vmatpush2.msra.mxu0 0.0
      %3453 = vmatprep.subr.mxu0 0.0
      %3454 = vmatpush2.msra.mxu0 0.0
      %3455 = vmatprep.subr.mxu0 0.0
      %3456 = vmatpush2.msra.mxu0 0.0
      %3457 = vmatprep.subr.mxu0 0.0
      %3458 = vmatpush2.msra.mxu0 0.0
      %3459 = vmatprep.subr.mxu0 0.0
      %3460 = vmatpush2.msra.mxu0 0.0
      %3461 = vmatprep.subr.mxu0 0.0
      %3462 = vmatpush2.msra.mxu0 0.0
      %3463 = vmatprep.subr.mxu0 0.0
      %3464 = vmatpush2.msra.mxu0 0.0
      %3465 = vmatprep.subr.mxu0 0.0
      %3466 = vmatpush2.msra.mxu0 0.0
      %3467 = vmatprep.subr.mxu0 0.0
      %3468 = vmatpush2.msra.mxu0 0.0
      %3469 = vmatprep.subr.mxu0 0.0
      %3470 = vmatpush2.msra.mxu0 0.0
      %3471 = vmatprep.mubr.f32.mxu0 0.0
      %3472 = vmatmul.mubr.f32.gmra.mxu0 %v3370
      %v3473 = vpop.f32.mrf.mxu0
      %v3474 = vadd.f32 %v3405, %v3473
      %v3475 = vpop.f32.mrf.mxu0
      %3476 = vmatprep.mubr.f32.mxu0 0.0
      %3477 = vmatmul.mubr.f32.gmra.mxu0 %v3371
      %v3478 = vpop.f32.mrf.mxu0
      %v3479 = vadd.f32 %v3405, %v3478
      %v3480 = vpop.f32.mrf.mxu0
      %3481 = vmatprep.mubr.f32.mxu0 0.0
      %3482 = vmatmul.mubr.f32.gmra.mxu0 %v3372
      %v3483 = vpop.f32.mrf.mxu0
      %v3484 = vadd.f32 %v3405, %v3483
      %v3485 = vpop.f32.mrf.mxu0
      %3486 = vmatprep.mubr.f32.mxu0 0.0
      %3487 = vmatmul.mubr.f32.gmra.mxu0 %v3373
      %v3488 = vpop.f32.mrf.mxu0
      %v3489 = vadd.f32 %v3405, %v3488
      %v3490 = vpop.f32.mrf.mxu0
      %3491 = vmatprep.mubr.f32.mxu0 0.0
      %3492 = vmatmul.mubr.f32.gmra.mxu0 %v3374
      %v3493 = vpop.f32.mrf.mxu0
      %v3494 = vadd.f32 %v3405, %v3493
      %v3495 = vpop.f32.mrf.mxu0
      %3496 = vmatprep.mubr.f32.mxu0 0.0
      %3497 = vmatmul.mubr.f32.gmra.mxu0 %v3375
      %v3498 = vpop.f32.mrf.mxu0
      %v3499 = vadd.f32 %v3405, %v3498
      %v3500 = vpop.f32.mrf.mxu0
      %3501 = vmatprep.mubr.f32.mxu0 0.0
      %3502 = vmatmul.mubr.f32.gmra.mxu0 %v3376
      %v3503 = vpop.f32.mrf.mxu0
      %v3504 = vadd.f32 %v3405, %v3503
      %v3505 = vpop.f32.mrf.mxu0
      %3506 = vdwg.mxu0
      %v3507 = vmax.f32 %v3474, 0.0
      %v3508 = vmax.f32 %v3479, 0.0
      %v3509 = vmax.f32 %v3484, 0.0
      %v3510 = vmax.f32 %v3489, 0.0
      %v3511 = vmax.f32 %v3494, 0.0
      %v3512 = vmax.f32 %v3499, 0.0
      %v3513 = vmax.f32 %v3504, 0.0
      %3514 = vst [vmem:[#allocation6] sm:$0xff] %v3507
      %3515 = vst [vmem:[#allocation6 + $0x8] sm:$0xff] %v3508
      %3516 = vst [vmem:[#allocation6 + $0x10] sm:$0xff] %v3509
      %3517 = vst [vmem:[#allocation6 + $0x18] sm:$0xff] %v3510
      %3518 = vst [vmem:[#allocation6 + $0x20] sm:$0xff] %v3511
      %3519 = vst [vmem:[#allocation6 + $0x28] sm:$0xff] %v3512
      %3520 = vst [vmem:[#allocation6 + $0x30] sm:$0xff] %v3513
      %3521 = vst [vmem:[#allocation7] sm:$0xff] 0.0
      %3522 = vst [vmem:[#allocation7 + $0x8] sm:$0xff] 0.0
      %3523 = vst [vmem:[#allocation7 + $0x10] sm:$0xff] 0.0
      %3524 = vst [vmem:[#allocation7 + $0x18] sm:$0xff] 0.0
      %3525 = vst [vmem:[#allocation7 + $0x20] sm:$0xff] 0.0
      %3526 = vst [vmem:[#allocation7 + $0x28] sm:$0xff] 0.0
      %3527 = vst [vmem:[#allocation7 + $0x30] sm:$0xff] 0.0
      %3528 = vst [vmem:[#allocation7 + $0x38] sm:$0xff] 0.0
      %3529 = vst [vmem:[#allocation7 + $0x40] sm:$0xff] 0.0
      %3530 = vst [vmem:[#allocation7 + $0x48] sm:$0xff] 0.0
      %3531 = vst [vmem:[#allocation7 + $0x50] sm:$0xff] 0.0
      %3532 = vst [vmem:[#allocation7 + $0x58] sm:$0xff] 0.0
      %3533 = vst [vmem:[#allocation7 + $0x60] sm:$0xff] 0.0
      %3534 = vst [vmem:[#allocation7 + $0x68] sm:$0xff] 0.0
      %3535 = vst [vmem:[#allocation7 + $0x70] sm:$0xff] 0.0
      %3536 = vst [vmem:[#allocation7 + $0x78] sm:$0xff] 0.0
      %3537 = vst [vmem:[#allocation7 + $0x80] sm:$0xff] 0.0
      %3538 = vst [vmem:[#allocation7 + $0x88] sm:$0xff] 0.0
      %v3539 = vld [vmem:[#allocation6] ss:$2 sm:$0x7]
      %3540 = vst [vmem:[#allocation7] sm:$0x7] %v3539
      %s3541 = scalar_lea.vmem [#allocation6], 1
      %v3542 = vld [vmem:[%s3541] ss:$2 sm:$0x7]
      %3543 = vst [vmem:[#allocation7 + $0x8] sm:$0x7] %v3542
      %s3544 = scalar_lea.vmem [#allocation6], 2
      %v3545 = vld [vmem:[%s3544] ss:$2 sm:$0x7]
      %3546 = vst [vmem:[#allocation7 + $0x10] sm:$0x7] %v3545
      %s3547 = scalar_lea.vmem [#allocation6], 7
      %v3548 = vld [vmem:[%s3547] ss:$2 sm:$0x7]
      %3549 = vst [vmem:[#allocation7 + $0x18] sm:$0x7] %v3548
      %s3550 = scalar_lea.vmem [#allocation6], 8
      %v3551 = vld [vmem:[%s3550] ss:$2 sm:$0x7]
      %3552 = vst [vmem:[#allocation7 + $0x20] sm:$0x7] %v3551
      %s3553 = scalar_lea.vmem [#allocation6], 9
      %v3554 = vld [vmem:[%s3553] ss:$2 sm:$0x7]
      %3555 = vst [vmem:[#allocation7 + $0x28] sm:$0x7] %v3554
      %s3556 = scalar_lea.vmem [#allocation6], 14
      %v3557 = vld [vmem:[%s3556] ss:$2 sm:$0x7]
      %3558 = vst [vmem:[#allocation7 + $0x30] sm:$0x7] %v3557
      %s3559 = scalar_lea.vmem [#allocation6], 15
      %v3560 = vld [vmem:[%s3559] ss:$2 sm:$0x7]
      %3561 = vst [vmem:[#allocation7 + $0x38] sm:$0x7] %v3560
      %s3562 = scalar_lea.vmem [#allocation6], 16
      %v3563 = vld [vmem:[%s3562] ss:$2 sm:$0x7]
      %3564 = vst [vmem:[#allocation7 + $0x40] sm:$0x7] %v3563
      %v3565 = vld [vmem:[%s3556] ss:$2 sm:$0x7]
      %v3567 = vrot.slane %v3565, 5
      %3569 = vst [vmem:[#allocation7] sm:$0x38] %v3567
      %v3570 = vld [vmem:[%s3559] ss:$2 sm:$0x7]
      %v3572 = vrot.slane %v3570, 5
      %3574 = vst [vmem:[#allocation7 + $0x8] sm:$0x38] %v3572
      %v3575 = vld [vmem:[%s3562] ss:$2 sm:$0x7]
      %v3577 = vrot.slane %v3575, 5
      %3579 = vst [vmem:[#allocation7 + $0x10] sm:$0x38] %v3577
      %s3580 = scalar_lea.vmem [#allocation6], 21
      %v3581 = vld [vmem:[%s3580] ss:$2 sm:$0x7]
      %v3583 = vrot.slane %v3581, 5
      %3585 = vst [vmem:[#allocation7 + $0x18] sm:$0x38] %v3583
      %s3586 = scalar_lea.vmem [#allocation6], 22
      %v3587 = vld [vmem:[%s3586] ss:$2 sm:$0x7]
      %v3589 = vrot.slane %v3587, 5
      %3591 = vst [vmem:[#allocation7 + $0x20] sm:$0x38] %v3589
      %s3592 = scalar_lea.vmem [#allocation6], 23
      %v3593 = vld [vmem:[%s3592] ss:$2 sm:$0x7]
      %v3595 = vrot.slane %v3593, 5
      %3597 = vst [vmem:[#allocation7 + $0x28] sm:$0x38] %v3595
      %s3598 = scalar_lea.vmem [#allocation6], 28
      %v3599 = vld [vmem:[%s3598] ss:$2 sm:$0x7]
      %v3601 = vrot.slane %v3599, 5
      %3603 = vst [vmem:[#allocation7 + $0x30] sm:$0x38] %v3601
      %s3604 = scalar_lea.vmem [#allocation6], 29
      %v3605 = vld [vmem:[%s3604] ss:$2 sm:$0x7]
      %v3607 = vrot.slane %v3605, 5
      %3609 = vst [vmem:[#allocation7 + $0x38] sm:$0x38] %v3607
      %s3610 = scalar_lea.vmem [#allocation6], 30
      %v3611 = vld [vmem:[%s3610] ss:$2 sm:$0x7]
      %v3613 = vrot.slane %v3611, 5
      %3615 = vst [vmem:[#allocation7 + $0x40] sm:$0x38] %v3613
      %v3616 = vld [vmem:[%s3598] ss:$2 sm:$0x7]
      %v3618 = vrot.slane %v3616, 2
      %3620 = vst [vmem:[#allocation7] sm:$0xc0] %v3618
      %3621 = vst [vmem:[#allocation7 + $0x48] sm:$0x1] %v3618
      %v3622 = vld [vmem:[%s3604] ss:$2 sm:$0x7]
      %v3624 = vrot.slane %v3622, 2
      %3626 = vst [vmem:[#allocation7 + $0x8] sm:$0xc0] %v3624
      %3627 = vst [vmem:[#allocation7 + $0x50] sm:$0x1] %v3624
      %v3628 = vld [vmem:[%s3610] ss:$2 sm:$0x7]
      %v3630 = vrot.slane %v3628, 2
      %3632 = vst [vmem:[#allocation7 + $0x10] sm:$0xc0] %v3630
      %3633 = vst [vmem:[#allocation7 + $0x58] sm:$0x1] %v3630
      %s3634 = scalar_lea.vmem [#allocation6], 35
      %v3635 = vld [vmem:[%s3634] ss:$2 sm:$0x7]
      %v3637 = vrot.slane %v3635, 2
      %3639 = vst [vmem:[#allocation7 + $0x18] sm:$0xc0] %v3637
      %3640 = vst [vmem:[#allocation7 + $0x60] sm:$0x1] %v3637
      %s3641 = scalar_lea.vmem [#allocation6], 36
      %v3642 = vld [vmem:[%s3641] ss:$2 sm:$0x7]
      %v3644 = vrot.slane %v3642, 2
      %3646 = vst [vmem:[#allocation7 + $0x20] sm:$0xc0] %v3644
      %3647 = vst [vmem:[#allocation7 + $0x68] sm:$0x1] %v3644
      %s3648 = scalar_lea.vmem [#allocation6], 37
      %v3649 = vld [vmem:[%s3648] ss:$2 sm:$0x7]
      %v3651 = vrot.slane %v3649, 2
      %3653 = vst [vmem:[#allocation7 + $0x28] sm:$0xc0] %v3651
      %3654 = vst [vmem:[#allocation7 + $0x70] sm:$0x1] %v3651
      %s3655 = scalar_lea.vmem [#allocation6], 42
      %v3656 = vld [vmem:[%s3655] ss:$2 sm:$0x7]
      %v3658 = vrot.slane %v3656, 2
      %3660 = vst [vmem:[#allocation7 + $0x30] sm:$0xc0] %v3658
      %3661 = vst [vmem:[#allocation7 + $0x78] sm:$0x1] %v3658
      %s3662 = scalar_lea.vmem [#allocation6], 43
      %v3663 = vld [vmem:[%s3662] ss:$2 sm:$0x7]
      %v3665 = vrot.slane %v3663, 2
      %3667 = vst [vmem:[#allocation7 + $0x38] sm:$0xc0] %v3665
      %3668 = vst [vmem:[#allocation7 + $0x80] sm:$0x1] %v3665
      %s3669 = scalar_lea.vmem [#allocation6], 44
      %v3670 = vld [vmem:[%s3669] ss:$2 sm:$0x7]
      %v3672 = vrot.slane %v3670, 2
      %3674 = vst [vmem:[#allocation7 + $0x40] sm:$0xc0] %v3672
      %3675 = vst [vmem:[#allocation7 + $0x88] sm:$0x1] %v3672
      %v3676 = vld [vmem:[#allocation7] sm:$0xff]
      %v3677 = vld [vmem:[#allocation7 + $0x8] sm:$0xff]
      %v3678 = vld [vmem:[#allocation7 + $0x10] sm:$0xff]
      %v3679 = vld [vmem:[#allocation7 + $0x18] sm:$0xff]
      %v3680 = vld [vmem:[#allocation7 + $0x20] sm:$0xff]
      %v3681 = vld [vmem:[#allocation7 + $0x28] sm:$0xff]
      %v3682 = vld [vmem:[#allocation7 + $0x30] sm:$0xff]
      %v3683 = vld [vmem:[#allocation7 + $0x38] sm:$0xff]
      %v3684 = vld [vmem:[#allocation7 + $0x40] sm:$0xff]
      %v3685 = vld [vmem:[#allocation7 + $0x48] sm:$0xff]
      %v3686 = vld [vmem:[#allocation7 + $0x50] sm:$0xff]
      %v3687 = vld [vmem:[#allocation7 + $0x58] sm:$0xff]
      %v3688 = vld [vmem:[#allocation7 + $0x60] sm:$0xff]
      %v3689 = vld [vmem:[#allocation7 + $0x68] sm:$0xff]
      %v3690 = vld [vmem:[#allocation7 + $0x70] sm:$0xff]
      %v3691 = vld [vmem:[#allocation7 + $0x78] sm:$0xff]
      %v3692 = vld [vmem:[#allocation7 + $0x80] sm:$0xff]
      %v3693 = vld [vmem:[#allocation7 + $0x88] sm:$0xff]
      %v3694 = vld [vmem:[%s11] sm:$0xff]
      %v3695 = vld [vmem:[%s11 + $0x8] sm:$0xff]
      %v3696 = vld [vmem:[%s11 + $0x10] sm:$0xff]
      %v3697 = vld [vmem:[%s11 + $0x18] sm:$0xff]
      %v3698 = vld [vmem:[%s11 + $0x20] sm:$0xff]
      %v3699 = vld [vmem:[%s11 + $0x28] sm:$0xff]
      %v3700 = vld [vmem:[%s11 + $0x30] sm:$0xff]
      %v3701 = vld [vmem:[%s11 + $0x38] sm:$0xff]
      %v3702 = vld [vmem:[%s11 + $0x40] sm:$0xff]
      %v3703 = vld [vmem:[%s11 + $0x48] sm:$0xff]
      %v3704 = vld [vmem:[%s11 + $0x50] sm:$0xff]
      %v3705 = vld [vmem:[%s11 + $0x58] sm:$0xff]
      %v3706 = vld [vmem:[%s11 + $0x60] sm:$0xff]
      %v3707 = vld [vmem:[%s11 + $0x68] sm:$0xff]
      %v3708 = vld [vmem:[%s11 + $0x70] sm:$0xff]
      %v3709 = vld [vmem:[%s11 + $0x78] sm:$0xff]
      %v3710 = vld [vmem:[%s11 + $0x80] sm:$0xff]
      %v3711 = vld [vmem:[%s11 + $0x88] sm:$0xff]
      %v3712 = vld [vmem:[%s11 + $0x90] sm:$0xff]
      %v3713 = vld [vmem:[%s11 + $0x98] sm:$0xff]
      %v3714 = vld [vmem:[%s11 + $0xa0] sm:$0xff]
      %v3715 = vld [vmem:[%s11 + $0xa8] sm:$0xff]
      %v3716 = vld [vmem:[%s11 + $0xb0] sm:$0xff]
      %v3717 = vld [vmem:[%s11 + $0xb8] sm:$0xff]
      %v3718 = vld [vmem:[%s11 + $0xc0] sm:$0xff]
      %v3719 = vld [vmem:[%s11 + $0xc8] sm:$0xff]
      %v3720 = vld [vmem:[%s11 + $0xd0] sm:$0xff]
      %v3721 = vld [vmem:[%s11 + $0xd8] sm:$0xff]
      %v3722 = vld [vmem:[%s11 + $0xe0] sm:$0xff]
      %v3723 = vld [vmem:[%s11 + $0xe8] sm:$0xff]
      %v3724 = vld [vmem:[%s11 + $0xf0] sm:$0xff]
      %v3725 = vld [vmem:[%s11 + $0xf8] sm:$0xff]
      %v3726 = vld [vmem:[%s11 + $0x100] sm:$0xff]
      %v3727 = vld [vmem:[%s11 + $0x108] sm:$0xff]
      %v3728 = vld [vmem:[%s11 + $0x110] sm:$0xff]
      %v3729 = vld [vmem:[%s11 + $0x118] sm:$0xff]
      %v3730 = vld [vmem:[%s11 + $0x120] sm:$0xff]
      %v3731 = vld [vmem:[%s11 + $0x128] sm:$0xff]
      %v3732 = vld [vmem:[%s11 + $0x130] sm:$0xff]
      %v3733 = vld [vmem:[%s11 + $0x138] sm:$0xff]
      %v3734 = vld [vmem:[%s11 + $0x140] sm:$0xff]
      %v3735 = vld [vmem:[%s11 + $0x148] sm:$0xff]
      %v3736 = vld [vmem:[%s11 + $0x150] sm:$0xff]
      %v3737 = vld [vmem:[%s11 + $0x158] sm:$0xff]
      %v3738 = vld [vmem:[%s11 + $0x160] sm:$0xff]
      %v3739 = vld [vmem:[%s11 + $0x168] sm:$0xff]
      %v3740 = vld [vmem:[%s11 + $0x170] sm:$0xff]
      %v3741 = vld [vmem:[%s11 + $0x178] sm:$0xff]
      %v3742 = vld [vmem:[%s11 + $0x180] sm:$0xff]
      %v3743 = vld [vmem:[%s11 + $0x188] sm:$0xff]
      %v3744 = vld [vmem:[%s11 + $0x190] sm:$0xff]
      %v3745 = vld [vmem:[%s11 + $0x198] sm:$0xff]
      %v3746 = vld [vmem:[%s11 + $0x1a0] sm:$0xff]
      %v3747 = vld [vmem:[%s11 + $0x1a8] sm:$0xff]
      %v3748 = vld [vmem:[%s11 + $0x1b0] sm:$0xff]
      %v3749 = vld [vmem:[%s11 + $0x1b8] sm:$0xff]
      %v3750 = vld [vmem:[%s11 + $0x1c0] sm:$0xff]
      %v3751 = vld [vmem:[%s11 + $0x1c8] sm:$0xff]
      %v3752 = vld [vmem:[%s11 + $0x1d0] sm:$0xff]
      %v3753 = vld [vmem:[%s11 + $0x1d8] sm:$0xff]
      %v3754 = vld [vmem:[%s11 + $0x1e0] sm:$0xff]
      %v3755 = vld [vmem:[%s11 + $0x1e8] sm:$0xff]
      %v3756 = vld [vmem:[%s11 + $0x1f0] sm:$0xff]
      %v3757 = vld [vmem:[%s11 + $0x1f8] sm:$0xff]
      %v3758 = vld [vmem:[%s11 + $0x200] sm:$0xff]
      %v3759 = vld [vmem:[%s11 + $0x208] sm:$0xff]
      %v3760 = vld [vmem:[%s11 + $0x210] sm:$0xff]
      %v3761 = vld [vmem:[%s11 + $0x218] sm:$0xff]
      %v3762 = vld [vmem:[%s11 + $0x220] sm:$0xff]
      %v3763 = vld [vmem:[%s11 + $0x228] sm:$0xff]
      %v3764 = vld [vmem:[%s11 + $0x230] sm:$0xff]
      %v3765 = vld [vmem:[%s11 + $0x238] sm:$0xff]
      %v3766 = vld [vmem:[%s11 + $0x240] sm:$0xff]
      %v3767 = vld [vmem:[%s11 + $0x248] sm:$0xff]
      %v3768 = vld [vmem:[%s11 + $0x250] sm:$0xff]
      %v3769 = vld [vmem:[%s11 + $0x258] sm:$0xff]
      %v3770 = vld [vmem:[%s11 + $0x260] sm:$0xff]
      %v3771 = vld [vmem:[%s11 + $0x268] sm:$0xff]
      %v3772 = vld [vmem:[%s11 + $0x270] sm:$0xff]
      %v3773 = vld [vmem:[%s11 + $0x278] sm:$0xff]
      %v3774 = vld [vmem:[%s11 + $0x280] sm:$0xff]
      %v3775 = vld [vmem:[%s11 + $0x288] sm:$0xff]
      %v3776 = vld [vmem:[%s11 + $0x290] sm:$0xff]
      %v3777 = vld [vmem:[%s11 + $0x298] sm:$0xff]
      %v3778 = vld [vmem:[%s11 + $0x2a0] sm:$0xff]
      %v3779 = vld [vmem:[%s11 + $0x2a8] sm:$0xff]
      %v3780 = vld [vmem:[%s11 + $0x2b0] sm:$0xff]
      %v3781 = vld [vmem:[%s11 + $0x2b8] sm:$0xff]
      %v3782 = vld [vmem:[%s11 + $0x2c0] sm:$0xff]
      %v3783 = vld [vmem:[%s11 + $0x2c8] sm:$0xff]
      %v3784 = vld [vmem:[%s11 + $0x2d0] sm:$0xff]
      %v3785 = vld [vmem:[%s11 + $0x2d8] sm:$0xff]
      %v3786 = vld [vmem:[%s11 + $0x2e0] sm:$0xff]
      %v3787 = vld [vmem:[%s11 + $0x2e8] sm:$0xff]
      %v3788 = vld [vmem:[%s11 + $0x2f0] sm:$0xff]
      %v3789 = vld [vmem:[%s11 + $0x2f8] sm:$0xff]
      %v3790 = vld [vmem:[%s11 + $0x300] sm:$0xff]
      %v3791 = vld [vmem:[%s11 + $0x308] sm:$0xff]
      %v3792 = vld [vmem:[%s11 + $0x310] sm:$0xff]
      %v3793 = vld [vmem:[%s11 + $0x318] sm:$0xff]
      %v3794 = vld [vmem:[%s11 + $0x320] sm:$0xff]
      %v3795 = vld [vmem:[%s11 + $0x328] sm:$0xff]
      %v3796 = vld [vmem:[%s11 + $0x330] sm:$0xff]
      %v3797 = vld [vmem:[%s11 + $0x338] sm:$0xff]
      %v3798 = vld [vmem:[%s11 + $0x340] sm:$0xff]
      %v3799 = vld [vmem:[%s11 + $0x348] sm:$0xff]
      %v3800 = vld [vmem:[%s11 + $0x350] sm:$0xff]
      %v3801 = vld [vmem:[%s11 + $0x358] sm:$0xff]
      %v3802 = vld [vmem:[%s11 + $0x360] sm:$0xff]
      %v3803 = vld [vmem:[%s11 + $0x368] sm:$0xff]
      %v3804 = vld [vmem:[%s11 + $0x370] sm:$0xff]
      %v3805 = vld [vmem:[%s11 + $0x378] sm:$0xff]
      %v3806 = vld [vmem:[%s11 + $0x380] sm:$0xff]
      %v3807 = vld [vmem:[%s11 + $0x388] sm:$0xff]
      %v3808 = vld [vmem:[%s11 + $0x390] sm:$0xff]
      %v3809 = vld [vmem:[%s11 + $0x398] sm:$0xff]
      %v3810 = vld [vmem:[%s11 + $0x3a0] sm:$0xff]
      %v3811 = vld [vmem:[%s11 + $0x3a8] sm:$0xff]
      %v3812 = vld [vmem:[%s11 + $0x3b0] sm:$0xff]
      %v3813 = vld [vmem:[%s11 + $0x3b8] sm:$0xff]
      %v3814 = vld [vmem:[%s11 + $0x3c0] sm:$0xff]
      %v3815 = vld [vmem:[%s11 + $0x3c8] sm:$0xff]
      %v3816 = vld [vmem:[%s11 + $0x3d0] sm:$0xff]
      %v3817 = vld [vmem:[%s11 + $0x3d8] sm:$0xff]
      %v3818 = vld [vmem:[%s11 + $0x3e0] sm:$0xff]
      %v3819 = vld [vmem:[%s11 + $0x3e8] sm:$0xff]
      %v3820 = vld [vmem:[%s11 + $0x3f0] sm:$0xff]
      %v3821 = vld [vmem:[%s11 + $0x3f8] sm:$0xff]
      %v3822 = vld [vmem:[%s11 + $0x400] sm:$0xff]
      %v3823 = vld [vmem:[%s11 + $0x408] sm:$0xff]
      %v3824 = vld [vmem:[%s11 + $0x410] sm:$0xff]
      %v3825 = vld [vmem:[%s11 + $0x418] sm:$0xff]
      %v3826 = vld [vmem:[%s11 + $0x420] sm:$0xff]
      %v3827 = vld [vmem:[%s11 + $0x428] sm:$0xff]
      %v3828 = vld [vmem:[%s11 + $0x430] sm:$0xff]
      %v3829 = vld [vmem:[%s11 + $0x438] sm:$0xff]
      %v3830 = vld [vmem:[%s11 + $0x440] sm:$0xff]
      %v3831 = vld [vmem:[%s11 + $0x448] sm:$0xff]
      %v3832 = vld [vmem:[%s11 + $0x450] sm:$0xff]
      %v3833 = vld [vmem:[%s11 + $0x458] sm:$0xff]
      %v3834 = vld [vmem:[%s11 + $0x460] sm:$0xff]
      %v3835 = vld [vmem:[%s11 + $0x468] sm:$0xff]
      %v3836 = vld [vmem:[%s11 + $0x470] sm:$0xff]
      %v3837 = vld [vmem:[%s11 + $0x478] sm:$0xff]
      %v3838 = vld [vmem:[%s12] sm:$0x1]
      %v3840 = vlaneseq
      %v3841 = vshrl.u32 %v3840, 7
      %v3842 = vsub.s32 0, %v3841
      %v3843 = vrot.slane %v3838, %v3842
      %3845 = vmatprep.subr.mxu0 0.0
      %3846 = vmatpush1.msra.mxu0 %v3709
      %3847 = vmatprep.subr.mxu0 0.0
      %3848 = vmatpush1.msra.mxu0 %v3708
      %3849 = vmatprep.subr.mxu0 0.0
      %3850 = vmatpush1.msra.mxu0 %v3707
      %3851 = vmatprep.subr.mxu0 0.0
      %3852 = vmatpush1.msra.mxu0 %v3706
      %3853 = vmatprep.subr.mxu0 0.0
      %3854 = vmatpush1.msra.mxu0 %v3705
      %3855 = vmatprep.subr.mxu0 0.0
      %3856 = vmatpush1.msra.mxu0 %v3704
      %3857 = vmatprep.subr.mxu0 0.0
      %3858 = vmatpush1.msra.mxu0 %v3703
      %3859 = vmatprep.subr.mxu0 0.0
      %3860 = vmatpush1.msra.mxu0 %v3702
      %3861 = vmatprep.subr.mxu0 0.0
      %3862 = vmatpush1.msra.mxu0 %v3701
      %3863 = vmatprep.subr.mxu0 0.0
      %3864 = vmatpush1.msra.mxu0 %v3700
      %3865 = vmatprep.subr.mxu0 0.0
      %3866 = vmatpush1.msra.mxu0 %v3699
      %3867 = vmatprep.subr.mxu0 0.0
      %3868 = vmatpush1.msra.mxu0 %v3698
      %3869 = vmatprep.subr.mxu0 0.0
      %3870 = vmatpush1.msra.mxu0 %v3697
      %3871 = vmatprep.subr.mxu0 0.0
      %3872 = vmatpush1.msra.mxu0 %v3696
      %3873 = vmatprep.subr.mxu0 0.0
      %3874 = vmatpush1.msra.mxu0 %v3695
      %3875 = vmatprep.subr.mxu0 0.0
      %3876 = vmatpush1.msra.mxu0 %v3694
      %3877 = vmatprep.subr.mxu0 0.0
      %3878 = vmatpush2.msra.mxu0 %v3725
      %3879 = vmatprep.subr.mxu0 0.0
      %3880 = vmatpush2.msra.mxu0 %v3724
      %3881 = vmatprep.subr.mxu0 0.0
      %3882 = vmatpush2.msra.mxu0 %v3723
      %3883 = vmatprep.subr.mxu0 0.0
      %3884 = vmatpush2.msra.mxu0 %v3722
      %3885 = vmatprep.subr.mxu0 0.0
      %3886 = vmatpush2.msra.mxu0 %v3721
      %3887 = vmatprep.subr.mxu0 0.0
      %3888 = vmatpush2.msra.mxu0 %v3720
      %3889 = vmatprep.subr.mxu0 0.0
      %3890 = vmatpush2.msra.mxu0 %v3719
      %3891 = vmatprep.subr.mxu0 0.0
      %3892 = vmatpush2.msra.mxu0 %v3718
      %3893 = vmatprep.subr.mxu0 0.0
      %3894 = vmatpush2.msra.mxu0 %v3717
      %3895 = vmatprep.subr.mxu0 0.0
      %3896 = vmatpush2.msra.mxu0 %v3716
      %3897 = vmatprep.subr.mxu0 0.0
      %3898 = vmatpush2.msra.mxu0 %v3715
      %3899 = vmatprep.subr.mxu0 0.0
      %3900 = vmatpush2.msra.mxu0 %v3714
      %3901 = vmatprep.subr.mxu0 0.0
      %3902 = vmatpush2.msra.mxu0 %v3713
      %3903 = vmatprep.subr.mxu0 0.0
      %3904 = vmatpush2.msra.mxu0 %v3712
      %3905 = vmatprep.subr.mxu0 0.0
      %3906 = vmatpush2.msra.mxu0 %v3711
      %3907 = vmatprep.subr.mxu0 0.0
      %3908 = vmatpush2.msra.mxu0 %v3710
      %3909 = vmatprep.mubr.f32.mxu0 %v3677
      %3910 = vmatmul.mubr.f32.gmra.mxu0 %v3676
      %v3911 = vpop.f32.mrf.mxu0
      %v3912 = vadd.f32 %v3843, %v3911
      %v3913 = vpop.f32.mrf.mxu0
      %3914 = vmatprep.mubr.f32.mxu0 %v3686
      %3915 = vmatmul.mubr.f32.gmra.mxu0 %v3685
      %v3916 = vpop.f32.mrf.mxu0
      %v3917 = vadd.f32 %v3843, %v3916
      %v3918 = vpop.f32.mrf.mxu0
      %3919 = vdwg.mxu0
      %3920 = vmatprep.subr.mxu0 0.0
      %3921 = vmatpush1.msra.mxu0 %v3741
      %3922 = vmatprep.subr.mxu0 0.0
      %3923 = vmatpush1.msra.mxu0 %v3740
      %3924 = vmatprep.subr.mxu0 0.0
      %3925 = vmatpush1.msra.mxu0 %v3739
      %3926 = vmatprep.subr.mxu0 0.0
      %3927 = vmatpush1.msra.mxu0 %v3738
      %3928 = vmatprep.subr.mxu0 0.0
      %3929 = vmatpush1.msra.mxu0 %v3737
      %3930 = vmatprep.subr.mxu0 0.0
      %3931 = vmatpush1.msra.mxu0 %v3736
      %3932 = vmatprep.subr.mxu0 0.0
      %3933 = vmatpush1.msra.mxu0 %v3735
      %3934 = vmatprep.subr.mxu0 0.0
      %3935 = vmatpush1.msra.mxu0 %v3734
      %3936 = vmatprep.subr.mxu0 0.0
      %3937 = vmatpush1.msra.mxu0 %v3733
      %3938 = vmatprep.subr.mxu0 0.0
      %3939 = vmatpush1.msra.mxu0 %v3732
      %3940 = vmatprep.subr.mxu0 0.0
      %3941 = vmatpush1.msra.mxu0 %v3731
      %3942 = vmatprep.subr.mxu0 0.0
      %3943 = vmatpush1.msra.mxu0 %v3730
      %3944 = vmatprep.subr.mxu0 0.0
      %3945 = vmatpush1.msra.mxu0 %v3729
      %3946 = vmatprep.subr.mxu0 0.0
      %3947 = vmatpush1.msra.mxu0 %v3728
      %3948 = vmatprep.subr.mxu0 0.0
      %3949 = vmatpush1.msra.mxu0 %v3727
      %3950 = vmatprep.subr.mxu0 0.0
      %3951 = vmatpush1.msra.mxu0 %v3726
      %3952 = vmatprep.subr.mxu0 0.0
      %3953 = vmatpush2.msra.mxu0 %v3757
      %3954 = vmatprep.subr.mxu0 0.0
      %3955 = vmatpush2.msra.mxu0 %v3756
      %3956 = vmatprep.subr.mxu0 0.0
      %3957 = vmatpush2.msra.mxu0 %v3755
      %3958 = vmatprep.subr.mxu0 0.0
      %3959 = vmatpush2.msra.mxu0 %v3754
      %3960 = vmatprep.subr.mxu0 0.0
      %3961 = vmatpush2.msra.mxu0 %v3753
      %3962 = vmatprep.subr.mxu0 0.0
      %3963 = vmatpush2.msra.mxu0 %v3752
      %3964 = vmatprep.subr.mxu0 0.0
      %3965 = vmatpush2.msra.mxu0 %v3751
      %3966 = vmatprep.subr.mxu0 0.0
      %3967 = vmatpush2.msra.mxu0 %v3750
      %3968 = vmatprep.subr.mxu0 0.0
      %3969 = vmatpush2.msra.mxu0 %v3749
      %3970 = vmatprep.subr.mxu0 0.0
      %3971 = vmatpush2.msra.mxu0 %v3748
      %3972 = vmatprep.subr.mxu0 0.0
      %3973 = vmatpush2.msra.mxu0 %v3747
      %3974 = vmatprep.subr.mxu0 0.0
      %3975 = vmatpush2.msra.mxu0 %v3746
      %3976 = vmatprep.subr.mxu0 0.0
      %3977 = vmatpush2.msra.mxu0 %v3745
      %3978 = vmatprep.subr.mxu0 0.0
      %3979 = vmatpush2.msra.mxu0 %v3744
      %3980 = vmatprep.subr.mxu0 0.0
      %3981 = vmatpush2.msra.mxu0 %v3743
      %3982 = vmatprep.subr.mxu0 0.0
      %3983 = vmatpush2.msra.mxu0 %v3742
      %3984 = vmatprep.mubr.f32.mxu0 %v3679
      %3985 = vmatmul.mubr.f32.gmra.mxu0 %v3678
      %v3986 = vpop.f32.mrf.mxu0
      %v3987 = vadd.f32 %v3912, %v3986
      %v3988 = vpop.f32.mrf.mxu0
      %3989 = vmatprep.mubr.f32.mxu0 %v3688
      %3990 = vmatmul.mubr.f32.gmra.mxu0 %v3687
      %v3991 = vpop.f32.mrf.mxu0
      %v3992 = vadd.f32 %v3917, %v3991
      %v3993 = vpop.f32.mrf.mxu0
      %3994 = vdwg.mxu0
      %3995 = vmatprep.subr.mxu0 0.0
      %3996 = vmatpush1.msra.mxu0 %v3773
      %3997 = vmatprep.subr.mxu0 0.0
      %3998 = vmatpush1.msra.mxu0 %v3772
      %3999 = vmatprep.subr.mxu0 0.0
      %4000 = vmatpush1.msra.mxu0 %v3771
      %4001 = vmatprep.subr.mxu0 0.0
      %4002 = vmatpush1.msra.mxu0 %v3770
      %4003 = vmatprep.subr.mxu0 0.0
      %4004 = vmatpush1.msra.mxu0 %v3769
      %4005 = vmatprep.subr.mxu0 0.0
      %4006 = vmatpush1.msra.mxu0 %v3768
      %4007 = vmatprep.subr.mxu0 0.0
      %4008 = vmatpush1.msra.mxu0 %v3767
      %4009 = vmatprep.subr.mxu0 0.0
      %4010 = vmatpush1.msra.mxu0 %v3766
      %4011 = vmatprep.subr.mxu0 0.0
      %4012 = vmatpush1.msra.mxu0 %v3765
      %4013 = vmatprep.subr.mxu0 0.0
      %4014 = vmatpush1.msra.mxu0 %v3764
      %4015 = vmatprep.subr.mxu0 0.0
      %4016 = vmatpush1.msra.mxu0 %v3763
      %4017 = vmatprep.subr.mxu0 0.0
      %4018 = vmatpush1.msra.mxu0 %v3762
      %4019 = vmatprep.subr.mxu0 0.0
      %4020 = vmatpush1.msra.mxu0 %v3761
      %4021 = vmatprep.subr.mxu0 0.0
      %4022 = vmatpush1.msra.mxu0 %v3760
      %4023 = vmatprep.subr.mxu0 0.0
      %4024 = vmatpush1.msra.mxu0 %v3759
      %4025 = vmatprep.subr.mxu0 0.0
      %4026 = vmatpush1.msra.mxu0 %v3758
      %4027 = vmatprep.subr.mxu0 0.0
      %4028 = vmatpush2.msra.mxu0 %v3789
      %4029 = vmatprep.subr.mxu0 0.0
      %4030 = vmatpush2.msra.mxu0 %v3788
      %4031 = vmatprep.subr.mxu0 0.0
      %4032 = vmatpush2.msra.mxu0 %v3787
      %4033 = vmatprep.subr.mxu0 0.0
      %4034 = vmatpush2.msra.mxu0 %v3786
      %4035 = vmatprep.subr.mxu0 0.0
      %4036 = vmatpush2.msra.mxu0 %v3785
      %4037 = vmatprep.subr.mxu0 0.0
      %4038 = vmatpush2.msra.mxu0 %v3784
      %4039 = vmatprep.subr.mxu0 0.0
      %4040 = vmatpush2.msra.mxu0 %v3783
      %4041 = vmatprep.subr.mxu0 0.0
      %4042 = vmatpush2.msra.mxu0 %v3782
      %4043 = vmatprep.subr.mxu0 0.0
      %4044 = vmatpush2.msra.mxu0 %v3781
      %4045 = vmatprep.subr.mxu0 0.0
      %4046 = vmatpush2.msra.mxu0 %v3780
      %4047 = vmatprep.subr.mxu0 0.0
      %4048 = vmatpush2.msra.mxu0 %v3779
      %4049 = vmatprep.subr.mxu0 0.0
      %4050 = vmatpush2.msra.mxu0 %v3778
      %4051 = vmatprep.subr.mxu0 0.0
      %4052 = vmatpush2.msra.mxu0 %v3777
      %4053 = vmatprep.subr.mxu0 0.0
      %4054 = vmatpush2.msra.mxu0 %v3776
      %4055 = vmatprep.subr.mxu0 0.0
      %4056 = vmatpush2.msra.mxu0 %v3775
      %4057 = vmatprep.subr.mxu0 0.0
      %4058 = vmatpush2.msra.mxu0 %v3774
      %4059 = vmatprep.mubr.f32.mxu0 %v3681
      %4060 = vmatmul.mubr.f32.gmra.mxu0 %v3680
      %v4061 = vpop.f32.mrf.mxu0
      %v4062 = vadd.f32 %v3987, %v4061
      %v4063 = vpop.f32.mrf.mxu0
      %4064 = vmatprep.mubr.f32.mxu0 %v3690
      %4065 = vmatmul.mubr.f32.gmra.mxu0 %v3689
      %v4066 = vpop.f32.mrf.mxu0
      %v4067 = vadd.f32 %v3992, %v4066
      %v4068 = vpop.f32.mrf.mxu0
      %4069 = vdwg.mxu0
      %4070 = vmatprep.subr.mxu0 0.0
      %4071 = vmatpush1.msra.mxu0 %v3805
      %4072 = vmatprep.subr.mxu0 0.0
      %4073 = vmatpush1.msra.mxu0 %v3804
      %4074 = vmatprep.subr.mxu0 0.0
      %4075 = vmatpush1.msra.mxu0 %v3803
      %4076 = vmatprep.subr.mxu0 0.0
      %4077 = vmatpush1.msra.mxu0 %v3802
      %4078 = vmatprep.subr.mxu0 0.0
      %4079 = vmatpush1.msra.mxu0 %v3801
      %4080 = vmatprep.subr.mxu0 0.0
      %4081 = vmatpush1.msra.mxu0 %v3800
      %4082 = vmatprep.subr.mxu0 0.0
      %4083 = vmatpush1.msra.mxu0 %v3799
      %4084 = vmatprep.subr.mxu0 0.0
      %4085 = vmatpush1.msra.mxu0 %v3798
      %4086 = vmatprep.subr.mxu0 0.0
      %4087 = vmatpush1.msra.mxu0 %v3797
      %4088 = vmatprep.subr.mxu0 0.0
      %4089 = vmatpush1.msra.mxu0 %v3796
      %4090 = vmatprep.subr.mxu0 0.0
      %4091 = vmatpush1.msra.mxu0 %v3795
      %4092 = vmatprep.subr.mxu0 0.0
      %4093 = vmatpush1.msra.mxu0 %v3794
      %4094 = vmatprep.subr.mxu0 0.0
      %4095 = vmatpush1.msra.mxu0 %v3793
      %4096 = vmatprep.subr.mxu0 0.0
      %4097 = vmatpush1.msra.mxu0 %v3792
      %4098 = vmatprep.subr.mxu0 0.0
      %4099 = vmatpush1.msra.mxu0 %v3791
      %4100 = vmatprep.subr.mxu0 0.0
      %4101 = vmatpush1.msra.mxu0 %v3790
      %4102 = vmatprep.subr.mxu0 0.0
      %4103 = vmatpush2.msra.mxu0 %v3821
      %4104 = vmatprep.subr.mxu0 0.0
      %4105 = vmatpush2.msra.mxu0 %v3820
      %4106 = vmatprep.subr.mxu0 0.0
      %4107 = vmatpush2.msra.mxu0 %v3819
      %4108 = vmatprep.subr.mxu0 0.0
      %4109 = vmatpush2.msra.mxu0 %v3818
      %4110 = vmatprep.subr.mxu0 0.0
      %4111 = vmatpush2.msra.mxu0 %v3817
      %4112 = vmatprep.subr.mxu0 0.0
      %4113 = vmatpush2.msra.mxu0 %v3816
      %4114 = vmatprep.subr.mxu0 0.0
      %4115 = vmatpush2.msra.mxu0 %v3815
      %4116 = vmatprep.subr.mxu0 0.0
      %4117 = vmatpush2.msra.mxu0 %v3814
      %4118 = vmatprep.subr.mxu0 0.0
      %4119 = vmatpush2.msra.mxu0 %v3813
      %4120 = vmatprep.subr.mxu0 0.0
      %4121 = vmatpush2.msra.mxu0 %v3812
      %4122 = vmatprep.subr.mxu0 0.0
      %4123 = vmatpush2.msra.mxu0 %v3811
      %4124 = vmatprep.subr.mxu0 0.0
      %4125 = vmatpush2.msra.mxu0 %v3810
      %4126 = vmatprep.subr.mxu0 0.0
      %4127 = vmatpush2.msra.mxu0 %v3809
      %4128 = vmatprep.subr.mxu0 0.0
      %4129 = vmatpush2.msra.mxu0 %v3808
      %4130 = vmatprep.subr.mxu0 0.0
      %4131 = vmatpush2.msra.mxu0 %v3807
      %4132 = vmatprep.subr.mxu0 0.0
      %4133 = vmatpush2.msra.mxu0 %v3806
      %4134 = vmatprep.mubr.f32.mxu0 %v3683
      %4135 = vmatmul.mubr.f32.gmra.mxu0 %v3682
      %v4136 = vpop.f32.mrf.mxu0
      %v4137 = vadd.f32 %v4062, %v4136
      %v4138 = vpop.f32.mrf.mxu0
      %4139 = vmatprep.mubr.f32.mxu0 %v3692
      %4140 = vmatmul.mubr.f32.gmra.mxu0 %v3691
      %v4141 = vpop.f32.mrf.mxu0
      %v4142 = vadd.f32 %v4067, %v4141
      %v4143 = vpop.f32.mrf.mxu0
      %4144 = vdwg.mxu0
      %4145 = vmatprep.subr.mxu0 0.0
      %4146 = vmatpush1.msra.mxu0 %v3837
      %4147 = vmatprep.subr.mxu0 0.0
      %4148 = vmatpush1.msra.mxu0 %v3836
      %4149 = vmatprep.subr.mxu0 0.0
      %4150 = vmatpush1.msra.mxu0 %v3835
      %4151 = vmatprep.subr.mxu0 0.0
      %4152 = vmatpush1.msra.mxu0 %v3834
      %4153 = vmatprep.subr.mxu0 0.0
      %4154 = vmatpush1.msra.mxu0 %v3833
      %4155 = vmatprep.subr.mxu0 0.0
      %4156 = vmatpush1.msra.mxu0 %v3832
      %4157 = vmatprep.subr.mxu0 0.0
      %4158 = vmatpush1.msra.mxu0 %v3831
      %4159 = vmatprep.subr.mxu0 0.0
      %4160 = vmatpush1.msra.mxu0 %v3830
      %4161 = vmatprep.subr.mxu0 0.0
      %4162 = vmatpush1.msra.mxu0 %v3829
      %4163 = vmatprep.subr.mxu0 0.0
      %4164 = vmatpush1.msra.mxu0 %v3828
      %4165 = vmatprep.subr.mxu0 0.0
      %4166 = vmatpush1.msra.mxu0 %v3827
      %4167 = vmatprep.subr.mxu0 0.0
      %4168 = vmatpush1.msra.mxu0 %v3826
      %4169 = vmatprep.subr.mxu0 0.0
      %4170 = vmatpush1.msra.mxu0 %v3825
      %4171 = vmatprep.subr.mxu0 0.0
      %4172 = vmatpush1.msra.mxu0 %v3824
      %4173 = vmatprep.subr.mxu0 0.0
      %4174 = vmatpush1.msra.mxu0 %v3823
      %4175 = vmatprep.subr.mxu0 0.0
      %4176 = vmatpush1.msra.mxu0 %v3822
      %4177 = vmatprep.subr.mxu0 0.0
      %4178 = vmatpush2.msra.mxu0 0.0
      %4179 = vmatprep.subr.mxu0 0.0
      %4180 = vmatpush2.msra.mxu0 0.0
      %4181 = vmatprep.subr.mxu0 0.0
      %4182 = vmatpush2.msra.mxu0 0.0
      %4183 = vmatprep.subr.mxu0 0.0
      %4184 = vmatpush2.msra.mxu0 0.0
      %4185 = vmatprep.subr.mxu0 0.0
      %4186 = vmatpush2.msra.mxu0 0.0
      %4187 = vmatprep.subr.mxu0 0.0
      %4188 = vmatpush2.msra.mxu0 0.0
      %4189 = vmatprep.subr.mxu0 0.0
      %4190 = vmatpush2.msra.mxu0 0.0
      %4191 = vmatprep.subr.mxu0 0.0
      %4192 = vmatpush2.msra.mxu0 0.0
      %4193 = vmatprep.subr.mxu0 0.0
      %4194 = vmatpush2.msra.mxu0 0.0
      %4195 = vmatprep.subr.mxu0 0.0
      %4196 = vmatpush2.msra.mxu0 0.0
      %4197 = vmatprep.subr.mxu0 0.0
      %4198 = vmatpush2.msra.mxu0 0.0
      %4199 = vmatprep.subr.mxu0 0.0
      %4200 = vmatpush2.msra.mxu0 0.0
      %4201 = vmatprep.subr.mxu0 0.0
      %4202 = vmatpush2.msra.mxu0 0.0
      %4203 = vmatprep.subr.mxu0 0.0
      %4204 = vmatpush2.msra.mxu0 0.0
      %4205 = vmatprep.subr.mxu0 0.0
      %4206 = vmatpush2.msra.mxu0 0.0
      %4207 = vmatprep.subr.mxu0 0.0
      %4208 = vmatpush2.msra.mxu0 0.0
      %4209 = vmatprep.mubr.f32.mxu0 0.0
      %4210 = vmatmul.mubr.f32.gmra.mxu0 %v3684
      %v4211 = vpop.f32.mrf.mxu0
      %v4212 = vadd.f32 %v4137, %v4211
      %v4213 = vpop.f32.mrf.mxu0
      %4214 = vmatprep.mubr.f32.mxu0 0.0
      %4215 = vmatmul.mubr.f32.gmra.mxu0 %v3693
      %v4216 = vpop.f32.mrf.mxu0
      %v4217 = vadd.f32 %v4142, %v4216
      %v4218 = vpop.f32.mrf.mxu0
      %4219 = vdwg.mxu0
      %v4220 = vmax.f32 %v4212, 0.0
      %v4221 = vmax.f32 %v4217, 0.0
      %4222 = vst [vmem:[%s660] sm:$0xff] %v4220
      %4223 = vst [vmem:[%s660 + $0x8] sm:$0xff] %v4221
      %v4224 = vld [vmem:[%s13] sm:$0xff]
      %v4225 = vld [vmem:[%s13 + $0x8] sm:$0xff]
      %v4226 = vld [vmem:[%s13 + $0x10] sm:$0xff]
      %v4227 = vld [vmem:[%s13 + $0x18] sm:$0xff]
      %v4228 = vld [vmem:[%s13 + $0x20] sm:$0xff]
      %v4229 = vld [vmem:[%s13 + $0x28] sm:$0xff]
      %v4230 = vld [vmem:[%s13 + $0x30] sm:$0xff]
      %v4231 = vld [vmem:[%s13 + $0x38] sm:$0xff]
      %v4232 = vld [vmem:[%s13 + $0x40] sm:$0xff]
      %v4233 = vld [vmem:[%s13 + $0x48] sm:$0xff]
      %v4234 = vld [vmem:[%s13 + $0x50] sm:$0xff]
      %v4235 = vld [vmem:[%s13 + $0x58] sm:$0xff]
      %v4236 = vld [vmem:[%s13 + $0x60] sm:$0xff]
      %v4237 = vld [vmem:[%s13 + $0x68] sm:$0xff]
      %v4238 = vld [vmem:[%s13 + $0x70] sm:$0xff]
      %v4239 = vld [vmem:[%s13 + $0x78] sm:$0xff]
      %v4240 = vld [vmem:[%s14] sm:$0x1]
      %v4242 = vlaneseq
      %v4243 = vshrl.u32 %v4242, 7
      %v4244 = vsub.s32 0, %v4243
      %v4245 = vrot.slane %v4240, %v4244
      %4247 = vmatprep.subr.mxu0 0.0
      %4248 = vmatpush1.msra.mxu0 %v4239
      %4249 = vmatprep.subr.mxu0 0.0
      %4250 = vmatpush1.msra.mxu0 %v4238
      %4251 = vmatprep.subr.mxu0 0.0
      %4252 = vmatpush1.msra.mxu0 %v4237
      %4253 = vmatprep.subr.mxu0 0.0
      %4254 = vmatpush1.msra.mxu0 %v4236
      %4255 = vmatprep.subr.mxu0 0.0
      %4256 = vmatpush1.msra.mxu0 %v4235
      %4257 = vmatprep.subr.mxu0 0.0
      %4258 = vmatpush1.msra.mxu0 %v4234
      %4259 = vmatprep.subr.mxu0 0.0
      %4260 = vmatpush1.msra.mxu0 %v4233
      %4261 = vmatprep.subr.mxu0 0.0
      %4262 = vmatpush1.msra.mxu0 %v4232
      %4263 = vmatprep.subr.mxu0 0.0
      %4264 = vmatpush1.msra.mxu0 %v4231
      %4265 = vmatprep.subr.mxu0 0.0
      %4266 = vmatpush1.msra.mxu0 %v4230
      %4267 = vmatprep.subr.mxu0 0.0
      %4268 = vmatpush1.msra.mxu0 %v4229
      %4269 = vmatprep.subr.mxu0 0.0
      %4270 = vmatpush1.msra.mxu0 %v4228
      %4271 = vmatprep.subr.mxu0 0.0
      %4272 = vmatpush1.msra.mxu0 %v4227
      %4273 = vmatprep.subr.mxu0 0.0
      %4274 = vmatpush1.msra.mxu0 %v4226
      %4275 = vmatprep.subr.mxu0 0.0
      %4276 = vmatpush1.msra.mxu0 %v4225
      %4277 = vmatprep.subr.mxu0 0.0
      %4278 = vmatpush1.msra.mxu0 %v4224
      %4279 = vmatprep.subr.mxu0 0.0
      %4280 = vmatpush2.msra.mxu0 0.0
      %4281 = vmatprep.subr.mxu0 0.0
      %4282 = vmatpush2.msra.mxu0 0.0
      %4283 = vmatprep.subr.mxu0 0.0
      %4284 = vmatpush2.msra.mxu0 0.0
      %4285 = vmatprep.subr.mxu0 0.0
      %4286 = vmatpush2.msra.mxu0 0.0
      %4287 = vmatprep.subr.mxu0 0.0
      %4288 = vmatpush2.msra.mxu0 0.0
      %4289 = vmatprep.subr.mxu0 0.0
      %4290 = vmatpush2.msra.mxu0 0.0
      %4291 = vmatprep.subr.mxu0 0.0
      %4292 = vmatpush2.msra.mxu0 0.0
      %4293 = vmatprep.subr.mxu0 0.0
      %4294 = vmatpush2.msra.mxu0 0.0
      %4295 = vmatprep.subr.mxu0 0.0
      %4296 = vmatpush2.msra.mxu0 0.0
      %4297 = vmatprep.subr.mxu0 0.0
      %4298 = vmatpush2.msra.mxu0 0.0
      %4299 = vmatprep.subr.mxu0 0.0
      %4300 = vmatpush2.msra.mxu0 0.0
      %4301 = vmatprep.subr.mxu0 0.0
      %4302 = vmatpush2.msra.mxu0 0.0
      %4303 = vmatprep.subr.mxu0 0.0
      %4304 = vmatpush2.msra.mxu0 0.0
      %4305 = vmatprep.subr.mxu0 0.0
      %4306 = vmatpush2.msra.mxu0 0.0
      %4307 = vmatprep.subr.mxu0 0.0
      %4308 = vmatpush2.msra.mxu0 0.0
      %4309 = vmatprep.subr.mxu0 0.0
      %4310 = vmatpush2.msra.mxu0 0.0
      %4311 = vmatprep.mubr.f32.mxu0 0.0
      %4312 = vmatmul.mubr.f32.gmra.mxu0 %v4220
      %v4313 = vpop.f32.mrf.mxu0
      %v4314 = vadd.f32 %v4245, %v4313
      %v4315 = vpop.f32.mrf.mxu0
      %4316 = vmatprep.mubr.f32.mxu0 0.0
      %4317 = vmatmul.mubr.f32.gmra.mxu0 %v4221
      %v4318 = vpop.f32.mrf.mxu0
      %v4319 = vadd.f32 %v4245, %v4318
      %v4320 = vpop.f32.mrf.mxu0
      %4321 = vdwg.mxu0
      %v4322 = vmax.f32 %v4314, 0.0
      %v4323 = vmax.f32 %v4319, 0.0
      %4324 = vst [vmem:[#allocation8] sm:$0xff] %v4322
      %4325 = vst [vmem:[#allocation8 + $0x8] sm:$0xff] %v4323
      %4326 = vst [vmem:[#allocation9] sm:$0xff] 0.0
      %4327 = vst [vmem:[#allocation9 + $0x8] sm:$0xff] 0.0
      %4328 = vst [vmem:[#allocation9 + $0x10] sm:$0xff] 0.0
      %4329 = vst [vmem:[#allocation9 + $0x18] sm:$0xff] 0.0
      %4330 = vst [vmem:[#allocation9 + $0x20] sm:$0xff] 0.0
      %4331 = vst [vmem:[#allocation9 + $0x28] sm:$0xff] 0.0
      %4332 = vst [vmem:[#allocation9 + $0x30] sm:$0xff] 0.0
      %4333 = vst [vmem:[#allocation9 + $0x38] sm:$0xff] 0.0
      %4334 = vst [vmem:[#allocation9 + $0x40] sm:$0xff] 0.0
      %v4335 = vld [vmem:[#allocation8] sm:$0x1]
      %4336 = vst [vmem:[#allocation9] sm:$0x1] %v4335
      %v4337 = vld [vmem:[#allocation8 + $0x1] sm:$0x1]
      %4338 = vst [vmem:[#allocation9 + $0x8] sm:$0x1] %v4337
      %v4339 = vld [vmem:[#allocation8 + $0x2] sm:$0x1]
      %4340 = vst [vmem:[#allocation9 + $0x10] sm:$0x1] %v4339
      %v4341 = vld [vmem:[#allocation8 + $0x3] sm:$0x1]
      %4342 = vst [vmem:[#allocation9 + $0x18] sm:$0x1] %v4341
      %v4343 = vld [vmem:[#allocation8 + $0x4] sm:$0x1]
      %4344 = vst [vmem:[#allocation9 + $0x20] sm:$0x1] %v4343
      %v4345 = vld [vmem:[#allocation8 + $0x5] sm:$0x1]
      %4346 = vst [vmem:[#allocation9 + $0x28] sm:$0x1] %v4345
      %v4347 = vld [vmem:[#allocation8 + $0x6] sm:$0x1]
      %4348 = vst [vmem:[#allocation9 + $0x30] sm:$0x1] %v4347
      %v4349 = vld [vmem:[#allocation8 + $0x7] sm:$0x1]
      %4350 = vst [vmem:[#allocation9 + $0x38] sm:$0x1] %v4349
      %v4351 = vld [vmem:[#allocation8 + $0x8] sm:$0x1]
      %4352 = vst [vmem:[#allocation9 + $0x40] sm:$0x1] %v4351
      %v4353 = vld [vmem:[#allocation9] sm:$0xff]
      %v4354 = vld [vmem:[#allocation9 + $0x8] sm:$0xff]
      %v4355 = vld [vmem:[#allocation9 + $0x10] sm:$0xff]
      %v4356 = vld [vmem:[#allocation9 + $0x18] sm:$0xff]
      %v4357 = vld [vmem:[#allocation9 + $0x20] sm:$0xff]
      %v4358 = vld [vmem:[#allocation9 + $0x28] sm:$0xff]
      %v4359 = vld [vmem:[#allocation9 + $0x30] sm:$0xff]
      %v4360 = vld [vmem:[#allocation9 + $0x38] sm:$0xff]
      %v4361 = vld [vmem:[#allocation9 + $0x40] sm:$0xff]
      %v4362 = vld [vmem:[%s15] sm:$0xff]
      %v4363 = vld [vmem:[%s15 + $0x8] sm:$0xff]
      %v4364 = vld [vmem:[%s15 + $0x10] sm:$0xff]
      %v4365 = vld [vmem:[%s15 + $0x18] sm:$0xff]
      %v4366 = vld [vmem:[%s15 + $0x20] sm:$0xff]
      %v4367 = vld [vmem:[%s15 + $0x28] sm:$0xff]
      %v4368 = vld [vmem:[%s15 + $0x30] sm:$0xff]
      %v4369 = vld [vmem:[%s15 + $0x38] sm:$0xff]
      %v4370 = vld [vmem:[%s15 + $0x40] sm:$0xff]
      %v4371 = vld [vmem:[%s15 + $0x48] sm:$0xff]
      %v4372 = vld [vmem:[%s15 + $0x50] sm:$0xff]
      %v4373 = vld [vmem:[%s15 + $0x58] sm:$0xff]
      %v4374 = vld [vmem:[%s15 + $0x60] sm:$0xff]
      %v4375 = vld [vmem:[%s15 + $0x68] sm:$0xff]
      %v4376 = vld [vmem:[%s15 + $0x70] sm:$0xff]
      %v4377 = vld [vmem:[%s15 + $0x78] sm:$0xff]
      %v4378 = vld [vmem:[%s15 + $0x80] sm:$0xff]
      %v4379 = vld [vmem:[%s15 + $0x88] sm:$0xff]
      %v4380 = vld [vmem:[%s15 + $0x90] sm:$0xff]
      %v4381 = vld [vmem:[%s15 + $0x98] sm:$0xff]
      %v4382 = vld [vmem:[%s15 + $0xa0] sm:$0xff]
      %v4383 = vld [vmem:[%s15 + $0xa8] sm:$0xff]
      %v4384 = vld [vmem:[%s15 + $0xb0] sm:$0xff]
      %v4385 = vld [vmem:[%s15 + $0xb8] sm:$0xff]
      %v4386 = vld [vmem:[%s15 + $0xc0] sm:$0xff]
      %v4387 = vld [vmem:[%s15 + $0xc8] sm:$0xff]
      %v4388 = vld [vmem:[%s15 + $0xd0] sm:$0xff]
      %v4389 = vld [vmem:[%s15 + $0xd8] sm:$0xff]
      %v4390 = vld [vmem:[%s15 + $0xe0] sm:$0xff]
      %v4391 = vld [vmem:[%s15 + $0xe8] sm:$0xff]
      %v4392 = vld [vmem:[%s15 + $0xf0] sm:$0xff]
      %v4393 = vld [vmem:[%s15 + $0xf8] sm:$0xff]
      %v4394 = vld [vmem:[%s15 + $0x100] sm:$0xff]
      %v4395 = vld [vmem:[%s15 + $0x108] sm:$0xff]
      %v4396 = vld [vmem:[%s15 + $0x110] sm:$0xff]
      %v4397 = vld [vmem:[%s15 + $0x118] sm:$0xff]
      %v4398 = vld [vmem:[%s15 + $0x120] sm:$0xff]
      %v4399 = vld [vmem:[%s15 + $0x128] sm:$0xff]
      %v4400 = vld [vmem:[%s15 + $0x130] sm:$0xff]
      %v4401 = vld [vmem:[%s15 + $0x138] sm:$0xff]
      %v4402 = vld [vmem:[%s15 + $0x140] sm:$0xff]
      %v4403 = vld [vmem:[%s15 + $0x148] sm:$0xff]
      %v4404 = vld [vmem:[%s15 + $0x150] sm:$0xff]
      %v4405 = vld [vmem:[%s15 + $0x158] sm:$0xff]
      %v4406 = vld [vmem:[%s15 + $0x160] sm:$0xff]
      %v4407 = vld [vmem:[%s15 + $0x168] sm:$0xff]
      %v4408 = vld [vmem:[%s15 + $0x170] sm:$0xff]
      %v4409 = vld [vmem:[%s15 + $0x178] sm:$0xff]
      %v4410 = vld [vmem:[%s15 + $0x180] sm:$0xff]
      %v4411 = vld [vmem:[%s15 + $0x188] sm:$0xff]
      %v4412 = vld [vmem:[%s15 + $0x190] sm:$0xff]
      %v4413 = vld [vmem:[%s15 + $0x198] sm:$0xff]
      %v4414 = vld [vmem:[%s15 + $0x1a0] sm:$0xff]
      %v4415 = vld [vmem:[%s15 + $0x1a8] sm:$0xff]
      %v4416 = vld [vmem:[%s15 + $0x1b0] sm:$0xff]
      %v4417 = vld [vmem:[%s15 + $0x1b8] sm:$0xff]
      %v4418 = vld [vmem:[%s15 + $0x1c0] sm:$0xff]
      %v4419 = vld [vmem:[%s15 + $0x1c8] sm:$0xff]
      %v4420 = vld [vmem:[%s15 + $0x1d0] sm:$0xff]
      %v4421 = vld [vmem:[%s15 + $0x1d8] sm:$0xff]
      %v4422 = vld [vmem:[%s15 + $0x1e0] sm:$0xff]
      %v4423 = vld [vmem:[%s15 + $0x1e8] sm:$0xff]
      %v4424 = vld [vmem:[%s15 + $0x1f0] sm:$0xff]
      %v4425 = vld [vmem:[%s15 + $0x1f8] sm:$0xff]
      %v4426 = vld [vmem:[%s15 + $0x200] sm:$0xff]
      %v4427 = vld [vmem:[%s15 + $0x208] sm:$0xff]
      %v4428 = vld [vmem:[%s15 + $0x210] sm:$0xff]
      %v4429 = vld [vmem:[%s15 + $0x218] sm:$0xff]
      %v4430 = vld [vmem:[%s15 + $0x220] sm:$0xff]
      %v4431 = vld [vmem:[%s15 + $0x228] sm:$0xff]
      %v4432 = vld [vmem:[%s15 + $0x230] sm:$0xff]
      %v4433 = vld [vmem:[%s15 + $0x238] sm:$0xff]
      %v4434 = vld [vmem:[%s15 + $0x240] sm:$0xff]
      %v4435 = vld [vmem:[%s15 + $0x248] sm:$0xff]
      %v4436 = vld [vmem:[%s15 + $0x250] sm:$0xff]
      %v4437 = vld [vmem:[%s15 + $0x258] sm:$0xff]
      %v4438 = vld [vmem:[%s15 + $0x260] sm:$0xff]
      %v4439 = vld [vmem:[%s15 + $0x268] sm:$0xff]
      %v4440 = vld [vmem:[%s15 + $0x270] sm:$0xff]
      %v4441 = vld [vmem:[%s15 + $0x278] sm:$0xff]
      %v4442 = vld [vmem:[%s15 + $0x280] sm:$0xff]
      %v4443 = vld [vmem:[%s15 + $0x288] sm:$0xff]
      %v4444 = vld [vmem:[%s15 + $0x290] sm:$0xff]
      %v4445 = vld [vmem:[%s15 + $0x298] sm:$0xff]
      %v4446 = vld [vmem:[%s15 + $0x2a0] sm:$0xff]
      %v4447 = vld [vmem:[%s15 + $0x2a8] sm:$0xff]
      %v4448 = vld [vmem:[%s15 + $0x2b0] sm:$0xff]
      %v4449 = vld [vmem:[%s15 + $0x2b8] sm:$0xff]
      %v4450 = vld [vmem:[%s15 + $0x2c0] sm:$0xff]
      %v4451 = vld [vmem:[%s15 + $0x2c8] sm:$0xff]
      %v4452 = vld [vmem:[%s15 + $0x2d0] sm:$0xff]
      %v4453 = vld [vmem:[%s15 + $0x2d8] sm:$0xff]
      %v4454 = vld [vmem:[%s15 + $0x2e0] sm:$0xff]
      %v4455 = vld [vmem:[%s15 + $0x2e8] sm:$0xff]
      %v4456 = vld [vmem:[%s15 + $0x2f0] sm:$0xff]
      %v4457 = vld [vmem:[%s15 + $0x2f8] sm:$0xff]
      %v4458 = vld [vmem:[%s15 + $0x300] sm:$0xff]
      %v4459 = vld [vmem:[%s15 + $0x308] sm:$0xff]
      %v4460 = vld [vmem:[%s15 + $0x310] sm:$0xff]
      %v4461 = vld [vmem:[%s15 + $0x318] sm:$0xff]
      %v4462 = vld [vmem:[%s15 + $0x320] sm:$0xff]
      %v4463 = vld [vmem:[%s15 + $0x328] sm:$0xff]
      %v4464 = vld [vmem:[%s15 + $0x330] sm:$0xff]
      %v4465 = vld [vmem:[%s15 + $0x338] sm:$0xff]
      %v4466 = vld [vmem:[%s15 + $0x340] sm:$0xff]
      %v4467 = vld [vmem:[%s15 + $0x348] sm:$0xff]
      %v4468 = vld [vmem:[%s15 + $0x350] sm:$0xff]
      %v4469 = vld [vmem:[%s15 + $0x358] sm:$0xff]
      %v4470 = vld [vmem:[%s15 + $0x360] sm:$0xff]
      %v4471 = vld [vmem:[%s15 + $0x368] sm:$0xff]
      %v4472 = vld [vmem:[%s15 + $0x370] sm:$0xff]
      %v4473 = vld [vmem:[%s15 + $0x378] sm:$0xff]
      %v4474 = vld [vmem:[%s15 + $0x380] sm:$0xff]
      %v4475 = vld [vmem:[%s15 + $0x388] sm:$0xff]
      %v4476 = vld [vmem:[%s15 + $0x390] sm:$0xff]
      %v4477 = vld [vmem:[%s15 + $0x398] sm:$0xff]
      %v4478 = vld [vmem:[%s15 + $0x3a0] sm:$0xff]
      %v4479 = vld [vmem:[%s15 + $0x3a8] sm:$0xff]
      %v4480 = vld [vmem:[%s15 + $0x3b0] sm:$0xff]
      %v4481 = vld [vmem:[%s15 + $0x3b8] sm:$0xff]
      %v4482 = vld [vmem:[%s15 + $0x3c0] sm:$0xff]
      %v4483 = vld [vmem:[%s15 + $0x3c8] sm:$0xff]
      %v4484 = vld [vmem:[%s15 + $0x3d0] sm:$0xff]
      %v4485 = vld [vmem:[%s15 + $0x3d8] sm:$0xff]
      %v4486 = vld [vmem:[%s15 + $0x3e0] sm:$0xff]
      %v4487 = vld [vmem:[%s15 + $0x3e8] sm:$0xff]
      %v4488 = vld [vmem:[%s15 + $0x3f0] sm:$0xff]
      %v4489 = vld [vmem:[%s15 + $0x3f8] sm:$0xff]
      %v4490 = vld [vmem:[%s15 + $0x400] sm:$0xff]
      %v4491 = vld [vmem:[%s15 + $0x408] sm:$0xff]
      %v4492 = vld [vmem:[%s15 + $0x410] sm:$0xff]
      %v4493 = vld [vmem:[%s15 + $0x418] sm:$0xff]
      %v4494 = vld [vmem:[%s15 + $0x420] sm:$0xff]
      %v4495 = vld [vmem:[%s15 + $0x428] sm:$0xff]
      %v4496 = vld [vmem:[%s15 + $0x430] sm:$0xff]
      %v4497 = vld [vmem:[%s15 + $0x438] sm:$0xff]
      %v4498 = vld [vmem:[%s15 + $0x440] sm:$0xff]
      %v4499 = vld [vmem:[%s15 + $0x448] sm:$0xff]
      %v4500 = vld [vmem:[%s15 + $0x450] sm:$0xff]
      %v4501 = vld [vmem:[%s15 + $0x458] sm:$0xff]
      %v4502 = vld [vmem:[%s15 + $0x460] sm:$0xff]
      %v4503 = vld [vmem:[%s15 + $0x468] sm:$0xff]
      %v4504 = vld [vmem:[%s15 + $0x470] sm:$0xff]
      %v4505 = vld [vmem:[%s15 + $0x478] sm:$0xff]
      %v4506 = vld [vmem:[%s16] sm:$0x1]
      %v4508 = vlaneseq
      %v4509 = vshrl.u32 %v4508, 7
      %v4510 = vsub.s32 0, %v4509
      %v4511 = vrot.slane %v4506, %v4510
      %4513 = vmatprep.subr.mxu0 0.0
      %4514 = vmatpush1.msra.mxu0 %v4377
      %4515 = vmatprep.subr.mxu0 0.0
      %4516 = vmatpush1.msra.mxu0 %v4376
      %4517 = vmatprep.subr.mxu0 0.0
      %4518 = vmatpush1.msra.mxu0 %v4375
      %4519 = vmatprep.subr.mxu0 0.0
      %4520 = vmatpush1.msra.mxu0 %v4374
      %4521 = vmatprep.subr.mxu0 0.0
      %4522 = vmatpush1.msra.mxu0 %v4373
      %4523 = vmatprep.subr.mxu0 0.0
      %4524 = vmatpush1.msra.mxu0 %v4372
      %4525 = vmatprep.subr.mxu0 0.0
      %4526 = vmatpush1.msra.mxu0 %v4371
      %4527 = vmatprep.subr.mxu0 0.0
      %4528 = vmatpush1.msra.mxu0 %v4370
      %4529 = vmatprep.subr.mxu0 0.0
      %4530 = vmatpush1.msra.mxu0 %v4369
      %4531 = vmatprep.subr.mxu0 0.0
      %4532 = vmatpush1.msra.mxu0 %v4368
      %4533 = vmatprep.subr.mxu0 0.0
      %4534 = vmatpush1.msra.mxu0 %v4367
      %4535 = vmatprep.subr.mxu0 0.0
      %4536 = vmatpush1.msra.mxu0 %v4366
      %4537 = vmatprep.subr.mxu0 0.0
      %4538 = vmatpush1.msra.mxu0 %v4365
      %4539 = vmatprep.subr.mxu0 0.0
      %4540 = vmatpush1.msra.mxu0 %v4364
      %4541 = vmatprep.subr.mxu0 0.0
      %4542 = vmatpush1.msra.mxu0 %v4363
      %4543 = vmatprep.subr.mxu0 0.0
      %4544 = vmatpush1.msra.mxu0 %v4362
      %4545 = vmatprep.subr.mxu0 0.0
      %4546 = vmatpush2.msra.mxu0 %v4393
      %4547 = vmatprep.subr.mxu0 0.0
      %4548 = vmatpush2.msra.mxu0 %v4392
      %4549 = vmatprep.subr.mxu0 0.0
      %4550 = vmatpush2.msra.mxu0 %v4391
      %4551 = vmatprep.subr.mxu0 0.0
      %4552 = vmatpush2.msra.mxu0 %v4390
      %4553 = vmatprep.subr.mxu0 0.0
      %4554 = vmatpush2.msra.mxu0 %v4389
      %4555 = vmatprep.subr.mxu0 0.0
      %4556 = vmatpush2.msra.mxu0 %v4388
      %4557 = vmatprep.subr.mxu0 0.0
      %4558 = vmatpush2.msra.mxu0 %v4387
      %4559 = vmatprep.subr.mxu0 0.0
      %4560 = vmatpush2.msra.mxu0 %v4386
      %4561 = vmatprep.subr.mxu0 0.0
      %4562 = vmatpush2.msra.mxu0 %v4385
      %4563 = vmatprep.subr.mxu0 0.0
      %4564 = vmatpush2.msra.mxu0 %v4384
      %4565 = vmatprep.subr.mxu0 0.0
      %4566 = vmatpush2.msra.mxu0 %v4383
      %4567 = vmatprep.subr.mxu0 0.0
      %4568 = vmatpush2.msra.mxu0 %v4382
      %4569 = vmatprep.subr.mxu0 0.0
      %4570 = vmatpush2.msra.mxu0 %v4381
      %4571 = vmatprep.subr.mxu0 0.0
      %4572 = vmatpush2.msra.mxu0 %v4380
      %4573 = vmatprep.subr.mxu0 0.0
      %4574 = vmatpush2.msra.mxu0 %v4379
      %4575 = vmatprep.subr.mxu0 0.0
      %4576 = vmatpush2.msra.mxu0 %v4378
      %4577 = vmatprep.mubr.f32.mxu0 %v4354
      %4578 = vmatmul.mubr.f32.gmra.mxu0 %v4353
      %v4579 = vpop.f32.mrf.mxu0
      %v4580 = vadd.f32 %v4511, %v4579
      %v4581 = vpop.f32.mrf.mxu0
      %4582 = vdwg.mxu0
      %4583 = vmatprep.subr.mxu0 0.0
      %4584 = vmatpush1.msra.mxu0 %v4409
      %4585 = vmatprep.subr.mxu0 0.0
      %4586 = vmatpush1.msra.mxu0 %v4408
      %4587 = vmatprep.subr.mxu0 0.0
      %4588 = vmatpush1.msra.mxu0 %v4407
      %4589 = vmatprep.subr.mxu0 0.0
      %4590 = vmatpush1.msra.mxu0 %v4406
      %4591 = vmatprep.subr.mxu0 0.0
      %4592 = vmatpush1.msra.mxu0 %v4405
      %4593 = vmatprep.subr.mxu0 0.0
      %4594 = vmatpush1.msra.mxu0 %v4404
      %4595 = vmatprep.subr.mxu0 0.0
      %4596 = vmatpush1.msra.mxu0 %v4403
      %4597 = vmatprep.subr.mxu0 0.0
      %4598 = vmatpush1.msra.mxu0 %v4402
      %4599 = vmatprep.subr.mxu0 0.0
      %4600 = vmatpush1.msra.mxu0 %v4401
      %4601 = vmatprep.subr.mxu0 0.0
      %4602 = vmatpush1.msra.mxu0 %v4400
      %4603 = vmatprep.subr.mxu0 0.0
      %4604 = vmatpush1.msra.mxu0 %v4399
      %4605 = vmatprep.subr.mxu0 0.0
      %4606 = vmatpush1.msra.mxu0 %v4398
      %4607 = vmatprep.subr.mxu0 0.0
      %4608 = vmatpush1.msra.mxu0 %v4397
      %4609 = vmatprep.subr.mxu0 0.0
      %4610 = vmatpush1.msra.mxu0 %v4396
      %4611 = vmatprep.subr.mxu0 0.0
      %4612 = vmatpush1.msra.mxu0 %v4395
      %4613 = vmatprep.subr.mxu0 0.0
      %4614 = vmatpush1.msra.mxu0 %v4394
      %4615 = vmatprep.subr.mxu0 0.0
      %4616 = vmatpush2.msra.mxu0 %v4425
      %4617 = vmatprep.subr.mxu0 0.0
      %4618 = vmatpush2.msra.mxu0 %v4424
      %4619 = vmatprep.subr.mxu0 0.0
      %4620 = vmatpush2.msra.mxu0 %v4423
      %4621 = vmatprep.subr.mxu0 0.0
      %4622 = vmatpush2.msra.mxu0 %v4422
      %4623 = vmatprep.subr.mxu0 0.0
      %4624 = vmatpush2.msra.mxu0 %v4421
      %4625 = vmatprep.subr.mxu0 0.0
      %4626 = vmatpush2.msra.mxu0 %v4420
      %4627 = vmatprep.subr.mxu0 0.0
      %4628 = vmatpush2.msra.mxu0 %v4419
      %4629 = vmatprep.subr.mxu0 0.0
      %4630 = vmatpush2.msra.mxu0 %v4418
      %4631 = vmatprep.subr.mxu0 0.0
      %4632 = vmatpush2.msra.mxu0 %v4417
      %4633 = vmatprep.subr.mxu0 0.0
      %4634 = vmatpush2.msra.mxu0 %v4416
      %4635 = vmatprep.subr.mxu0 0.0
      %4636 = vmatpush2.msra.mxu0 %v4415
      %4637 = vmatprep.subr.mxu0 0.0
      %4638 = vmatpush2.msra.mxu0 %v4414
      %4639 = vmatprep.subr.mxu0 0.0
      %4640 = vmatpush2.msra.mxu0 %v4413
      %4641 = vmatprep.subr.mxu0 0.0
      %4642 = vmatpush2.msra.mxu0 %v4412
      %4643 = vmatprep.subr.mxu0 0.0
      %4644 = vmatpush2.msra.mxu0 %v4411
      %4645 = vmatprep.subr.mxu0 0.0
      %4646 = vmatpush2.msra.mxu0 %v4410
      %4647 = vmatprep.mubr.f32.mxu0 %v4356
      %4648 = vmatmul.mubr.f32.gmra.mxu0 %v4355
      %v4649 = vpop.f32.mrf.mxu0
      %v4650 = vadd.f32 %v4580, %v4649
      %v4651 = vpop.f32.mrf.mxu0
      %4652 = vdwg.mxu0
      %4653 = vmatprep.subr.mxu0 0.0
      %4654 = vmatpush1.msra.mxu0 %v4441
      %4655 = vmatprep.subr.mxu0 0.0
      %4656 = vmatpush1.msra.mxu0 %v4440
      %4657 = vmatprep.subr.mxu0 0.0
      %4658 = vmatpush1.msra.mxu0 %v4439
      %4659 = vmatprep.subr.mxu0 0.0
      %4660 = vmatpush1.msra.mxu0 %v4438
      %4661 = vmatprep.subr.mxu0 0.0
      %4662 = vmatpush1.msra.mxu0 %v4437
      %4663 = vmatprep.subr.mxu0 0.0
      %4664 = vmatpush1.msra.mxu0 %v4436
      %4665 = vmatprep.subr.mxu0 0.0
      %4666 = vmatpush1.msra.mxu0 %v4435
      %4667 = vmatprep.subr.mxu0 0.0
      %4668 = vmatpush1.msra.mxu0 %v4434
      %4669 = vmatprep.subr.mxu0 0.0
      %4670 = vmatpush1.msra.mxu0 %v4433
      %4671 = vmatprep.subr.mxu0 0.0
      %4672 = vmatpush1.msra.mxu0 %v4432
      %4673 = vmatprep.subr.mxu0 0.0
      %4674 = vmatpush1.msra.mxu0 %v4431
      %4675 = vmatprep.subr.mxu0 0.0
      %4676 = vmatpush1.msra.mxu0 %v4430
      %4677 = vmatprep.subr.mxu0 0.0
      %4678 = vmatpush1.msra.mxu0 %v4429
      %4679 = vmatprep.subr.mxu0 0.0
      %4680 = vmatpush1.msra.mxu0 %v4428
      %4681 = vmatprep.subr.mxu0 0.0
      %4682 = vmatpush1.msra.mxu0 %v4427
      %4683 = vmatprep.subr.mxu0 0.0
      %4684 = vmatpush1.msra.mxu0 %v4426
      %4685 = vmatprep.subr.mxu0 0.0
      %4686 = vmatpush2.msra.mxu0 %v4457
      %4687 = vmatprep.subr.mxu0 0.0
      %4688 = vmatpush2.msra.mxu0 %v4456
      %4689 = vmatprep.subr.mxu0 0.0
      %4690 = vmatpush2.msra.mxu0 %v4455
      %4691 = vmatprep.subr.mxu0 0.0
      %4692 = vmatpush2.msra.mxu0 %v4454
      %4693 = vmatprep.subr.mxu0 0.0
      %4694 = vmatpush2.msra.mxu0 %v4453
      %4695 = vmatprep.subr.mxu0 0.0
      %4696 = vmatpush2.msra.mxu0 %v4452
      %4697 = vmatprep.subr.mxu0 0.0
      %4698 = vmatpush2.msra.mxu0 %v4451
      %4699 = vmatprep.subr.mxu0 0.0
      %4700 = vmatpush2.msra.mxu0 %v4450
      %4701 = vmatprep.subr.mxu0 0.0
      %4702 = vmatpush2.msra.mxu0 %v4449
      %4703 = vmatprep.subr.mxu0 0.0
      %4704 = vmatpush2.msra.mxu0 %v4448
      %4705 = vmatprep.subr.mxu0 0.0
      %4706 = vmatpush2.msra.mxu0 %v4447
      %4707 = vmatprep.subr.mxu0 0.0
      %4708 = vmatpush2.msra.mxu0 %v4446
      %4709 = vmatprep.subr.mxu0 0.0
      %4710 = vmatpush2.msra.mxu0 %v4445
      %4711 = vmatprep.subr.mxu0 0.0
      %4712 = vmatpush2.msra.mxu0 %v4444
      %4713 = vmatprep.subr.mxu0 0.0
      %4714 = vmatpush2.msra.mxu0 %v4443
      %4715 = vmatprep.subr.mxu0 0.0
      %4716 = vmatpush2.msra.mxu0 %v4442
      %4717 = vmatprep.mubr.f32.mxu0 %v4358
      %4718 = vmatmul.mubr.f32.gmra.mxu0 %v4357
      %v4719 = vpop.f32.mrf.mxu0
      %v4720 = vadd.f32 %v4650, %v4719
      %v4721 = vpop.f32.mrf.mxu0
      %4722 = vdwg.mxu0
      %4723 = vmatprep.subr.mxu0 0.0
      %4724 = vmatpush1.msra.mxu0 %v4473
      %4725 = vmatprep.subr.mxu0 0.0
      %4726 = vmatpush1.msra.mxu0 %v4472
      %4727 = vmatprep.subr.mxu0 0.0
      %4728 = vmatpush1.msra.mxu0 %v4471
      %4729 = vmatprep.subr.mxu0 0.0
      %4730 = vmatpush1.msra.mxu0 %v4470
      %4731 = vmatprep.subr.mxu0 0.0
      %4732 = vmatpush1.msra.mxu0 %v4469
      %4733 = vmatprep.subr.mxu0 0.0
      %4734 = vmatpush1.msra.mxu0 %v4468
      %4735 = vmatprep.subr.mxu0 0.0
      %4736 = vmatpush1.msra.mxu0 %v4467
      %4737 = vmatprep.subr.mxu0 0.0
      %4738 = vmatpush1.msra.mxu0 %v4466
      %4739 = vmatprep.subr.mxu0 0.0
      %4740 = vmatpush1.msra.mxu0 %v4465
      %4741 = vmatprep.subr.mxu0 0.0
      %4742 = vmatpush1.msra.mxu0 %v4464
      %4743 = vmatprep.subr.mxu0 0.0
      %4744 = vmatpush1.msra.mxu0 %v4463
      %4745 = vmatprep.subr.mxu0 0.0
      %4746 = vmatpush1.msra.mxu0 %v4462
      %4747 = vmatprep.subr.mxu0 0.0
      %4748 = vmatpush1.msra.mxu0 %v4461
      %4749 = vmatprep.subr.mxu0 0.0
      %4750 = vmatpush1.msra.mxu0 %v4460
      %4751 = vmatprep.subr.mxu0 0.0
      %4752 = vmatpush1.msra.mxu0 %v4459
      %4753 = vmatprep.subr.mxu0 0.0
      %4754 = vmatpush1.msra.mxu0 %v4458
      %4755 = vmatprep.subr.mxu0 0.0
      %4756 = vmatpush2.msra.mxu0 %v4489
      %4757 = vmatprep.subr.mxu0 0.0
      %4758 = vmatpush2.msra.mxu0 %v4488
      %4759 = vmatprep.subr.mxu0 0.0
      %4760 = vmatpush2.msra.mxu0 %v4487
      %4761 = vmatprep.subr.mxu0 0.0
      %4762 = vmatpush2.msra.mxu0 %v4486
      %4763 = vmatprep.subr.mxu0 0.0
      %4764 = vmatpush2.msra.mxu0 %v4485
      %4765 = vmatprep.subr.mxu0 0.0
      %4766 = vmatpush2.msra.mxu0 %v4484
      %4767 = vmatprep.subr.mxu0 0.0
      %4768 = vmatpush2.msra.mxu0 %v4483
      %4769 = vmatprep.subr.mxu0 0.0
      %4770 = vmatpush2.msra.mxu0 %v4482
      %4771 = vmatprep.subr.mxu0 0.0
      %4772 = vmatpush2.msra.mxu0 %v4481
      %4773 = vmatprep.subr.mxu0 0.0
      %4774 = vmatpush2.msra.mxu0 %v4480
      %4775 = vmatprep.subr.mxu0 0.0
      %4776 = vmatpush2.msra.mxu0 %v4479
      %4777 = vmatprep.subr.mxu0 0.0
      %4778 = vmatpush2.msra.mxu0 %v4478
      %4779 = vmatprep.subr.mxu0 0.0
      %4780 = vmatpush2.msra.mxu0 %v4477
      %4781 = vmatprep.subr.mxu0 0.0
      %4782 = vmatpush2.msra.mxu0 %v4476
      %4783 = vmatprep.subr.mxu0 0.0
      %4784 = vmatpush2.msra.mxu0 %v4475
      %4785 = vmatprep.subr.mxu0 0.0
      %4786 = vmatpush2.msra.mxu0 %v4474
      %4787 = vmatprep.mubr.f32.mxu0 %v4360
      %4788 = vmatmul.mubr.f32.gmra.mxu0 %v4359
      %v4789 = vpop.f32.mrf.mxu0
      %v4790 = vadd.f32 %v4720, %v4789
      %v4791 = vpop.f32.mrf.mxu0
      %4792 = vdwg.mxu0
      %4793 = vmatprep.subr.mxu0 0.0
      %4794 = vmatpush1.msra.mxu0 %v4505
      %4795 = vmatprep.subr.mxu0 0.0
      %4796 = vmatpush1.msra.mxu0 %v4504
      %4797 = vmatprep.subr.mxu0 0.0
      %4798 = vmatpush1.msra.mxu0 %v4503
      %4799 = vmatprep.subr.mxu0 0.0
      %4800 = vmatpush1.msra.mxu0 %v4502
      %4801 = vmatprep.subr.mxu0 0.0
      %4802 = vmatpush1.msra.mxu0 %v4501
      %4803 = vmatprep.subr.mxu0 0.0
      %4804 = vmatpush1.msra.mxu0 %v4500
      %4805 = vmatprep.subr.mxu0 0.0
      %4806 = vmatpush1.msra.mxu0 %v4499
      %4807 = vmatprep.subr.mxu0 0.0
      %4808 = vmatpush1.msra.mxu0 %v4498
      %4809 = vmatprep.subr.mxu0 0.0
      %4810 = vmatpush1.msra.mxu0 %v4497
      %4811 = vmatprep.subr.mxu0 0.0
      %4812 = vmatpush1.msra.mxu0 %v4496
      %4813 = vmatprep.subr.mxu0 0.0
      %4814 = vmatpush1.msra.mxu0 %v4495
      %4815 = vmatprep.subr.mxu0 0.0
      %4816 = vmatpush1.msra.mxu0 %v4494
      %4817 = vmatprep.subr.mxu0 0.0
      %4818 = vmatpush1.msra.mxu0 %v4493
      %4819 = vmatprep.subr.mxu0 0.0
      %4820 = vmatpush1.msra.mxu0 %v4492
      %4821 = vmatprep.subr.mxu0 0.0
      %4822 = vmatpush1.msra.mxu0 %v4491
      %4823 = vmatprep.subr.mxu0 0.0
      %4824 = vmatpush1.msra.mxu0 %v4490
      %4825 = vmatprep.subr.mxu0 0.0
      %4826 = vmatpush2.msra.mxu0 0.0
      %4827 = vmatprep.subr.mxu0 0.0
      %4828 = vmatpush2.msra.mxu0 0.0
      %4829 = vmatprep.subr.mxu0 0.0
      %4830 = vmatpush2.msra.mxu0 0.0
      %4831 = vmatprep.subr.mxu0 0.0
      %4832 = vmatpush2.msra.mxu0 0.0
      %4833 = vmatprep.subr.mxu0 0.0
      %4834 = vmatpush2.msra.mxu0 0.0
      %4835 = vmatprep.subr.mxu0 0.0
      %4836 = vmatpush2.msra.mxu0 0.0
      %4837 = vmatprep.subr.mxu0 0.0
      %4838 = vmatpush2.msra.mxu0 0.0
      %4839 = vmatprep.subr.mxu0 0.0
      %4840 = vmatpush2.msra.mxu0 0.0
      %4841 = vmatprep.subr.mxu0 0.0
      %4842 = vmatpush2.msra.mxu0 0.0
      %4843 = vmatprep.subr.mxu0 0.0
      %4844 = vmatpush2.msra.mxu0 0.0
      %4845 = vmatprep.subr.mxu0 0.0
      %4846 = vmatpush2.msra.mxu0 0.0
      %4847 = vmatprep.subr.mxu0 0.0
      %4848 = vmatpush2.msra.mxu0 0.0
      %4849 = vmatprep.subr.mxu0 0.0
      %4850 = vmatpush2.msra.mxu0 0.0
      %4851 = vmatprep.subr.mxu0 0.0
      %4852 = vmatpush2.msra.mxu0 0.0
      %4853 = vmatprep.subr.mxu0 0.0
      %4854 = vmatpush2.msra.mxu0 0.0
      %4855 = vmatprep.subr.mxu0 0.0
      %4856 = vmatpush2.msra.mxu0 0.0
      %4857 = vmatprep.mubr.f32.mxu0 0.0
      %4858 = vmatmul.mubr.f32.gmra.mxu0 %v4361
      %v4859 = vpop.f32.mrf.mxu0
      %v4860 = vadd.f32 %v4790, %v4859
      %v4861 = vpop.f32.mrf.mxu0
      %4862 = vdwg.mxu0
      %v4863 = vmax.f32 %v4860, 0.0
      %4864 = vst [vmem:[%s664] sm:$0xff] %v4863
      %p4865 = scmp.lt.s32.totalorder %s32, 1
      %s4866 = scalar_select %p4865, %s32, 1
      %s4867 = smul.addr %s4866, 29
      %s4868 = smul.addr %s4867, 8
      %s4869 = scalar_lea.vmem %s17, %s4868
      %p4870 = scmp.lt.s32.totalorder %s32, 1
      %s4871 = scalar_select %p4870, %s32, 1
      %s4872 = smul.addr %s4871, 7
      %s4873 = smul.addr %s4872, 8
      %s4874 = scalar_lea.vmem %s18, %s4873
      %p4875 = scmp.lt.s32.totalorder %s32, 1
      %s4876 = scalar_select %p4875, %s32, 1
      %s4877 = smul.addr %s4876, 2
      %s4878 = smul.addr %s4877, 8
      %s4879 = scalar_lea.vmem %s19, %s4878
      %p4880 = scmp.lt.s32.totalorder %s32, 1
      %s4881 = scalar_select %p4880, %s32, 1
      %s4882 = smul.addr %s4881, 8
      %s4883 = scalar_lea.vmem %s20, %s4882
      // Predicated region
      $region89: #{_lambda_.1} parent=87 // pred_check
        %p4884 = pneg %p412
      $region90: #{_lambda_.1} parent=87 // pred_check_branch
        %4886 = sbr.rel (%p4884) target = $region92
      $region91: #{_lambda_.1} parent=87 // pred_region
        _
      $region92: #{_lambda_.1} parent=87 // pred_fallthru
        _
      // Predicated region
      $region93: #{_lambda_.1} parent=87 // pred_check
        %p4887 = pneg %p438
      $region94: #{_lambda_.1} parent=87 // pred_check_branch
        %4889 = sbr.rel (%p4887) target = $region96
      $region95: #{_lambda_.1} parent=87 // pred_region
        _
      $region96: #{_lambda_.1} parent=87 // pred_fallthru
        _
      // Predicated region
      $region97: #{_lambda_.1} parent=87 // pred_check
        %p4890 = pneg %p464
      $region98: #{_lambda_.1} parent=87 // pred_check_branch
        %4892 = sbr.rel (%p4890) target = $region100
      $region99: #{_lambda_.1} parent=87 // pred_region
        _
      $region100: #{_lambda_.1} parent=87 // pred_fallthru
        _
      // Predicated region
      $region101: #{_lambda_.1} parent=87 // pred_check
        %p4893 = pneg %p490
      $region102: #{_lambda_.1} parent=87 // pred_check_branch
        %4895 = sbr.rel (%p4893) target = $region104
      $region103: #{_lambda_.1} parent=87 // pred_region
        _
      $region104: #{_lambda_.1} parent=87 // pred_fallthru
        _
    $region88: #{_lambda_.1} parent=5 // pred_fallthru
      _
    %p4896 = scmp.le.s32.totalorder 2, %s27
    // Predicated region
    $region105: #{_lambda_.1} parent=5 // pred_check
      %p4897 = pneg %p4896
    $region106: #{_lambda_.1} parent=5 // pred_check_branch
      %4899 = sbr.rel (%p4897) target = $region108
    $region107: #{_lambda_.1} parent=5 // pred_region
      %s4900 = ssub.s32 %s27, 2
      // Predicated region
      $region109: #{_lambda_.1} parent=107 // pred_check
        %p4901 = pneg %p418
      $region110: #{_lambda_.1} parent=107 // pred_check_branch
        %4903 = sbr.rel (%p4901) target = $region112
      $region111: #{_lambda_.1} parent=107 // pred_region
        %p4904 = scmp.lt.s32.totalorder %s33, 1
        %s4905 = scalar_select %p4904, %s33, 1
        %s4906 = smul.addr %s4905, 29
        %s4907 = smul.addr %s4906, 8
        %s4908 = scalar_lea.vmem %s17, %s4907
      $region112: #{_lambda_.1} parent=107 // pred_fallthru
        _
      // Predicated region
      $region113: #{_lambda_.1} parent=107 // pred_check
        %p4909 = pneg %p444
      $region114: #{_lambda_.1} parent=107 // pred_check_branch
        %4911 = sbr.rel (%p4909) target = $region116
      $region115: #{_lambda_.1} parent=107 // pred_region
        %p4912 = scmp.lt.s32.totalorder %s33, 1
        %s4913 = scalar_select %p4912, %s33, 1
        %s4914 = smul.addr %s4913, 7
        %s4915 = smul.addr %s4914, 8
        %s4916 = scalar_lea.vmem %s18, %s4915
      $region116: #{_lambda_.1} parent=107 // pred_fallthru
        _
      // Predicated region
      $region117: #{_lambda_.1} parent=107 // pred_check
        %p4917 = pneg %p470
      $region118: #{_lambda_.1} parent=107 // pred_check_branch
        %4919 = sbr.rel (%p4917) target = $region120
      $region119: #{_lambda_.1} parent=107 // pred_region
        %p4920 = scmp.lt.s32.totalorder %s33, 1
        %s4921 = scalar_select %p4920, %s33, 1
        %s4922 = smul.addr %s4921, 2
        %s4923 = smul.addr %s4922, 8
        %s4924 = scalar_lea.vmem %s19, %s4923
      $region120: #{_lambda_.1} parent=107 // pred_fallthru
        _
      // Predicated region
      $region121: #{_lambda_.1} parent=107 // pred_check
        %p4925 = pneg %p496
      $region122: #{_lambda_.1} parent=107 // pred_check_branch
        %4927 = sbr.rel (%p4925) target = $region124
      $region123: #{_lambda_.1} parent=107 // pred_region
        %p4928 = scmp.lt.s32.totalorder %s33, 1
        %s4929 = scalar_select %p4928, %s33, 1
        %s4930 = smul.addr %s4929, 8
        %s4931 = scalar_lea.vmem %s20, %s4930
      $region124: #{_lambda_.1} parent=107 // pred_fallthru
        _
    $region108: #{_lambda_.1} parent=5 // pred_fallthru
      _
  $region6: #{_lambda_.1} parent=0 // loop_footer
    %s31 = sadd.s32 1, %s27
  $region7: #{_lambda_.1} parent=0 // loop_footer_branch
    %26 = sbr.rel target = $region3
  $region8: #{_lambda_.1} parent=0 // loop_exit
    _

</llo_original>
